<compile_context>
chip_gen: v6e
topology: v6e:2x2x1
jax: 0.10.0
libtpu: 0.0.40
codegen_flags: <defaults>
</compile_context>

<pallas_src>
import jax
import jax.numpy as jnp
from jax.experimental import pallas as pl
from jax.experimental.pallas import tpu as pltpu

IMG_FEATS = 64 * 64 * 3       # 12288
LAB_FEATS = 12 + 10           # 22
H1, H2 = 512, 256
TK = 4096                     # K tile of the big layer-1 matmul -> 3 grid steps
                              # (bf16 weight tile = 4 MiB; ~9 MiB total VMEM,
                              #  fits default scoped limits on v5e/v6e/v7x)


def _disc_kernel(x_ref, w1_ref, lab_ref, wlab_ref, b1_ref,
                 w2_ref, b2_ref, w3_ref, b3_ref, o_ref, acc_ref):
    k = pl.program_id(0)

    @pl.when(k == 0)
    def _():
        # Seed the accumulator with the (tiny) label contribution + bias.
        acc_ref[...] = (
            jnp.dot(lab_ref[...].astype(jnp.bfloat16), wlab_ref[...],
                    preferred_element_type=jnp.float32)
            + b1_ref[...])

    # Streaming K-tile of the 12288 x 512 matmul (bf16 weights, f32 acc).
    acc_ref[...] += jnp.dot(x_ref[...].astype(jnp.bfloat16), w1_ref[...],
                            preferred_element_type=jnp.float32)

    @pl.when(k == pl.num_programs(0) - 1)
    def _():
        h1 = acc_ref[...]
        h1 = jnp.where(h1 >= 0.0, h1, 0.2 * h1)               # LeakyReLU(0.2)
        h2 = jnp.dot(h1.astype(jnp.bfloat16), w2_ref[...],
                     preferred_element_type=jnp.float32) + b2_ref[...]
        h2 = jnp.where(h2 >= 0.0, h2, 0.2 * h2)               # LeakyReLU(0.2)
        # 256 -> 1: broadcast-multiply + lane reduction (avoids a degenerate
        # N=1 MXU matmul); all in f32.
        h3 = jnp.sum(h2 * w3_ref[...], axis=-1, keepdims=True) + b3_ref[...]
        o_ref[...] = jax.nn.sigmoid(h3)


def init_discriminator_params(key):
    """PyTorch-default-style Linear init; weights stored bf16 for streaming."""
    def linear(k, fan_in, fan_out):
        kw, kb = jax.random.split(k)
        bound = 1.0 / (fan_in ** 0.5)
        w = jax.random.uniform(kw, (fan_in, fan_out), jnp.float32, -bound, bound)
        b = jax.random.uniform(kb, (fan_out,), jnp.float32, -bound, bound)
        return w, b

    k1, k2, k3 = jax.random.split(key, 3)
    w1, b1 = linear(k1, IMG_FEATS + LAB_FEATS, H1)
    w2, b2 = linear(k2, H1, H2)
    w3, b3 = linear(k3, H2, 1)

    return dict(
        w1_img=w1[:IMG_FEATS].astype(jnp.bfloat16),   # (12288, 512) bf16
        w1_lab=w1[IMG_FEATS:].astype(jnp.bfloat16),   # (22, 512)    bf16
        b1=b1.reshape(1, H1),                         # f32
        w2=w2.astype(jnp.bfloat16),                   # (512, 256)   bf16
        b2=b2.reshape(1, H2),                         # f32
        w3=w3.reshape(1, H2),                         # (1, 256) row, f32
        b3=b3.reshape(1, 1),                          # f32
    )


@jax.jit
def discriminator_forward(params, img, hair_label, eye_label):
    B = img.shape[0]
    x = img.reshape(B, IMG_FEATS)                              # torch .view(-1, 12288)
    lab = jnp.concatenate([hair_label, eye_label], axis=-1)    # (B, 22)

    # Pad batch to a multiple of 8 -> full-sublane activation tiles.
    B_pad = ((B + 7) // 8) * 8
    if B_pad != B:
        x = jnp.pad(x, ((0, B_pad - B), (0, 0)))
        lab = jnp.pad(lab, ((0, B_pad - B), (0, 0)))

    n_k = IMG_FEATS // TK
    w1, wlab = params["w1_img"], params["w1_lab"]
    b1, w2, b2 = params["b1"], params["w2"], params["b2"]
    w3, b3 = params["w3"], params["b3"]

    flops = 2 * B_pad * (IMG_FEATS * H1 + LAB_FEATS * H1 + H1 * H2 + H2)
    bytes_accessed = (w1.size * 2 + wlab.size * 2 + w2.size * 2
                      + (b1.size + b2.size + w3.size + b3.size) * 4
                      + x.size * 4 + lab.size * 4 + B_pad * 4)

    out = pl.pallas_call(
        _disc_kernel,
        out_shape=jax.ShapeDtypeStruct((B_pad, 1), jnp.float32),
        grid=(n_k,),
        in_specs=[
            pl.BlockSpec((B_pad, TK), lambda k: (0, k)),          # x image tile
            pl.BlockSpec((TK, H1), lambda k: (k, 0)),             # w1 image tile (bf16)
            pl.BlockSpec((B_pad, LAB_FEATS), lambda k: (0, 0)),   # labels (resident)
            pl.BlockSpec((LAB_FEATS, H1), lambda k: (0, 0)),      # w1 label slab (bf16)
            pl.BlockSpec((1, H1), lambda k: (0, 0)),              # b1
            pl.BlockSpec((H1, H2), lambda k: (0, 0)),             # w2 (bf16)
            pl.BlockSpec((1, H2), lambda k: (0, 0)),              # b2
            pl.BlockSpec((1, H2), lambda k: (0, 0)),              # w3 row (f32)
            pl.BlockSpec((1, 1), lambda k: (0, 0)),               # b3
        ],
        out_specs=pl.BlockSpec((B_pad, 1), lambda k: (0, 0)),
        scratch_shapes=[pltpu.VMEM((B_pad, H1), jnp.float32)],    # layer-1 accumulator
        compiler_params=pltpu.CompilerParams(
            dimension_semantics=("arbitrary",),                   # K is a reduction
            vmem_limit_bytes=32 * 1024 * 1024),
        cost_estimate=pl.CostEstimate(
            flops=flops, transcendentals=B_pad, bytes_accessed=bytes_accessed),
    )(x, w1, lab, wlab, b1, w2, b2, w3, b3)

    return out[:B]


if __name__ == "__main__":
    key = jax.random.PRNGKey(0)
    kp, ki, kh, ke = jax.random.split(key, 4)

    params = init_discriminator_params(kp)

    B = 4
    img = jax.random.uniform(ki, (B, 3, 64, 64), jnp.float32, -1.0, 1.0)
    hair_label = jax.nn.one_hot(
        jax.random.randint(kh, (B,), 0, 12), 12, dtype=jnp.float32)
    eye_label = jax.nn.one_hot(
        jax.random.randint(ke, (B,), 0, 10), 10, dtype=jnp.float32)

    v = discriminator_forward(params, img, hair_label, eye_label)
    v = jax.block_until_ready(v)

    # Pure-JAX reference (same bf16 weights upcast, f32 math) for sanity.
    def ref_forward(p, img_, hair_, eye_):
        x = jnp.concatenate([img_.reshape(img_.shape[0], -1), hair_, eye_], -1)
        w1_full = jnp.concatenate([p["w1_img"], p["w1_lab"]], 0).astype(jnp.float32)
        h = x @ w1_full + p["b1"]
        h = jnp.where(h >= 0.0, h, 0.2 * h)
        h = h @ p["w2"].astype(jnp.float32) + p["b2"]
        h = jnp.where(h >= 0.0, h, 0.2 * h)
        h = h @ p["w3"].T + p["b3"]
        return jax.nn.sigmoid(h)

    v_ref = ref_forward(params, img, hair_label, eye_label)

    assert v.shape == (B, 1), v.shape
    assert v.dtype == jnp.float32
    assert bool(jnp.all(jnp.isfinite(v)))
    assert bool(jnp.all((v >= 0.0) & (v <= 1.0)))          # sigmoid range
    assert bool(jnp.allclose(v, v_ref, atol=2e-2)), float(jnp.max(jnp.abs(v - v_ref)))
    print("KERNEL_OK")
</pallas_src>

<mosaic_0001>
module attributes {stable_mosaic.version = 11 : i64} {
  func.func @_disc_kernel(%arg0: i32, %arg1: memref<8x4096xf32, #tpu.memory_space<vmem>>, %arg2: memref<4096x512xbf16, #tpu.memory_space<vmem>>, %arg3: memref<8x22xf32, #tpu.memory_space<vmem>>, %arg4: memref<22x512xbf16, #tpu.memory_space<vmem>>, %arg5: memref<1x512xf32, #tpu.memory_space<vmem>>, %arg6: memref<512x256xbf16, #tpu.memory_space<vmem>>, %arg7: memref<1x256xf32, #tpu.memory_space<vmem>>, %arg8: memref<1x256xf32, #tpu.memory_space<vmem>>, %arg9: memref<1x1xf32, #tpu.memory_space<vmem>>, %arg10: memref<8x1xf32, #tpu.memory_space<vmem>>, %arg11: memref<8x512xf32, #tpu.memory_space<vmem>>) attributes {dimension_semantics = [#tpu.dimension_semantics<arbitrary>], iteration_bounds = array<i64: 3>, scalar_prefetch = 0 : i64, scratch_operands = 1 : i64, tpu.core_type = #tpu.core_type<tc>, window_params = [{transform_indices = @transform_0, window_bounds = array<i64: 8, 4096>}, {transform_indices = @transform_1, window_bounds = array<i64: 4096, 512>}, {pipeline_mode = #tpu.pipeline_mode<synchronous>, transform_indices = @transform_2, window_bounds = array<i64: 8, 22>}, {pipeline_mode = #tpu.pipeline_mode<synchronous>, transform_indices = @transform_3, window_bounds = array<i64: 22, 512>}, {pipeline_mode = #tpu.pipeline_mode<synchronous>, transform_indices = @transform_4, window_bounds = array<i64: 1, 512>}, {pipeline_mode = #tpu.pipeline_mode<synchronous>, transform_indices = @transform_5, window_bounds = array<i64: 512, 256>}, {pipeline_mode = #tpu.pipeline_mode<synchronous>, transform_indices = @transform_6, window_bounds = array<i64: 1, 256>}, {pipeline_mode = #tpu.pipeline_mode<synchronous>, transform_indices = @transform_7, window_bounds = array<i64: 1, 256>}, {pipeline_mode = #tpu.pipeline_mode<synchronous>, transform_indices = @transform_8, window_bounds = array<i64: 1, 1>}, {pipeline_mode = #tpu.pipeline_mode<synchronous>, transform_indices = @transform_9, window_bounds = array<i64: 8, 1>}]} {
    %c0_i32 = arith.constant 0 : i32
    %0 = arith.cmpi eq, %arg0, %c0_i32 : i32
    %1 = arith.extui %0 : i1 to i32
    %c0_i32_0 = arith.constant 0 : i32
    %2 = arith.cmpi ne, %1, %c0_i32_0 : i32
    scf.if %2 {
      %c0_9 = arith.constant 0 : index
      %c0_10 = arith.constant 0 : index
      %13 = vector.load %arg3[%c0_9, %c0_10] : memref<8x22xf32, #tpu.memory_space<vmem>>, vector<8x22xf32>
      %14 = arith.truncf %13 : vector<8x22xf32> to vector<8x22xbf16>
      %c0_11 = arith.constant 0 : index
      %c0_12 = arith.constant 0 : index
      %15 = vector.load %arg4[%c0_11, %c0_12] : memref<22x512xbf16, #tpu.memory_space<vmem>>, vector<22x512xbf16>
      %cst_13 = arith.constant dense<0.000000e+00> : vector<8x512xf32>
      %16 = tpu.matmul %14, %15, %cst_13 {dimension_numbers = #tpu.dot_dimension_numbers<[1], [0], [0], [1], [0, 0, 1, 1], [], []>} : vector<8x22xbf16>, vector<22x512xbf16>, vector<8x512xf32> -> vector<8x512xf32>
      %c0_14 = arith.constant 0 : index
      %c0_15 = arith.constant 0 : index
      %17 = vector.load %arg5[%c0_14, %c0_15] : memref<1x512xf32, #tpu.memory_space<vmem>>, vector<1x512xf32>
      %18 = vector.broadcast %17 : vector<1x512xf32> to vector<8x512xf32>
      %19 = arith.addf %16, %18 : vector<8x512xf32>
      %c0_16 = arith.constant 0 : index
      %c0_17 = arith.constant 0 : index
      %20 = vector.load %arg11[%c0_16, %c0_17] : memref<8x512xf32, #tpu.memory_space<vmem>>, vector<8x512xf32>
      tpu.vector_store %arg11[%c0_16, %c0_17], %19 {strides = array<i32>} : memref<8x512xf32, #tpu.memory_space<vmem>>, vector<8x512xf32>,
    } else {
    }
    %c0 = arith.constant 0 : index
    %c0_1 = arith.constant 0 : index
    %3 = vector.load %arg11[%c0, %c0_1] : memref<8x512xf32, #tpu.memory_space<vmem>>, vector<8x512xf32>
    %c0_2 = arith.constant 0 : index
    %c0_3 = arith.constant 0 : index
    %4 = vector.load %arg1[%c0_2, %c0_3] : memref<8x4096xf32, #tpu.memory_space<vmem>>, vector<8x4096xf32>
    %5 = arith.truncf %4 : vector<8x4096xf32> to vector<8x4096xbf16>
    %c0_4 = arith.constant 0 : index
    %c0_5 = arith.constant 0 : index
    %6 = vector.load %arg2[%c0_4, %c0_5] : memref<4096x512xbf16, #tpu.memory_space<vmem>>, vector<4096x512xbf16>
    %cst = arith.constant dense<0.000000e+00> : vector<8x512xf32>
    %7 = tpu.matmul %5, %6, %cst {dimension_numbers = #tpu.dot_dimension_numbers<[1], [0], [0], [1], [0, 0, 1, 1], [], []>} : vector<8x4096xbf16>, vector<4096x512xbf16>, vector<8x512xf32> -> vector<8x512xf32>
    %8 = arith.addf %3, %7 : vector<8x512xf32>
    %c0_6 = arith.constant 0 : index
    %c0_7 = arith.constant 0 : index
    %9 = vector.load %arg11[%c0_6, %c0_7] : memref<8x512xf32, #tpu.memory_space<vmem>>, vector<8x512xf32>
    tpu.vector_store %arg11[%c0_6, %c0_7], %8 {strides = array<i32>} : memref<8x512xf32, #tpu.memory_space<vmem>>, vector<8x512xf32>,
    %c2_i32 = arith.constant 2 : i32
    %10 = arith.cmpi eq, %arg0, %c2_i32 : i32
    %11 = arith.extui %10 : i1 to i32
    %c0_i32_8 = arith.constant 0 : i32
    %12 = arith.cmpi ne, %11, %c0_i32_8 : i32
    scf.if %12 {
      %c0_9 = arith.constant 0 : index
      %c0_10 = arith.constant 0 : index
      %13 = vector.load %arg11[%c0_9, %c0_10] : memref<8x512xf32, #tpu.memory_space<vmem>>, vector<8x512xf32>
      %cst_11 = arith.constant 0.000000e+00 : f32
      %14 = vector.broadcast %cst_11 : f32 to vector<8x512xf32>
      %15 = arith.cmpf oge, %13, %14 : vector<8x512xf32>
      %cst_12 = arith.constant 2.000000e-01 : f32
      %16 = vector.broadcast %cst_12 : f32 to vector<8x512xf32>
      %17 = arith.mulf %16, %13 : vector<8x512xf32>
      %18 = arith.select %15, %13, %17 : vector<8x512xi1>, vector<8x512xf32>
      %19 = arith.truncf %18 : vector<8x512xf32> to vector<8x512xbf16>
      %c0_13 = arith.constant 0 : index
      %c0_14 = arith.constant 0 : index
      %20 = vector.load %arg6[%c0_13, %c0_14] : memref<512x256xbf16, #tpu.memory_space<vmem>>, vector<512x256xbf16>
      %cst_15 = arith.constant dense<0.000000e+00> : vector<8x256xf32>
      %21 = tpu.matmul %19, %20, %cst_15 {dimension_numbers = #tpu.dot_dimension_numbers<[1], [0], [0], [1], [0, 0, 1, 1], [], []>} : vector<8x512xbf16>, vector<512x256xbf16>, vector<8x256xf32> -> vector<8x256xf32>
      %c0_16 = arith.constant 0 : index
      %c0_17 = arith.constant 0 : index
      %22 = vector.load %arg7[%c0_16, %c0_17] : memref<1x256xf32, #tpu.memory_space<vmem>>, vector<1x256xf32>
      %23 = vector.broadcast %22 : vector<1x256xf32> to vector<8x256xf32>
      %24 = arith.addf %21, %23 : vector<8x256xf32>
      %cst_18 = arith.constant 0.000000e+00 : f32
      %25 = vector.broadcast %cst_18 : f32 to vector<8x256xf32>
      %26 = arith.cmpf oge, %24, %25 : vector<8x256xf32>
      %cst_19 = arith.constant 2.000000e-01 : f32
      %27 = vector.broadcast %cst_19 : f32 to vector<8x256xf32>
      %28 = arith.mulf %27, %24 : vector<8x256xf32>
      %29 = arith.select %26, %24, %28 : vector<8x256xi1>, vector<8x256xf32>
      %c0_20 = arith.constant 0 : index
      %c0_21 = arith.constant 0 : index
      %30 = vector.load %arg8[%c0_20, %c0_21] : memref<1x256xf32, #tpu.memory_space<vmem>>, vector<1x256xf32>
      %31 = vector.broadcast %30 : vector<1x256xf32> to vector<8x256xf32>
      %32 = arith.mulf %29, %31 : vector<8x256xf32>
      %cst_22 = arith.constant dense<0.000000e+00> : vector<8xf32>
      %33 = vector.multi_reduction <add>, %32, %cst_22 [1] : vector<8x256xf32> to vector<8xf32>
      %34 = vector.shape_cast %33 : vector<8xf32> to vector<8x1xf32>
      %c0_23 = arith.constant 0 : index
      %c0_24 = arith.constant 0 : index
      %35 = vector.load %arg9[%c0_23, %c0_24] : memref<1x1xf32, #tpu.memory_space<vmem>>, vector<1x1xf32>
      %36 = vector.broadcast %35 : vector<1x1xf32> to vector<8x1xf32>
      %37 = arith.addf %34, %36 : vector<8x1xf32>
      %38 = arith.negf %37 : vector<8x1xf32>
      %39 = math.exp %38 : vector<8x1xf32>
      %cst_25 = arith.constant 1.000000e+00 : f32
      %40 = vector.broadcast %cst_25 : f32 to vector<8x1xf32>
      %41 = arith.addf %40, %39 : vector<8x1xf32>
      %42 = arith.divf %40, %41 : vector<8x1xf32>
      %c0_26 = arith.constant 0 : index
      %c0_27 = arith.constant 0 : index
      %43 = vector.load %arg10[%c0_26, %c0_27] : memref<8x1xf32, #tpu.memory_space<vmem>>, vector<8x1xf32>
      tpu.vector_store %arg10[%c0_26, %c0_27], %42 {strides = array<i32>} : memref<8x1xf32, #tpu.memory_space<vmem>>, vector<8x1xf32>,
    } else {
    }
    return
  }
  func.func @transform_0(%arg0: i32) -> (i32, i32) {
    %c0_i32 = arith.constant 0 : i32
    %c0_i32_0 = arith.constant 0 : i32
    return %c0_i32, %arg0 : i32, i32
  }
  func.func @transform_1(%arg0: i32) -> (i32, i32) {
    %c0_i32 = arith.constant 0 : i32
    %c0_i32_0 = arith.constant 0 : i32
    return %arg0, %c0_i32 : i32, i32
  }
  func.func @transform_2(%arg0: i32) -> (i32, i32) {
    %c0_i32 = arith.constant 0 : i32
    %c0_i32_0 = arith.constant 0 : i32
    %c0_i32_1 = arith.constant 0 : i32
    return %c0_i32, %c0_i32_0 : i32, i32
  }
  func.func @transform_3(%arg0: i32) -> (i32, i32) {
    %c0_i32 = arith.constant 0 : i32
    %c0_i32_0 = arith.constant 0 : i32
    %c0_i32_1 = arith.constant 0 : i32
    return %c0_i32, %c0_i32_0 : i32, i32
  }
  func.func @transform_4(%arg0: i32) -> (i32, i32) {
    %c0_i32 = arith.constant 0 : i32
    %c0_i32_0 = arith.constant 0 : i32
    %c0_i32_1 = arith.constant 0 : i32
    return %c0_i32, %c0_i32_0 : i32, i32
  }
  func.func @transform_5(%arg0: i32) -> (i32, i32) {
    %c0_i32 = arith.constant 0 : i32
    %c0_i32_0 = arith.constant 0 : i32
    %c0_i32_1 = arith.constant 0 : i32
    return %c0_i32, %c0_i32_0 : i32, i32
  }
  func.func @transform_6(%arg0: i32) -> (i32, i32) {
    %c0_i32 = arith.constant 0 : i32
    %c0_i32_0 = arith.constant 0 : i32
    %c0_i32_1 = arith.constant 0 : i32
    return %c0_i32, %c0_i32_0 : i32, i32
  }
  func.func @transform_7(%arg0: i32) -> (i32, i32) {
    %c0_i32 = arith.constant 0 : i32
    %c0_i32_0 = arith.constant 0 : i32
    %c0_i32_1 = arith.constant 0 : i32
    return %c0_i32, %c0_i32_0 : i32, i32
  }
  func.func @transform_8(%arg0: i32) -> (i32, i32) {
    %c0_i32 = arith.constant 0 : i32
    %c0_i32_0 = arith.constant 0 : i32
    %c0_i32_1 = arith.constant 0 : i32
    return %c0_i32, %c0_i32_0 : i32, i32
  }
  func.func @transform_9(%arg0: i32) -> (i32, i32) {
    %c0_i32 = arith.constant 0 : i32
    %c0_i32_0 = arith.constant 0 : i32
    %c0_i32_1 = arith.constant 0 : i32
    return %c0_i32, %c0_i32_0 : i32, i32
  }
}

</mosaic_0001>

<llo_original>
// kernel: discriminator_forward.1
$region0: #{discriminator_forward.1}
  #allocation0 [shape = 'u32[]', space=smem, size = 0x4, offset = 0x4, fixed_abs, tag = 'smem constant byte address 0x4 - core index']
  #allocation1 [shape = 'u32[144,128]{1,0:T(1,128)}', space=vmem, size = 0x12000, scoped, tag = 'internal scratch']
  #allocation2 [shape = 'f32[8,512]{1,0:T(8,128)}', space=vmem, size = 0x4000, scoped, tag = 'scratch operand']
  #allocation3 [shape = 'f32[1,1]{1,0:T(1,128)S(1)}', space=vmem, size = 0x200, scoped, tag = 'scoped memory for discriminator_forward.1']
  %s0 = inlined_call_operand.vmem [shape: f32[8,12288], index: 0, kind: input, shape index: {}]
  %s1 = inlined_call_operand.hbm [shape: bf16[12288,512], index: 1, kind: input, shape index: {}]
  %s2 = inlined_call_operand.vmem [shape: f32[8,22], index: 2, kind: input, shape index: {}]
  %s3 = inlined_call_operand.hbm [shape: bf16[22,512], index: 3, kind: input, shape index: {}]
  %s4 = inlined_call_operand.hbm [shape: f32[1,512], index: 4, kind: input, shape index: {}]
  %s5 = inlined_call_operand.hbm [shape: bf16[512,256], index: 5, kind: input, shape index: {}]
  %s6 = inlined_call_operand.hbm [shape: f32[1,256], index: 6, kind: input, shape index: {}]
  %s7 = inlined_call_operand.hbm [shape: f32[1,256], index: 7, kind: input, shape index: {}]
  %s8 = inlined_call_operand.<no memory space> [shape: f32[1,1], index: 8, kind: input, shape index: {}]
  %s9 = inlined_call_operand.vmem [shape: f32[8,1], index: 9, kind: output, shape index: {}]
  %s10 = sld [smem:[#allocation0]]
  $region101: #{discriminator_forward.1} parent=0
    _
  %s12 = ssub.s32 1, %s10
  %s13 = scalar_select 0, %s12, %s10
  %v14 = vstv %s8
  %15 = vst [vmem:[#allocation3] sm:$0x1] %v14
  $region1: #{discriminator_forward.1} parent=0
    #allocation4 [shape = 'u8[8388608]{0}', space=vmem, size = 0x800000, scoped, tag = 'input window, operand 1']
    #allocation5 [shape = 's32[2]{0}', space=sflag, size = 0x8, scoped, tag = 'scoped memory for discriminator_forward.1']
    #allocation6 [shape = 'u8[24576]{0}', space=vmem, size = 0x6000, scoped, tag = 'input window, operand 3, single buffered']
    #allocation7 [shape = 's32[1]{0}', space=sflag, size = 0x4, scoped, tag = 'scoped memory for discriminator_forward.1']
    #allocation8 [shape = 'u8[2048]{0}', space=vmem, size = 0x800, scoped, tag = 'input window, operand 4, single buffered']
    #allocation9 [shape = 'u8[262144]{0}', space=vmem, size = 0x40000, scoped, tag = 'input window, operand 5, single buffered']
    #allocation10 [shape = 's32[1]{0}', space=sflag, size = 0x4, scoped, tag = 'scoped memory for discriminator_forward.1']
    #allocation11 [shape = 'u8[1024]{0}', space=vmem, size = 0x400, scoped, tag = 'input window, operand 6, single buffered']
    #allocation12 [shape = 'u8[1024]{0}', space=vmem, size = 0x400, scoped, tag = 'input window, operand 7, single buffered']
    #allocation13 [shape = 's32[1]{0}', space=sflag, size = 0x4, scoped, tag = 'scoped memory for discriminator_forward.1']
    %16 = vsyncpa [#allocation5], 0
    %s17 = scalar_lea.sflag [#allocation5], 1
    %18 = vsyncpa %s17, 0
    %19 = vsyncpa [#allocation7], 0
    %20 = vsyncpa [#allocation10], 0
    %21 = vsyncpa [#allocation13], 0
    loop: start=0, step=1, limit=5
    $region2: #{discriminator_forward.1} parent=1 // loop_pre_header
      _
    $region3: #{discriminator_forward.1} parent=1 // loop_header
      %s23 = sphi 0, %s27
      %p24 = scmp.ge.s32.totalorder %s23, 5
      %s33 = sphi 0, %s35
      %s36 = sphi 0, %s33
      %s37 = sphi 0, %s36
      %s53 = sphi 0, %s37
      %s59 = sphi 0, %s61
      %s62 = sphi 0, %s59
      %s63 = sphi 0, %s62
      %s79 = sphi 0, %s63
      %s83 = sphi 0, %s83
      %s85 = sphi 0, %s83
      %s86 = sphi 0, %s85
      %s100 = sphi 0, %s86
      %s104 = sphi 0, %s104
      %s106 = sphi 0, %s104
      %s107 = sphi 0, %s106
      %s121 = sphi 0, %s107
      %s125 = sphi 0, %s125
      %s127 = sphi 0, %s125
      %s128 = sphi 0, %s127
      %s142 = sphi 0, %s128
      %s146 = sphi 0, %s146
      %s148 = sphi 0, %s146
      %s149 = sphi 0, %s148
      %s163 = sphi 0, %s149
      %s167 = sphi 0, %s167
      %s169 = sphi 0, %s167
      %s170 = sphi 0, %s169
      %s184 = sphi 0, %s170
      %s188 = sphi 0, %s188
      %s190 = sphi 0, %s188
      %s191 = sphi 0, %s190
      %s205 = sphi 0, %s191
      %s209 = sphi 0, %s209
      %s211 = sphi 0, %s209
      %s212 = sphi 0, %s211
      %s226 = sphi 0, %s212
      %s230 = sphi 0, %s230
      %s232 = sphi 0, %s230
      %s233 = sphi 0, %s232
      %s247 = sphi 0, %s233
    $region4: #{discriminator_forward.1} parent=1 // loop_header_branch
      %26 = sbr.rel (%p24) target = $region8
    $region5: #{discriminator_forward.1} parent=1 // loop_body
      %s28 = ssub.s32 %s23, 1
      %s29 = ssub.s32 %s23, 2
      %s30 = sadd.s32 %s23, 1
      %s31 = ssub.s32 %s23, %s30
      %p32 = scmp.eq.s32.totalorder %s31, 0
      %s34 = sadd.s32 %s33, 1
      %s35 = scalar_select %p32, %s33, %s34
      %p38 = pneg %p32
      %p39 = scmp.eq.s32.totalorder %s23, 2
      %p40 = por %p38, %p39
      %p41 = scmp.ne.s32.totalorder %s33, %s36
      %p42 = scmp.eq.s32.totalorder %s23, 0
      %p43 = por %p41, %p42
      %p44 = scmp.ne.s32.totalorder %s33, %s36
      %p45 = scmp.eq.s32.totalorder %s28, 2
      %p46 = por %p44, %p45
      %p47 = scmp.ne.s32.totalorder %s36, %s37
      %p48 = scmp.eq.s32.totalorder %s28, 0
      %p49 = por %p47, %p48
      %p50 = scmp.ne.s32.totalorder %s36, %s37
      %p51 = scmp.eq.s32.totalorder %s29, 2
      %p52 = por %p50, %p51
      %p54 = scmp.ne.s32.totalorder %s37, %s53
      %p55 = scmp.eq.s32.totalorder %s29, 0
      %p56 = por %p54, %p55
      %s57 = ssub.s32 %s23, %s30
      %p58 = scmp.eq.s32.totalorder %s57, 0
      %s60 = sadd.s32 %s59, 1
      %s61 = scalar_select %p58, %s59, %s60
      %p64 = pneg %p58
      %p65 = scmp.eq.s32.totalorder %s23, 2
      %p66 = por %p64, %p65
      %p67 = scmp.ne.s32.totalorder %s59, %s62
      %p68 = scmp.eq.s32.totalorder %s23, 0
      %p69 = por %p67, %p68
      %p70 = scmp.ne.s32.totalorder %s59, %s62
      %p71 = scmp.eq.s32.totalorder %s28, 2
      %p72 = por %p70, %p71
      %p73 = scmp.ne.s32.totalorder %s62, %s63
      %p74 = scmp.eq.s32.totalorder %s28, 0
      %p75 = por %p73, %p74
      %p76 = scmp.ne.s32.totalorder %s62, %s63
      %p77 = scmp.eq.s32.totalorder %s29, 2
      %p78 = por %p76, %p77
      %p80 = scmp.ne.s32.totalorder %s63, %s79
      %p81 = scmp.eq.s32.totalorder %s29, 0
      %p82 = por %p80, %p81
      %s84 = sadd.s32 %s83, 1
      %p87 = scmp.eq.s32.totalorder %s23, 2
      %p88 = scmp.ne.s32.totalorder %s83, %s85
      %p89 = scmp.eq.s32.totalorder %s23, 0
      %p90 = por %p88, %p89
      %p91 = scmp.ne.s32.totalorder %s83, %s85
      %p92 = scmp.eq.s32.totalorder %s28, 2
      %p93 = por %p91, %p92
      %p94 = scmp.ne.s32.totalorder %s85, %s86
      %p95 = scmp.eq.s32.totalorder %s28, 0
      %p96 = por %p94, %p95
      %p97 = scmp.ne.s32.totalorder %s85, %s86
      %p98 = scmp.eq.s32.totalorder %s29, 2
      %p99 = por %p97, %p98
      %p101 = scmp.ne.s32.totalorder %s86, %s100
      %p102 = scmp.eq.s32.totalorder %s29, 0
      %p103 = por %p101, %p102
      %s105 = sadd.s32 %s104, 1
      %p108 = scmp.eq.s32.totalorder %s23, 2
      %p109 = scmp.ne.s32.totalorder %s104, %s106
      %p110 = scmp.eq.s32.totalorder %s23, 0
      %p111 = por %p109, %p110
      %p112 = scmp.ne.s32.totalorder %s104, %s106
      %p113 = scmp.eq.s32.totalorder %s28, 2
      %p114 = por %p112, %p113
      %p115 = scmp.ne.s32.totalorder %s106, %s107
      %p116 = scmp.eq.s32.totalorder %s28, 0
      %p117 = por %p115, %p116
      %p118 = scmp.ne.s32.totalorder %s106, %s107
      %p119 = scmp.eq.s32.totalorder %s29, 2
      %p120 = por %p118, %p119
      %p122 = scmp.ne.s32.totalorder %s107, %s121
      %p123 = scmp.eq.s32.totalorder %s29, 0
      %p124 = por %p122, %p123
      %s126 = sadd.s32 %s125, 1
      %p129 = scmp.eq.s32.totalorder %s23, 2
      %p130 = scmp.ne.s32.totalorder %s125, %s127
      %p131 = scmp.eq.s32.totalorder %s23, 0
      %p132 = por %p130, %p131
      %p133 = scmp.ne.s32.totalorder %s125, %s127
      %p134 = scmp.eq.s32.totalorder %s28, 2
      %p135 = por %p133, %p134
      %p136 = scmp.ne.s32.totalorder %s127, %s128
      %p137 = scmp.eq.s32.totalorder %s28, 0
      %p138 = por %p136, %p137
      %p139 = scmp.ne.s32.totalorder %s127, %s128
      %p140 = scmp.eq.s32.totalorder %s29, 2
      %p141 = por %p139, %p140
      %p143 = scmp.ne.s32.totalorder %s128, %s142
      %p144 = scmp.eq.s32.totalorder %s29, 0
      %p145 = por %p143, %p144
      %s147 = sadd.s32 %s146, 1
      %p150 = scmp.eq.s32.totalorder %s23, 2
      %p151 = scmp.ne.s32.totalorder %s146, %s148
      %p152 = scmp.eq.s32.totalorder %s23, 0
      %p153 = por %p151, %p152
      %p154 = scmp.ne.s32.totalorder %s146, %s148
      %p155 = scmp.eq.s32.totalorder %s28, 2
      %p156 = por %p154, %p155
      %p157 = scmp.ne.s32.totalorder %s148, %s149
      %p158 = scmp.eq.s32.totalorder %s28, 0
      %p159 = por %p157, %p158
      %p160 = scmp.ne.s32.totalorder %s148, %s149
      %p161 = scmp.eq.s32.totalorder %s29, 2
      %p162 = por %p160, %p161
      %p164 = scmp.ne.s32.totalorder %s149, %s163
      %p165 = scmp.eq.s32.totalorder %s29, 0
      %p166 = por %p164, %p165
      %s168 = sadd.s32 %s167, 1
      %p171 = scmp.eq.s32.totalorder %s23, 2
      %p172 = scmp.ne.s32.totalorder %s167, %s169
      %p173 = scmp.eq.s32.totalorder %s23, 0
      %p174 = por %p172, %p173
      %p175 = scmp.ne.s32.totalorder %s167, %s169
      %p176 = scmp.eq.s32.totalorder %s28, 2
      %p177 = por %p175, %p176
      %p178 = scmp.ne.s32.totalorder %s169, %s170
      %p179 = scmp.eq.s32.totalorder %s28, 0
      %p180 = por %p178, %p179
      %p181 = scmp.ne.s32.totalorder %s169, %s170
      %p182 = scmp.eq.s32.totalorder %s29, 2
      %p183 = por %p181, %p182
      %p185 = scmp.ne.s32.totalorder %s170, %s184
      %p186 = scmp.eq.s32.totalorder %s29, 0
      %p187 = por %p185, %p186
      %s189 = sadd.s32 %s188, 1
      %p192 = scmp.eq.s32.totalorder %s23, 2
      %p193 = scmp.ne.s32.totalorder %s188, %s190
      %p194 = scmp.eq.s32.totalorder %s23, 0
      %p195 = por %p193, %p194
      %p196 = scmp.ne.s32.totalorder %s188, %s190
      %p197 = scmp.eq.s32.totalorder %s28, 2
      %p198 = por %p196, %p197
      %p199 = scmp.ne.s32.totalorder %s190, %s191
      %p200 = scmp.eq.s32.totalorder %s28, 0
      %p201 = por %p199, %p200
      %p202 = scmp.ne.s32.totalorder %s190, %s191
      %p203 = scmp.eq.s32.totalorder %s29, 2
      %p204 = por %p202, %p203
      %p206 = scmp.ne.s32.totalorder %s191, %s205
      %p207 = scmp.eq.s32.totalorder %s29, 0
      %p208 = por %p206, %p207
      %s210 = sadd.s32 %s209, 1
      %p213 = scmp.eq.s32.totalorder %s23, 2
      %p214 = scmp.ne.s32.totalorder %s209, %s211
      %p215 = scmp.eq.s32.totalorder %s23, 0
      %p216 = por %p214, %p215
      %p217 = scmp.ne.s32.totalorder %s209, %s211
      %p218 = scmp.eq.s32.totalorder %s28, 2
      %p219 = por %p217, %p218
      %p220 = scmp.ne.s32.totalorder %s211, %s212
      %p221 = scmp.eq.s32.totalorder %s28, 0
      %p222 = por %p220, %p221
      %p223 = scmp.ne.s32.totalorder %s211, %s212
      %p224 = scmp.eq.s32.totalorder %s29, 2
      %p225 = por %p223, %p224
      %p227 = scmp.ne.s32.totalorder %s212, %s226
      %p228 = scmp.eq.s32.totalorder %s29, 0
      %p229 = por %p227, %p228
      %s231 = sadd.s32 %s230, 1
      %p234 = scmp.eq.s32.totalorder %s23, 2
      %p235 = scmp.ne.s32.totalorder %s230, %s232
      %p236 = scmp.eq.s32.totalorder %s23, 0
      %p237 = por %p235, %p236
      %p238 = scmp.ne.s32.totalorder %s230, %s232
      %p239 = scmp.eq.s32.totalorder %s28, 2
      %p240 = por %p238, %p239
      %p241 = scmp.ne.s32.totalorder %s232, %s233
      %p242 = scmp.eq.s32.totalorder %s28, 0
      %p243 = por %p241, %p242
      %p244 = scmp.ne.s32.totalorder %s232, %s233
      %p245 = scmp.eq.s32.totalorder %s29, 2
      %p246 = por %p244, %p245
      %p248 = scmp.ne.s32.totalorder %s233, %s247
      %p249 = scmp.eq.s32.totalorder %s29, 0
      %p250 = por %p248, %p249
      %p251 = scmp.le.s32.totalorder 1, %s23
      %p252 = scmp.lt.s32.totalorder %s23, 4
      %p253 = pnand %p251, %p252
      %p254 = pneg %p253
      // Predicated region
      $region9: #{discriminator_forward.1} parent=5 // pred_check
        _
      $region10: #{discriminator_forward.1} parent=5 // pred_check_branch
        %256 = sbr.rel (%p253) target = $region12
      $region11: #{discriminator_forward.1} parent=5 // pred_region
        %s257 = ssub.s32 %s23, 1
        // Predicated region
        $region13: #{discriminator_forward.1} parent=11 // pred_check
          %p258 = pneg %p96
        $region14: #{discriminator_forward.1} parent=11 // pred_check_branch
          %260 = sbr.rel (%p258) target = $region16
        $region15: #{discriminator_forward.1} parent=11 // pred_region
          _
        $region16: #{discriminator_forward.1} parent=11 // pred_fallthru
          _
        // Predicated region
        $region17: #{discriminator_forward.1} parent=11 // pred_check
          %p261 = pneg %p117
        $region18: #{discriminator_forward.1} parent=11 // pred_check_branch
          %263 = sbr.rel (%p261) target = $region20
        $region19: #{discriminator_forward.1} parent=11 // pred_region
          %s265 = ssub.s32 768, 768
          %266 = vsyncadd [#allocation7], %s265
          %s267 = sshll.u32 [#allocation6], 4
          %s268 = int_to_ptr.vmem [resolvable:$true] %s267
          %273 = dma.hbm_to_vmem [thread:$0]  %s3, 768, %s268, [#allocation7], 256, 256, 16
        $region20: #{discriminator_forward.1} parent=11 // pred_fallthru
          _
        // Predicated region
        $region21: #{discriminator_forward.1} parent=11 // pred_check
          %p274 = pneg %p138
        $region22: #{discriminator_forward.1} parent=11 // pred_check_branch
          %276 = sbr.rel (%p274) target = $region24
        $region23: #{discriminator_forward.1} parent=11 // pred_region
          %s278 = ssub.s32 64, 64
          %279 = vsyncadd [#allocation7], %s278
          %s281 = sshll.u32 [#allocation8], 4
          %s282 = int_to_ptr.vmem [resolvable:$true] %s281
          %284 = dma.hbm_to_vmem [thread:$0]  %s4, 64, %s282, [#allocation7]
        $region24: #{discriminator_forward.1} parent=11 // pred_fallthru
          _
        // Predicated region
        $region25: #{discriminator_forward.1} parent=11 // pred_check
          %p285 = pneg %p159
        $region26: #{discriminator_forward.1} parent=11 // pred_check_branch
          %287 = sbr.rel (%p285) target = $region28
        $region27: #{discriminator_forward.1} parent=11 // pred_region
          %s289 = ssub.s32 8192, 8192
          %290 = vsyncadd [#allocation10], %s289
          %s291 = sshll.u32 [#allocation9], 4
          %s292 = int_to_ptr.vmem [resolvable:$true] %s291
          %297 = dma.hbm_to_vmem [thread:$0]  %s5, 8192, %s292, [#allocation10], 128, 128, 8
        $region28: #{discriminator_forward.1} parent=11 // pred_fallthru
          _
        // Predicated region
        $region29: #{discriminator_forward.1} parent=11 // pred_check
          %p298 = pneg %p180
        $region30: #{discriminator_forward.1} parent=11 // pred_check_branch
          %300 = sbr.rel (%p298) target = $region32
        $region31: #{discriminator_forward.1} parent=11 // pred_region
          %s302 = ssub.s32 32, 32
          %303 = vsyncadd [#allocation10], %s302
          %s305 = sshll.u32 [#allocation11], 4
          %s306 = int_to_ptr.vmem [resolvable:$true] %s305
          %308 = dma.hbm_to_vmem [thread:$0]  %s6, 32, %s306, [#allocation10]
        $region32: #{discriminator_forward.1} parent=11 // pred_fallthru
          _
        // Predicated region
        $region33: #{discriminator_forward.1} parent=11 // pred_check
          %p309 = pneg %p201
        $region34: #{discriminator_forward.1} parent=11 // pred_check_branch
          %311 = sbr.rel (%p309) target = $region36
        $region35: #{discriminator_forward.1} parent=11 // pred_region
          %s313 = ssub.s32 32, 32
          %314 = vsyncadd [#allocation13], %s313
          %s316 = sshll.u32 [#allocation12], 4
          %s317 = int_to_ptr.vmem [resolvable:$true] %s316
          %319 = dma.hbm_to_vmem [thread:$0]  %s7, 32, %s317, [#allocation13]
        $region36: #{discriminator_forward.1} parent=11 // pred_fallthru
          _
        // Predicated region
        $region37: #{discriminator_forward.1} parent=11 // pred_check
          %p320 = pneg %p222
        $region38: #{discriminator_forward.1} parent=11 // pred_check_branch
          %322 = sbr.rel (%p320) target = $region40
        $region39: #{discriminator_forward.1} parent=11 // pred_region
          _
        $region40: #{discriminator_forward.1} parent=11 // pred_fallthru
          _
      $region12: #{discriminator_forward.1} parent=5 // pred_fallthru
        _
      %p323 = scmp.lt.s32.totalorder %s23, 3
      // Predicated region
      $region41: #{discriminator_forward.1} parent=5 // pred_check
        %p324 = pneg %p323
      $region42: #{discriminator_forward.1} parent=5 // pred_check_branch
        %326 = sbr.rel (%p324) target = $region44
      $region43: #{discriminator_forward.1} parent=5 // pred_region
        // Predicated region
        $region45: #{discriminator_forward.1} parent=43 // pred_check
          %p327 = pneg %p43
        $region46: #{discriminator_forward.1} parent=43 // pred_check_branch
          %329 = sbr.rel (%p327) target = $region48
        $region47: #{discriminator_forward.1} parent=43 // pred_region
          %s330 = smul.u32 32, %s23
          %p331 = scmp.lt.s32.totalorder %s330, 95
          %s332 = scalar_select %p331, %s330, 95
          %s333 = smul.addr %s332, 8
          %s334 = scalar_lea.vmem %s0, %s333
          %s335 = smul.u32 32, %s23
        $region48: #{discriminator_forward.1} parent=43 // pred_fallthru
          _
        // Predicated region
        $region49: #{discriminator_forward.1} parent=43 // pred_check
          %p336 = pneg %p69
        $region50: #{discriminator_forward.1} parent=43 // pred_check_branch
          %338 = sbr.rel (%p336) target = $region52
        $region51: #{discriminator_forward.1} parent=43 // pred_region
          %s339 = sand.u32 %s59, 1
          %s340 = scalar_lea.sflag [#allocation5], %s339
          %s341 = sand.u32 %s59, 1
          %s342 = smul.addr %s341, 8192
          %s343 = scalar_lea.vmem [#allocation4], %s342
          %s344 = smul.u32 512, %s23
          %s346 = ssub.s32 131072, 131072
          %347 = vsyncadd %s340, %s346
          %s348 = smul.addr %s344, 4
          %s349 = smul.addr %s348, 64
          %s350 = scalar_lea.hbm %s1, %s349
          %s351 = sshll.u32 %s343, 4
          %s352 = int_to_ptr.vmem [resolvable:$true] %s351
          %357 = dma.hbm_to_vmem [thread:$0]  %s350, 131072, %s352, %s340, 256, 256, 16
        $region52: #{discriminator_forward.1} parent=43 // pred_fallthru
          _
      $region44: #{discriminator_forward.1} parent=5 // pred_fallthru
        _
      %p358 = scmp.le.s32.totalorder 1, %s23
      %p359 = scmp.lt.s32.totalorder %s23, 4
      %p360 = pnand %p358, %p359
      %p361 = pneg %p360
      // Predicated region
      $region53: #{discriminator_forward.1} parent=5 // pred_check
        _
      $region54: #{discriminator_forward.1} parent=5 // pred_check_branch
        %363 = sbr.rel (%p360) target = $region56
      $region55: #{discriminator_forward.1} parent=5 // pred_region
        %s364 = ssub.s32 %s23, 1
        %s365 = sand.u32 %s62, 1
        %s366 = scalar_lea.sflag [#allocation5], %s365
        %s367 = sand.u32 %s62, 1
        %s368 = smul.addr %s367, 8192
        %s369 = scalar_lea.vmem [#allocation4], %s368
        // Predicated region
        $region57: #{discriminator_forward.1} parent=55 // pred_check
          %p370 = pneg %p75
        $region58: #{discriminator_forward.1} parent=55 // pred_check_branch
          %372 = sbr.rel (%p370) target = $region60
        $region59: #{discriminator_forward.1} parent=55 // pred_region
          %373 = dma.done %s366, 131072
        $region60: #{discriminator_forward.1} parent=55 // pred_fallthru
          _
        // Predicated region
        $region61: #{discriminator_forward.1} parent=55 // pred_check
          %p374 = pneg %p117
        $region62: #{discriminator_forward.1} parent=55 // pred_check_branch
          %376 = sbr.rel (%p374) target = $region64
        $region63: #{discriminator_forward.1} parent=55 // pred_region
          %377 = dma.done [#allocation7], 768
        $region64: #{discriminator_forward.1} parent=55 // pred_fallthru
          _
        // Predicated region
        $region65: #{discriminator_forward.1} parent=55 // pred_check
          %p378 = pneg %p138
        $region66: #{discriminator_forward.1} parent=55 // pred_check_branch
          %380 = sbr.rel (%p378) target = $region68
        $region67: #{discriminator_forward.1} parent=55 // pred_region
          %381 = dma.done [#allocation7], 64
        $region68: #{discriminator_forward.1} parent=55 // pred_fallthru
          _
        // Predicated region
        $region69: #{discriminator_forward.1} parent=55 // pred_check
          %p382 = pneg %p159
        $region70: #{discriminator_forward.1} parent=55 // pred_check_branch
          %384 = sbr.rel (%p382) target = $region72
        $region71: #{discriminator_forward.1} parent=55 // pred_region
          %385 = dma.done [#allocation10], 8192
        $region72: #{discriminator_forward.1} parent=55 // pred_fallthru
          _
        // Predicated region
        $region73: #{discriminator_forward.1} parent=55 // pred_check
          %p386 = pneg %p180
        $region74: #{discriminator_forward.1} parent=55 // pred_check_branch
          %388 = sbr.rel (%p386) target = $region76
        $region75: #{discriminator_forward.1} parent=55 // pred_region
          %389 = dma.done [#allocation10], 32
        $region76: #{discriminator_forward.1} parent=55 // pred_fallthru
          _
        // Predicated region
        $region77: #{discriminator_forward.1} parent=55 // pred_check
          %p390 = pneg %p201
        $region78: #{discriminator_forward.1} parent=55 // pred_check_branch
          %392 = sbr.rel (%p390) target = $region80
        $region79: #{discriminator_forward.1} parent=55 // pred_region
          %393 = dma.done [#allocation13], 32
        $region80: #{discriminator_forward.1} parent=55 // pred_fallthru
          _
        %s394 = smul.u32 32, %s28
        %p395 = scmp.lt.s32.totalorder %s394, 95
        %s396 = scalar_select %p395, %s394, 95
        %s397 = smul.addr %s396, 8
        %s398 = scalar_lea.vmem %s0, %s397
        %p399 = pneg %p49
        %p400 = pneg %p46
        %s401 = sand.u32 %s62, 1
        %s402 = scalar_lea.sflag [#allocation5], %s401
        %s403 = sand.u32 %s62, 1
        %s404 = smul.addr %s403, 8192
        %s405 = scalar_lea.vmem [#allocation4], %s404
        %p406 = pneg %p75
        %p407 = pneg %p72
        %p408 = pneg %p96
        %p409 = pneg %p93
        %p410 = pneg %p117
        %p411 = pneg %p114
        %p412 = pneg %p138
        %p413 = pneg %p135
        %p414 = pneg %p159
        %p415 = pneg %p156
        %p416 = pneg %p180
        %p417 = pneg %p177
        %p418 = pneg %p201
        %p419 = pneg %p198
        %p420 = pneg %p222
        %p421 = pneg %p219
        %p422 = pneg %p243
        %p423 = pneg %p240
        %s424 = smul.u32 32, %s28
        %p425 = scmp.lt.s32.totalorder %s424, 95
        %s426 = scalar_select %p425, %s424, 95
        %s427 = smul.addr %s426, 8
        %s428 = scalar_lea.vmem %s0, %s427
        %s429 = smul.u32 32, %s28
        %s430 = smul.u32 512, %s28
        %p432 = scmp.eq.s32.totalorder %s28, 0
        // Predicated region
        $region81: #{discriminator_forward.1} parent=55 // pred_check
          %p433 = pneg %p432
        $region82: #{discriminator_forward.1} parent=55 // pred_check_branch
          %435 = sbr.rel (%p433) target = $region84
        $region83: #{discriminator_forward.1} parent=55 // pred_region
          %v436 = vld [vmem:[%s2] sm:$0xff]
          %v437 = vpack.c.bf16 %v436, %v436
          %v438 = vld [vmem:[#allocation6] sm:$0xff]
          %v439 = vld [vmem:[#allocation6 + $0x8] sm:$0xff]
          %v440 = vld [vmem:[#allocation6 + $0x10] sm:$0xff]
          %v441 = vld [vmem:[#allocation6 + $0x18] sm:$0xff]
          %v442 = vld [vmem:[#allocation6 + $0x20] sm:$0x77]
          %v443 = vld [vmem:[#allocation6 + $0x28] sm:$0x77]
          %v444 = vld [vmem:[#allocation8] sm:$0xf]
          %v446 = vlaneseq
          %v447 = vshrl.u32 %v446, 7
          %v448 = vsub.s32 0, %v447
          %v449 = vrot.slane %v444, %v448
          %v450 = vlaneseq
          %v451 = vshrl.u32 %v450, 7
          %v452 = vsub.s32 1, %v451
          %v453 = vrot.slane %v444, %v452
          %v454 = vlaneseq
          %v455 = vshrl.u32 %v454, 7
          %v456 = vsub.s32 2, %v455
          %v457 = vrot.slane %v444, %v456
          %v458 = vlaneseq
          %v459 = vshrl.u32 %v458, 7
          %v460 = vsub.s32 3, %v459
          %v461 = vrot.slane %v444, %v460
          %v472 = vunpack.c.l.b16 %v438
          %v473 = vunpack.c.h.b16 %v438
          %v474 = vunpack.c.l.b16 %v439
          %v475 = vunpack.c.h.b16 %v439
          %v476 = vunpack.c.l.b16 %v440
          %v477 = vunpack.c.h.b16 %v440
          %v478 = vunpack.c.l.b16 %v441
          %v479 = vunpack.c.h.b16 %v441
          %v480 = vunpack.c.l.b16 %v442
          %v481 = vunpack.c.h.b16 %v442
          %v482 = vunpack.c.l.b16 %v443
          %v483 = vunpack.c.h.b16 %v443
          %v484 = vpack.c.b16 %v476, %v472
          %v485 = vpack.c.b16 %v477, %v473
          %v486 = vpack.c.b16 %v478, %v474
          %v487 = vpack.c.b16 %v479, %v475
          %v488 = vpack.c.b16 %v480, %v480
          %v489 = vpack.c.b16 %v481, %v481
          %v490 = vpack.c.b16 %v482, %v482
          %v491 = vpack.c.b16 %v483, %v483
          %vm496 = vcmask 179200
          %v498 = vsel %vm496, %v437, 0
          %vm500 = vcmask 1042432
          %v502 = vsel %vm500, %v488, 0
          %v505 = vsel %vm500, %v489, 0
          %v508 = vsel %vm500, %v490, 0
          %v511 = vsel %vm500, %v491, 0
          %513 = vmatprep.subr.bf16.mxu0 0
          %514 = vmatpush1.bf16.msra.mxu0 0
          %515 = vmatprep.subr.bf16.mxu0 0
          %516 = vmatpush1.bf16.msra.mxu0 0
          %517 = vmatprep.subr.bf16.mxu0 0
          %518 = vmatpush1.bf16.msra.mxu0 0
          %519 = vmatprep.subr.bf16.mxu0 0
          %520 = vmatpush1.bf16.msra.mxu0 0
          %521 = vmatprep.subr.bf16.mxu0 0
          %522 = vmatpush1.bf16.msra.mxu0 0
          %523 = vmatprep.subr.bf16.mxu0 0
          %524 = vmatpush1.bf16.msra.mxu0 0
          %525 = vmatprep.subr.bf16.mxu0 %v505
          %526 = vmatpush1.bf16.msra.mxu0 %v502
          %527 = vmatprep.subr.bf16.mxu0 %v485
          %528 = vmatpush1.bf16.msra.mxu0 %v484
          %529 = vmatprep.subr.bf16.mxu0 0
          %530 = vmatpush2.bf16.msra.mxu0 0
          %531 = vmatprep.subr.bf16.mxu0 0
          %532 = vmatpush2.bf16.msra.mxu0 0
          %533 = vmatprep.subr.bf16.mxu0 0
          %534 = vmatpush2.bf16.msra.mxu0 0
          %535 = vmatprep.subr.bf16.mxu0 0
          %536 = vmatpush2.bf16.msra.mxu0 0
          %537 = vmatprep.subr.bf16.mxu0 0
          %538 = vmatpush2.bf16.msra.mxu0 0
          %539 = vmatprep.subr.bf16.mxu0 0
          %540 = vmatpush2.bf16.msra.mxu0 0
          %541 = vmatprep.subr.bf16.mxu0 0
          %542 = vmatpush2.bf16.msra.mxu0 0
          %543 = vmatprep.subr.bf16.mxu0 0
          %544 = vmatpush2.bf16.msra.mxu0 0
          %545 = vmatprep.mubr.bf16.mxu0 0
          %546 = vmatmul.mubr.bf16.gmra.mxu0 %v498
          %v547 = vpop.f32.mrf.mxu0
          %v548 = vadd.f32 %v449, %v547
          %v549 = vpop.f32.mrf.mxu0
          %v550 = vadd.f32 %v453, %v549
          %v551 = vpop.f32.mrf.mxu0
          %v552 = vpop.f32.mrf.mxu0
          %553 = vdwg.mxu0
          %554 = vmatprep.subr.bf16.mxu0 0
          %555 = vmatpush1.bf16.msra.mxu0 0
          %556 = vmatprep.subr.bf16.mxu0 0
          %557 = vmatpush1.bf16.msra.mxu0 0
          %558 = vmatprep.subr.bf16.mxu0 0
          %559 = vmatpush1.bf16.msra.mxu0 0
          %560 = vmatprep.subr.bf16.mxu0 0
          %561 = vmatpush1.bf16.msra.mxu0 0
          %562 = vmatprep.subr.bf16.mxu0 0
          %563 = vmatpush1.bf16.msra.mxu0 0
          %564 = vmatprep.subr.bf16.mxu0 0
          %565 = vmatpush1.bf16.msra.mxu0 0
          %566 = vmatprep.subr.bf16.mxu0 %v511
          %567 = vmatpush1.bf16.msra.mxu0 %v508
          %568 = vmatprep.subr.bf16.mxu0 %v487
          %569 = vmatpush1.bf16.msra.mxu0 %v486
          %570 = vmatprep.subr.bf16.mxu0 0
          %571 = vmatpush2.bf16.msra.mxu0 0
          %572 = vmatprep.subr.bf16.mxu0 0
          %573 = vmatpush2.bf16.msra.mxu0 0
          %574 = vmatprep.subr.bf16.mxu0 0
          %575 = vmatpush2.bf16.msra.mxu0 0
          %576 = vmatprep.subr.bf16.mxu0 0
          %577 = vmatpush2.bf16.msra.mxu0 0
          %578 = vmatprep.subr.bf16.mxu0 0
          %579 = vmatpush2.bf16.msra.mxu0 0
          %580 = vmatprep.subr.bf16.mxu0 0
          %581 = vmatpush2.bf16.msra.mxu0 0
          %582 = vmatprep.subr.bf16.mxu0 0
          %583 = vmatpush2.bf16.msra.mxu0 0
          %584 = vmatprep.subr.bf16.mxu0 0
          %585 = vmatpush2.bf16.msra.mxu0 0
          %586 = vmatprep.mubr.bf16.mxu0 0
          %587 = vmatmul.mubr.bf16.gmra.mxu0 %v498
          %v588 = vpop.f32.mrf.mxu0
          %v589 = vadd.f32 %v457, %v588
          %v590 = vpop.f32.mrf.mxu0
          %v591 = vadd.f32 %v461, %v590
          %v592 = vpop.f32.mrf.mxu0
          %v593 = vpop.f32.mrf.mxu0
          %594 = vdwg.mxu0
          %595 = vst [vmem:[#allocation2] sm:$0xff] %v548
          %596 = vst [vmem:[#allocation2 + $0x8] sm:$0xff] %v550
          %597 = vst [vmem:[#allocation2 + $0x10] sm:$0xff] %v589
          %598 = vst [vmem:[#allocation2 + $0x18] sm:$0xff] %v591
        $region84: #{discriminator_forward.1} parent=55 // pred_fallthru
          _
        %v599 = vld [vmem:[#allocation2] sm:$0xff]
        %v600 = vld [vmem:[#allocation2 + $0x8] sm:$0xff]
        %v601 = vld [vmem:[#allocation2 + $0x10] sm:$0xff]
        %v602 = vld [vmem:[#allocation2 + $0x18] sm:$0xff]
        %v603 = vld [vmem:[%s428] sm:$0xff]
        %v604 = vld [vmem:[%s428 + $0x8] sm:$0xff]
        %v605 = vld [vmem:[%s428 + $0x10] sm:$0xff]
        %v606 = vld [vmem:[%s428 + $0x18] sm:$0xff]
        %v607 = vld [vmem:[%s428 + $0x20] sm:$0xff]
        %v608 = vld [vmem:[%s428 + $0x28] sm:$0xff]
        %v609 = vld [vmem:[%s428 + $0x30] sm:$0xff]
        %v610 = vld [vmem:[%s428 + $0x38] sm:$0xff]
        %v611 = vld [vmem:[%s428 + $0x40] sm:$0xff]
        %v612 = vld [vmem:[%s428 + $0x48] sm:$0xff]
        %v613 = vld [vmem:[%s428 + $0x50] sm:$0xff]
        %v614 = vld [vmem:[%s428 + $0x58] sm:$0xff]
        %v615 = vld [vmem:[%s428 + $0x60] sm:$0xff]
        %v616 = vld [vmem:[%s428 + $0x68] sm:$0xff]
        %v617 = vld [vmem:[%s428 + $0x70] sm:$0xff]
        %v618 = vld [vmem:[%s428 + $0x78] sm:$0xff]
        %v619 = vld [vmem:[%s428 + $0x80] sm:$0xff]
        %v620 = vld [vmem:[%s428 + $0x88] sm:$0xff]
        %v621 = vld [vmem:[%s428 + $0x90] sm:$0xff]
        %v622 = vld [vmem:[%s428 + $0x98] sm:$0xff]
        %v623 = vld [vmem:[%s428 + $0xa0] sm:$0xff]
        %v624 = vld [vmem:[%s428 + $0xa8] sm:$0xff]
        %v625 = vld [vmem:[%s428 + $0xb0] sm:$0xff]
        %v626 = vld [vmem:[%s428 + $0xb8] sm:$0xff]
        %v627 = vld [vmem:[%s428 + $0xc0] sm:$0xff]
        %v628 = vld [vmem:[%s428 + $0xc8] sm:$0xff]
        %v629 = vld [vmem:[%s428 + $0xd0] sm:$0xff]
        %v630 = vld [vmem:[%s428 + $0xd8] sm:$0xff]
        %v631 = vld [vmem:[%s428 + $0xe0] sm:$0xff]
        %v632 = vld [vmem:[%s428 + $0xe8] sm:$0xff]
        %v633 = vld [vmem:[%s428 + $0xf0] sm:$0xff]
        %v634 = vld [vmem:[%s428 + $0xf8] sm:$0xff]
        %v635 = vpack.c.bf16 %v603, %v603
        %v636 = vpack.c.bf16 %v604, %v604
        %v637 = vpack.c.bf16 %v605, %v605
        %v638 = vpack.c.bf16 %v606, %v606
        %v639 = vpack.c.bf16 %v607, %v607
        %v640 = vpack.c.bf16 %v608, %v608
        %v641 = vpack.c.bf16 %v609, %v609
        %v642 = vpack.c.bf16 %v610, %v610
        %v643 = vpack.c.bf16 %v611, %v611
        %v644 = vpack.c.bf16 %v612, %v612
        %v645 = vpack.c.bf16 %v613, %v613
        %v646 = vpack.c.bf16 %v614, %v614
        %v647 = vpack.c.bf16 %v615, %v615
        %v648 = vpack.c.bf16 %v616, %v616
        %v649 = vpack.c.bf16 %v617, %v617
        %v650 = vpack.c.bf16 %v618, %v618
        %v651 = vpack.c.bf16 %v619, %v619
        %v652 = vpack.c.bf16 %v620, %v620
        %v653 = vpack.c.bf16 %v621, %v621
        %v654 = vpack.c.bf16 %v622, %v622
        %v655 = vpack.c.bf16 %v623, %v623
        %v656 = vpack.c.bf16 %v624, %v624
        %v657 = vpack.c.bf16 %v625, %v625
        %v658 = vpack.c.bf16 %v626, %v626
        %v659 = vpack.c.bf16 %v627, %v627
        %v660 = vpack.c.bf16 %v628, %v628
        %v661 = vpack.c.bf16 %v629, %v629
        %v662 = vpack.c.bf16 %v630, %v630
        %v663 = vpack.c.bf16 %v631, %v631
        %v664 = vpack.c.bf16 %v632, %v632
        %v665 = vpack.c.bf16 %v633, %v633
        %v666 = vpack.c.bf16 %v634, %v634
        %v667 = vld [vmem:[%s369] sm:$0xff]
        %v668 = vld [vmem:[%s369 + $0x8] sm:$0xff]
        %v669 = vld [vmem:[%s369 + $0x10] sm:$0xff]
        %v670 = vld [vmem:[%s369 + $0x18] sm:$0xff]
        %v671 = vld [vmem:[%s369 + $0x20] sm:$0xff]
        %v672 = vld [vmem:[%s369 + $0x28] sm:$0xff]
        %v673 = vld [vmem:[%s369 + $0x30] sm:$0xff]
        %v674 = vld [vmem:[%s369 + $0x38] sm:$0xff]
        %v675 = vld [vmem:[%s369 + $0x40] sm:$0xff]
        %v676 = vld [vmem:[%s369 + $0x48] sm:$0xff]
        %v677 = vld [vmem:[%s369 + $0x50] sm:$0xff]
        %v678 = vld [vmem:[%s369 + $0x58] sm:$0xff]
        %v679 = vld [vmem:[%s369 + $0x60] sm:$0xff]
        %v680 = vld [vmem:[%s369 + $0x68] sm:$0xff]
        %v681 = vld [vmem:[%s369 + $0x70] sm:$0xff]
        %v682 = vld [vmem:[%s369 + $0x78] sm:$0xff]
        %v683 = vld [vmem:[%s369 + $0x80] sm:$0xff]
        %v684 = vld [vmem:[%s369 + $0x88] sm:$0xff]
        %v685 = vld [vmem:[%s369 + $0x90] sm:$0xff]
        %v686 = vld [vmem:[%s369 + $0x98] sm:$0xff]
        %v687 = vld [vmem:[%s369 + $0xa0] sm:$0xff]
        %v688 = vld [vmem:[%s369 + $0xa8] sm:$0xff]
        %v689 = vld [vmem:[%s369 + $0xb0] sm:$0xff]
        %v690 = vld [vmem:[%s369 + $0xb8] sm:$0xff]
        %v691 = vld [vmem:[%s369 + $0xc0] sm:$0xff]
        %v692 = vld [vmem:[%s369 + $0xc8] sm:$0xff]
        %v693 = vld [vmem:[%s369 + $0xd0] sm:$0xff]
        %v694 = vld [vmem:[%s369 + $0xd8] sm:$0xff]
        %v695 = vld [vmem:[%s369 + $0xe0] sm:$0xff]
        %v696 = vld [vmem:[%s369 + $0xe8] sm:$0xff]
        %v697 = vld [vmem:[%s369 + $0xf0] sm:$0xff]
        %v698 = vld [vmem:[%s369 + $0xf8] sm:$0xff]
        %v699 = vld [vmem:[%s369 + $0x100] sm:$0xff]
        %v700 = vld [vmem:[%s369 + $0x108] sm:$0xff]
        %v701 = vld [vmem:[%s369 + $0x110] sm:$0xff]
        %v702 = vld [vmem:[%s369 + $0x118] sm:$0xff]
        %v703 = vld [vmem:[%s369 + $0x120] sm:$0xff]
        %v704 = vld [vmem:[%s369 + $0x128] sm:$0xff]
        %v705 = vld [vmem:[%s369 + $0x130] sm:$0xff]
        %v706 = vld [vmem:[%s369 + $0x138] sm:$0xff]
        %v707 = vld [vmem:[%s369 + $0x140] sm:$0xff]
        %v708 = vld [vmem:[%s369 + $0x148] sm:$0xff]
        %v709 = vld [vmem:[%s369 + $0x150] sm:$0xff]
        %v710 = vld [vmem:[%s369 + $0x158] sm:$0xff]
        %v711 = vld [vmem:[%s369 + $0x160] sm:$0xff]
        %v712 = vld [vmem:[%s369 + $0x168] sm:$0xff]
        %v713 = vld [vmem:[%s369 + $0x170] sm:$0xff]
        %v714 = vld [vmem:[%s369 + $0x178] sm:$0xff]
        %v715 = vld [vmem:[%s369 + $0x180] sm:$0xff]
        %v716 = vld [vmem:[%s369 + $0x188] sm:$0xff]
        %v717 = vld [vmem:[%s369 + $0x190] sm:$0xff]
        %v718 = vld [vmem:[%s369 + $0x198] sm:$0xff]
        %v719 = vld [vmem:[%s369 + $0x1a0] sm:$0xff]
        %v720 = vld [vmem:[%s369 + $0x1a8] sm:$0xff]
        %v721 = vld [vmem:[%s369 + $0x1b0] sm:$0xff]
        %v722 = vld [vmem:[%s369 + $0x1b8] sm:$0xff]
        %v723 = vld [vmem:[%s369 + $0x1c0] sm:$0xff]
        %v724 = vld [vmem:[%s369 + $0x1c8] sm:$0xff]
        %v725 = vld [vmem:[%s369 + $0x1d0] sm:$0xff]
        %v726 = vld [vmem:[%s369 + $0x1d8] sm:$0xff]
        %v727 = vld [vmem:[%s369 + $0x1e0] sm:$0xff]
        %v728 = vld [vmem:[%s369 + $0x1e8] sm:$0xff]
        %v729 = vld [vmem:[%s369 + $0x1f0] sm:$0xff]
        %v730 = vld [vmem:[%s369 + $0x1f8] sm:$0xff]
        %v731 = vld [vmem:[%s369 + $0x200] sm:$0xff]
        %v732 = vld [vmem:[%s369 + $0x208] sm:$0xff]
        %v733 = vld [vmem:[%s369 + $0x210] sm:$0xff]
        %v734 = vld [vmem:[%s369 + $0x218] sm:$0xff]
        %v735 = vld [vmem:[%s369 + $0x220] sm:$0xff]
        %v736 = vld [vmem:[%s369 + $0x228] sm:$0xff]
        %v737 = vld [vmem:[%s369 + $0x230] sm:$0xff]
        %v738 = vld [vmem:[%s369 + $0x238] sm:$0xff]
        %v739 = vld [vmem:[%s369 + $0x240] sm:$0xff]
        %v740 = vld [vmem:[%s369 + $0x248] sm:$0xff]
        %v741 = vld [vmem:[%s369 + $0x250] sm:$0xff]
        %v742 = vld [vmem:[%s369 + $0x258] sm:$0xff]
        %v743 = vld [vmem:[%s369 + $0x260] sm:$0xff]
        %v744 = vld [vmem:[%s369 + $0x268] sm:$0xff]
        %v745 = vld [vmem:[%s369 + $0x270] sm:$0xff]
        %v746 = vld [vmem:[%s369 + $0x278] sm:$0xff]
        %v747 = vld [vmem:[%s369 + $0x280] sm:$0xff]
        %v748 = vld [vmem:[%s369 + $0x288] sm:$0xff]
        %v749 = vld [vmem:[%s369 + $0x290] sm:$0xff]
        %v750 = vld [vmem:[%s369 + $0x298] sm:$0xff]
        %v751 = vld [vmem:[%s369 + $0x2a0] sm:$0xff]
        %v752 = vld [vmem:[%s369 + $0x2a8] sm:$0xff]
        %v753 = vld [vmem:[%s369 + $0x2b0] sm:$0xff]
        %v754 = vld [vmem:[%s369 + $0x2b8] sm:$0xff]
        %v755 = vld [vmem:[%s369 + $0x2c0] sm:$0xff]
        %v756 = vld [vmem:[%s369 + $0x2c8] sm:$0xff]
        %v757 = vld [vmem:[%s369 + $0x2d0] sm:$0xff]
        %v758 = vld [vmem:[%s369 + $0x2d8] sm:$0xff]
        %v759 = vld [vmem:[%s369 + $0x2e0] sm:$0xff]
        %v760 = vld [vmem:[%s369 + $0x2e8] sm:$0xff]
        %v761 = vld [vmem:[%s369 + $0x2f0] sm:$0xff]
        %v762 = vld [vmem:[%s369 + $0x2f8] sm:$0xff]
        %v763 = vld [vmem:[%s369 + $0x300] sm:$0xff]
        %v764 = vld [vmem:[%s369 + $0x308] sm:$0xff]
        %v765 = vld [vmem:[%s369 + $0x310] sm:$0xff]
        %v766 = vld [vmem:[%s369 + $0x318] sm:$0xff]
        %v767 = vld [vmem:[%s369 + $0x320] sm:$0xff]
        %v768 = vld [vmem:[%s369 + $0x328] sm:$0xff]
        %v769 = vld [vmem:[%s369 + $0x330] sm:$0xff]
        %v770 = vld [vmem:[%s369 + $0x338] sm:$0xff]
        %v771 = vld [vmem:[%s369 + $0x340] sm:$0xff]
        %v772 = vld [vmem:[%s369 + $0x348] sm:$0xff]
        %v773 = vld [vmem:[%s369 + $0x350] sm:$0xff]
        %v774 = vld [vmem:[%s369 + $0x358] sm:$0xff]
        %v775 = vld [vmem:[%s369 + $0x360] sm:$0xff]
        %v776 = vld [vmem:[%s369 + $0x368] sm:$0xff]
        %v777 = vld [vmem:[%s369 + $0x370] sm:$0xff]
        %v778 = vld [vmem:[%s369 + $0x378] sm:$0xff]
        %v779 = vld [vmem:[%s369 + $0x380] sm:$0xff]
        %v780 = vld [vmem:[%s369 + $0x388] sm:$0xff]
        %v781 = vld [vmem:[%s369 + $0x390] sm:$0xff]
        %v782 = vld [vmem:[%s369 + $0x398] sm:$0xff]
        %v783 = vld [vmem:[%s369 + $0x3a0] sm:$0xff]
        %v784 = vld [vmem:[%s369 + $0x3a8] sm:$0xff]
        %v785 = vld [vmem:[%s369 + $0x3b0] sm:$0xff]
        %v786 = vld [vmem:[%s369 + $0x3b8] sm:$0xff]
        %v787 = vld [vmem:[%s369 + $0x3c0] sm:$0xff]
        %v788 = vld [vmem:[%s369 + $0x3c8] sm:$0xff]
        %v789 = vld [vmem:[%s369 + $0x3d0] sm:$0xff]
        %v790 = vld [vmem:[%s369 + $0x3d8] sm:$0xff]
        %v791 = vld [vmem:[%s369 + $0x3e0] sm:$0xff]
        %v792 = vld [vmem:[%s369 + $0x3e8] sm:$0xff]
        %v793 = vld [vmem:[%s369 + $0x3f0] sm:$0xff]
        %v794 = vld [vmem:[%s369 + $0x3f8] sm:$0xff]
        %v795 = vld [vmem:[%s369 + $0x400] sm:$0xff]
        %v796 = vld [vmem:[%s369 + $0x408] sm:$0xff]
        %v797 = vld [vmem:[%s369 + $0x410] sm:$0xff]
        %v798 = vld [vmem:[%s369 + $0x418] sm:$0xff]
        %v799 = vld [vmem:[%s369 + $0x420] sm:$0xff]
        %v800 = vld [vmem:[%s369 + $0x428] sm:$0xff]
        %v801 = vld [vmem:[%s369 + $0x430] sm:$0xff]
        %v802 = vld [vmem:[%s369 + $0x438] sm:$0xff]
        %v803 = vld [vmem:[%s369 + $0x440] sm:$0xff]
        %v804 = vld [vmem:[%s369 + $0x448] sm:$0xff]
        %v805 = vld [vmem:[%s369 + $0x450] sm:$0xff]
        %v806 = vld [vmem:[%s369 + $0x458] sm:$0xff]
        %v807 = vld [vmem:[%s369 + $0x460] sm:$0xff]
        %v808 = vld [vmem:[%s369 + $0x468] sm:$0xff]
        %v809 = vld [vmem:[%s369 + $0x470] sm:$0xff]
        %v810 = vld [vmem:[%s369 + $0x478] sm:$0xff]
        %v811 = vld [vmem:[%s369 + $0x480] sm:$0xff]
        %v812 = vld [vmem:[%s369 + $0x488] sm:$0xff]
        %v813 = vld [vmem:[%s369 + $0x490] sm:$0xff]
        %v814 = vld [vmem:[%s369 + $0x498] sm:$0xff]
        %v815 = vld [vmem:[%s369 + $0x4a0] sm:$0xff]
        %v816 = vld [vmem:[%s369 + $0x4a8] sm:$0xff]
        %v817 = vld [vmem:[%s369 + $0x4b0] sm:$0xff]
        %v818 = vld [vmem:[%s369 + $0x4b8] sm:$0xff]
        %v819 = vld [vmem:[%s369 + $0x4c0] sm:$0xff]
        %v820 = vld [vmem:[%s369 + $0x4c8] sm:$0xff]
        %v821 = vld [vmem:[%s369 + $0x4d0] sm:$0xff]
        %v822 = vld [vmem:[%s369 + $0x4d8] sm:$0xff]
        %v823 = vld [vmem:[%s369 + $0x4e0] sm:$0xff]
        %v824 = vld [vmem:[%s369 + $0x4e8] sm:$0xff]
        %v825 = vld [vmem:[%s369 + $0x4f0] sm:$0xff]
        %v826 = vld [vmem:[%s369 + $0x4f8] sm:$0xff]
        %v827 = vld [vmem:[%s369 + $0x500] sm:$0xff]
        %v828 = vld [vmem:[%s369 + $0x508] sm:$0xff]
        %v829 = vld [vmem:[%s369 + $0x510] sm:$0xff]
        %v830 = vld [vmem:[%s369 + $0x518] sm:$0xff]
        %v831 = vld [vmem:[%s369 + $0x520] sm:$0xff]
        %v832 = vld [vmem:[%s369 + $0x528] sm:$0xff]
        %v833 = vld [vmem:[%s369 + $0x530] sm:$0xff]
        %v834 = vld [vmem:[%s369 + $0x538] sm:$0xff]
        %v835 = vld [vmem:[%s369 + $0x540] sm:$0xff]
        %v836 = vld [vmem:[%s369 + $0x548] sm:$0xff]
        %v837 = vld [vmem:[%s369 + $0x550] sm:$0xff]
        %v838 = vld [vmem:[%s369 + $0x558] sm:$0xff]
        %v839 = vld [vmem:[%s369 + $0x560] sm:$0xff]
        %v840 = vld [vmem:[%s369 + $0x568] sm:$0xff]
        %v841 = vld [vmem:[%s369 + $0x570] sm:$0xff]
        %v842 = vld [vmem:[%s369 + $0x578] sm:$0xff]
        %v843 = vld [vmem:[%s369 + $0x580] sm:$0xff]
        %v844 = vld [vmem:[%s369 + $0x588] sm:$0xff]
        %v845 = vld [vmem:[%s369 + $0x590] sm:$0xff]
        %v846 = vld [vmem:[%s369 + $0x598] sm:$0xff]
        %v847 = vld [vmem:[%s369 + $0x5a0] sm:$0xff]
        %v848 = vld [vmem:[%s369 + $0x5a8] sm:$0xff]
        %v849 = vld [vmem:[%s369 + $0x5b0] sm:$0xff]
        %v850 = vld [vmem:[%s369 + $0x5b8] sm:$0xff]
        %v851 = vld [vmem:[%s369 + $0x5c0] sm:$0xff]
        %v852 = vld [vmem:[%s369 + $0x5c8] sm:$0xff]
        %v853 = vld [vmem:[%s369 + $0x5d0] sm:$0xff]
        %v854 = vld [vmem:[%s369 + $0x5d8] sm:$0xff]
        %v855 = vld [vmem:[%s369 + $0x5e0] sm:$0xff]
        %v856 = vld [vmem:[%s369 + $0x5e8] sm:$0xff]
        %v857 = vld [vmem:[%s369 + $0x5f0] sm:$0xff]
        %v858 = vld [vmem:[%s369 + $0x5f8] sm:$0xff]
        %v859 = vld [vmem:[%s369 + $0x600] sm:$0xff]
        %v860 = vld [vmem:[%s369 + $0x608] sm:$0xff]
        %v861 = vld [vmem:[%s369 + $0x610] sm:$0xff]
        %v862 = vld [vmem:[%s369 + $0x618] sm:$0xff]
        %v863 = vld [vmem:[%s369 + $0x620] sm:$0xff]
        %v864 = vld [vmem:[%s369 + $0x628] sm:$0xff]
        %v865 = vld [vmem:[%s369 + $0x630] sm:$0xff]
        %v866 = vld [vmem:[%s369 + $0x638] sm:$0xff]
        %v867 = vld [vmem:[%s369 + $0x640] sm:$0xff]
        %v868 = vld [vmem:[%s369 + $0x648] sm:$0xff]
        %v869 = vld [vmem:[%s369 + $0x650] sm:$0xff]
        %v870 = vld [vmem:[%s369 + $0x658] sm:$0xff]
        %v871 = vld [vmem:[%s369 + $0x660] sm:$0xff]
        %v872 = vld [vmem:[%s369 + $0x668] sm:$0xff]
        %v873 = vld [vmem:[%s369 + $0x670] sm:$0xff]
        %v874 = vld [vmem:[%s369 + $0x678] sm:$0xff]
        %v875 = vld [vmem:[%s369 + $0x680] sm:$0xff]
        %v876 = vld [vmem:[%s369 + $0x688] sm:$0xff]
        %v877 = vld [vmem:[%s369 + $0x690] sm:$0xff]
        %v878 = vld [vmem:[%s369 + $0x698] sm:$0xff]
        %v879 = vld [vmem:[%s369 + $0x6a0] sm:$0xff]
        %v880 = vld [vmem:[%s369 + $0x6a8] sm:$0xff]
        %v881 = vld [vmem:[%s369 + $0x6b0] sm:$0xff]
        %v882 = vld [vmem:[%s369 + $0x6b8] sm:$0xff]
        %v883 = vld [vmem:[%s369 + $0x6c0] sm:$0xff]
        %v884 = vld [vmem:[%s369 + $0x6c8] sm:$0xff]
        %v885 = vld [vmem:[%s369 + $0x6d0] sm:$0xff]
        %v886 = vld [vmem:[%s369 + $0x6d8] sm:$0xff]
        %v887 = vld [vmem:[%s369 + $0x6e0] sm:$0xff]
        %v888 = vld [vmem:[%s369 + $0x6e8] sm:$0xff]
        %v889 = vld [vmem:[%s369 + $0x6f0] sm:$0xff]
        %v890 = vld [vmem:[%s369 + $0x6f8] sm:$0xff]
        %v891 = vld [vmem:[%s369 + $0x700] sm:$0xff]
        %v892 = vld [vmem:[%s369 + $0x708] sm:$0xff]
        %v893 = vld [vmem:[%s369 + $0x710] sm:$0xff]
        %v894 = vld [vmem:[%s369 + $0x718] sm:$0xff]
        %v895 = vld [vmem:[%s369 + $0x720] sm:$0xff]
        %v896 = vld [vmem:[%s369 + $0x728] sm:$0xff]
        %v897 = vld [vmem:[%s369 + $0x730] sm:$0xff]
        %v898 = vld [vmem:[%s369 + $0x738] sm:$0xff]
        %v899 = vld [vmem:[%s369 + $0x740] sm:$0xff]
        %v900 = vld [vmem:[%s369 + $0x748] sm:$0xff]
        %v901 = vld [vmem:[%s369 + $0x750] sm:$0xff]
        %v902 = vld [vmem:[%s369 + $0x758] sm:$0xff]
        %v903 = vld [vmem:[%s369 + $0x760] sm:$0xff]
        %v904 = vld [vmem:[%s369 + $0x768] sm:$0xff]
        %v905 = vld [vmem:[%s369 + $0x770] sm:$0xff]
        %v906 = vld [vmem:[%s369 + $0x778] sm:$0xff]
        %v907 = vld [vmem:[%s369 + $0x780] sm:$0xff]
        %v908 = vld [vmem:[%s369 + $0x788] sm:$0xff]
        %v909 = vld [vmem:[%s369 + $0x790] sm:$0xff]
        %v910 = vld [vmem:[%s369 + $0x798] sm:$0xff]
        %v911 = vld [vmem:[%s369 + $0x7a0] sm:$0xff]
        %v912 = vld [vmem:[%s369 + $0x7a8] sm:$0xff]
        %v913 = vld [vmem:[%s369 + $0x7b0] sm:$0xff]
        %v914 = vld [vmem:[%s369 + $0x7b8] sm:$0xff]
        %v915 = vld [vmem:[%s369 + $0x7c0] sm:$0xff]
        %v916 = vld [vmem:[%s369 + $0x7c8] sm:$0xff]
        %v917 = vld [vmem:[%s369 + $0x7d0] sm:$0xff]
        %v918 = vld [vmem:[%s369 + $0x7d8] sm:$0xff]
        %v919 = vld [vmem:[%s369 + $0x7e0] sm:$0xff]
        %v920 = vld [vmem:[%s369 + $0x7e8] sm:$0xff]
        %v921 = vld [vmem:[%s369 + $0x7f0] sm:$0xff]
        %v922 = vld [vmem:[%s369 + $0x7f8] sm:$0xff]
        %v923 = vld [vmem:[%s369 + $0x800] sm:$0xff]
        %v924 = vld [vmem:[%s369 + $0x808] sm:$0xff]
        %v925 = vld [vmem:[%s369 + $0x810] sm:$0xff]
        %v926 = vld [vmem:[%s369 + $0x818] sm:$0xff]
        %v927 = vld [vmem:[%s369 + $0x820] sm:$0xff]
        %v928 = vld [vmem:[%s369 + $0x828] sm:$0xff]
        %v929 = vld [vmem:[%s369 + $0x830] sm:$0xff]
        %v930 = vld [vmem:[%s369 + $0x838] sm:$0xff]
        %v931 = vld [vmem:[%s369 + $0x840] sm:$0xff]
        %v932 = vld [vmem:[%s369 + $0x848] sm:$0xff]
        %v933 = vld [vmem:[%s369 + $0x850] sm:$0xff]
        %v934 = vld [vmem:[%s369 + $0x858] sm:$0xff]
        %v935 = vld [vmem:[%s369 + $0x860] sm:$0xff]
        %v936 = vld [vmem:[%s369 + $0x868] sm:$0xff]
        %v937 = vld [vmem:[%s369 + $0x870] sm:$0xff]
        %v938 = vld [vmem:[%s369 + $0x878] sm:$0xff]
        %v939 = vld [vmem:[%s369 + $0x880] sm:$0xff]
        %v940 = vld [vmem:[%s369 + $0x888] sm:$0xff]
        %v941 = vld [vmem:[%s369 + $0x890] sm:$0xff]
        %v942 = vld [vmem:[%s369 + $0x898] sm:$0xff]
        %v943 = vld [vmem:[%s369 + $0x8a0] sm:$0xff]
        %v944 = vld [vmem:[%s369 + $0x8a8] sm:$0xff]
        %v945 = vld [vmem:[%s369 + $0x8b0] sm:$0xff]
        %v946 = vld [vmem:[%s369 + $0x8b8] sm:$0xff]
        %v947 = vld [vmem:[%s369 + $0x8c0] sm:$0xff]
        %v948 = vld [vmem:[%s369 + $0x8c8] sm:$0xff]
        %v949 = vld [vmem:[%s369 + $0x8d0] sm:$0xff]
        %v950 = vld [vmem:[%s369 + $0x8d8] sm:$0xff]
        %v951 = vld [vmem:[%s369 + $0x8e0] sm:$0xff]
        %v952 = vld [vmem:[%s369 + $0x8e8] sm:$0xff]
        %v953 = vld [vmem:[%s369 + $0x8f0] sm:$0xff]
        %v954 = vld [vmem:[%s369 + $0x8f8] sm:$0xff]
        %v955 = vld [vmem:[%s369 + $0x900] sm:$0xff]
        %v956 = vld [vmem:[%s369 + $0x908] sm:$0xff]
        %v957 = vld [vmem:[%s369 + $0x910] sm:$0xff]
        %v958 = vld [vmem:[%s369 + $0x918] sm:$0xff]
        %v959 = vld [vmem:[%s369 + $0x920] sm:$0xff]
        %v960 = vld [vmem:[%s369 + $0x928] sm:$0xff]
        %v961 = vld [vmem:[%s369 + $0x930] sm:$0xff]
        %v962 = vld [vmem:[%s369 + $0x938] sm:$0xff]
        %v963 = vld [vmem:[%s369 + $0x940] sm:$0xff]
        %v964 = vld [vmem:[%s369 + $0x948] sm:$0xff]
        %v965 = vld [vmem:[%s369 + $0x950] sm:$0xff]
        %v966 = vld [vmem:[%s369 + $0x958] sm:$0xff]
        %v967 = vld [vmem:[%s369 + $0x960] sm:$0xff]
        %v968 = vld [vmem:[%s369 + $0x968] sm:$0xff]
        %v969 = vld [vmem:[%s369 + $0x970] sm:$0xff]
        %v970 = vld [vmem:[%s369 + $0x978] sm:$0xff]
        %v971 = vld [vmem:[%s369 + $0x980] sm:$0xff]
        %v972 = vld [vmem:[%s369 + $0x988] sm:$0xff]
        %v973 = vld [vmem:[%s369 + $0x990] sm:$0xff]
        %v974 = vld [vmem:[%s369 + $0x998] sm:$0xff]
        %v975 = vld [vmem:[%s369 + $0x9a0] sm:$0xff]
        %v976 = vld [vmem:[%s369 + $0x9a8] sm:$0xff]
        %v977 = vld [vmem:[%s369 + $0x9b0] sm:$0xff]
        %v978 = vld [vmem:[%s369 + $0x9b8] sm:$0xff]
        %v979 = vld [vmem:[%s369 + $0x9c0] sm:$0xff]
        %v980 = vld [vmem:[%s369 + $0x9c8] sm:$0xff]
        %v981 = vld [vmem:[%s369 + $0x9d0] sm:$0xff]
        %v982 = vld [vmem:[%s369 + $0x9d8] sm:$0xff]
        %v983 = vld [vmem:[%s369 + $0x9e0] sm:$0xff]
        %v984 = vld [vmem:[%s369 + $0x9e8] sm:$0xff]
        %v985 = vld [vmem:[%s369 + $0x9f0] sm:$0xff]
        %v986 = vld [vmem:[%s369 + $0x9f8] sm:$0xff]
        %v987 = vld [vmem:[%s369 + $0xa00] sm:$0xff]
        %v988 = vld [vmem:[%s369 + $0xa08] sm:$0xff]
        %v989 = vld [vmem:[%s369 + $0xa10] sm:$0xff]
        %v990 = vld [vmem:[%s369 + $0xa18] sm:$0xff]
        %v991 = vld [vmem:[%s369 + $0xa20] sm:$0xff]
        %v992 = vld [vmem:[%s369 + $0xa28] sm:$0xff]
        %v993 = vld [vmem:[%s369 + $0xa30] sm:$0xff]
        %v994 = vld [vmem:[%s369 + $0xa38] sm:$0xff]
        %v995 = vld [vmem:[%s369 + $0xa40] sm:$0xff]
        %v996 = vld [vmem:[%s369 + $0xa48] sm:$0xff]
        %v997 = vld [vmem:[%s369 + $0xa50] sm:$0xff]
        %v998 = vld [vmem:[%s369 + $0xa58] sm:$0xff]
        %v999 = vld [vmem:[%s369 + $0xa60] sm:$0xff]
        %v1000 = vld [vmem:[%s369 + $0xa68] sm:$0xff]
        %v1001 = vld [vmem:[%s369 + $0xa70] sm:$0xff]
        %v1002 = vld [vmem:[%s369 + $0xa78] sm:$0xff]
        %v1003 = vld [vmem:[%s369 + $0xa80] sm:$0xff]
        %v1004 = vld [vmem:[%s369 + $0xa88] sm:$0xff]
        %v1005 = vld [vmem:[%s369 + $0xa90] sm:$0xff]
        %v1006 = vld [vmem:[%s369 + $0xa98] sm:$0xff]
        %v1007 = vld [vmem:[%s369 + $0xaa0] sm:$0xff]
        %v1008 = vld [vmem:[%s369 + $0xaa8] sm:$0xff]
        %v1009 = vld [vmem:[%s369 + $0xab0] sm:$0xff]
        %v1010 = vld [vmem:[%s369 + $0xab8] sm:$0xff]
        %v1011 = vld [vmem:[%s369 + $0xac0] sm:$0xff]
        %v1012 = vld [vmem:[%s369 + $0xac8] sm:$0xff]
        %v1013 = vld [vmem:[%s369 + $0xad0] sm:$0xff]
        %v1014 = vld [vmem:[%s369 + $0xad8] sm:$0xff]
        %v1015 = vld [vmem:[%s369 + $0xae0] sm:$0xff]
        %v1016 = vld [vmem:[%s369 + $0xae8] sm:$0xff]
        %v1017 = vld [vmem:[%s369 + $0xaf0] sm:$0xff]
        %v1018 = vld [vmem:[%s369 + $0xaf8] sm:$0xff]
        %v1019 = vld [vmem:[%s369 + $0xb00] sm:$0xff]
        %v1020 = vld [vmem:[%s369 + $0xb08] sm:$0xff]
        %v1021 = vld [vmem:[%s369 + $0xb10] sm:$0xff]
        %v1022 = vld [vmem:[%s369 + $0xb18] sm:$0xff]
        %v1023 = vld [vmem:[%s369 + $0xb20] sm:$0xff]
        %v1024 = vld [vmem:[%s369 + $0xb28] sm:$0xff]
        %v1025 = vld [vmem:[%s369 + $0xb30] sm:$0xff]
        %v1026 = vld [vmem:[%s369 + $0xb38] sm:$0xff]
        %v1027 = vld [vmem:[%s369 + $0xb40] sm:$0xff]
        %v1028 = vld [vmem:[%s369 + $0xb48] sm:$0xff]
        %v1029 = vld [vmem:[%s369 + $0xb50] sm:$0xff]
        %v1030 = vld [vmem:[%s369 + $0xb58] sm:$0xff]
        %v1031 = vld [vmem:[%s369 + $0xb60] sm:$0xff]
        %v1032 = vld [vmem:[%s369 + $0xb68] sm:$0xff]
        %v1033 = vld [vmem:[%s369 + $0xb70] sm:$0xff]
        %v1034 = vld [vmem:[%s369 + $0xb78] sm:$0xff]
        %v1035 = vld [vmem:[%s369 + $0xb80] sm:$0xff]
        %v1036 = vld [vmem:[%s369 + $0xb88] sm:$0xff]
        %v1037 = vld [vmem:[%s369 + $0xb90] sm:$0xff]
        %v1038 = vld [vmem:[%s369 + $0xb98] sm:$0xff]
        %v1039 = vld [vmem:[%s369 + $0xba0] sm:$0xff]
        %v1040 = vld [vmem:[%s369 + $0xba8] sm:$0xff]
        %v1041 = vld [vmem:[%s369 + $0xbb0] sm:$0xff]
        %v1042 = vld [vmem:[%s369 + $0xbb8] sm:$0xff]
        %v1043 = vld [vmem:[%s369 + $0xbc0] sm:$0xff]
        %v1044 = vld [vmem:[%s369 + $0xbc8] sm:$0xff]
        %v1045 = vld [vmem:[%s369 + $0xbd0] sm:$0xff]
        %v1046 = vld [vmem:[%s369 + $0xbd8] sm:$0xff]
        %v1047 = vld [vmem:[%s369 + $0xbe0] sm:$0xff]
        %v1048 = vld [vmem:[%s369 + $0xbe8] sm:$0xff]
        %v1049 = vld [vmem:[%s369 + $0xbf0] sm:$0xff]
        %v1050 = vld [vmem:[%s369 + $0xbf8] sm:$0xff]
        %v1051 = vld [vmem:[%s369 + $0xc00] sm:$0xff]
        %v1052 = vld [vmem:[%s369 + $0xc08] sm:$0xff]
        %v1053 = vld [vmem:[%s369 + $0xc10] sm:$0xff]
        %v1054 = vld [vmem:[%s369 + $0xc18] sm:$0xff]
        %v1055 = vld [vmem:[%s369 + $0xc20] sm:$0xff]
        %v1056 = vld [vmem:[%s369 + $0xc28] sm:$0xff]
        %v1057 = vld [vmem:[%s369 + $0xc30] sm:$0xff]
        %v1058 = vld [vmem:[%s369 + $0xc38] sm:$0xff]
        %v1059 = vld [vmem:[%s369 + $0xc40] sm:$0xff]
        %v1060 = vld [vmem:[%s369 + $0xc48] sm:$0xff]
        %v1061 = vld [vmem:[%s369 + $0xc50] sm:$0xff]
        %v1062 = vld [vmem:[%s369 + $0xc58] sm:$0xff]
        %v1063 = vld [vmem:[%s369 + $0xc60] sm:$0xff]
        %v1064 = vld [vmem:[%s369 + $0xc68] sm:$0xff]
        %v1065 = vld [vmem:[%s369 + $0xc70] sm:$0xff]
        %v1066 = vld [vmem:[%s369 + $0xc78] sm:$0xff]
        %v1067 = vld [vmem:[%s369 + $0xc80] sm:$0xff]
        %v1068 = vld [vmem:[%s369 + $0xc88] sm:$0xff]
        %v1069 = vld [vmem:[%s369 + $0xc90] sm:$0xff]
        %v1070 = vld [vmem:[%s369 + $0xc98] sm:$0xff]
        %v1071 = vld [vmem:[%s369 + $0xca0] sm:$0xff]
        %v1072 = vld [vmem:[%s369 + $0xca8] sm:$0xff]
        %v1073 = vld [vmem:[%s369 + $0xcb0] sm:$0xff]
        %v1074 = vld [vmem:[%s369 + $0xcb8] sm:$0xff]
        %v1075 = vld [vmem:[%s369 + $0xcc0] sm:$0xff]
        %v1076 = vld [vmem:[%s369 + $0xcc8] sm:$0xff]
        %v1077 = vld [vmem:[%s369 + $0xcd0] sm:$0xff]
        %v1078 = vld [vmem:[%s369 + $0xcd8] sm:$0xff]
        %v1079 = vld [vmem:[%s369 + $0xce0] sm:$0xff]
        %v1080 = vld [vmem:[%s369 + $0xce8] sm:$0xff]
        %v1081 = vld [vmem:[%s369 + $0xcf0] sm:$0xff]
        %v1082 = vld [vmem:[%s369 + $0xcf8] sm:$0xff]
        %v1083 = vld [vmem:[%s369 + $0xd00] sm:$0xff]
        %v1084 = vld [vmem:[%s369 + $0xd08] sm:$0xff]
        %v1085 = vld [vmem:[%s369 + $0xd10] sm:$0xff]
        %v1086 = vld [vmem:[%s369 + $0xd18] sm:$0xff]
        %v1087 = vld [vmem:[%s369 + $0xd20] sm:$0xff]
        %v1088 = vld [vmem:[%s369 + $0xd28] sm:$0xff]
        %v1089 = vld [vmem:[%s369 + $0xd30] sm:$0xff]
        %v1090 = vld [vmem:[%s369 + $0xd38] sm:$0xff]
        %v1091 = vld [vmem:[%s369 + $0xd40] sm:$0xff]
        %v1092 = vld [vmem:[%s369 + $0xd48] sm:$0xff]
        %v1093 = vld [vmem:[%s369 + $0xd50] sm:$0xff]
        %v1094 = vld [vmem:[%s369 + $0xd58] sm:$0xff]
        %v1095 = vld [vmem:[%s369 + $0xd60] sm:$0xff]
        %v1096 = vld [vmem:[%s369 + $0xd68] sm:$0xff]
        %v1097 = vld [vmem:[%s369 + $0xd70] sm:$0xff]
        %v1098 = vld [vmem:[%s369 + $0xd78] sm:$0xff]
        %v1099 = vld [vmem:[%s369 + $0xd80] sm:$0xff]
        %v1100 = vld [vmem:[%s369 + $0xd88] sm:$0xff]
        %v1101 = vld [vmem:[%s369 + $0xd90] sm:$0xff]
        %v1102 = vld [vmem:[%s369 + $0xd98] sm:$0xff]
        %v1103 = vld [vmem:[%s369 + $0xda0] sm:$0xff]
        %v1104 = vld [vmem:[%s369 + $0xda8] sm:$0xff]
        %v1105 = vld [vmem:[%s369 + $0xdb0] sm:$0xff]
        %v1106 = vld [vmem:[%s369 + $0xdb8] sm:$0xff]
        %v1107 = vld [vmem:[%s369 + $0xdc0] sm:$0xff]
        %v1108 = vld [vmem:[%s369 + $0xdc8] sm:$0xff]
        %v1109 = vld [vmem:[%s369 + $0xdd0] sm:$0xff]
        %v1110 = vld [vmem:[%s369 + $0xdd8] sm:$0xff]
        %v1111 = vld [vmem:[%s369 + $0xde0] sm:$0xff]
        %v1112 = vld [vmem:[%s369 + $0xde8] sm:$0xff]
        %v1113 = vld [vmem:[%s369 + $0xdf0] sm:$0xff]
        %v1114 = vld [vmem:[%s369 + $0xdf8] sm:$0xff]
        %v1115 = vld [vmem:[%s369 + $0xe00] sm:$0xff]
        %v1116 = vld [vmem:[%s369 + $0xe08] sm:$0xff]
        %v1117 = vld [vmem:[%s369 + $0xe10] sm:$0xff]
        %v1118 = vld [vmem:[%s369 + $0xe18] sm:$0xff]
        %v1119 = vld [vmem:[%s369 + $0xe20] sm:$0xff]
        %v1120 = vld [vmem:[%s369 + $0xe28] sm:$0xff]
        %v1121 = vld [vmem:[%s369 + $0xe30] sm:$0xff]
        %v1122 = vld [vmem:[%s369 + $0xe38] sm:$0xff]
        %v1123 = vld [vmem:[%s369 + $0xe40] sm:$0xff]
        %v1124 = vld [vmem:[%s369 + $0xe48] sm:$0xff]
        %v1125 = vld [vmem:[%s369 + $0xe50] sm:$0xff]
        %v1126 = vld [vmem:[%s369 + $0xe58] sm:$0xff]
        %v1127 = vld [vmem:[%s369 + $0xe60] sm:$0xff]
        %v1128 = vld [vmem:[%s369 + $0xe68] sm:$0xff]
        %v1129 = vld [vmem:[%s369 + $0xe70] sm:$0xff]
        %v1130 = vld [vmem:[%s369 + $0xe78] sm:$0xff]
        %v1131 = vld [vmem:[%s369 + $0xe80] sm:$0xff]
        %v1132 = vld [vmem:[%s369 + $0xe88] sm:$0xff]
        %v1133 = vld [vmem:[%s369 + $0xe90] sm:$0xff]
        %v1134 = vld [vmem:[%s369 + $0xe98] sm:$0xff]
        %v1135 = vld [vmem:[%s369 + $0xea0] sm:$0xff]
        %v1136 = vld [vmem:[%s369 + $0xea8] sm:$0xff]
        %v1137 = vld [vmem:[%s369 + $0xeb0] sm:$0xff]
        %v1138 = vld [vmem:[%s369 + $0xeb8] sm:$0xff]
        %v1139 = vld [vmem:[%s369 + $0xec0] sm:$0xff]
        %v1140 = vld [vmem:[%s369 + $0xec8] sm:$0xff]
        %v1141 = vld [vmem:[%s369 + $0xed0] sm:$0xff]
        %v1142 = vld [vmem:[%s369 + $0xed8] sm:$0xff]
        %v1143 = vld [vmem:[%s369 + $0xee0] sm:$0xff]
        %v1144 = vld [vmem:[%s369 + $0xee8] sm:$0xff]
        %v1145 = vld [vmem:[%s369 + $0xef0] sm:$0xff]
        %v1146 = vld [vmem:[%s369 + $0xef8] sm:$0xff]
        %v1147 = vld [vmem:[%s369 + $0xf00] sm:$0xff]
        %v1148 = vld [vmem:[%s369 + $0xf08] sm:$0xff]
        %v1149 = vld [vmem:[%s369 + $0xf10] sm:$0xff]
        %v1150 = vld [vmem:[%s369 + $0xf18] sm:$0xff]
        %v1151 = vld [vmem:[%s369 + $0xf20] sm:$0xff]
        %v1152 = vld [vmem:[%s369 + $0xf28] sm:$0xff]
        %v1153 = vld [vmem:[%s369 + $0xf30] sm:$0xff]
        %v1154 = vld [vmem:[%s369 + $0xf38] sm:$0xff]
        %v1155 = vld [vmem:[%s369 + $0xf40] sm:$0xff]
        %v1156 = vld [vmem:[%s369 + $0xf48] sm:$0xff]
        %v1157 = vld [vmem:[%s369 + $0xf50] sm:$0xff]
        %v1158 = vld [vmem:[%s369 + $0xf58] sm:$0xff]
        %v1159 = vld [vmem:[%s369 + $0xf60] sm:$0xff]
        %v1160 = vld [vmem:[%s369 + $0xf68] sm:$0xff]
        %v1161 = vld [vmem:[%s369 + $0xf70] sm:$0xff]
        %v1162 = vld [vmem:[%s369 + $0xf78] sm:$0xff]
        %v1163 = vld [vmem:[%s369 + $0xf80] sm:$0xff]
        %v1164 = vld [vmem:[%s369 + $0xf88] sm:$0xff]
        %v1165 = vld [vmem:[%s369 + $0xf90] sm:$0xff]
        %v1166 = vld [vmem:[%s369 + $0xf98] sm:$0xff]
        %v1167 = vld [vmem:[%s369 + $0xfa0] sm:$0xff]
        %v1168 = vld [vmem:[%s369 + $0xfa8] sm:$0xff]
        %v1169 = vld [vmem:[%s369 + $0xfb0] sm:$0xff]
        %v1170 = vld [vmem:[%s369 + $0xfb8] sm:$0xff]
        %v1171 = vld [vmem:[%s369 + $0xfc0] sm:$0xff]
        %v1172 = vld [vmem:[%s369 + $0xfc8] sm:$0xff]
        %v1173 = vld [vmem:[%s369 + $0xfd0] sm:$0xff]
        %v1174 = vld [vmem:[%s369 + $0xfd8] sm:$0xff]
        %v1175 = vld [vmem:[%s369 + $0xfe0] sm:$0xff]
        %v1176 = vld [vmem:[%s369 + $0xfe8] sm:$0xff]
        %v1177 = vld [vmem:[%s369 + $0xff0] sm:$0xff]
        %v1178 = vld [vmem:[%s369 + $0xff8] sm:$0xff]
        %v1179 = vld [vmem:[%s369 + $0x1000] sm:$0xff]
        %v1180 = vld [vmem:[%s369 + $0x1008] sm:$0xff]
        %v1181 = vld [vmem:[%s369 + $0x1010] sm:$0xff]
        %v1182 = vld [vmem:[%s369 + $0x1018] sm:$0xff]
        %v1183 = vld [vmem:[%s369 + $0x1020] sm:$0xff]
        %v1184 = vld [vmem:[%s369 + $0x1028] sm:$0xff]
        %v1185 = vld [vmem:[%s369 + $0x1030] sm:$0xff]
        %v1186 = vld [vmem:[%s369 + $0x1038] sm:$0xff]
        %v1187 = vld [vmem:[%s369 + $0x1040] sm:$0xff]
        %v1188 = vld [vmem:[%s369 + $0x1048] sm:$0xff]
        %v1189 = vld [vmem:[%s369 + $0x1050] sm:$0xff]
        %v1190 = vld [vmem:[%s369 + $0x1058] sm:$0xff]
        %v1191 = vld [vmem:[%s369 + $0x1060] sm:$0xff]
        %v1192 = vld [vmem:[%s369 + $0x1068] sm:$0xff]
        %v1193 = vld [vmem:[%s369 + $0x1070] sm:$0xff]
        %v1194 = vld [vmem:[%s369 + $0x1078] sm:$0xff]
        %v1195 = vld [vmem:[%s369 + $0x1080] sm:$0xff]
        %v1196 = vld [vmem:[%s369 + $0x1088] sm:$0xff]
        %v1197 = vld [vmem:[%s369 + $0x1090] sm:$0xff]
        %v1198 = vld [vmem:[%s369 + $0x1098] sm:$0xff]
        %v1199 = vld [vmem:[%s369 + $0x10a0] sm:$0xff]
        %v1200 = vld [vmem:[%s369 + $0x10a8] sm:$0xff]
        %v1201 = vld [vmem:[%s369 + $0x10b0] sm:$0xff]
        %v1202 = vld [vmem:[%s369 + $0x10b8] sm:$0xff]
        %v1203 = vld [vmem:[%s369 + $0x10c0] sm:$0xff]
        %v1204 = vld [vmem:[%s369 + $0x10c8] sm:$0xff]
        %v1205 = vld [vmem:[%s369 + $0x10d0] sm:$0xff]
        %v1206 = vld [vmem:[%s369 + $0x10d8] sm:$0xff]
        %v1207 = vld [vmem:[%s369 + $0x10e0] sm:$0xff]
        %v1208 = vld [vmem:[%s369 + $0x10e8] sm:$0xff]
        %v1209 = vld [vmem:[%s369 + $0x10f0] sm:$0xff]
        %v1210 = vld [vmem:[%s369 + $0x10f8] sm:$0xff]
        %v1211 = vld [vmem:[%s369 + $0x1100] sm:$0xff]
        %v1212 = vld [vmem:[%s369 + $0x1108] sm:$0xff]
        %v1213 = vld [vmem:[%s369 + $0x1110] sm:$0xff]
        %v1214 = vld [vmem:[%s369 + $0x1118] sm:$0xff]
        %v1215 = vld [vmem:[%s369 + $0x1120] sm:$0xff]
        %v1216 = vld [vmem:[%s369 + $0x1128] sm:$0xff]
        %v1217 = vld [vmem:[%s369 + $0x1130] sm:$0xff]
        %v1218 = vld [vmem:[%s369 + $0x1138] sm:$0xff]
        %v1219 = vld [vmem:[%s369 + $0x1140] sm:$0xff]
        %v1220 = vld [vmem:[%s369 + $0x1148] sm:$0xff]
        %v1221 = vld [vmem:[%s369 + $0x1150] sm:$0xff]
        %v1222 = vld [vmem:[%s369 + $0x1158] sm:$0xff]
        %v1223 = vld [vmem:[%s369 + $0x1160] sm:$0xff]
        %v1224 = vld [vmem:[%s369 + $0x1168] sm:$0xff]
        %v1225 = vld [vmem:[%s369 + $0x1170] sm:$0xff]
        %v1226 = vld [vmem:[%s369 + $0x1178] sm:$0xff]
        %v1227 = vld [vmem:[%s369 + $0x1180] sm:$0xff]
        %v1228 = vld [vmem:[%s369 + $0x1188] sm:$0xff]
        %v1229 = vld [vmem:[%s369 + $0x1190] sm:$0xff]
        %v1230 = vld [vmem:[%s369 + $0x1198] sm:$0xff]
        %v1231 = vld [vmem:[%s369 + $0x11a0] sm:$0xff]
        %v1232 = vld [vmem:[%s369 + $0x11a8] sm:$0xff]
        %v1233 = vld [vmem:[%s369 + $0x11b0] sm:$0xff]
        %v1234 = vld [vmem:[%s369 + $0x11b8] sm:$0xff]
        %v1235 = vld [vmem:[%s369 + $0x11c0] sm:$0xff]
        %v1236 = vld [vmem:[%s369 + $0x11c8] sm:$0xff]
        %v1237 = vld [vmem:[%s369 + $0x11d0] sm:$0xff]
        %v1238 = vld [vmem:[%s369 + $0x11d8] sm:$0xff]
        %v1239 = vld [vmem:[%s369 + $0x11e0] sm:$0xff]
        %v1240 = vld [vmem:[%s369 + $0x11e8] sm:$0xff]
        %v1241 = vld [vmem:[%s369 + $0x11f0] sm:$0xff]
        %v1242 = vld [vmem:[%s369 + $0x11f8] sm:$0xff]
        %v1243 = vld [vmem:[%s369 + $0x1200] sm:$0xff]
        %v1244 = vld [vmem:[%s369 + $0x1208] sm:$0xff]
        %v1245 = vld [vmem:[%s369 + $0x1210] sm:$0xff]
        %v1246 = vld [vmem:[%s369 + $0x1218] sm:$0xff]
        %v1247 = vld [vmem:[%s369 + $0x1220] sm:$0xff]
        %v1248 = vld [vmem:[%s369 + $0x1228] sm:$0xff]
        %v1249 = vld [vmem:[%s369 + $0x1230] sm:$0xff]
        %v1250 = vld [vmem:[%s369 + $0x1238] sm:$0xff]
        %v1251 = vld [vmem:[%s369 + $0x1240] sm:$0xff]
        %v1252 = vld [vmem:[%s369 + $0x1248] sm:$0xff]
        %v1253 = vld [vmem:[%s369 + $0x1250] sm:$0xff]
        %v1254 = vld [vmem:[%s369 + $0x1258] sm:$0xff]
        %v1255 = vld [vmem:[%s369 + $0x1260] sm:$0xff]
        %v1256 = vld [vmem:[%s369 + $0x1268] sm:$0xff]
        %v1257 = vld [vmem:[%s369 + $0x1270] sm:$0xff]
        %v1258 = vld [vmem:[%s369 + $0x1278] sm:$0xff]
        %v1259 = vld [vmem:[%s369 + $0x1280] sm:$0xff]
        %v1260 = vld [vmem:[%s369 + $0x1288] sm:$0xff]
        %v1261 = vld [vmem:[%s369 + $0x1290] sm:$0xff]
        %v1262 = vld [vmem:[%s369 + $0x1298] sm:$0xff]
        %v1263 = vld [vmem:[%s369 + $0x12a0] sm:$0xff]
        %v1264 = vld [vmem:[%s369 + $0x12a8] sm:$0xff]
        %v1265 = vld [vmem:[%s369 + $0x12b0] sm:$0xff]
        %v1266 = vld [vmem:[%s369 + $0x12b8] sm:$0xff]
        %v1267 = vld [vmem:[%s369 + $0x12c0] sm:$0xff]
        %v1268 = vld [vmem:[%s369 + $0x12c8] sm:$0xff]
        %v1269 = vld [vmem:[%s369 + $0x12d0] sm:$0xff]
        %v1270 = vld [vmem:[%s369 + $0x12d8] sm:$0xff]
        %v1271 = vld [vmem:[%s369 + $0x12e0] sm:$0xff]
        %v1272 = vld [vmem:[%s369 + $0x12e8] sm:$0xff]
        %v1273 = vld [vmem:[%s369 + $0x12f0] sm:$0xff]
        %v1274 = vld [vmem:[%s369 + $0x12f8] sm:$0xff]
        %v1275 = vld [vmem:[%s369 + $0x1300] sm:$0xff]
        %v1276 = vld [vmem:[%s369 + $0x1308] sm:$0xff]
        %v1277 = vld [vmem:[%s369 + $0x1310] sm:$0xff]
        %v1278 = vld [vmem:[%s369 + $0x1318] sm:$0xff]
        %v1279 = vld [vmem:[%s369 + $0x1320] sm:$0xff]
        %v1280 = vld [vmem:[%s369 + $0x1328] sm:$0xff]
        %v1281 = vld [vmem:[%s369 + $0x1330] sm:$0xff]
        %v1282 = vld [vmem:[%s369 + $0x1338] sm:$0xff]
        %v1283 = vld [vmem:[%s369 + $0x1340] sm:$0xff]
        %v1284 = vld [vmem:[%s369 + $0x1348] sm:$0xff]
        %v1285 = vld [vmem:[%s369 + $0x1350] sm:$0xff]
        %v1286 = vld [vmem:[%s369 + $0x1358] sm:$0xff]
        %v1287 = vld [vmem:[%s369 + $0x1360] sm:$0xff]
        %v1288 = vld [vmem:[%s369 + $0x1368] sm:$0xff]
        %v1289 = vld [vmem:[%s369 + $0x1370] sm:$0xff]
        %v1290 = vld [vmem:[%s369 + $0x1378] sm:$0xff]
        %v1291 = vld [vmem:[%s369 + $0x1380] sm:$0xff]
        %v1292 = vld [vmem:[%s369 + $0x1388] sm:$0xff]
        %v1293 = vld [vmem:[%s369 + $0x1390] sm:$0xff]
        %v1294 = vld [vmem:[%s369 + $0x1398] sm:$0xff]
        %v1295 = vld [vmem:[%s369 + $0x13a0] sm:$0xff]
        %v1296 = vld [vmem:[%s369 + $0x13a8] sm:$0xff]
        %v1297 = vld [vmem:[%s369 + $0x13b0] sm:$0xff]
        %v1298 = vld [vmem:[%s369 + $0x13b8] sm:$0xff]
        %v1299 = vld [vmem:[%s369 + $0x13c0] sm:$0xff]
        %v1300 = vld [vmem:[%s369 + $0x13c8] sm:$0xff]
        %v1301 = vld [vmem:[%s369 + $0x13d0] sm:$0xff]
        %v1302 = vld [vmem:[%s369 + $0x13d8] sm:$0xff]
        %v1303 = vld [vmem:[%s369 + $0x13e0] sm:$0xff]
        %v1304 = vld [vmem:[%s369 + $0x13e8] sm:$0xff]
        %v1305 = vld [vmem:[%s369 + $0x13f0] sm:$0xff]
        %v1306 = vld [vmem:[%s369 + $0x13f8] sm:$0xff]
        %v1307 = vld [vmem:[%s369 + $0x1400] sm:$0xff]
        %v1308 = vld [vmem:[%s369 + $0x1408] sm:$0xff]
        %v1309 = vld [vmem:[%s369 + $0x1410] sm:$0xff]
        %v1310 = vld [vmem:[%s369 + $0x1418] sm:$0xff]
        %v1311 = vld [vmem:[%s369 + $0x1420] sm:$0xff]
        %v1312 = vld [vmem:[%s369 + $0x1428] sm:$0xff]
        %v1313 = vld [vmem:[%s369 + $0x1430] sm:$0xff]
        %v1314 = vld [vmem:[%s369 + $0x1438] sm:$0xff]
        %v1315 = vld [vmem:[%s369 + $0x1440] sm:$0xff]
        %v1316 = vld [vmem:[%s369 + $0x1448] sm:$0xff]
        %v1317 = vld [vmem:[%s369 + $0x1450] sm:$0xff]
        %v1318 = vld [vmem:[%s369 + $0x1458] sm:$0xff]
        %v1319 = vld [vmem:[%s369 + $0x1460] sm:$0xff]
        %v1320 = vld [vmem:[%s369 + $0x1468] sm:$0xff]
        %v1321 = vld [vmem:[%s369 + $0x1470] sm:$0xff]
        %v1322 = vld [vmem:[%s369 + $0x1478] sm:$0xff]
        %v1323 = vld [vmem:[%s369 + $0x1480] sm:$0xff]
        %v1324 = vld [vmem:[%s369 + $0x1488] sm:$0xff]
        %v1325 = vld [vmem:[%s369 + $0x1490] sm:$0xff]
        %v1326 = vld [vmem:[%s369 + $0x1498] sm:$0xff]
        %v1327 = vld [vmem:[%s369 + $0x14a0] sm:$0xff]
        %v1328 = vld [vmem:[%s369 + $0x14a8] sm:$0xff]
        %v1329 = vld [vmem:[%s369 + $0x14b0] sm:$0xff]
        %v1330 = vld [vmem:[%s369 + $0x14b8] sm:$0xff]
        %v1331 = vld [vmem:[%s369 + $0x14c0] sm:$0xff]
        %v1332 = vld [vmem:[%s369 + $0x14c8] sm:$0xff]
        %v1333 = vld [vmem:[%s369 + $0x14d0] sm:$0xff]
        %v1334 = vld [vmem:[%s369 + $0x14d8] sm:$0xff]
        %v1335 = vld [vmem:[%s369 + $0x14e0] sm:$0xff]
        %v1336 = vld [vmem:[%s369 + $0x14e8] sm:$0xff]
        %v1337 = vld [vmem:[%s369 + $0x14f0] sm:$0xff]
        %v1338 = vld [vmem:[%s369 + $0x14f8] sm:$0xff]
        %v1339 = vld [vmem:[%s369 + $0x1500] sm:$0xff]
        %v1340 = vld [vmem:[%s369 + $0x1508] sm:$0xff]
        %v1341 = vld [vmem:[%s369 + $0x1510] sm:$0xff]
        %v1342 = vld [vmem:[%s369 + $0x1518] sm:$0xff]
        %v1343 = vld [vmem:[%s369 + $0x1520] sm:$0xff]
        %v1344 = vld [vmem:[%s369 + $0x1528] sm:$0xff]
        %v1345 = vld [vmem:[%s369 + $0x1530] sm:$0xff]
        %v1346 = vld [vmem:[%s369 + $0x1538] sm:$0xff]
        %v1347 = vld [vmem:[%s369 + $0x1540] sm:$0xff]
        %v1348 = vld [vmem:[%s369 + $0x1548] sm:$0xff]
        %v1349 = vld [vmem:[%s369 + $0x1550] sm:$0xff]
        %v1350 = vld [vmem:[%s369 + $0x1558] sm:$0xff]
        %v1351 = vld [vmem:[%s369 + $0x1560] sm:$0xff]
        %v1352 = vld [vmem:[%s369 + $0x1568] sm:$0xff]
        %v1353 = vld [vmem:[%s369 + $0x1570] sm:$0xff]
        %v1354 = vld [vmem:[%s369 + $0x1578] sm:$0xff]
        %v1355 = vld [vmem:[%s369 + $0x1580] sm:$0xff]
        %v1356 = vld [vmem:[%s369 + $0x1588] sm:$0xff]
        %v1357 = vld [vmem:[%s369 + $0x1590] sm:$0xff]
        %v1358 = vld [vmem:[%s369 + $0x1598] sm:$0xff]
        %v1359 = vld [vmem:[%s369 + $0x15a0] sm:$0xff]
        %v1360 = vld [vmem:[%s369 + $0x15a8] sm:$0xff]
        %v1361 = vld [vmem:[%s369 + $0x15b0] sm:$0xff]
        %v1362 = vld [vmem:[%s369 + $0x15b8] sm:$0xff]
        %v1363 = vld [vmem:[%s369 + $0x15c0] sm:$0xff]
        %v1364 = vld [vmem:[%s369 + $0x15c8] sm:$0xff]
        %v1365 = vld [vmem:[%s369 + $0x15d0] sm:$0xff]
        %v1366 = vld [vmem:[%s369 + $0x15d8] sm:$0xff]
        %v1367 = vld [vmem:[%s369 + $0x15e0] sm:$0xff]
        %v1368 = vld [vmem:[%s369 + $0x15e8] sm:$0xff]
        %v1369 = vld [vmem:[%s369 + $0x15f0] sm:$0xff]
        %v1370 = vld [vmem:[%s369 + $0x15f8] sm:$0xff]
        %v1371 = vld [vmem:[%s369 + $0x1600] sm:$0xff]
        %v1372 = vld [vmem:[%s369 + $0x1608] sm:$0xff]
        %v1373 = vld [vmem:[%s369 + $0x1610] sm:$0xff]
        %v1374 = vld [vmem:[%s369 + $0x1618] sm:$0xff]
        %v1375 = vld [vmem:[%s369 + $0x1620] sm:$0xff]
        %v1376 = vld [vmem:[%s369 + $0x1628] sm:$0xff]
        %v1377 = vld [vmem:[%s369 + $0x1630] sm:$0xff]
        %v1378 = vld [vmem:[%s369 + $0x1638] sm:$0xff]
        %v1379 = vld [vmem:[%s369 + $0x1640] sm:$0xff]
        %v1380 = vld [vmem:[%s369 + $0x1648] sm:$0xff]
        %v1381 = vld [vmem:[%s369 + $0x1650] sm:$0xff]
        %v1382 = vld [vmem:[%s369 + $0x1658] sm:$0xff]
        %v1383 = vld [vmem:[%s369 + $0x1660] sm:$0xff]
        %v1384 = vld [vmem:[%s369 + $0x1668] sm:$0xff]
        %v1385 = vld [vmem:[%s369 + $0x1670] sm:$0xff]
        %v1386 = vld [vmem:[%s369 + $0x1678] sm:$0xff]
        %v1387 = vld [vmem:[%s369 + $0x1680] sm:$0xff]
        %v1388 = vld [vmem:[%s369 + $0x1688] sm:$0xff]
        %v1389 = vld [vmem:[%s369 + $0x1690] sm:$0xff]
        %v1390 = vld [vmem:[%s369 + $0x1698] sm:$0xff]
        %v1391 = vld [vmem:[%s369 + $0x16a0] sm:$0xff]
        %v1392 = vld [vmem:[%s369 + $0x16a8] sm:$0xff]
        %v1393 = vld [vmem:[%s369 + $0x16b0] sm:$0xff]
        %v1394 = vld [vmem:[%s369 + $0x16b8] sm:$0xff]
        %v1395 = vld [vmem:[%s369 + $0x16c0] sm:$0xff]
        %v1396 = vld [vmem:[%s369 + $0x16c8] sm:$0xff]
        %v1397 = vld [vmem:[%s369 + $0x16d0] sm:$0xff]
        %v1398 = vld [vmem:[%s369 + $0x16d8] sm:$0xff]
        %v1399 = vld [vmem:[%s369 + $0x16e0] sm:$0xff]
        %v1400 = vld [vmem:[%s369 + $0x16e8] sm:$0xff]
        %v1401 = vld [vmem:[%s369 + $0x16f0] sm:$0xff]
        %v1402 = vld [vmem:[%s369 + $0x16f8] sm:$0xff]
        %v1403 = vld [vmem:[%s369 + $0x1700] sm:$0xff]
        %v1404 = vld [vmem:[%s369 + $0x1708] sm:$0xff]
        %v1405 = vld [vmem:[%s369 + $0x1710] sm:$0xff]
        %v1406 = vld [vmem:[%s369 + $0x1718] sm:$0xff]
        %v1407 = vld [vmem:[%s369 + $0x1720] sm:$0xff]
        %v1408 = vld [vmem:[%s369 + $0x1728] sm:$0xff]
        %v1409 = vld [vmem:[%s369 + $0x1730] sm:$0xff]
        %v1410 = vld [vmem:[%s369 + $0x1738] sm:$0xff]
        %v1411 = vld [vmem:[%s369 + $0x1740] sm:$0xff]
        %v1412 = vld [vmem:[%s369 + $0x1748] sm:$0xff]
        %v1413 = vld [vmem:[%s369 + $0x1750] sm:$0xff]
        %v1414 = vld [vmem:[%s369 + $0x1758] sm:$0xff]
        %v1415 = vld [vmem:[%s369 + $0x1760] sm:$0xff]
        %v1416 = vld [vmem:[%s369 + $0x1768] sm:$0xff]
        %v1417 = vld [vmem:[%s369 + $0x1770] sm:$0xff]
        %v1418 = vld [vmem:[%s369 + $0x1778] sm:$0xff]
        %v1419 = vld [vmem:[%s369 + $0x1780] sm:$0xff]
        %v1420 = vld [vmem:[%s369 + $0x1788] sm:$0xff]
        %v1421 = vld [vmem:[%s369 + $0x1790] sm:$0xff]
        %v1422 = vld [vmem:[%s369 + $0x1798] sm:$0xff]
        %v1423 = vld [vmem:[%s369 + $0x17a0] sm:$0xff]
        %v1424 = vld [vmem:[%s369 + $0x17a8] sm:$0xff]
        %v1425 = vld [vmem:[%s369 + $0x17b0] sm:$0xff]
        %v1426 = vld [vmem:[%s369 + $0x17b8] sm:$0xff]
        %v1427 = vld [vmem:[%s369 + $0x17c0] sm:$0xff]
        %v1428 = vld [vmem:[%s369 + $0x17c8] sm:$0xff]
        %v1429 = vld [vmem:[%s369 + $0x17d0] sm:$0xff]
        %v1430 = vld [vmem:[%s369 + $0x17d8] sm:$0xff]
        %v1431 = vld [vmem:[%s369 + $0x17e0] sm:$0xff]
        %v1432 = vld [vmem:[%s369 + $0x17e8] sm:$0xff]
        %v1433 = vld [vmem:[%s369 + $0x17f0] sm:$0xff]
        %v1434 = vld [vmem:[%s369 + $0x17f8] sm:$0xff]
        %v1435 = vld [vmem:[%s369 + $0x1800] sm:$0xff]
        %v1436 = vld [vmem:[%s369 + $0x1808] sm:$0xff]
        %v1437 = vld [vmem:[%s369 + $0x1810] sm:$0xff]
        %v1438 = vld [vmem:[%s369 + $0x1818] sm:$0xff]
        %v1439 = vld [vmem:[%s369 + $0x1820] sm:$0xff]
        %v1440 = vld [vmem:[%s369 + $0x1828] sm:$0xff]
        %v1441 = vld [vmem:[%s369 + $0x1830] sm:$0xff]
        %v1442 = vld [vmem:[%s369 + $0x1838] sm:$0xff]
        %v1443 = vld [vmem:[%s369 + $0x1840] sm:$0xff]
        %v1444 = vld [vmem:[%s369 + $0x1848] sm:$0xff]
        %v1445 = vld [vmem:[%s369 + $0x1850] sm:$0xff]
        %v1446 = vld [vmem:[%s369 + $0x1858] sm:$0xff]
        %v1447 = vld [vmem:[%s369 + $0x1860] sm:$0xff]
        %v1448 = vld [vmem:[%s369 + $0x1868] sm:$0xff]
        %v1449 = vld [vmem:[%s369 + $0x1870] sm:$0xff]
        %v1450 = vld [vmem:[%s369 + $0x1878] sm:$0xff]
        %v1451 = vld [vmem:[%s369 + $0x1880] sm:$0xff]
        %v1452 = vld [vmem:[%s369 + $0x1888] sm:$0xff]
        %v1453 = vld [vmem:[%s369 + $0x1890] sm:$0xff]
        %v1454 = vld [vmem:[%s369 + $0x1898] sm:$0xff]
        %v1455 = vld [vmem:[%s369 + $0x18a0] sm:$0xff]
        %v1456 = vld [vmem:[%s369 + $0x18a8] sm:$0xff]
        %v1457 = vld [vmem:[%s369 + $0x18b0] sm:$0xff]
        %v1458 = vld [vmem:[%s369 + $0x18b8] sm:$0xff]
        %v1459 = vld [vmem:[%s369 + $0x18c0] sm:$0xff]
        %v1460 = vld [vmem:[%s369 + $0x18c8] sm:$0xff]
        %v1461 = vld [vmem:[%s369 + $0x18d0] sm:$0xff]
        %v1462 = vld [vmem:[%s369 + $0x18d8] sm:$0xff]
        %v1463 = vld [vmem:[%s369 + $0x18e0] sm:$0xff]
        %v1464 = vld [vmem:[%s369 + $0x18e8] sm:$0xff]
        %v1465 = vld [vmem:[%s369 + $0x18f0] sm:$0xff]
        %v1466 = vld [vmem:[%s369 + $0x18f8] sm:$0xff]
        %v1467 = vld [vmem:[%s369 + $0x1900] sm:$0xff]
        %v1468 = vld [vmem:[%s369 + $0x1908] sm:$0xff]
        %v1469 = vld [vmem:[%s369 + $0x1910] sm:$0xff]
        %v1470 = vld [vmem:[%s369 + $0x1918] sm:$0xff]
        %v1471 = vld [vmem:[%s369 + $0x1920] sm:$0xff]
        %v1472 = vld [vmem:[%s369 + $0x1928] sm:$0xff]
        %v1473 = vld [vmem:[%s369 + $0x1930] sm:$0xff]
        %v1474 = vld [vmem:[%s369 + $0x1938] sm:$0xff]
        %v1475 = vld [vmem:[%s369 + $0x1940] sm:$0xff]
        %v1476 = vld [vmem:[%s369 + $0x1948] sm:$0xff]
        %v1477 = vld [vmem:[%s369 + $0x1950] sm:$0xff]
        %v1478 = vld [vmem:[%s369 + $0x1958] sm:$0xff]
        %v1479 = vld [vmem:[%s369 + $0x1960] sm:$0xff]
        %v1480 = vld [vmem:[%s369 + $0x1968] sm:$0xff]
        %v1481 = vld [vmem:[%s369 + $0x1970] sm:$0xff]
        %v1482 = vld [vmem:[%s369 + $0x1978] sm:$0xff]
        %v1483 = vld [vmem:[%s369 + $0x1980] sm:$0xff]
        %v1484 = vld [vmem:[%s369 + $0x1988] sm:$0xff]
        %v1485 = vld [vmem:[%s369 + $0x1990] sm:$0xff]
        %v1486 = vld [vmem:[%s369 + $0x1998] sm:$0xff]
        %v1487 = vld [vmem:[%s369 + $0x19a0] sm:$0xff]
        %v1488 = vld [vmem:[%s369 + $0x19a8] sm:$0xff]
        %v1489 = vld [vmem:[%s369 + $0x19b0] sm:$0xff]
        %v1490 = vld [vmem:[%s369 + $0x19b8] sm:$0xff]
        %v1491 = vld [vmem:[%s369 + $0x19c0] sm:$0xff]
        %v1492 = vld [vmem:[%s369 + $0x19c8] sm:$0xff]
        %v1493 = vld [vmem:[%s369 + $0x19d0] sm:$0xff]
        %v1494 = vld [vmem:[%s369 + $0x19d8] sm:$0xff]
        %v1495 = vld [vmem:[%s369 + $0x19e0] sm:$0xff]
        %v1496 = vld [vmem:[%s369 + $0x19e8] sm:$0xff]
        %v1497 = vld [vmem:[%s369 + $0x19f0] sm:$0xff]
        %v1498 = vld [vmem:[%s369 + $0x19f8] sm:$0xff]
        %v1499 = vld [vmem:[%s369 + $0x1a00] sm:$0xff]
        %v1500 = vld [vmem:[%s369 + $0x1a08] sm:$0xff]
        %v1501 = vld [vmem:[%s369 + $0x1a10] sm:$0xff]
        %v1502 = vld [vmem:[%s369 + $0x1a18] sm:$0xff]
        %v1503 = vld [vmem:[%s369 + $0x1a20] sm:$0xff]
        %v1504 = vld [vmem:[%s369 + $0x1a28] sm:$0xff]
        %v1505 = vld [vmem:[%s369 + $0x1a30] sm:$0xff]
        %v1506 = vld [vmem:[%s369 + $0x1a38] sm:$0xff]
        %v1507 = vld [vmem:[%s369 + $0x1a40] sm:$0xff]
        %v1508 = vld [vmem:[%s369 + $0x1a48] sm:$0xff]
        %v1509 = vld [vmem:[%s369 + $0x1a50] sm:$0xff]
        %v1510 = vld [vmem:[%s369 + $0x1a58] sm:$0xff]
        %v1511 = vld [vmem:[%s369 + $0x1a60] sm:$0xff]
        %v1512 = vld [vmem:[%s369 + $0x1a68] sm:$0xff]
        %v1513 = vld [vmem:[%s369 + $0x1a70] sm:$0xff]
        %v1514 = vld [vmem:[%s369 + $0x1a78] sm:$0xff]
        %v1515 = vld [vmem:[%s369 + $0x1a80] sm:$0xff]
        %v1516 = vld [vmem:[%s369 + $0x1a88] sm:$0xff]
        %v1517 = vld [vmem:[%s369 + $0x1a90] sm:$0xff]
        %v1518 = vld [vmem:[%s369 + $0x1a98] sm:$0xff]
        %v1519 = vld [vmem:[%s369 + $0x1aa0] sm:$0xff]
        %v1520 = vld [vmem:[%s369 + $0x1aa8] sm:$0xff]
        %v1521 = vld [vmem:[%s369 + $0x1ab0] sm:$0xff]
        %v1522 = vld [vmem:[%s369 + $0x1ab8] sm:$0xff]
        %v1523 = vld [vmem:[%s369 + $0x1ac0] sm:$0xff]
        %v1524 = vld [vmem:[%s369 + $0x1ac8] sm:$0xff]
        %v1525 = vld [vmem:[%s369 + $0x1ad0] sm:$0xff]
        %v1526 = vld [vmem:[%s369 + $0x1ad8] sm:$0xff]
        %v1527 = vld [vmem:[%s369 + $0x1ae0] sm:$0xff]
        %v1528 = vld [vmem:[%s369 + $0x1ae8] sm:$0xff]
        %v1529 = vld [vmem:[%s369 + $0x1af0] sm:$0xff]
        %v1530 = vld [vmem:[%s369 + $0x1af8] sm:$0xff]
        %v1531 = vld [vmem:[%s369 + $0x1b00] sm:$0xff]
        %v1532 = vld [vmem:[%s369 + $0x1b08] sm:$0xff]
        %v1533 = vld [vmem:[%s369 + $0x1b10] sm:$0xff]
        %v1534 = vld [vmem:[%s369 + $0x1b18] sm:$0xff]
        %v1535 = vld [vmem:[%s369 + $0x1b20] sm:$0xff]
        %v1536 = vld [vmem:[%s369 + $0x1b28] sm:$0xff]
        %v1537 = vld [vmem:[%s369 + $0x1b30] sm:$0xff]
        %v1538 = vld [vmem:[%s369 + $0x1b38] sm:$0xff]
        %v1539 = vld [vmem:[%s369 + $0x1b40] sm:$0xff]
        %v1540 = vld [vmem:[%s369 + $0x1b48] sm:$0xff]
        %v1541 = vld [vmem:[%s369 + $0x1b50] sm:$0xff]
        %v1542 = vld [vmem:[%s369 + $0x1b58] sm:$0xff]
        %v1543 = vld [vmem:[%s369 + $0x1b60] sm:$0xff]
        %v1544 = vld [vmem:[%s369 + $0x1b68] sm:$0xff]
        %v1545 = vld [vmem:[%s369 + $0x1b70] sm:$0xff]
        %v1546 = vld [vmem:[%s369 + $0x1b78] sm:$0xff]
        %v1547 = vld [vmem:[%s369 + $0x1b80] sm:$0xff]
        %v1548 = vld [vmem:[%s369 + $0x1b88] sm:$0xff]
        %v1549 = vld [vmem:[%s369 + $0x1b90] sm:$0xff]
        %v1550 = vld [vmem:[%s369 + $0x1b98] sm:$0xff]
        %v1551 = vld [vmem:[%s369 + $0x1ba0] sm:$0xff]
        %v1552 = vld [vmem:[%s369 + $0x1ba8] sm:$0xff]
        %v1553 = vld [vmem:[%s369 + $0x1bb0] sm:$0xff]
        %v1554 = vld [vmem:[%s369 + $0x1bb8] sm:$0xff]
        %v1555 = vld [vmem:[%s369 + $0x1bc0] sm:$0xff]
        %v1556 = vld [vmem:[%s369 + $0x1bc8] sm:$0xff]
        %v1557 = vld [vmem:[%s369 + $0x1bd0] sm:$0xff]
        %v1558 = vld [vmem:[%s369 + $0x1bd8] sm:$0xff]
        %v1559 = vld [vmem:[%s369 + $0x1be0] sm:$0xff]
        %v1560 = vld [vmem:[%s369 + $0x1be8] sm:$0xff]
        %v1561 = vld [vmem:[%s369 + $0x1bf0] sm:$0xff]
        %v1562 = vld [vmem:[%s369 + $0x1bf8] sm:$0xff]
        %v1563 = vld [vmem:[%s369 + $0x1c00] sm:$0xff]
        %v1564 = vld [vmem:[%s369 + $0x1c08] sm:$0xff]
        %v1565 = vld [vmem:[%s369 + $0x1c10] sm:$0xff]
        %v1566 = vld [vmem:[%s369 + $0x1c18] sm:$0xff]
        %v1567 = vld [vmem:[%s369 + $0x1c20] sm:$0xff]
        %v1568 = vld [vmem:[%s369 + $0x1c28] sm:$0xff]
        %v1569 = vld [vmem:[%s369 + $0x1c30] sm:$0xff]
        %v1570 = vld [vmem:[%s369 + $0x1c38] sm:$0xff]
        %v1571 = vld [vmem:[%s369 + $0x1c40] sm:$0xff]
        %v1572 = vld [vmem:[%s369 + $0x1c48] sm:$0xff]
        %v1573 = vld [vmem:[%s369 + $0x1c50] sm:$0xff]
        %v1574 = vld [vmem:[%s369 + $0x1c58] sm:$0xff]
        %v1575 = vld [vmem:[%s369 + $0x1c60] sm:$0xff]
        %v1576 = vld [vmem:[%s369 + $0x1c68] sm:$0xff]
        %v1577 = vld [vmem:[%s369 + $0x1c70] sm:$0xff]
        %v1578 = vld [vmem:[%s369 + $0x1c78] sm:$0xff]
        %v1579 = vld [vmem:[%s369 + $0x1c80] sm:$0xff]
        %v1580 = vld [vmem:[%s369 + $0x1c88] sm:$0xff]
        %v1581 = vld [vmem:[%s369 + $0x1c90] sm:$0xff]
        %v1582 = vld [vmem:[%s369 + $0x1c98] sm:$0xff]
        %v1583 = vld [vmem:[%s369 + $0x1ca0] sm:$0xff]
        %v1584 = vld [vmem:[%s369 + $0x1ca8] sm:$0xff]
        %v1585 = vld [vmem:[%s369 + $0x1cb0] sm:$0xff]
        %v1586 = vld [vmem:[%s369 + $0x1cb8] sm:$0xff]
        %v1587 = vld [vmem:[%s369 + $0x1cc0] sm:$0xff]
        %v1588 = vld [vmem:[%s369 + $0x1cc8] sm:$0xff]
        %v1589 = vld [vmem:[%s369 + $0x1cd0] sm:$0xff]
        %v1590 = vld [vmem:[%s369 + $0x1cd8] sm:$0xff]
        %v1591 = vld [vmem:[%s369 + $0x1ce0] sm:$0xff]
        %v1592 = vld [vmem:[%s369 + $0x1ce8] sm:$0xff]
        %v1593 = vld [vmem:[%s369 + $0x1cf0] sm:$0xff]
        %v1594 = vld [vmem:[%s369 + $0x1cf8] sm:$0xff]
        %v1595 = vld [vmem:[%s369 + $0x1d00] sm:$0xff]
        %v1596 = vld [vmem:[%s369 + $0x1d08] sm:$0xff]
        %v1597 = vld [vmem:[%s369 + $0x1d10] sm:$0xff]
        %v1598 = vld [vmem:[%s369 + $0x1d18] sm:$0xff]
        %v1599 = vld [vmem:[%s369 + $0x1d20] sm:$0xff]
        %v1600 = vld [vmem:[%s369 + $0x1d28] sm:$0xff]
        %v1601 = vld [vmem:[%s369 + $0x1d30] sm:$0xff]
        %v1602 = vld [vmem:[%s369 + $0x1d38] sm:$0xff]
        %v1603 = vld [vmem:[%s369 + $0x1d40] sm:$0xff]
        %v1604 = vld [vmem:[%s369 + $0x1d48] sm:$0xff]
        %v1605 = vld [vmem:[%s369 + $0x1d50] sm:$0xff]
        %v1606 = vld [vmem:[%s369 + $0x1d58] sm:$0xff]
        %v1607 = vld [vmem:[%s369 + $0x1d60] sm:$0xff]
        %v1608 = vld [vmem:[%s369 + $0x1d68] sm:$0xff]
        %v1609 = vld [vmem:[%s369 + $0x1d70] sm:$0xff]
        %v1610 = vld [vmem:[%s369 + $0x1d78] sm:$0xff]
        %v1611 = vld [vmem:[%s369 + $0x1d80] sm:$0xff]
        %v1612 = vld [vmem:[%s369 + $0x1d88] sm:$0xff]
        %v1613 = vld [vmem:[%s369 + $0x1d90] sm:$0xff]
        %v1614 = vld [vmem:[%s369 + $0x1d98] sm:$0xff]
        %v1615 = vld [vmem:[%s369 + $0x1da0] sm:$0xff]
        %v1616 = vld [vmem:[%s369 + $0x1da8] sm:$0xff]
        %v1617 = vld [vmem:[%s369 + $0x1db0] sm:$0xff]
        %v1618 = vld [vmem:[%s369 + $0x1db8] sm:$0xff]
        %v1619 = vld [vmem:[%s369 + $0x1dc0] sm:$0xff]
        %v1620 = vld [vmem:[%s369 + $0x1dc8] sm:$0xff]
        %v1621 = vld [vmem:[%s369 + $0x1dd0] sm:$0xff]
        %v1622 = vld [vmem:[%s369 + $0x1dd8] sm:$0xff]
        %v1623 = vld [vmem:[%s369 + $0x1de0] sm:$0xff]
        %v1624 = vld [vmem:[%s369 + $0x1de8] sm:$0xff]
        %v1625 = vld [vmem:[%s369 + $0x1df0] sm:$0xff]
        %v1626 = vld [vmem:[%s369 + $0x1df8] sm:$0xff]
        %v1627 = vld [vmem:[%s369 + $0x1e00] sm:$0xff]
        %v1628 = vld [vmem:[%s369 + $0x1e08] sm:$0xff]
        %v1629 = vld [vmem:[%s369 + $0x1e10] sm:$0xff]
        %v1630 = vld [vmem:[%s369 + $0x1e18] sm:$0xff]
        %v1631 = vld [vmem:[%s369 + $0x1e20] sm:$0xff]
        %v1632 = vld [vmem:[%s369 + $0x1e28] sm:$0xff]
        %v1633 = vld [vmem:[%s369 + $0x1e30] sm:$0xff]
        %v1634 = vld [vmem:[%s369 + $0x1e38] sm:$0xff]
        %v1635 = vld [vmem:[%s369 + $0x1e40] sm:$0xff]
        %v1636 = vld [vmem:[%s369 + $0x1e48] sm:$0xff]
        %v1637 = vld [vmem:[%s369 + $0x1e50] sm:$0xff]
        %v1638 = vld [vmem:[%s369 + $0x1e58] sm:$0xff]
        %v1639 = vld [vmem:[%s369 + $0x1e60] sm:$0xff]
        %v1640 = vld [vmem:[%s369 + $0x1e68] sm:$0xff]
        %v1641 = vld [vmem:[%s369 + $0x1e70] sm:$0xff]
        %v1642 = vld [vmem:[%s369 + $0x1e78] sm:$0xff]
        %v1643 = vld [vmem:[%s369 + $0x1e80] sm:$0xff]
        %v1644 = vld [vmem:[%s369 + $0x1e88] sm:$0xff]
        %v1645 = vld [vmem:[%s369 + $0x1e90] sm:$0xff]
        %v1646 = vld [vmem:[%s369 + $0x1e98] sm:$0xff]
        %v1647 = vld [vmem:[%s369 + $0x1ea0] sm:$0xff]
        %v1648 = vld [vmem:[%s369 + $0x1ea8] sm:$0xff]
        %v1649 = vld [vmem:[%s369 + $0x1eb0] sm:$0xff]
        %v1650 = vld [vmem:[%s369 + $0x1eb8] sm:$0xff]
        %v1651 = vld [vmem:[%s369 + $0x1ec0] sm:$0xff]
        %v1652 = vld [vmem:[%s369 + $0x1ec8] sm:$0xff]
        %v1653 = vld [vmem:[%s369 + $0x1ed0] sm:$0xff]
        %v1654 = vld [vmem:[%s369 + $0x1ed8] sm:$0xff]
        %v1655 = vld [vmem:[%s369 + $0x1ee0] sm:$0xff]
        %v1656 = vld [vmem:[%s369 + $0x1ee8] sm:$0xff]
        %v1657 = vld [vmem:[%s369 + $0x1ef0] sm:$0xff]
        %v1658 = vld [vmem:[%s369 + $0x1ef8] sm:$0xff]
        %v1659 = vld [vmem:[%s369 + $0x1f00] sm:$0xff]
        %v1660 = vld [vmem:[%s369 + $0x1f08] sm:$0xff]
        %v1661 = vld [vmem:[%s369 + $0x1f10] sm:$0xff]
        %v1662 = vld [vmem:[%s369 + $0x1f18] sm:$0xff]
        %v1663 = vld [vmem:[%s369 + $0x1f20] sm:$0xff]
        %v1664 = vld [vmem:[%s369 + $0x1f28] sm:$0xff]
        %v1665 = vld [vmem:[%s369 + $0x1f30] sm:$0xff]
        %v1666 = vld [vmem:[%s369 + $0x1f38] sm:$0xff]
        %v1667 = vld [vmem:[%s369 + $0x1f40] sm:$0xff]
        %v1668 = vld [vmem:[%s369 + $0x1f48] sm:$0xff]
        %v1669 = vld [vmem:[%s369 + $0x1f50] sm:$0xff]
        %v1670 = vld [vmem:[%s369 + $0x1f58] sm:$0xff]
        %v1671 = vld [vmem:[%s369 + $0x1f60] sm:$0xff]
        %v1672 = vld [vmem:[%s369 + $0x1f68] sm:$0xff]
        %v1673 = vld [vmem:[%s369 + $0x1f70] sm:$0xff]
        %v1674 = vld [vmem:[%s369 + $0x1f78] sm:$0xff]
        %v1675 = vld [vmem:[%s369 + $0x1f80] sm:$0xff]
        %v1676 = vld [vmem:[%s369 + $0x1f88] sm:$0xff]
        %v1677 = vld [vmem:[%s369 + $0x1f90] sm:$0xff]
        %v1678 = vld [vmem:[%s369 + $0x1f98] sm:$0xff]
        %v1679 = vld [vmem:[%s369 + $0x1fa0] sm:$0xff]
        %v1680 = vld [vmem:[%s369 + $0x1fa8] sm:$0xff]
        %v1681 = vld [vmem:[%s369 + $0x1fb0] sm:$0xff]
        %v1682 = vld [vmem:[%s369 + $0x1fb8] sm:$0xff]
        %v1683 = vld [vmem:[%s369 + $0x1fc0] sm:$0xff]
        %v1684 = vld [vmem:[%s369 + $0x1fc8] sm:$0xff]
        %v1685 = vld [vmem:[%s369 + $0x1fd0] sm:$0xff]
        %v1686 = vld [vmem:[%s369 + $0x1fd8] sm:$0xff]
        %v1687 = vld [vmem:[%s369 + $0x1fe0] sm:$0xff]
        %v1688 = vld [vmem:[%s369 + $0x1fe8] sm:$0xff]
        %v1689 = vld [vmem:[%s369 + $0x1ff0] sm:$0xff]
        %v1690 = vld [vmem:[%s369 + $0x1ff8] sm:$0xff]
        %v2715 = vunpack.c.l.b16 %v667
        %v2716 = vunpack.c.h.b16 %v667
        %v2717 = vunpack.c.l.b16 %v668
        %v2718 = vunpack.c.h.b16 %v668
        %v2719 = vunpack.c.l.b16 %v669
        %v2720 = vunpack.c.h.b16 %v669
        %v2721 = vunpack.c.l.b16 %v670
        %v2722 = vunpack.c.h.b16 %v670
        %v2723 = vunpack.c.l.b16 %v671
        %v2724 = vunpack.c.h.b16 %v671
        %v2725 = vunpack.c.l.b16 %v672
        %v2726 = vunpack.c.h.b16 %v672
        %v2727 = vunpack.c.l.b16 %v673
        %v2728 = vunpack.c.h.b16 %v673
        %v2729 = vunpack.c.l.b16 %v674
        %v2730 = vunpack.c.h.b16 %v674
        %v2731 = vunpack.c.l.b16 %v675
        %v2732 = vunpack.c.h.b16 %v675
        %v2733 = vunpack.c.l.b16 %v676
        %v2734 = vunpack.c.h.b16 %v676
        %v2735 = vunpack.c.l.b16 %v677
        %v2736 = vunpack.c.h.b16 %v677
        %v2737 = vunpack.c.l.b16 %v678
        %v2738 = vunpack.c.h.b16 %v678
        %v2739 = vunpack.c.l.b16 %v679
        %v2740 = vunpack.c.h.b16 %v679
        %v2741 = vunpack.c.l.b16 %v680
        %v2742 = vunpack.c.h.b16 %v680
        %v2743 = vunpack.c.l.b16 %v681
        %v2744 = vunpack.c.h.b16 %v681
        %v2745 = vunpack.c.l.b16 %v682
        %v2746 = vunpack.c.h.b16 %v682
        %v2747 = vunpack.c.l.b16 %v683
        %v2748 = vunpack.c.h.b16 %v683
        %v2749 = vunpack.c.l.b16 %v684
        %v2750 = vunpack.c.h.b16 %v684
        %v2751 = vunpack.c.l.b16 %v685
        %v2752 = vunpack.c.h.b16 %v685
        %v2753 = vunpack.c.l.b16 %v686
        %v2754 = vunpack.c.h.b16 %v686
        %v2755 = vunpack.c.l.b16 %v687
        %v2756 = vunpack.c.h.b16 %v687
        %v2757 = vunpack.c.l.b16 %v688
        %v2758 = vunpack.c.h.b16 %v688
        %v2759 = vunpack.c.l.b16 %v689
        %v2760 = vunpack.c.h.b16 %v689
        %v2761 = vunpack.c.l.b16 %v690
        %v2762 = vunpack.c.h.b16 %v690
        %v2763 = vunpack.c.l.b16 %v691
        %v2764 = vunpack.c.h.b16 %v691
        %v2765 = vunpack.c.l.b16 %v692
        %v2766 = vunpack.c.h.b16 %v692
        %v2767 = vunpack.c.l.b16 %v693
        %v2768 = vunpack.c.h.b16 %v693
        %v2769 = vunpack.c.l.b16 %v694
        %v2770 = vunpack.c.h.b16 %v694
        %v2771 = vunpack.c.l.b16 %v695
        %v2772 = vunpack.c.h.b16 %v695
        %v2773 = vunpack.c.l.b16 %v696
        %v2774 = vunpack.c.h.b16 %v696
        %v2775 = vunpack.c.l.b16 %v697
        %v2776 = vunpack.c.h.b16 %v697
        %v2777 = vunpack.c.l.b16 %v698
        %v2778 = vunpack.c.h.b16 %v698
        %v2779 = vunpack.c.l.b16 %v699
        %v2780 = vunpack.c.h.b16 %v699
        %v2781 = vunpack.c.l.b16 %v700
        %v2782 = vunpack.c.h.b16 %v700
        %v2783 = vunpack.c.l.b16 %v701
        %v2784 = vunpack.c.h.b16 %v701
        %v2785 = vunpack.c.l.b16 %v702
        %v2786 = vunpack.c.h.b16 %v702
        %v2787 = vunpack.c.l.b16 %v703
        %v2788 = vunpack.c.h.b16 %v703
        %v2789 = vunpack.c.l.b16 %v704
        %v2790 = vunpack.c.h.b16 %v704
        %v2791 = vunpack.c.l.b16 %v705
        %v2792 = vunpack.c.h.b16 %v705
        %v2793 = vunpack.c.l.b16 %v706
        %v2794 = vunpack.c.h.b16 %v706
        %v2795 = vunpack.c.l.b16 %v707
        %v2796 = vunpack.c.h.b16 %v707
        %v2797 = vunpack.c.l.b16 %v708
        %v2798 = vunpack.c.h.b16 %v708
        %v2799 = vunpack.c.l.b16 %v709
        %v2800 = vunpack.c.h.b16 %v709
        %v2801 = vunpack.c.l.b16 %v710
        %v2802 = vunpack.c.h.b16 %v710
        %v2803 = vunpack.c.l.b16 %v711
        %v2804 = vunpack.c.h.b16 %v711
        %v2805 = vunpack.c.l.b16 %v712
        %v2806 = vunpack.c.h.b16 %v712
        %v2807 = vunpack.c.l.b16 %v713
        %v2808 = vunpack.c.h.b16 %v713
        %v2809 = vunpack.c.l.b16 %v714
        %v2810 = vunpack.c.h.b16 %v714
        %v2811 = vunpack.c.l.b16 %v715
        %v2812 = vunpack.c.h.b16 %v715
        %v2813 = vunpack.c.l.b16 %v716
        %v2814 = vunpack.c.h.b16 %v716
        %v2815 = vunpack.c.l.b16 %v717
        %v2816 = vunpack.c.h.b16 %v717
        %v2817 = vunpack.c.l.b16 %v718
        %v2818 = vunpack.c.h.b16 %v718
        %v2819 = vunpack.c.l.b16 %v719
        %v2820 = vunpack.c.h.b16 %v719
        %v2821 = vunpack.c.l.b16 %v720
        %v2822 = vunpack.c.h.b16 %v720
        %v2823 = vunpack.c.l.b16 %v721
        %v2824 = vunpack.c.h.b16 %v721
        %v2825 = vunpack.c.l.b16 %v722
        %v2826 = vunpack.c.h.b16 %v722
        %v2827 = vunpack.c.l.b16 %v723
        %v2828 = vunpack.c.h.b16 %v723
        %v2829 = vunpack.c.l.b16 %v724
        %v2830 = vunpack.c.h.b16 %v724
        %v2831 = vunpack.c.l.b16 %v725
        %v2832 = vunpack.c.h.b16 %v725
        %v2833 = vunpack.c.l.b16 %v726
        %v2834 = vunpack.c.h.b16 %v726
        %v2835 = vunpack.c.l.b16 %v727
        %v2836 = vunpack.c.h.b16 %v727
        %v2837 = vunpack.c.l.b16 %v728
        %v2838 = vunpack.c.h.b16 %v728
        %v2839 = vunpack.c.l.b16 %v729
        %v2840 = vunpack.c.h.b16 %v729
        %v2841 = vunpack.c.l.b16 %v730
        %v2842 = vunpack.c.h.b16 %v730
        %v2843 = vunpack.c.l.b16 %v731
        %v2844 = vunpack.c.h.b16 %v731
        %v2845 = vunpack.c.l.b16 %v732
        %v2846 = vunpack.c.h.b16 %v732
        %v2847 = vunpack.c.l.b16 %v733
        %v2848 = vunpack.c.h.b16 %v733
        %v2849 = vunpack.c.l.b16 %v734
        %v2850 = vunpack.c.h.b16 %v734
        %v2851 = vunpack.c.l.b16 %v735
        %v2852 = vunpack.c.h.b16 %v735
        %v2853 = vunpack.c.l.b16 %v736
        %v2854 = vunpack.c.h.b16 %v736
        %v2855 = vunpack.c.l.b16 %v737
        %v2856 = vunpack.c.h.b16 %v737
        %v2857 = vunpack.c.l.b16 %v738
        %v2858 = vunpack.c.h.b16 %v738
        %v2859 = vunpack.c.l.b16 %v739
        %v2860 = vunpack.c.h.b16 %v739
        %v2861 = vunpack.c.l.b16 %v740
        %v2862 = vunpack.c.h.b16 %v740
        %v2863 = vunpack.c.l.b16 %v741
        %v2864 = vunpack.c.h.b16 %v741
        %v2865 = vunpack.c.l.b16 %v742
        %v2866 = vunpack.c.h.b16 %v742
        %v2867 = vunpack.c.l.b16 %v743
        %v2868 = vunpack.c.h.b16 %v743
        %v2869 = vunpack.c.l.b16 %v744
        %v2870 = vunpack.c.h.b16 %v744
        %v2871 = vunpack.c.l.b16 %v745
        %v2872 = vunpack.c.h.b16 %v745
        %v2873 = vunpack.c.l.b16 %v746
        %v2874 = vunpack.c.h.b16 %v746
        %v2875 = vunpack.c.l.b16 %v747
        %v2876 = vunpack.c.h.b16 %v747
        %v2877 = vunpack.c.l.b16 %v748
        %v2878 = vunpack.c.h.b16 %v748
        %v2879 = vunpack.c.l.b16 %v749
        %v2880 = vunpack.c.h.b16 %v749
        %v2881 = vunpack.c.l.b16 %v750
        %v2882 = vunpack.c.h.b16 %v750
        %v2883 = vunpack.c.l.b16 %v751
        %v2884 = vunpack.c.h.b16 %v751
        %v2885 = vunpack.c.l.b16 %v752
        %v2886 = vunpack.c.h.b16 %v752
        %v2887 = vunpack.c.l.b16 %v753
        %v2888 = vunpack.c.h.b16 %v753
        %v2889 = vunpack.c.l.b16 %v754
        %v2890 = vunpack.c.h.b16 %v754
        %v2891 = vunpack.c.l.b16 %v755
        %v2892 = vunpack.c.h.b16 %v755
        %v2893 = vunpack.c.l.b16 %v756
        %v2894 = vunpack.c.h.b16 %v756
        %v2895 = vunpack.c.l.b16 %v757
        %v2896 = vunpack.c.h.b16 %v757
        %v2897 = vunpack.c.l.b16 %v758
        %v2898 = vunpack.c.h.b16 %v758
        %v2899 = vunpack.c.l.b16 %v759
        %v2900 = vunpack.c.h.b16 %v759
        %v2901 = vunpack.c.l.b16 %v760
        %v2902 = vunpack.c.h.b16 %v760
        %v2903 = vunpack.c.l.b16 %v761
        %v2904 = vunpack.c.h.b16 %v761
        %v2905 = vunpack.c.l.b16 %v762
        %v2906 = vunpack.c.h.b16 %v762
        %v2907 = vunpack.c.l.b16 %v763
        %v2908 = vunpack.c.h.b16 %v763
        %v2909 = vunpack.c.l.b16 %v764
        %v2910 = vunpack.c.h.b16 %v764
        %v2911 = vunpack.c.l.b16 %v765
        %v2912 = vunpack.c.h.b16 %v765
        %v2913 = vunpack.c.l.b16 %v766
        %v2914 = vunpack.c.h.b16 %v766
        %v2915 = vunpack.c.l.b16 %v767
        %v2916 = vunpack.c.h.b16 %v767
        %v2917 = vunpack.c.l.b16 %v768
        %v2918 = vunpack.c.h.b16 %v768
        %v2919 = vunpack.c.l.b16 %v769
        %v2920 = vunpack.c.h.b16 %v769
        %v2921 = vunpack.c.l.b16 %v770
        %v2922 = vunpack.c.h.b16 %v770
        %v2923 = vunpack.c.l.b16 %v771
        %v2924 = vunpack.c.h.b16 %v771
        %v2925 = vunpack.c.l.b16 %v772
        %v2926 = vunpack.c.h.b16 %v772
        %v2927 = vunpack.c.l.b16 %v773
        %v2928 = vunpack.c.h.b16 %v773
        %v2929 = vunpack.c.l.b16 %v774
        %v2930 = vunpack.c.h.b16 %v774
        %v2931 = vunpack.c.l.b16 %v775
        %v2932 = vunpack.c.h.b16 %v775
        %v2933 = vunpack.c.l.b16 %v776
        %v2934 = vunpack.c.h.b16 %v776
        %v2935 = vunpack.c.l.b16 %v777
        %v2936 = vunpack.c.h.b16 %v777
        %v2937 = vunpack.c.l.b16 %v778
        %v2938 = vunpack.c.h.b16 %v778
        %v2939 = vunpack.c.l.b16 %v779
        %v2940 = vunpack.c.h.b16 %v779
        %v2941 = vunpack.c.l.b16 %v780
        %v2942 = vunpack.c.h.b16 %v780
        %v2943 = vunpack.c.l.b16 %v781
        %v2944 = vunpack.c.h.b16 %v781
        %v2945 = vunpack.c.l.b16 %v782
        %v2946 = vunpack.c.h.b16 %v782
        %v2947 = vunpack.c.l.b16 %v783
        %v2948 = vunpack.c.h.b16 %v783
        %v2949 = vunpack.c.l.b16 %v784
        %v2950 = vunpack.c.h.b16 %v784
        %v2951 = vunpack.c.l.b16 %v785
        %v2952 = vunpack.c.h.b16 %v785
        %v2953 = vunpack.c.l.b16 %v786
        %v2954 = vunpack.c.h.b16 %v786
        %v2955 = vunpack.c.l.b16 %v787
        %v2956 = vunpack.c.h.b16 %v787
        %v2957 = vunpack.c.l.b16 %v788
        %v2958 = vunpack.c.h.b16 %v788
        %v2959 = vunpack.c.l.b16 %v789
        %v2960 = vunpack.c.h.b16 %v789
        %v2961 = vunpack.c.l.b16 %v790
        %v2962 = vunpack.c.h.b16 %v790
        %v2963 = vunpack.c.l.b16 %v791
        %v2964 = vunpack.c.h.b16 %v791
        %v2965 = vunpack.c.l.b16 %v792
        %v2966 = vunpack.c.h.b16 %v792
        %v2967 = vunpack.c.l.b16 %v793
        %v2968 = vunpack.c.h.b16 %v793
        %v2969 = vunpack.c.l.b16 %v794
        %v2970 = vunpack.c.h.b16 %v794
        %v2971 = vunpack.c.l.b16 %v795
        %v2972 = vunpack.c.h.b16 %v795
        %v2973 = vunpack.c.l.b16 %v796
        %v2974 = vunpack.c.h.b16 %v796
        %v2975 = vunpack.c.l.b16 %v797
        %v2976 = vunpack.c.h.b16 %v797
        %v2977 = vunpack.c.l.b16 %v798
        %v2978 = vunpack.c.h.b16 %v798
        %v2979 = vunpack.c.l.b16 %v799
        %v2980 = vunpack.c.h.b16 %v799
        %v2981 = vunpack.c.l.b16 %v800
        %v2982 = vunpack.c.h.b16 %v800
        %v2983 = vunpack.c.l.b16 %v801
        %v2984 = vunpack.c.h.b16 %v801
        %v2985 = vunpack.c.l.b16 %v802
        %v2986 = vunpack.c.h.b16 %v802
        %v2987 = vunpack.c.l.b16 %v803
        %v2988 = vunpack.c.h.b16 %v803
        %v2989 = vunpack.c.l.b16 %v804
        %v2990 = vunpack.c.h.b16 %v804
        %v2991 = vunpack.c.l.b16 %v805
        %v2992 = vunpack.c.h.b16 %v805
        %v2993 = vunpack.c.l.b16 %v806
        %v2994 = vunpack.c.h.b16 %v806
        %v2995 = vunpack.c.l.b16 %v807
        %v2996 = vunpack.c.h.b16 %v807
        %v2997 = vunpack.c.l.b16 %v808
        %v2998 = vunpack.c.h.b16 %v808
        %v2999 = vunpack.c.l.b16 %v809
        %v3000 = vunpack.c.h.b16 %v809
        %v3001 = vunpack.c.l.b16 %v810
        %v3002 = vunpack.c.h.b16 %v810
        %v3003 = vunpack.c.l.b16 %v811
        %v3004 = vunpack.c.h.b16 %v811
        %v3005 = vunpack.c.l.b16 %v812
        %v3006 = vunpack.c.h.b16 %v812
        %v3007 = vunpack.c.l.b16 %v813
        %v3008 = vunpack.c.h.b16 %v813
        %v3009 = vunpack.c.l.b16 %v814
        %v3010 = vunpack.c.h.b16 %v814
        %v3011 = vunpack.c.l.b16 %v815
        %v3012 = vunpack.c.h.b16 %v815
        %v3013 = vunpack.c.l.b16 %v816
        %v3014 = vunpack.c.h.b16 %v816
        %v3015 = vunpack.c.l.b16 %v817
        %v3016 = vunpack.c.h.b16 %v817
        %v3017 = vunpack.c.l.b16 %v818
        %v3018 = vunpack.c.h.b16 %v818
        %v3019 = vunpack.c.l.b16 %v819
        %v3020 = vunpack.c.h.b16 %v819
        %v3021 = vunpack.c.l.b16 %v820
        %v3022 = vunpack.c.h.b16 %v820
        %v3023 = vunpack.c.l.b16 %v821
        %v3024 = vunpack.c.h.b16 %v821
        %v3025 = vunpack.c.l.b16 %v822
        %v3026 = vunpack.c.h.b16 %v822
        %v3027 = vunpack.c.l.b16 %v823
        %v3028 = vunpack.c.h.b16 %v823
        %v3029 = vunpack.c.l.b16 %v824
        %v3030 = vunpack.c.h.b16 %v824
        %v3031 = vunpack.c.l.b16 %v825
        %v3032 = vunpack.c.h.b16 %v825
        %v3033 = vunpack.c.l.b16 %v826
        %v3034 = vunpack.c.h.b16 %v826
        %v3035 = vunpack.c.l.b16 %v827
        %v3036 = vunpack.c.h.b16 %v827
        %v3037 = vunpack.c.l.b16 %v828
        %v3038 = vunpack.c.h.b16 %v828
        %v3039 = vunpack.c.l.b16 %v829
        %v3040 = vunpack.c.h.b16 %v829
        %v3041 = vunpack.c.l.b16 %v830
        %v3042 = vunpack.c.h.b16 %v830
        %v3043 = vunpack.c.l.b16 %v831
        %v3044 = vunpack.c.h.b16 %v831
        %v3045 = vunpack.c.l.b16 %v832
        %v3046 = vunpack.c.h.b16 %v832
        %v3047 = vunpack.c.l.b16 %v833
        %v3048 = vunpack.c.h.b16 %v833
        %v3049 = vunpack.c.l.b16 %v834
        %v3050 = vunpack.c.h.b16 %v834
        %v3051 = vunpack.c.l.b16 %v835
        %v3052 = vunpack.c.h.b16 %v835
        %v3053 = vunpack.c.l.b16 %v836
        %v3054 = vunpack.c.h.b16 %v836
        %v3055 = vunpack.c.l.b16 %v837
        %v3056 = vunpack.c.h.b16 %v837
        %v3057 = vunpack.c.l.b16 %v838
        %v3058 = vunpack.c.h.b16 %v838
        %v3059 = vunpack.c.l.b16 %v839
        %v3060 = vunpack.c.h.b16 %v839
        %v3061 = vunpack.c.l.b16 %v840
        %v3062 = vunpack.c.h.b16 %v840
        %v3063 = vunpack.c.l.b16 %v841
        %v3064 = vunpack.c.h.b16 %v841
        %v3065 = vunpack.c.l.b16 %v842
        %v3066 = vunpack.c.h.b16 %v842
        %v3067 = vunpack.c.l.b16 %v843
        %v3068 = vunpack.c.h.b16 %v843
        %v3069 = vunpack.c.l.b16 %v844
        %v3070 = vunpack.c.h.b16 %v844
        %v3071 = vunpack.c.l.b16 %v845
        %v3072 = vunpack.c.h.b16 %v845
        %v3073 = vunpack.c.l.b16 %v846
        %v3074 = vunpack.c.h.b16 %v846
        %v3075 = vunpack.c.l.b16 %v847
        %v3076 = vunpack.c.h.b16 %v847
        %v3077 = vunpack.c.l.b16 %v848
        %v3078 = vunpack.c.h.b16 %v848
        %v3079 = vunpack.c.l.b16 %v849
        %v3080 = vunpack.c.h.b16 %v849
        %v3081 = vunpack.c.l.b16 %v850
        %v3082 = vunpack.c.h.b16 %v850
        %v3083 = vunpack.c.l.b16 %v851
        %v3084 = vunpack.c.h.b16 %v851
        %v3085 = vunpack.c.l.b16 %v852
        %v3086 = vunpack.c.h.b16 %v852
        %v3087 = vunpack.c.l.b16 %v853
        %v3088 = vunpack.c.h.b16 %v853
        %v3089 = vunpack.c.l.b16 %v854
        %v3090 = vunpack.c.h.b16 %v854
        %v3091 = vunpack.c.l.b16 %v855
        %v3092 = vunpack.c.h.b16 %v855
        %v3093 = vunpack.c.l.b16 %v856
        %v3094 = vunpack.c.h.b16 %v856
        %v3095 = vunpack.c.l.b16 %v857
        %v3096 = vunpack.c.h.b16 %v857
        %v3097 = vunpack.c.l.b16 %v858
        %v3098 = vunpack.c.h.b16 %v858
        %v3099 = vunpack.c.l.b16 %v859
        %v3100 = vunpack.c.h.b16 %v859
        %v3101 = vunpack.c.l.b16 %v860
        %v3102 = vunpack.c.h.b16 %v860
        %v3103 = vunpack.c.l.b16 %v861
        %v3104 = vunpack.c.h.b16 %v861
        %v3105 = vunpack.c.l.b16 %v862
        %v3106 = vunpack.c.h.b16 %v862
        %v3107 = vunpack.c.l.b16 %v863
        %v3108 = vunpack.c.h.b16 %v863
        %v3109 = vunpack.c.l.b16 %v864
        %v3110 = vunpack.c.h.b16 %v864
        %v3111 = vunpack.c.l.b16 %v865
        %v3112 = vunpack.c.h.b16 %v865
        %v3113 = vunpack.c.l.b16 %v866
        %v3114 = vunpack.c.h.b16 %v866
        %v3115 = vunpack.c.l.b16 %v867
        %v3116 = vunpack.c.h.b16 %v867
        %v3117 = vunpack.c.l.b16 %v868
        %v3118 = vunpack.c.h.b16 %v868
        %v3119 = vunpack.c.l.b16 %v869
        %v3120 = vunpack.c.h.b16 %v869
        %v3121 = vunpack.c.l.b16 %v870
        %v3122 = vunpack.c.h.b16 %v870
        %v3123 = vunpack.c.l.b16 %v871
        %v3124 = vunpack.c.h.b16 %v871
        %v3125 = vunpack.c.l.b16 %v872
        %v3126 = vunpack.c.h.b16 %v872
        %v3127 = vunpack.c.l.b16 %v873
        %v3128 = vunpack.c.h.b16 %v873
        %v3129 = vunpack.c.l.b16 %v874
        %v3130 = vunpack.c.h.b16 %v874
        %v3131 = vunpack.c.l.b16 %v875
        %v3132 = vunpack.c.h.b16 %v875
        %v3133 = vunpack.c.l.b16 %v876
        %v3134 = vunpack.c.h.b16 %v876
        %v3135 = vunpack.c.l.b16 %v877
        %v3136 = vunpack.c.h.b16 %v877
        %v3137 = vunpack.c.l.b16 %v878
        %v3138 = vunpack.c.h.b16 %v878
        %v3139 = vunpack.c.l.b16 %v879
        %v3140 = vunpack.c.h.b16 %v879
        %v3141 = vunpack.c.l.b16 %v880
        %v3142 = vunpack.c.h.b16 %v880
        %v3143 = vunpack.c.l.b16 %v881
        %v3144 = vunpack.c.h.b16 %v881
        %v3145 = vunpack.c.l.b16 %v882
        %v3146 = vunpack.c.h.b16 %v882
        %v3147 = vunpack.c.l.b16 %v883
        %v3148 = vunpack.c.h.b16 %v883
        %v3149 = vunpack.c.l.b16 %v884
        %v3150 = vunpack.c.h.b16 %v884
        %v3151 = vunpack.c.l.b16 %v885
        %v3152 = vunpack.c.h.b16 %v885
        %v3153 = vunpack.c.l.b16 %v886
        %v3154 = vunpack.c.h.b16 %v886
        %v3155 = vunpack.c.l.b16 %v887
        %v3156 = vunpack.c.h.b16 %v887
        %v3157 = vunpack.c.l.b16 %v888
        %v3158 = vunpack.c.h.b16 %v888
        %v3159 = vunpack.c.l.b16 %v889
        %v3160 = vunpack.c.h.b16 %v889
        %v3161 = vunpack.c.l.b16 %v890
        %v3162 = vunpack.c.h.b16 %v890
        %v3163 = vunpack.c.l.b16 %v891
        %v3164 = vunpack.c.h.b16 %v891
        %v3165 = vunpack.c.l.b16 %v892
        %v3166 = vunpack.c.h.b16 %v892
        %v3167 = vunpack.c.l.b16 %v893
        %v3168 = vunpack.c.h.b16 %v893
        %v3169 = vunpack.c.l.b16 %v894
        %v3170 = vunpack.c.h.b16 %v894
        %v3171 = vunpack.c.l.b16 %v895
        %v3172 = vunpack.c.h.b16 %v895
        %v3173 = vunpack.c.l.b16 %v896
        %v3174 = vunpack.c.h.b16 %v896
        %v3175 = vunpack.c.l.b16 %v897
        %v3176 = vunpack.c.h.b16 %v897
        %v3177 = vunpack.c.l.b16 %v898
        %v3178 = vunpack.c.h.b16 %v898
        %v3179 = vunpack.c.l.b16 %v899
        %v3180 = vunpack.c.h.b16 %v899
        %v3181 = vunpack.c.l.b16 %v900
        %v3182 = vunpack.c.h.b16 %v900
        %v3183 = vunpack.c.l.b16 %v901
        %v3184 = vunpack.c.h.b16 %v901
        %v3185 = vunpack.c.l.b16 %v902
        %v3186 = vunpack.c.h.b16 %v902
        %v3187 = vunpack.c.l.b16 %v903
        %v3188 = vunpack.c.h.b16 %v903
        %v3189 = vunpack.c.l.b16 %v904
        %v3190 = vunpack.c.h.b16 %v904
        %v3191 = vunpack.c.l.b16 %v905
        %v3192 = vunpack.c.h.b16 %v905
        %v3193 = vunpack.c.l.b16 %v906
        %v3194 = vunpack.c.h.b16 %v906
        %v3195 = vunpack.c.l.b16 %v907
        %v3196 = vunpack.c.h.b16 %v907
        %v3197 = vunpack.c.l.b16 %v908
        %v3198 = vunpack.c.h.b16 %v908
        %v3199 = vunpack.c.l.b16 %v909
        %v3200 = vunpack.c.h.b16 %v909
        %v3201 = vunpack.c.l.b16 %v910
        %v3202 = vunpack.c.h.b16 %v910
        %v3203 = vunpack.c.l.b16 %v911
        %v3204 = vunpack.c.h.b16 %v911
        %v3205 = vunpack.c.l.b16 %v912
        %v3206 = vunpack.c.h.b16 %v912
        %v3207 = vunpack.c.l.b16 %v913
        %v3208 = vunpack.c.h.b16 %v913
        %v3209 = vunpack.c.l.b16 %v914
        %v3210 = vunpack.c.h.b16 %v914
        %v3211 = vunpack.c.l.b16 %v915
        %v3212 = vunpack.c.h.b16 %v915
        %v3213 = vunpack.c.l.b16 %v916
        %v3214 = vunpack.c.h.b16 %v916
        %v3215 = vunpack.c.l.b16 %v917
        %v3216 = vunpack.c.h.b16 %v917
        %v3217 = vunpack.c.l.b16 %v918
        %v3218 = vunpack.c.h.b16 %v918
        %v3219 = vunpack.c.l.b16 %v919
        %v3220 = vunpack.c.h.b16 %v919
        %v3221 = vunpack.c.l.b16 %v920
        %v3222 = vunpack.c.h.b16 %v920
        %v3223 = vunpack.c.l.b16 %v921
        %v3224 = vunpack.c.h.b16 %v921
        %v3225 = vunpack.c.l.b16 %v922
        %v3226 = vunpack.c.h.b16 %v922
        %v3227 = vunpack.c.l.b16 %v923
        %v3228 = vunpack.c.h.b16 %v923
        %v3229 = vunpack.c.l.b16 %v924
        %v3230 = vunpack.c.h.b16 %v924
        %v3231 = vunpack.c.l.b16 %v925
        %v3232 = vunpack.c.h.b16 %v925
        %v3233 = vunpack.c.l.b16 %v926
        %v3234 = vunpack.c.h.b16 %v926
        %v3235 = vunpack.c.l.b16 %v927
        %v3236 = vunpack.c.h.b16 %v927
        %v3237 = vunpack.c.l.b16 %v928
        %v3238 = vunpack.c.h.b16 %v928
        %v3239 = vunpack.c.l.b16 %v929
        %v3240 = vunpack.c.h.b16 %v929
        %v3241 = vunpack.c.l.b16 %v930
        %v3242 = vunpack.c.h.b16 %v930
        %v3243 = vunpack.c.l.b16 %v931
        %v3244 = vunpack.c.h.b16 %v931
        %v3245 = vunpack.c.l.b16 %v932
        %v3246 = vunpack.c.h.b16 %v932
        %v3247 = vunpack.c.l.b16 %v933
        %v3248 = vunpack.c.h.b16 %v933
        %v3249 = vunpack.c.l.b16 %v934
        %v3250 = vunpack.c.h.b16 %v934
        %v3251 = vunpack.c.l.b16 %v935
        %v3252 = vunpack.c.h.b16 %v935
        %v3253 = vunpack.c.l.b16 %v936
        %v3254 = vunpack.c.h.b16 %v936
        %v3255 = vunpack.c.l.b16 %v937
        %v3256 = vunpack.c.h.b16 %v937
        %v3257 = vunpack.c.l.b16 %v938
        %v3258 = vunpack.c.h.b16 %v938
        %v3259 = vunpack.c.l.b16 %v939
        %v3260 = vunpack.c.h.b16 %v939
        %v3261 = vunpack.c.l.b16 %v940
        %v3262 = vunpack.c.h.b16 %v940
        %v3263 = vunpack.c.l.b16 %v941
        %v3264 = vunpack.c.h.b16 %v941
        %v3265 = vunpack.c.l.b16 %v942
        %v3266 = vunpack.c.h.b16 %v942
        %v3267 = vunpack.c.l.b16 %v943
        %v3268 = vunpack.c.h.b16 %v943
        %v3269 = vunpack.c.l.b16 %v944
        %v3270 = vunpack.c.h.b16 %v944
        %v3271 = vunpack.c.l.b16 %v945
        %v3272 = vunpack.c.h.b16 %v945
        %v3273 = vunpack.c.l.b16 %v946
        %v3274 = vunpack.c.h.b16 %v946
        %v3275 = vunpack.c.l.b16 %v947
        %v3276 = vunpack.c.h.b16 %v947
        %v3277 = vunpack.c.l.b16 %v948
        %v3278 = vunpack.c.h.b16 %v948
        %v3279 = vunpack.c.l.b16 %v949
        %v3280 = vunpack.c.h.b16 %v949
        %v3281 = vunpack.c.l.b16 %v950
        %v3282 = vunpack.c.h.b16 %v950
        %v3283 = vunpack.c.l.b16 %v951
        %v3284 = vunpack.c.h.b16 %v951
        %v3285 = vunpack.c.l.b16 %v952
        %v3286 = vunpack.c.h.b16 %v952
        %v3287 = vunpack.c.l.b16 %v953
        %v3288 = vunpack.c.h.b16 %v953
        %v3289 = vunpack.c.l.b16 %v954
        %v3290 = vunpack.c.h.b16 %v954
        %v3291 = vunpack.c.l.b16 %v955
        %v3292 = vunpack.c.h.b16 %v955
        %v3293 = vunpack.c.l.b16 %v956
        %v3294 = vunpack.c.h.b16 %v956
        %v3295 = vunpack.c.l.b16 %v957
        %v3296 = vunpack.c.h.b16 %v957
        %v3297 = vunpack.c.l.b16 %v958
        %v3298 = vunpack.c.h.b16 %v958
        %v3299 = vunpack.c.l.b16 %v959
        %v3300 = vunpack.c.h.b16 %v959
        %v3301 = vunpack.c.l.b16 %v960
        %v3302 = vunpack.c.h.b16 %v960
        %v3303 = vunpack.c.l.b16 %v961
        %v3304 = vunpack.c.h.b16 %v961
        %v3305 = vunpack.c.l.b16 %v962
        %v3306 = vunpack.c.h.b16 %v962
        %v3307 = vunpack.c.l.b16 %v963
        %v3308 = vunpack.c.h.b16 %v963
        %v3309 = vunpack.c.l.b16 %v964
        %v3310 = vunpack.c.h.b16 %v964
        %v3311 = vunpack.c.l.b16 %v965
        %v3312 = vunpack.c.h.b16 %v965
        %v3313 = vunpack.c.l.b16 %v966
        %v3314 = vunpack.c.h.b16 %v966
        %v3315 = vunpack.c.l.b16 %v967
        %v3316 = vunpack.c.h.b16 %v967
        %v3317 = vunpack.c.l.b16 %v968
        %v3318 = vunpack.c.h.b16 %v968
        %v3319 = vunpack.c.l.b16 %v969
        %v3320 = vunpack.c.h.b16 %v969
        %v3321 = vunpack.c.l.b16 %v970
        %v3322 = vunpack.c.h.b16 %v970
        %v3323 = vunpack.c.l.b16 %v971
        %v3324 = vunpack.c.h.b16 %v971
        %v3325 = vunpack.c.l.b16 %v972
        %v3326 = vunpack.c.h.b16 %v972
        %v3327 = vunpack.c.l.b16 %v973
        %v3328 = vunpack.c.h.b16 %v973
        %v3329 = vunpack.c.l.b16 %v974
        %v3330 = vunpack.c.h.b16 %v974
        %v3331 = vunpack.c.l.b16 %v975
        %v3332 = vunpack.c.h.b16 %v975
        %v3333 = vunpack.c.l.b16 %v976
        %v3334 = vunpack.c.h.b16 %v976
        %v3335 = vunpack.c.l.b16 %v977
        %v3336 = vunpack.c.h.b16 %v977
        %v3337 = vunpack.c.l.b16 %v978
        %v3338 = vunpack.c.h.b16 %v978
        %v3339 = vunpack.c.l.b16 %v979
        %v3340 = vunpack.c.h.b16 %v979
        %v3341 = vunpack.c.l.b16 %v980
        %v3342 = vunpack.c.h.b16 %v980
        %v3343 = vunpack.c.l.b16 %v981
        %v3344 = vunpack.c.h.b16 %v981
        %v3345 = vunpack.c.l.b16 %v982
        %v3346 = vunpack.c.h.b16 %v982
        %v3347 = vunpack.c.l.b16 %v983
        %v3348 = vunpack.c.h.b16 %v983
        %v3349 = vunpack.c.l.b16 %v984
        %v3350 = vunpack.c.h.b16 %v984
        %v3351 = vunpack.c.l.b16 %v985
        %v3352 = vunpack.c.h.b16 %v985
        %v3353 = vunpack.c.l.b16 %v986
        %v3354 = vunpack.c.h.b16 %v986
        %v3355 = vunpack.c.l.b16 %v987
        %v3356 = vunpack.c.h.b16 %v987
        %v3357 = vunpack.c.l.b16 %v988
        %v3358 = vunpack.c.h.b16 %v988
        %v3359 = vunpack.c.l.b16 %v989
        %v3360 = vunpack.c.h.b16 %v989
        %v3361 = vunpack.c.l.b16 %v990
        %v3362 = vunpack.c.h.b16 %v990
        %v3363 = vunpack.c.l.b16 %v991
        %v3364 = vunpack.c.h.b16 %v991
        %v3365 = vunpack.c.l.b16 %v992
        %v3366 = vunpack.c.h.b16 %v992
        %v3367 = vunpack.c.l.b16 %v993
        %v3368 = vunpack.c.h.b16 %v993
        %v3369 = vunpack.c.l.b16 %v994
        %v3370 = vunpack.c.h.b16 %v994
        %v3371 = vunpack.c.l.b16 %v995
        %v3372 = vunpack.c.h.b16 %v995
        %v3373 = vunpack.c.l.b16 %v996
        %v3374 = vunpack.c.h.b16 %v996
        %v3375 = vunpack.c.l.b16 %v997
        %v3376 = vunpack.c.h.b16 %v997
        %v3377 = vunpack.c.l.b16 %v998
        %v3378 = vunpack.c.h.b16 %v998
        %v3379 = vunpack.c.l.b16 %v999
        %v3380 = vunpack.c.h.b16 %v999
        %v3381 = vunpack.c.l.b16 %v1000
        %v3382 = vunpack.c.h.b16 %v1000
        %v3383 = vunpack.c.l.b16 %v1001
        %v3384 = vunpack.c.h.b16 %v1001
        %v3385 = vunpack.c.l.b16 %v1002
        %v3386 = vunpack.c.h.b16 %v1002
        %v3387 = vunpack.c.l.b16 %v1003
        %v3388 = vunpack.c.h.b16 %v1003
        %v3389 = vunpack.c.l.b16 %v1004
        %v3390 = vunpack.c.h.b16 %v1004
        %v3391 = vunpack.c.l.b16 %v1005
        %v3392 = vunpack.c.h.b16 %v1005
        %v3393 = vunpack.c.l.b16 %v1006
        %v3394 = vunpack.c.h.b16 %v1006
        %v3395 = vunpack.c.l.b16 %v1007
        %v3396 = vunpack.c.h.b16 %v1007
        %v3397 = vunpack.c.l.b16 %v1008
        %v3398 = vunpack.c.h.b16 %v1008
        %v3399 = vunpack.c.l.b16 %v1009
        %v3400 = vunpack.c.h.b16 %v1009
        %v3401 = vunpack.c.l.b16 %v1010
        %v3402 = vunpack.c.h.b16 %v1010
        %v3403 = vunpack.c.l.b16 %v1011
        %v3404 = vunpack.c.h.b16 %v1011
        %v3405 = vunpack.c.l.b16 %v1012
        %v3406 = vunpack.c.h.b16 %v1012
        %v3407 = vunpack.c.l.b16 %v1013
        %v3408 = vunpack.c.h.b16 %v1013
        %v3409 = vunpack.c.l.b16 %v1014
        %v3410 = vunpack.c.h.b16 %v1014
        %v3411 = vunpack.c.l.b16 %v1015
        %v3412 = vunpack.c.h.b16 %v1015
        %v3413 = vunpack.c.l.b16 %v1016
        %v3414 = vunpack.c.h.b16 %v1016
        %v3415 = vunpack.c.l.b16 %v1017
        %v3416 = vunpack.c.h.b16 %v1017
        %v3417 = vunpack.c.l.b16 %v1018
        %v3418 = vunpack.c.h.b16 %v1018
        %v3419 = vunpack.c.l.b16 %v1019
        %v3420 = vunpack.c.h.b16 %v1019
        %v3421 = vunpack.c.l.b16 %v1020
        %v3422 = vunpack.c.h.b16 %v1020
        %v3423 = vunpack.c.l.b16 %v1021
        %v3424 = vunpack.c.h.b16 %v1021
        %v3425 = vunpack.c.l.b16 %v1022
        %v3426 = vunpack.c.h.b16 %v1022
        %v3427 = vunpack.c.l.b16 %v1023
        %v3428 = vunpack.c.h.b16 %v1023
        %v3429 = vunpack.c.l.b16 %v1024
        %v3430 = vunpack.c.h.b16 %v1024
        %v3431 = vunpack.c.l.b16 %v1025
        %v3432 = vunpack.c.h.b16 %v1025
        %v3433 = vunpack.c.l.b16 %v1026
        %v3434 = vunpack.c.h.b16 %v1026
        %v3435 = vunpack.c.l.b16 %v1027
        %v3436 = vunpack.c.h.b16 %v1027
        %v3437 = vunpack.c.l.b16 %v1028
        %v3438 = vunpack.c.h.b16 %v1028
        %v3439 = vunpack.c.l.b16 %v1029
        %v3440 = vunpack.c.h.b16 %v1029
        %v3441 = vunpack.c.l.b16 %v1030
        %v3442 = vunpack.c.h.b16 %v1030
        %v3443 = vunpack.c.l.b16 %v1031
        %v3444 = vunpack.c.h.b16 %v1031
        %v3445 = vunpack.c.l.b16 %v1032
        %v3446 = vunpack.c.h.b16 %v1032
        %v3447 = vunpack.c.l.b16 %v1033
        %v3448 = vunpack.c.h.b16 %v1033
        %v3449 = vunpack.c.l.b16 %v1034
        %v3450 = vunpack.c.h.b16 %v1034
        %v3451 = vunpack.c.l.b16 %v1035
        %v3452 = vunpack.c.h.b16 %v1035
        %v3453 = vunpack.c.l.b16 %v1036
        %v3454 = vunpack.c.h.b16 %v1036
        %v3455 = vunpack.c.l.b16 %v1037
        %v3456 = vunpack.c.h.b16 %v1037
        %v3457 = vunpack.c.l.b16 %v1038
        %v3458 = vunpack.c.h.b16 %v1038
        %v3459 = vunpack.c.l.b16 %v1039
        %v3460 = vunpack.c.h.b16 %v1039
        %v3461 = vunpack.c.l.b16 %v1040
        %v3462 = vunpack.c.h.b16 %v1040
        %v3463 = vunpack.c.l.b16 %v1041
        %v3464 = vunpack.c.h.b16 %v1041
        %v3465 = vunpack.c.l.b16 %v1042
        %v3466 = vunpack.c.h.b16 %v1042
        %v3467 = vunpack.c.l.b16 %v1043
        %v3468 = vunpack.c.h.b16 %v1043
        %v3469 = vunpack.c.l.b16 %v1044
        %v3470 = vunpack.c.h.b16 %v1044
        %v3471 = vunpack.c.l.b16 %v1045
        %v3472 = vunpack.c.h.b16 %v1045
        %v3473 = vunpack.c.l.b16 %v1046
        %v3474 = vunpack.c.h.b16 %v1046
        %v3475 = vunpack.c.l.b16 %v1047
        %v3476 = vunpack.c.h.b16 %v1047
        %v3477 = vunpack.c.l.b16 %v1048
        %v3478 = vunpack.c.h.b16 %v1048
        %v3479 = vunpack.c.l.b16 %v1049
        %v3480 = vunpack.c.h.b16 %v1049
        %v3481 = vunpack.c.l.b16 %v1050
        %v3482 = vunpack.c.h.b16 %v1050
        %v3483 = vunpack.c.l.b16 %v1051
        %v3484 = vunpack.c.h.b16 %v1051
        %v3485 = vunpack.c.l.b16 %v1052
        %v3486 = vunpack.c.h.b16 %v1052
        %v3487 = vunpack.c.l.b16 %v1053
        %v3488 = vunpack.c.h.b16 %v1053
        %v3489 = vunpack.c.l.b16 %v1054
        %v3490 = vunpack.c.h.b16 %v1054
        %v3491 = vunpack.c.l.b16 %v1055
        %v3492 = vunpack.c.h.b16 %v1055
        %v3493 = vunpack.c.l.b16 %v1056
        %v3494 = vunpack.c.h.b16 %v1056
        %v3495 = vunpack.c.l.b16 %v1057
        %v3496 = vunpack.c.h.b16 %v1057
        %v3497 = vunpack.c.l.b16 %v1058
        %v3498 = vunpack.c.h.b16 %v1058
        %v3499 = vunpack.c.l.b16 %v1059
        %v3500 = vunpack.c.h.b16 %v1059
        %v3501 = vunpack.c.l.b16 %v1060
        %v3502 = vunpack.c.h.b16 %v1060
        %v3503 = vunpack.c.l.b16 %v1061
        %v3504 = vunpack.c.h.b16 %v1061
        %v3505 = vunpack.c.l.b16 %v1062
        %v3506 = vunpack.c.h.b16 %v1062
        %v3507 = vunpack.c.l.b16 %v1063
        %v3508 = vunpack.c.h.b16 %v1063
        %v3509 = vunpack.c.l.b16 %v1064
        %v3510 = vunpack.c.h.b16 %v1064
        %v3511 = vunpack.c.l.b16 %v1065
        %v3512 = vunpack.c.h.b16 %v1065
        %v3513 = vunpack.c.l.b16 %v1066
        %v3514 = vunpack.c.h.b16 %v1066
        %v3515 = vunpack.c.l.b16 %v1067
        %v3516 = vunpack.c.h.b16 %v1067
        %v3517 = vunpack.c.l.b16 %v1068
        %v3518 = vunpack.c.h.b16 %v1068
        %v3519 = vunpack.c.l.b16 %v1069
        %v3520 = vunpack.c.h.b16 %v1069
        %v3521 = vunpack.c.l.b16 %v1070
        %v3522 = vunpack.c.h.b16 %v1070
        %v3523 = vunpack.c.l.b16 %v1071
        %v3524 = vunpack.c.h.b16 %v1071
        %v3525 = vunpack.c.l.b16 %v1072
        %v3526 = vunpack.c.h.b16 %v1072
        %v3527 = vunpack.c.l.b16 %v1073
        %v3528 = vunpack.c.h.b16 %v1073
        %v3529 = vunpack.c.l.b16 %v1074
        %v3530 = vunpack.c.h.b16 %v1074
        %v3531 = vunpack.c.l.b16 %v1075
        %v3532 = vunpack.c.h.b16 %v1075
        %v3533 = vunpack.c.l.b16 %v1076
        %v3534 = vunpack.c.h.b16 %v1076
        %v3535 = vunpack.c.l.b16 %v1077
        %v3536 = vunpack.c.h.b16 %v1077
        %v3537 = vunpack.c.l.b16 %v1078
        %v3538 = vunpack.c.h.b16 %v1078
        %v3539 = vunpack.c.l.b16 %v1079
        %v3540 = vunpack.c.h.b16 %v1079
        %v3541 = vunpack.c.l.b16 %v1080
        %v3542 = vunpack.c.h.b16 %v1080
        %v3543 = vunpack.c.l.b16 %v1081
        %v3544 = vunpack.c.h.b16 %v1081
        %v3545 = vunpack.c.l.b16 %v1082
        %v3546 = vunpack.c.h.b16 %v1082
        %v3547 = vunpack.c.l.b16 %v1083
        %v3548 = vunpack.c.h.b16 %v1083
        %v3549 = vunpack.c.l.b16 %v1084
        %v3550 = vunpack.c.h.b16 %v1084
        %v3551 = vunpack.c.l.b16 %v1085
        %v3552 = vunpack.c.h.b16 %v1085
        %v3553 = vunpack.c.l.b16 %v1086
        %v3554 = vunpack.c.h.b16 %v1086
        %v3555 = vunpack.c.l.b16 %v1087
        %v3556 = vunpack.c.h.b16 %v1087
        %v3557 = vunpack.c.l.b16 %v1088
        %v3558 = vunpack.c.h.b16 %v1088
        %v3559 = vunpack.c.l.b16 %v1089
        %v3560 = vunpack.c.h.b16 %v1089
        %v3561 = vunpack.c.l.b16 %v1090
        %v3562 = vunpack.c.h.b16 %v1090
        %v3563 = vunpack.c.l.b16 %v1091
        %v3564 = vunpack.c.h.b16 %v1091
        %v3565 = vunpack.c.l.b16 %v1092
        %v3566 = vunpack.c.h.b16 %v1092
        %v3567 = vunpack.c.l.b16 %v1093
        %v3568 = vunpack.c.h.b16 %v1093
        %v3569 = vunpack.c.l.b16 %v1094
        %v3570 = vunpack.c.h.b16 %v1094
        %v3571 = vunpack.c.l.b16 %v1095
        %v3572 = vunpack.c.h.b16 %v1095
        %v3573 = vunpack.c.l.b16 %v1096
        %v3574 = vunpack.c.h.b16 %v1096
        %v3575 = vunpack.c.l.b16 %v1097
        %v3576 = vunpack.c.h.b16 %v1097
        %v3577 = vunpack.c.l.b16 %v1098
        %v3578 = vunpack.c.h.b16 %v1098
        %v3579 = vunpack.c.l.b16 %v1099
        %v3580 = vunpack.c.h.b16 %v1099
        %v3581 = vunpack.c.l.b16 %v1100
        %v3582 = vunpack.c.h.b16 %v1100
        %v3583 = vunpack.c.l.b16 %v1101
        %v3584 = vunpack.c.h.b16 %v1101
        %v3585 = vunpack.c.l.b16 %v1102
        %v3586 = vunpack.c.h.b16 %v1102
        %v3587 = vunpack.c.l.b16 %v1103
        %v3588 = vunpack.c.h.b16 %v1103
        %v3589 = vunpack.c.l.b16 %v1104
        %v3590 = vunpack.c.h.b16 %v1104
        %v3591 = vunpack.c.l.b16 %v1105
        %v3592 = vunpack.c.h.b16 %v1105
        %v3593 = vunpack.c.l.b16 %v1106
        %v3594 = vunpack.c.h.b16 %v1106
        %v3595 = vunpack.c.l.b16 %v1107
        %v3596 = vunpack.c.h.b16 %v1107
        %v3597 = vunpack.c.l.b16 %v1108
        %v3598 = vunpack.c.h.b16 %v1108
        %v3599 = vunpack.c.l.b16 %v1109
        %v3600 = vunpack.c.h.b16 %v1109
        %v3601 = vunpack.c.l.b16 %v1110
        %v3602 = vunpack.c.h.b16 %v1110
        %v3603 = vunpack.c.l.b16 %v1111
        %v3604 = vunpack.c.h.b16 %v1111
        %v3605 = vunpack.c.l.b16 %v1112
        %v3606 = vunpack.c.h.b16 %v1112
        %v3607 = vunpack.c.l.b16 %v1113
        %v3608 = vunpack.c.h.b16 %v1113
        %v3609 = vunpack.c.l.b16 %v1114
        %v3610 = vunpack.c.h.b16 %v1114
        %v3611 = vunpack.c.l.b16 %v1115
        %v3612 = vunpack.c.h.b16 %v1115
        %v3613 = vunpack.c.l.b16 %v1116
        %v3614 = vunpack.c.h.b16 %v1116
        %v3615 = vunpack.c.l.b16 %v1117
        %v3616 = vunpack.c.h.b16 %v1117
        %v3617 = vunpack.c.l.b16 %v1118
        %v3618 = vunpack.c.h.b16 %v1118
        %v3619 = vunpack.c.l.b16 %v1119
        %v3620 = vunpack.c.h.b16 %v1119
        %v3621 = vunpack.c.l.b16 %v1120
        %v3622 = vunpack.c.h.b16 %v1120
        %v3623 = vunpack.c.l.b16 %v1121
        %v3624 = vunpack.c.h.b16 %v1121
        %v3625 = vunpack.c.l.b16 %v1122
        %v3626 = vunpack.c.h.b16 %v1122
        %v3627 = vunpack.c.l.b16 %v1123
        %v3628 = vunpack.c.h.b16 %v1123
        %v3629 = vunpack.c.l.b16 %v1124
        %v3630 = vunpack.c.h.b16 %v1124
        %v3631 = vunpack.c.l.b16 %v1125
        %v3632 = vunpack.c.h.b16 %v1125
        %v3633 = vunpack.c.l.b16 %v1126
        %v3634 = vunpack.c.h.b16 %v1126
        %v3635 = vunpack.c.l.b16 %v1127
        %v3636 = vunpack.c.h.b16 %v1127
        %v3637 = vunpack.c.l.b16 %v1128
        %v3638 = vunpack.c.h.b16 %v1128
        %v3639 = vunpack.c.l.b16 %v1129
        %v3640 = vunpack.c.h.b16 %v1129
        %v3641 = vunpack.c.l.b16 %v1130
        %v3642 = vunpack.c.h.b16 %v1130
        %v3643 = vunpack.c.l.b16 %v1131
        %v3644 = vunpack.c.h.b16 %v1131
        %v3645 = vunpack.c.l.b16 %v1132
        %v3646 = vunpack.c.h.b16 %v1132
        %v3647 = vunpack.c.l.b16 %v1133
        %v3648 = vunpack.c.h.b16 %v1133
        %v3649 = vunpack.c.l.b16 %v1134
        %v3650 = vunpack.c.h.b16 %v1134
        %v3651 = vunpack.c.l.b16 %v1135
        %v3652 = vunpack.c.h.b16 %v1135
        %v3653 = vunpack.c.l.b16 %v1136
        %v3654 = vunpack.c.h.b16 %v1136
        %v3655 = vunpack.c.l.b16 %v1137
        %v3656 = vunpack.c.h.b16 %v1137
        %v3657 = vunpack.c.l.b16 %v1138
        %v3658 = vunpack.c.h.b16 %v1138
        %v3659 = vunpack.c.l.b16 %v1139
        %v3660 = vunpack.c.h.b16 %v1139
        %v3661 = vunpack.c.l.b16 %v1140
        %v3662 = vunpack.c.h.b16 %v1140
        %v3663 = vunpack.c.l.b16 %v1141
        %v3664 = vunpack.c.h.b16 %v1141
        %v3665 = vunpack.c.l.b16 %v1142
        %v3666 = vunpack.c.h.b16 %v1142
        %v3667 = vunpack.c.l.b16 %v1143
        %v3668 = vunpack.c.h.b16 %v1143
        %v3669 = vunpack.c.l.b16 %v1144
        %v3670 = vunpack.c.h.b16 %v1144
        %v3671 = vunpack.c.l.b16 %v1145
        %v3672 = vunpack.c.h.b16 %v1145
        %v3673 = vunpack.c.l.b16 %v1146
        %v3674 = vunpack.c.h.b16 %v1146
        %v3675 = vunpack.c.l.b16 %v1147
        %v3676 = vunpack.c.h.b16 %v1147
        %v3677 = vunpack.c.l.b16 %v1148
        %v3678 = vunpack.c.h.b16 %v1148
        %v3679 = vunpack.c.l.b16 %v1149
        %v3680 = vunpack.c.h.b16 %v1149
        %v3681 = vunpack.c.l.b16 %v1150
        %v3682 = vunpack.c.h.b16 %v1150
        %v3683 = vunpack.c.l.b16 %v1151
        %v3684 = vunpack.c.h.b16 %v1151
        %v3685 = vunpack.c.l.b16 %v1152
        %v3686 = vunpack.c.h.b16 %v1152
        %v3687 = vunpack.c.l.b16 %v1153
        %v3688 = vunpack.c.h.b16 %v1153
        %v3689 = vunpack.c.l.b16 %v1154
        %v3690 = vunpack.c.h.b16 %v1154
        %v3691 = vunpack.c.l.b16 %v1155
        %v3692 = vunpack.c.h.b16 %v1155
        %v3693 = vunpack.c.l.b16 %v1156
        %v3694 = vunpack.c.h.b16 %v1156
        %v3695 = vunpack.c.l.b16 %v1157
        %v3696 = vunpack.c.h.b16 %v1157
        %v3697 = vunpack.c.l.b16 %v1158
        %v3698 = vunpack.c.h.b16 %v1158
        %v3699 = vunpack.c.l.b16 %v1159
        %v3700 = vunpack.c.h.b16 %v1159
        %v3701 = vunpack.c.l.b16 %v1160
        %v3702 = vunpack.c.h.b16 %v1160
        %v3703 = vunpack.c.l.b16 %v1161
        %v3704 = vunpack.c.h.b16 %v1161
        %v3705 = vunpack.c.l.b16 %v1162
        %v3706 = vunpack.c.h.b16 %v1162
        %v3707 = vunpack.c.l.b16 %v1163
        %v3708 = vunpack.c.h.b16 %v1163
        %v3709 = vunpack.c.l.b16 %v1164
        %v3710 = vunpack.c.h.b16 %v1164
        %v3711 = vunpack.c.l.b16 %v1165
        %v3712 = vunpack.c.h.b16 %v1165
        %v3713 = vunpack.c.l.b16 %v1166
        %v3714 = vunpack.c.h.b16 %v1166
        %v3715 = vunpack.c.l.b16 %v1167
        %v3716 = vunpack.c.h.b16 %v1167
        %v3717 = vunpack.c.l.b16 %v1168
        %v3718 = vunpack.c.h.b16 %v1168
        %v3719 = vunpack.c.l.b16 %v1169
        %v3720 = vunpack.c.h.b16 %v1169
        %v3721 = vunpack.c.l.b16 %v1170
        %v3722 = vunpack.c.h.b16 %v1170
        %v3723 = vunpack.c.l.b16 %v1171
        %v3724 = vunpack.c.h.b16 %v1171
        %v3725 = vunpack.c.l.b16 %v1172
        %v3726 = vunpack.c.h.b16 %v1172
        %v3727 = vunpack.c.l.b16 %v1173
        %v3728 = vunpack.c.h.b16 %v1173
        %v3729 = vunpack.c.l.b16 %v1174
        %v3730 = vunpack.c.h.b16 %v1174
        %v3731 = vunpack.c.l.b16 %v1175
        %v3732 = vunpack.c.h.b16 %v1175
        %v3733 = vunpack.c.l.b16 %v1176
        %v3734 = vunpack.c.h.b16 %v1176
        %v3735 = vunpack.c.l.b16 %v1177
        %v3736 = vunpack.c.h.b16 %v1177
        %v3737 = vunpack.c.l.b16 %v1178
        %v3738 = vunpack.c.h.b16 %v1178
        %v3739 = vunpack.c.l.b16 %v1179
        %v3740 = vunpack.c.h.b16 %v1179
        %v3741 = vunpack.c.l.b16 %v1180
        %v3742 = vunpack.c.h.b16 %v1180
        %v3743 = vunpack.c.l.b16 %v1181
        %v3744 = vunpack.c.h.b16 %v1181
        %v3745 = vunpack.c.l.b16 %v1182
        %v3746 = vunpack.c.h.b16 %v1182
        %v3747 = vunpack.c.l.b16 %v1183
        %v3748 = vunpack.c.h.b16 %v1183
        %v3749 = vunpack.c.l.b16 %v1184
        %v3750 = vunpack.c.h.b16 %v1184
        %v3751 = vunpack.c.l.b16 %v1185
        %v3752 = vunpack.c.h.b16 %v1185
        %v3753 = vunpack.c.l.b16 %v1186
        %v3754 = vunpack.c.h.b16 %v1186
        %v3755 = vunpack.c.l.b16 %v1187
        %v3756 = vunpack.c.h.b16 %v1187
        %v3757 = vunpack.c.l.b16 %v1188
        %v3758 = vunpack.c.h.b16 %v1188
        %v3759 = vunpack.c.l.b16 %v1189
        %v3760 = vunpack.c.h.b16 %v1189
        %v3761 = vunpack.c.l.b16 %v1190
        %v3762 = vunpack.c.h.b16 %v1190
        %v3763 = vunpack.c.l.b16 %v1191
        %v3764 = vunpack.c.h.b16 %v1191
        %v3765 = vunpack.c.l.b16 %v1192
        %v3766 = vunpack.c.h.b16 %v1192
        %v3767 = vunpack.c.l.b16 %v1193
        %v3768 = vunpack.c.h.b16 %v1193
        %v3769 = vunpack.c.l.b16 %v1194
        %v3770 = vunpack.c.h.b16 %v1194
        %v3771 = vunpack.c.l.b16 %v1195
        %v3772 = vunpack.c.h.b16 %v1195
        %v3773 = vunpack.c.l.b16 %v1196
        %v3774 = vunpack.c.h.b16 %v1196
        %v3775 = vunpack.c.l.b16 %v1197
        %v3776 = vunpack.c.h.b16 %v1197
        %v3777 = vunpack.c.l.b16 %v1198
        %v3778 = vunpack.c.h.b16 %v1198
        %v3779 = vunpack.c.l.b16 %v1199
        %v3780 = vunpack.c.h.b16 %v1199
        %v3781 = vunpack.c.l.b16 %v1200
        %v3782 = vunpack.c.h.b16 %v1200
        %v3783 = vunpack.c.l.b16 %v1201
        %v3784 = vunpack.c.h.b16 %v1201
        %v3785 = vunpack.c.l.b16 %v1202
        %v3786 = vunpack.c.h.b16 %v1202
        %v3787 = vunpack.c.l.b16 %v1203
        %v3788 = vunpack.c.h.b16 %v1203
        %v3789 = vunpack.c.l.b16 %v1204
        %v3790 = vunpack.c.h.b16 %v1204
        %v3791 = vunpack.c.l.b16 %v1205
        %v3792 = vunpack.c.h.b16 %v1205
        %v3793 = vunpack.c.l.b16 %v1206
        %v3794 = vunpack.c.h.b16 %v1206
        %v3795 = vunpack.c.l.b16 %v1207
        %v3796 = vunpack.c.h.b16 %v1207
        %v3797 = vunpack.c.l.b16 %v1208
        %v3798 = vunpack.c.h.b16 %v1208
        %v3799 = vunpack.c.l.b16 %v1209
        %v3800 = vunpack.c.h.b16 %v1209
        %v3801 = vunpack.c.l.b16 %v1210
        %v3802 = vunpack.c.h.b16 %v1210
        %v3803 = vunpack.c.l.b16 %v1211
        %v3804 = vunpack.c.h.b16 %v1211
        %v3805 = vunpack.c.l.b16 %v1212
        %v3806 = vunpack.c.h.b16 %v1212
        %v3807 = vunpack.c.l.b16 %v1213
        %v3808 = vunpack.c.h.b16 %v1213
        %v3809 = vunpack.c.l.b16 %v1214
        %v3810 = vunpack.c.h.b16 %v1214
        %v3811 = vunpack.c.l.b16 %v1215
        %v3812 = vunpack.c.h.b16 %v1215
        %v3813 = vunpack.c.l.b16 %v1216
        %v3814 = vunpack.c.h.b16 %v1216
        %v3815 = vunpack.c.l.b16 %v1217
        %v3816 = vunpack.c.h.b16 %v1217
        %v3817 = vunpack.c.l.b16 %v1218
        %v3818 = vunpack.c.h.b16 %v1218
        %v3819 = vunpack.c.l.b16 %v1219
        %v3820 = vunpack.c.h.b16 %v1219
        %v3821 = vunpack.c.l.b16 %v1220
        %v3822 = vunpack.c.h.b16 %v1220
        %v3823 = vunpack.c.l.b16 %v1221
        %v3824 = vunpack.c.h.b16 %v1221
        %v3825 = vunpack.c.l.b16 %v1222
        %v3826 = vunpack.c.h.b16 %v1222
        %v3827 = vunpack.c.l.b16 %v1223
        %v3828 = vunpack.c.h.b16 %v1223
        %v3829 = vunpack.c.l.b16 %v1224
        %v3830 = vunpack.c.h.b16 %v1224
        %v3831 = vunpack.c.l.b16 %v1225
        %v3832 = vunpack.c.h.b16 %v1225
        %v3833 = vunpack.c.l.b16 %v1226
        %v3834 = vunpack.c.h.b16 %v1226
        %v3835 = vunpack.c.l.b16 %v1227
        %v3836 = vunpack.c.h.b16 %v1227
        %v3837 = vunpack.c.l.b16 %v1228
        %v3838 = vunpack.c.h.b16 %v1228
        %v3839 = vunpack.c.l.b16 %v1229
        %v3840 = vunpack.c.h.b16 %v1229
        %v3841 = vunpack.c.l.b16 %v1230
        %v3842 = vunpack.c.h.b16 %v1230
        %v3843 = vunpack.c.l.b16 %v1231
        %v3844 = vunpack.c.h.b16 %v1231
        %v3845 = vunpack.c.l.b16 %v1232
        %v3846 = vunpack.c.h.b16 %v1232
        %v3847 = vunpack.c.l.b16 %v1233
        %v3848 = vunpack.c.h.b16 %v1233
        %v3849 = vunpack.c.l.b16 %v1234
        %v3850 = vunpack.c.h.b16 %v1234
        %v3851 = vunpack.c.l.b16 %v1235
        %v3852 = vunpack.c.h.b16 %v1235
        %v3853 = vunpack.c.l.b16 %v1236
        %v3854 = vunpack.c.h.b16 %v1236
        %v3855 = vunpack.c.l.b16 %v1237
        %v3856 = vunpack.c.h.b16 %v1237
        %v3857 = vunpack.c.l.b16 %v1238
        %v3858 = vunpack.c.h.b16 %v1238
        %v3859 = vunpack.c.l.b16 %v1239
        %v3860 = vunpack.c.h.b16 %v1239
        %v3861 = vunpack.c.l.b16 %v1240
        %v3862 = vunpack.c.h.b16 %v1240
        %v3863 = vunpack.c.l.b16 %v1241
        %v3864 = vunpack.c.h.b16 %v1241
        %v3865 = vunpack.c.l.b16 %v1242
        %v3866 = vunpack.c.h.b16 %v1242
        %v3867 = vunpack.c.l.b16 %v1243
        %v3868 = vunpack.c.h.b16 %v1243
        %v3869 = vunpack.c.l.b16 %v1244
        %v3870 = vunpack.c.h.b16 %v1244
        %v3871 = vunpack.c.l.b16 %v1245
        %v3872 = vunpack.c.h.b16 %v1245
        %v3873 = vunpack.c.l.b16 %v1246
        %v3874 = vunpack.c.h.b16 %v1246
        %v3875 = vunpack.c.l.b16 %v1247
        %v3876 = vunpack.c.h.b16 %v1247
        %v3877 = vunpack.c.l.b16 %v1248
        %v3878 = vunpack.c.h.b16 %v1248
        %v3879 = vunpack.c.l.b16 %v1249
        %v3880 = vunpack.c.h.b16 %v1249
        %v3881 = vunpack.c.l.b16 %v1250
        %v3882 = vunpack.c.h.b16 %v1250
        %v3883 = vunpack.c.l.b16 %v1251
        %v3884 = vunpack.c.h.b16 %v1251
        %v3885 = vunpack.c.l.b16 %v1252
        %v3886 = vunpack.c.h.b16 %v1252
        %v3887 = vunpack.c.l.b16 %v1253
        %v3888 = vunpack.c.h.b16 %v1253
        %v3889 = vunpack.c.l.b16 %v1254
        %v3890 = vunpack.c.h.b16 %v1254
        %v3891 = vunpack.c.l.b16 %v1255
        %v3892 = vunpack.c.h.b16 %v1255
        %v3893 = vunpack.c.l.b16 %v1256
        %v3894 = vunpack.c.h.b16 %v1256
        %v3895 = vunpack.c.l.b16 %v1257
        %v3896 = vunpack.c.h.b16 %v1257
        %v3897 = vunpack.c.l.b16 %v1258
        %v3898 = vunpack.c.h.b16 %v1258
        %v3899 = vunpack.c.l.b16 %v1259
        %v3900 = vunpack.c.h.b16 %v1259
        %v3901 = vunpack.c.l.b16 %v1260
        %v3902 = vunpack.c.h.b16 %v1260
        %v3903 = vunpack.c.l.b16 %v1261
        %v3904 = vunpack.c.h.b16 %v1261
        %v3905 = vunpack.c.l.b16 %v1262
        %v3906 = vunpack.c.h.b16 %v1262
        %v3907 = vunpack.c.l.b16 %v1263
        %v3908 = vunpack.c.h.b16 %v1263
        %v3909 = vunpack.c.l.b16 %v1264
        %v3910 = vunpack.c.h.b16 %v1264
        %v3911 = vunpack.c.l.b16 %v1265
        %v3912 = vunpack.c.h.b16 %v1265
        %v3913 = vunpack.c.l.b16 %v1266
        %v3914 = vunpack.c.h.b16 %v1266
        %v3915 = vunpack.c.l.b16 %v1267
        %v3916 = vunpack.c.h.b16 %v1267
        %v3917 = vunpack.c.l.b16 %v1268
        %v3918 = vunpack.c.h.b16 %v1268
        %v3919 = vunpack.c.l.b16 %v1269
        %v3920 = vunpack.c.h.b16 %v1269
        %v3921 = vunpack.c.l.b16 %v1270
        %v3922 = vunpack.c.h.b16 %v1270
        %v3923 = vunpack.c.l.b16 %v1271
        %v3924 = vunpack.c.h.b16 %v1271
        %v3925 = vunpack.c.l.b16 %v1272
        %v3926 = vunpack.c.h.b16 %v1272
        %v3927 = vunpack.c.l.b16 %v1273
        %v3928 = vunpack.c.h.b16 %v1273
        %v3929 = vunpack.c.l.b16 %v1274
        %v3930 = vunpack.c.h.b16 %v1274
        %v3931 = vunpack.c.l.b16 %v1275
        %v3932 = vunpack.c.h.b16 %v1275
        %v3933 = vunpack.c.l.b16 %v1276
        %v3934 = vunpack.c.h.b16 %v1276
        %v3935 = vunpack.c.l.b16 %v1277
        %v3936 = vunpack.c.h.b16 %v1277
        %v3937 = vunpack.c.l.b16 %v1278
        %v3938 = vunpack.c.h.b16 %v1278
        %v3939 = vunpack.c.l.b16 %v1279
        %v3940 = vunpack.c.h.b16 %v1279
        %v3941 = vunpack.c.l.b16 %v1280
        %v3942 = vunpack.c.h.b16 %v1280
        %v3943 = vunpack.c.l.b16 %v1281
        %v3944 = vunpack.c.h.b16 %v1281
        %v3945 = vunpack.c.l.b16 %v1282
        %v3946 = vunpack.c.h.b16 %v1282
        %v3947 = vunpack.c.l.b16 %v1283
        %v3948 = vunpack.c.h.b16 %v1283
        %v3949 = vunpack.c.l.b16 %v1284
        %v3950 = vunpack.c.h.b16 %v1284
        %v3951 = vunpack.c.l.b16 %v1285
        %v3952 = vunpack.c.h.b16 %v1285
        %v3953 = vunpack.c.l.b16 %v1286
        %v3954 = vunpack.c.h.b16 %v1286
        %v3955 = vunpack.c.l.b16 %v1287
        %v3956 = vunpack.c.h.b16 %v1287
        %v3957 = vunpack.c.l.b16 %v1288
        %v3958 = vunpack.c.h.b16 %v1288
        %v3959 = vunpack.c.l.b16 %v1289
        %v3960 = vunpack.c.h.b16 %v1289
        %v3961 = vunpack.c.l.b16 %v1290
        %v3962 = vunpack.c.h.b16 %v1290
        %v3963 = vunpack.c.l.b16 %v1291
        %v3964 = vunpack.c.h.b16 %v1291
        %v3965 = vunpack.c.l.b16 %v1292
        %v3966 = vunpack.c.h.b16 %v1292
        %v3967 = vunpack.c.l.b16 %v1293
        %v3968 = vunpack.c.h.b16 %v1293
        %v3969 = vunpack.c.l.b16 %v1294
        %v3970 = vunpack.c.h.b16 %v1294
        %v3971 = vunpack.c.l.b16 %v1295
        %v3972 = vunpack.c.h.b16 %v1295
        %v3973 = vunpack.c.l.b16 %v1296
        %v3974 = vunpack.c.h.b16 %v1296
        %v3975 = vunpack.c.l.b16 %v1297
        %v3976 = vunpack.c.h.b16 %v1297
        %v3977 = vunpack.c.l.b16 %v1298
        %v3978 = vunpack.c.h.b16 %v1298
        %v3979 = vunpack.c.l.b16 %v1299
        %v3980 = vunpack.c.h.b16 %v1299
        %v3981 = vunpack.c.l.b16 %v1300
        %v3982 = vunpack.c.h.b16 %v1300
        %v3983 = vunpack.c.l.b16 %v1301
        %v3984 = vunpack.c.h.b16 %v1301
        %v3985 = vunpack.c.l.b16 %v1302
        %v3986 = vunpack.c.h.b16 %v1302
        %v3987 = vunpack.c.l.b16 %v1303
        %v3988 = vunpack.c.h.b16 %v1303
        %v3989 = vunpack.c.l.b16 %v1304
        %v3990 = vunpack.c.h.b16 %v1304
        %v3991 = vunpack.c.l.b16 %v1305
        %v3992 = vunpack.c.h.b16 %v1305
        %v3993 = vunpack.c.l.b16 %v1306
        %v3994 = vunpack.c.h.b16 %v1306
        %v3995 = vunpack.c.l.b16 %v1307
        %v3996 = vunpack.c.h.b16 %v1307
        %v3997 = vunpack.c.l.b16 %v1308
        %v3998 = vunpack.c.h.b16 %v1308
        %v3999 = vunpack.c.l.b16 %v1309
        %v4000 = vunpack.c.h.b16 %v1309
        %v4001 = vunpack.c.l.b16 %v1310
        %v4002 = vunpack.c.h.b16 %v1310
        %v4003 = vunpack.c.l.b16 %v1311
        %v4004 = vunpack.c.h.b16 %v1311
        %v4005 = vunpack.c.l.b16 %v1312
        %v4006 = vunpack.c.h.b16 %v1312
        %v4007 = vunpack.c.l.b16 %v1313
        %v4008 = vunpack.c.h.b16 %v1313
        %v4009 = vunpack.c.l.b16 %v1314
        %v4010 = vunpack.c.h.b16 %v1314
        %v4011 = vunpack.c.l.b16 %v1315
        %v4012 = vunpack.c.h.b16 %v1315
        %v4013 = vunpack.c.l.b16 %v1316
        %v4014 = vunpack.c.h.b16 %v1316
        %v4015 = vunpack.c.l.b16 %v1317
        %v4016 = vunpack.c.h.b16 %v1317
        %v4017 = vunpack.c.l.b16 %v1318
        %v4018 = vunpack.c.h.b16 %v1318
        %v4019 = vunpack.c.l.b16 %v1319
        %v4020 = vunpack.c.h.b16 %v1319
        %v4021 = vunpack.c.l.b16 %v1320
        %v4022 = vunpack.c.h.b16 %v1320
        %v4023 = vunpack.c.l.b16 %v1321
        %v4024 = vunpack.c.h.b16 %v1321
        %v4025 = vunpack.c.l.b16 %v1322
        %v4026 = vunpack.c.h.b16 %v1322
        %v4027 = vunpack.c.l.b16 %v1323
        %v4028 = vunpack.c.h.b16 %v1323
        %v4029 = vunpack.c.l.b16 %v1324
        %v4030 = vunpack.c.h.b16 %v1324
        %v4031 = vunpack.c.l.b16 %v1325
        %v4032 = vunpack.c.h.b16 %v1325
        %v4033 = vunpack.c.l.b16 %v1326
        %v4034 = vunpack.c.h.b16 %v1326
        %v4035 = vunpack.c.l.b16 %v1327
        %v4036 = vunpack.c.h.b16 %v1327
        %v4037 = vunpack.c.l.b16 %v1328
        %v4038 = vunpack.c.h.b16 %v1328
        %v4039 = vunpack.c.l.b16 %v1329
        %v4040 = vunpack.c.h.b16 %v1329
        %v4041 = vunpack.c.l.b16 %v1330
        %v4042 = vunpack.c.h.b16 %v1330
        %v4043 = vunpack.c.l.b16 %v1331
        %v4044 = vunpack.c.h.b16 %v1331
        %v4045 = vunpack.c.l.b16 %v1332
        %v4046 = vunpack.c.h.b16 %v1332
        %v4047 = vunpack.c.l.b16 %v1333
        %v4048 = vunpack.c.h.b16 %v1333
        %v4049 = vunpack.c.l.b16 %v1334
        %v4050 = vunpack.c.h.b16 %v1334
        %v4051 = vunpack.c.l.b16 %v1335
        %v4052 = vunpack.c.h.b16 %v1335
        %v4053 = vunpack.c.l.b16 %v1336
        %v4054 = vunpack.c.h.b16 %v1336
        %v4055 = vunpack.c.l.b16 %v1337
        %v4056 = vunpack.c.h.b16 %v1337
        %v4057 = vunpack.c.l.b16 %v1338
        %v4058 = vunpack.c.h.b16 %v1338
        %v4059 = vunpack.c.l.b16 %v1339
        %v4060 = vunpack.c.h.b16 %v1339
        %v4061 = vunpack.c.l.b16 %v1340
        %v4062 = vunpack.c.h.b16 %v1340
        %v4063 = vunpack.c.l.b16 %v1341
        %v4064 = vunpack.c.h.b16 %v1341
        %v4065 = vunpack.c.l.b16 %v1342
        %v4066 = vunpack.c.h.b16 %v1342
        %v4067 = vunpack.c.l.b16 %v1343
        %v4068 = vunpack.c.h.b16 %v1343
        %v4069 = vunpack.c.l.b16 %v1344
        %v4070 = vunpack.c.h.b16 %v1344
        %v4071 = vunpack.c.l.b16 %v1345
        %v4072 = vunpack.c.h.b16 %v1345
        %v4073 = vunpack.c.l.b16 %v1346
        %v4074 = vunpack.c.h.b16 %v1346
        %v4075 = vunpack.c.l.b16 %v1347
        %v4076 = vunpack.c.h.b16 %v1347
        %v4077 = vunpack.c.l.b16 %v1348
        %v4078 = vunpack.c.h.b16 %v1348
        %v4079 = vunpack.c.l.b16 %v1349
        %v4080 = vunpack.c.h.b16 %v1349
        %v4081 = vunpack.c.l.b16 %v1350
        %v4082 = vunpack.c.h.b16 %v1350
        %v4083 = vunpack.c.l.b16 %v1351
        %v4084 = vunpack.c.h.b16 %v1351
        %v4085 = vunpack.c.l.b16 %v1352
        %v4086 = vunpack.c.h.b16 %v1352
        %v4087 = vunpack.c.l.b16 %v1353
        %v4088 = vunpack.c.h.b16 %v1353
        %v4089 = vunpack.c.l.b16 %v1354
        %v4090 = vunpack.c.h.b16 %v1354
        %v4091 = vunpack.c.l.b16 %v1355
        %v4092 = vunpack.c.h.b16 %v1355
        %v4093 = vunpack.c.l.b16 %v1356
        %v4094 = vunpack.c.h.b16 %v1356
        %v4095 = vunpack.c.l.b16 %v1357
        %v4096 = vunpack.c.h.b16 %v1357
        %v4097 = vunpack.c.l.b16 %v1358
        %v4098 = vunpack.c.h.b16 %v1358
        %v4099 = vunpack.c.l.b16 %v1359
        %v4100 = vunpack.c.h.b16 %v1359
        %v4101 = vunpack.c.l.b16 %v1360
        %v4102 = vunpack.c.h.b16 %v1360
        %v4103 = vunpack.c.l.b16 %v1361
        %v4104 = vunpack.c.h.b16 %v1361
        %v4105 = vunpack.c.l.b16 %v1362
        %v4106 = vunpack.c.h.b16 %v1362
        %v4107 = vunpack.c.l.b16 %v1363
        %v4108 = vunpack.c.h.b16 %v1363
        %v4109 = vunpack.c.l.b16 %v1364
        %v4110 = vunpack.c.h.b16 %v1364
        %v4111 = vunpack.c.l.b16 %v1365
        %v4112 = vunpack.c.h.b16 %v1365
        %v4113 = vunpack.c.l.b16 %v1366
        %v4114 = vunpack.c.h.b16 %v1366
        %v4115 = vunpack.c.l.b16 %v1367
        %v4116 = vunpack.c.h.b16 %v1367
        %v4117 = vunpack.c.l.b16 %v1368
        %v4118 = vunpack.c.h.b16 %v1368
        %v4119 = vunpack.c.l.b16 %v1369
        %v4120 = vunpack.c.h.b16 %v1369
        %v4121 = vunpack.c.l.b16 %v1370
        %v4122 = vunpack.c.h.b16 %v1370
        %v4123 = vunpack.c.l.b16 %v1371
        %v4124 = vunpack.c.h.b16 %v1371
        %v4125 = vunpack.c.l.b16 %v1372
        %v4126 = vunpack.c.h.b16 %v1372
        %v4127 = vunpack.c.l.b16 %v1373
        %v4128 = vunpack.c.h.b16 %v1373
        %v4129 = vunpack.c.l.b16 %v1374
        %v4130 = vunpack.c.h.b16 %v1374
        %v4131 = vunpack.c.l.b16 %v1375
        %v4132 = vunpack.c.h.b16 %v1375
        %v4133 = vunpack.c.l.b16 %v1376
        %v4134 = vunpack.c.h.b16 %v1376
        %v4135 = vunpack.c.l.b16 %v1377
        %v4136 = vunpack.c.h.b16 %v1377
        %v4137 = vunpack.c.l.b16 %v1378
        %v4138 = vunpack.c.h.b16 %v1378
        %v4139 = vunpack.c.l.b16 %v1379
        %v4140 = vunpack.c.h.b16 %v1379
        %v4141 = vunpack.c.l.b16 %v1380
        %v4142 = vunpack.c.h.b16 %v1380
        %v4143 = vunpack.c.l.b16 %v1381
        %v4144 = vunpack.c.h.b16 %v1381
        %v4145 = vunpack.c.l.b16 %v1382
        %v4146 = vunpack.c.h.b16 %v1382
        %v4147 = vunpack.c.l.b16 %v1383
        %v4148 = vunpack.c.h.b16 %v1383
        %v4149 = vunpack.c.l.b16 %v1384
        %v4150 = vunpack.c.h.b16 %v1384
        %v4151 = vunpack.c.l.b16 %v1385
        %v4152 = vunpack.c.h.b16 %v1385
        %v4153 = vunpack.c.l.b16 %v1386
        %v4154 = vunpack.c.h.b16 %v1386
        %v4155 = vunpack.c.l.b16 %v1387
        %v4156 = vunpack.c.h.b16 %v1387
        %v4157 = vunpack.c.l.b16 %v1388
        %v4158 = vunpack.c.h.b16 %v1388
        %v4159 = vunpack.c.l.b16 %v1389
        %v4160 = vunpack.c.h.b16 %v1389
        %v4161 = vunpack.c.l.b16 %v1390
        %v4162 = vunpack.c.h.b16 %v1390
        %v4163 = vunpack.c.l.b16 %v1391
        %v4164 = vunpack.c.h.b16 %v1391
        %v4165 = vunpack.c.l.b16 %v1392
        %v4166 = vunpack.c.h.b16 %v1392
        %v4167 = vunpack.c.l.b16 %v1393
        %v4168 = vunpack.c.h.b16 %v1393
        %v4169 = vunpack.c.l.b16 %v1394
        %v4170 = vunpack.c.h.b16 %v1394
        %v4171 = vunpack.c.l.b16 %v1395
        %v4172 = vunpack.c.h.b16 %v1395
        %v4173 = vunpack.c.l.b16 %v1396
        %v4174 = vunpack.c.h.b16 %v1396
        %v4175 = vunpack.c.l.b16 %v1397
        %v4176 = vunpack.c.h.b16 %v1397
        %v4177 = vunpack.c.l.b16 %v1398
        %v4178 = vunpack.c.h.b16 %v1398
        %v4179 = vunpack.c.l.b16 %v1399
        %v4180 = vunpack.c.h.b16 %v1399
        %v4181 = vunpack.c.l.b16 %v1400
        %v4182 = vunpack.c.h.b16 %v1400
        %v4183 = vunpack.c.l.b16 %v1401
        %v4184 = vunpack.c.h.b16 %v1401
        %v4185 = vunpack.c.l.b16 %v1402
        %v4186 = vunpack.c.h.b16 %v1402
        %v4187 = vunpack.c.l.b16 %v1403
        %v4188 = vunpack.c.h.b16 %v1403
        %v4189 = vunpack.c.l.b16 %v1404
        %v4190 = vunpack.c.h.b16 %v1404
        %v4191 = vunpack.c.l.b16 %v1405
        %v4192 = vunpack.c.h.b16 %v1405
        %v4193 = vunpack.c.l.b16 %v1406
        %v4194 = vunpack.c.h.b16 %v1406
        %v4195 = vunpack.c.l.b16 %v1407
        %v4196 = vunpack.c.h.b16 %v1407
        %v4197 = vunpack.c.l.b16 %v1408
        %v4198 = vunpack.c.h.b16 %v1408
        %v4199 = vunpack.c.l.b16 %v1409
        %v4200 = vunpack.c.h.b16 %v1409
        %v4201 = vunpack.c.l.b16 %v1410
        %v4202 = vunpack.c.h.b16 %v1410
        %v4203 = vunpack.c.l.b16 %v1411
        %v4204 = vunpack.c.h.b16 %v1411
        %v4205 = vunpack.c.l.b16 %v1412
        %v4206 = vunpack.c.h.b16 %v1412
        %v4207 = vunpack.c.l.b16 %v1413
        %v4208 = vunpack.c.h.b16 %v1413
        %v4209 = vunpack.c.l.b16 %v1414
        %v4210 = vunpack.c.h.b16 %v1414
        %v4211 = vunpack.c.l.b16 %v1415
        %v4212 = vunpack.c.h.b16 %v1415
        %v4213 = vunpack.c.l.b16 %v1416
        %v4214 = vunpack.c.h.b16 %v1416
        %v4215 = vunpack.c.l.b16 %v1417
        %v4216 = vunpack.c.h.b16 %v1417
        %v4217 = vunpack.c.l.b16 %v1418
        %v4218 = vunpack.c.h.b16 %v1418
        %v4219 = vunpack.c.l.b16 %v1419
        %v4220 = vunpack.c.h.b16 %v1419
        %v4221 = vunpack.c.l.b16 %v1420
        %v4222 = vunpack.c.h.b16 %v1420
        %v4223 = vunpack.c.l.b16 %v1421
        %v4224 = vunpack.c.h.b16 %v1421
        %v4225 = vunpack.c.l.b16 %v1422
        %v4226 = vunpack.c.h.b16 %v1422
        %v4227 = vunpack.c.l.b16 %v1423
        %v4228 = vunpack.c.h.b16 %v1423
        %v4229 = vunpack.c.l.b16 %v1424
        %v4230 = vunpack.c.h.b16 %v1424
        %v4231 = vunpack.c.l.b16 %v1425
        %v4232 = vunpack.c.h.b16 %v1425
        %v4233 = vunpack.c.l.b16 %v1426
        %v4234 = vunpack.c.h.b16 %v1426
        %v4235 = vunpack.c.l.b16 %v1427
        %v4236 = vunpack.c.h.b16 %v1427
        %v4237 = vunpack.c.l.b16 %v1428
        %v4238 = vunpack.c.h.b16 %v1428
        %v4239 = vunpack.c.l.b16 %v1429
        %v4240 = vunpack.c.h.b16 %v1429
        %v4241 = vunpack.c.l.b16 %v1430
        %v4242 = vunpack.c.h.b16 %v1430
        %v4243 = vunpack.c.l.b16 %v1431
        %v4244 = vunpack.c.h.b16 %v1431
        %v4245 = vunpack.c.l.b16 %v1432
        %v4246 = vunpack.c.h.b16 %v1432
        %v4247 = vunpack.c.l.b16 %v1433
        %v4248 = vunpack.c.h.b16 %v1433
        %v4249 = vunpack.c.l.b16 %v1434
        %v4250 = vunpack.c.h.b16 %v1434
        %v4251 = vunpack.c.l.b16 %v1435
        %v4252 = vunpack.c.h.b16 %v1435
        %v4253 = vunpack.c.l.b16 %v1436
        %v4254 = vunpack.c.h.b16 %v1436
        %v4255 = vunpack.c.l.b16 %v1437
        %v4256 = vunpack.c.h.b16 %v1437
        %v4257 = vunpack.c.l.b16 %v1438
        %v4258 = vunpack.c.h.b16 %v1438
        %v4259 = vunpack.c.l.b16 %v1439
        %v4260 = vunpack.c.h.b16 %v1439
        %v4261 = vunpack.c.l.b16 %v1440
        %v4262 = vunpack.c.h.b16 %v1440
        %v4263 = vunpack.c.l.b16 %v1441
        %v4264 = vunpack.c.h.b16 %v1441
        %v4265 = vunpack.c.l.b16 %v1442
        %v4266 = vunpack.c.h.b16 %v1442
        %v4267 = vunpack.c.l.b16 %v1443
        %v4268 = vunpack.c.h.b16 %v1443
        %v4269 = vunpack.c.l.b16 %v1444
        %v4270 = vunpack.c.h.b16 %v1444
        %v4271 = vunpack.c.l.b16 %v1445
        %v4272 = vunpack.c.h.b16 %v1445
        %v4273 = vunpack.c.l.b16 %v1446
        %v4274 = vunpack.c.h.b16 %v1446
        %v4275 = vunpack.c.l.b16 %v1447
        %v4276 = vunpack.c.h.b16 %v1447
        %v4277 = vunpack.c.l.b16 %v1448
        %v4278 = vunpack.c.h.b16 %v1448
        %v4279 = vunpack.c.l.b16 %v1449
        %v4280 = vunpack.c.h.b16 %v1449
        %v4281 = vunpack.c.l.b16 %v1450
        %v4282 = vunpack.c.h.b16 %v1450
        %v4283 = vunpack.c.l.b16 %v1451
        %v4284 = vunpack.c.h.b16 %v1451
        %v4285 = vunpack.c.l.b16 %v1452
        %v4286 = vunpack.c.h.b16 %v1452
        %v4287 = vunpack.c.l.b16 %v1453
        %v4288 = vunpack.c.h.b16 %v1453
        %v4289 = vunpack.c.l.b16 %v1454
        %v4290 = vunpack.c.h.b16 %v1454
        %v4291 = vunpack.c.l.b16 %v1455
        %v4292 = vunpack.c.h.b16 %v1455
        %v4293 = vunpack.c.l.b16 %v1456
        %v4294 = vunpack.c.h.b16 %v1456
        %v4295 = vunpack.c.l.b16 %v1457
        %v4296 = vunpack.c.h.b16 %v1457
        %v4297 = vunpack.c.l.b16 %v1458
        %v4298 = vunpack.c.h.b16 %v1458
        %v4299 = vunpack.c.l.b16 %v1459
        %v4300 = vunpack.c.h.b16 %v1459
        %v4301 = vunpack.c.l.b16 %v1460
        %v4302 = vunpack.c.h.b16 %v1460
        %v4303 = vunpack.c.l.b16 %v1461
        %v4304 = vunpack.c.h.b16 %v1461
        %v4305 = vunpack.c.l.b16 %v1462
        %v4306 = vunpack.c.h.b16 %v1462
        %v4307 = vunpack.c.l.b16 %v1463
        %v4308 = vunpack.c.h.b16 %v1463
        %v4309 = vunpack.c.l.b16 %v1464
        %v4310 = vunpack.c.h.b16 %v1464
        %v4311 = vunpack.c.l.b16 %v1465
        %v4312 = vunpack.c.h.b16 %v1465
        %v4313 = vunpack.c.l.b16 %v1466
        %v4314 = vunpack.c.h.b16 %v1466
        %v4315 = vunpack.c.l.b16 %v1467
        %v4316 = vunpack.c.h.b16 %v1467
        %v4317 = vunpack.c.l.b16 %v1468
        %v4318 = vunpack.c.h.b16 %v1468
        %v4319 = vunpack.c.l.b16 %v1469
        %v4320 = vunpack.c.h.b16 %v1469
        %v4321 = vunpack.c.l.b16 %v1470
        %v4322 = vunpack.c.h.b16 %v1470
        %v4323 = vunpack.c.l.b16 %v1471
        %v4324 = vunpack.c.h.b16 %v1471
        %v4325 = vunpack.c.l.b16 %v1472
        %v4326 = vunpack.c.h.b16 %v1472
        %v4327 = vunpack.c.l.b16 %v1473
        %v4328 = vunpack.c.h.b16 %v1473
        %v4329 = vunpack.c.l.b16 %v1474
        %v4330 = vunpack.c.h.b16 %v1474
        %v4331 = vunpack.c.l.b16 %v1475
        %v4332 = vunpack.c.h.b16 %v1475
        %v4333 = vunpack.c.l.b16 %v1476
        %v4334 = vunpack.c.h.b16 %v1476
        %v4335 = vunpack.c.l.b16 %v1477
        %v4336 = vunpack.c.h.b16 %v1477
        %v4337 = vunpack.c.l.b16 %v1478
        %v4338 = vunpack.c.h.b16 %v1478
        %v4339 = vunpack.c.l.b16 %v1479
        %v4340 = vunpack.c.h.b16 %v1479
        %v4341 = vunpack.c.l.b16 %v1480
        %v4342 = vunpack.c.h.b16 %v1480
        %v4343 = vunpack.c.l.b16 %v1481
        %v4344 = vunpack.c.h.b16 %v1481
        %v4345 = vunpack.c.l.b16 %v1482
        %v4346 = vunpack.c.h.b16 %v1482
        %v4347 = vunpack.c.l.b16 %v1483
        %v4348 = vunpack.c.h.b16 %v1483
        %v4349 = vunpack.c.l.b16 %v1484
        %v4350 = vunpack.c.h.b16 %v1484
        %v4351 = vunpack.c.l.b16 %v1485
        %v4352 = vunpack.c.h.b16 %v1485
        %v4353 = vunpack.c.l.b16 %v1486
        %v4354 = vunpack.c.h.b16 %v1486
        %v4355 = vunpack.c.l.b16 %v1487
        %v4356 = vunpack.c.h.b16 %v1487
        %v4357 = vunpack.c.l.b16 %v1488
        %v4358 = vunpack.c.h.b16 %v1488
        %v4359 = vunpack.c.l.b16 %v1489
        %v4360 = vunpack.c.h.b16 %v1489
        %v4361 = vunpack.c.l.b16 %v1490
        %v4362 = vunpack.c.h.b16 %v1490
        %v4363 = vunpack.c.l.b16 %v1491
        %v4364 = vunpack.c.h.b16 %v1491
        %v4365 = vunpack.c.l.b16 %v1492
        %v4366 = vunpack.c.h.b16 %v1492
        %v4367 = vunpack.c.l.b16 %v1493
        %v4368 = vunpack.c.h.b16 %v1493
        %v4369 = vunpack.c.l.b16 %v1494
        %v4370 = vunpack.c.h.b16 %v1494
        %v4371 = vunpack.c.l.b16 %v1495
        %v4372 = vunpack.c.h.b16 %v1495
        %v4373 = vunpack.c.l.b16 %v1496
        %v4374 = vunpack.c.h.b16 %v1496
        %v4375 = vunpack.c.l.b16 %v1497
        %v4376 = vunpack.c.h.b16 %v1497
        %v4377 = vunpack.c.l.b16 %v1498
        %v4378 = vunpack.c.h.b16 %v1498
        %v4379 = vunpack.c.l.b16 %v1499
        %v4380 = vunpack.c.h.b16 %v1499
        %v4381 = vunpack.c.l.b16 %v1500
        %v4382 = vunpack.c.h.b16 %v1500
        %v4383 = vunpack.c.l.b16 %v1501
        %v4384 = vunpack.c.h.b16 %v1501
        %v4385 = vunpack.c.l.b16 %v1502
        %v4386 = vunpack.c.h.b16 %v1502
        %v4387 = vunpack.c.l.b16 %v1503
        %v4388 = vunpack.c.h.b16 %v1503
        %v4389 = vunpack.c.l.b16 %v1504
        %v4390 = vunpack.c.h.b16 %v1504
        %v4391 = vunpack.c.l.b16 %v1505
        %v4392 = vunpack.c.h.b16 %v1505
        %v4393 = vunpack.c.l.b16 %v1506
        %v4394 = vunpack.c.h.b16 %v1506
        %v4395 = vunpack.c.l.b16 %v1507
        %v4396 = vunpack.c.h.b16 %v1507
        %v4397 = vunpack.c.l.b16 %v1508
        %v4398 = vunpack.c.h.b16 %v1508
        %v4399 = vunpack.c.l.b16 %v1509
        %v4400 = vunpack.c.h.b16 %v1509
        %v4401 = vunpack.c.l.b16 %v1510
        %v4402 = vunpack.c.h.b16 %v1510
        %v4403 = vunpack.c.l.b16 %v1511
        %v4404 = vunpack.c.h.b16 %v1511
        %v4405 = vunpack.c.l.b16 %v1512
        %v4406 = vunpack.c.h.b16 %v1512
        %v4407 = vunpack.c.l.b16 %v1513
        %v4408 = vunpack.c.h.b16 %v1513
        %v4409 = vunpack.c.l.b16 %v1514
        %v4410 = vunpack.c.h.b16 %v1514
        %v4411 = vunpack.c.l.b16 %v1515
        %v4412 = vunpack.c.h.b16 %v1515
        %v4413 = vunpack.c.l.b16 %v1516
        %v4414 = vunpack.c.h.b16 %v1516
        %v4415 = vunpack.c.l.b16 %v1517
        %v4416 = vunpack.c.h.b16 %v1517
        %v4417 = vunpack.c.l.b16 %v1518
        %v4418 = vunpack.c.h.b16 %v1518
        %v4419 = vunpack.c.l.b16 %v1519
        %v4420 = vunpack.c.h.b16 %v1519
        %v4421 = vunpack.c.l.b16 %v1520
        %v4422 = vunpack.c.h.b16 %v1520
        %v4423 = vunpack.c.l.b16 %v1521
        %v4424 = vunpack.c.h.b16 %v1521
        %v4425 = vunpack.c.l.b16 %v1522
        %v4426 = vunpack.c.h.b16 %v1522
        %v4427 = vunpack.c.l.b16 %v1523
        %v4428 = vunpack.c.h.b16 %v1523
        %v4429 = vunpack.c.l.b16 %v1524
        %v4430 = vunpack.c.h.b16 %v1524
        %v4431 = vunpack.c.l.b16 %v1525
        %v4432 = vunpack.c.h.b16 %v1525
        %v4433 = vunpack.c.l.b16 %v1526
        %v4434 = vunpack.c.h.b16 %v1526
        %v4435 = vunpack.c.l.b16 %v1527
        %v4436 = vunpack.c.h.b16 %v1527
        %v4437 = vunpack.c.l.b16 %v1528
        %v4438 = vunpack.c.h.b16 %v1528
        %v4439 = vunpack.c.l.b16 %v1529
        %v4440 = vunpack.c.h.b16 %v1529
        %v4441 = vunpack.c.l.b16 %v1530
        %v4442 = vunpack.c.h.b16 %v1530
        %v4443 = vunpack.c.l.b16 %v1531
        %v4444 = vunpack.c.h.b16 %v1531
        %v4445 = vunpack.c.l.b16 %v1532
        %v4446 = vunpack.c.h.b16 %v1532
        %v4447 = vunpack.c.l.b16 %v1533
        %v4448 = vunpack.c.h.b16 %v1533
        %v4449 = vunpack.c.l.b16 %v1534
        %v4450 = vunpack.c.h.b16 %v1534
        %v4451 = vunpack.c.l.b16 %v1535
        %v4452 = vunpack.c.h.b16 %v1535
        %v4453 = vunpack.c.l.b16 %v1536
        %v4454 = vunpack.c.h.b16 %v1536
        %v4455 = vunpack.c.l.b16 %v1537
        %v4456 = vunpack.c.h.b16 %v1537
        %v4457 = vunpack.c.l.b16 %v1538
        %v4458 = vunpack.c.h.b16 %v1538
        %v4459 = vunpack.c.l.b16 %v1539
        %v4460 = vunpack.c.h.b16 %v1539
        %v4461 = vunpack.c.l.b16 %v1540
        %v4462 = vunpack.c.h.b16 %v1540
        %v4463 = vunpack.c.l.b16 %v1541
        %v4464 = vunpack.c.h.b16 %v1541
        %v4465 = vunpack.c.l.b16 %v1542
        %v4466 = vunpack.c.h.b16 %v1542
        %v4467 = vunpack.c.l.b16 %v1543
        %v4468 = vunpack.c.h.b16 %v1543
        %v4469 = vunpack.c.l.b16 %v1544
        %v4470 = vunpack.c.h.b16 %v1544
        %v4471 = vunpack.c.l.b16 %v1545
        %v4472 = vunpack.c.h.b16 %v1545
        %v4473 = vunpack.c.l.b16 %v1546
        %v4474 = vunpack.c.h.b16 %v1546
        %v4475 = vunpack.c.l.b16 %v1547
        %v4476 = vunpack.c.h.b16 %v1547
        %v4477 = vunpack.c.l.b16 %v1548
        %v4478 = vunpack.c.h.b16 %v1548
        %v4479 = vunpack.c.l.b16 %v1549
        %v4480 = vunpack.c.h.b16 %v1549
        %v4481 = vunpack.c.l.b16 %v1550
        %v4482 = vunpack.c.h.b16 %v1550
        %v4483 = vunpack.c.l.b16 %v1551
        %v4484 = vunpack.c.h.b16 %v1551
        %v4485 = vunpack.c.l.b16 %v1552
        %v4486 = vunpack.c.h.b16 %v1552
        %v4487 = vunpack.c.l.b16 %v1553
        %v4488 = vunpack.c.h.b16 %v1553
        %v4489 = vunpack.c.l.b16 %v1554
        %v4490 = vunpack.c.h.b16 %v1554
        %v4491 = vunpack.c.l.b16 %v1555
        %v4492 = vunpack.c.h.b16 %v1555
        %v4493 = vunpack.c.l.b16 %v1556
        %v4494 = vunpack.c.h.b16 %v1556
        %v4495 = vunpack.c.l.b16 %v1557
        %v4496 = vunpack.c.h.b16 %v1557
        %v4497 = vunpack.c.l.b16 %v1558
        %v4498 = vunpack.c.h.b16 %v1558
        %v4499 = vunpack.c.l.b16 %v1559
        %v4500 = vunpack.c.h.b16 %v1559
        %v4501 = vunpack.c.l.b16 %v1560
        %v4502 = vunpack.c.h.b16 %v1560
        %v4503 = vunpack.c.l.b16 %v1561
        %v4504 = vunpack.c.h.b16 %v1561
        %v4505 = vunpack.c.l.b16 %v1562
        %v4506 = vunpack.c.h.b16 %v1562
        %v4507 = vunpack.c.l.b16 %v1563
        %v4508 = vunpack.c.h.b16 %v1563
        %v4509 = vunpack.c.l.b16 %v1564
        %v4510 = vunpack.c.h.b16 %v1564
        %v4511 = vunpack.c.l.b16 %v1565
        %v4512 = vunpack.c.h.b16 %v1565
        %v4513 = vunpack.c.l.b16 %v1566
        %v4514 = vunpack.c.h.b16 %v1566
        %v4515 = vunpack.c.l.b16 %v1567
        %v4516 = vunpack.c.h.b16 %v1567
        %v4517 = vunpack.c.l.b16 %v1568
        %v4518 = vunpack.c.h.b16 %v1568
        %v4519 = vunpack.c.l.b16 %v1569
        %v4520 = vunpack.c.h.b16 %v1569
        %v4521 = vunpack.c.l.b16 %v1570
        %v4522 = vunpack.c.h.b16 %v1570
        %v4523 = vunpack.c.l.b16 %v1571
        %v4524 = vunpack.c.h.b16 %v1571
        %v4525 = vunpack.c.l.b16 %v1572
        %v4526 = vunpack.c.h.b16 %v1572
        %v4527 = vunpack.c.l.b16 %v1573
        %v4528 = vunpack.c.h.b16 %v1573
        %v4529 = vunpack.c.l.b16 %v1574
        %v4530 = vunpack.c.h.b16 %v1574
        %v4531 = vunpack.c.l.b16 %v1575
        %v4532 = vunpack.c.h.b16 %v1575
        %v4533 = vunpack.c.l.b16 %v1576
        %v4534 = vunpack.c.h.b16 %v1576
        %v4535 = vunpack.c.l.b16 %v1577
        %v4536 = vunpack.c.h.b16 %v1577
        %v4537 = vunpack.c.l.b16 %v1578
        %v4538 = vunpack.c.h.b16 %v1578
        %v4539 = vunpack.c.l.b16 %v1579
        %v4540 = vunpack.c.h.b16 %v1579
        %v4541 = vunpack.c.l.b16 %v1580
        %v4542 = vunpack.c.h.b16 %v1580
        %v4543 = vunpack.c.l.b16 %v1581
        %v4544 = vunpack.c.h.b16 %v1581
        %v4545 = vunpack.c.l.b16 %v1582
        %v4546 = vunpack.c.h.b16 %v1582
        %v4547 = vunpack.c.l.b16 %v1583
        %v4548 = vunpack.c.h.b16 %v1583
        %v4549 = vunpack.c.l.b16 %v1584
        %v4550 = vunpack.c.h.b16 %v1584
        %v4551 = vunpack.c.l.b16 %v1585
        %v4552 = vunpack.c.h.b16 %v1585
        %v4553 = vunpack.c.l.b16 %v1586
        %v4554 = vunpack.c.h.b16 %v1586
        %v4555 = vunpack.c.l.b16 %v1587
        %v4556 = vunpack.c.h.b16 %v1587
        %v4557 = vunpack.c.l.b16 %v1588
        %v4558 = vunpack.c.h.b16 %v1588
        %v4559 = vunpack.c.l.b16 %v1589
        %v4560 = vunpack.c.h.b16 %v1589
        %v4561 = vunpack.c.l.b16 %v1590
        %v4562 = vunpack.c.h.b16 %v1590
        %v4563 = vunpack.c.l.b16 %v1591
        %v4564 = vunpack.c.h.b16 %v1591
        %v4565 = vunpack.c.l.b16 %v1592
        %v4566 = vunpack.c.h.b16 %v1592
        %v4567 = vunpack.c.l.b16 %v1593
        %v4568 = vunpack.c.h.b16 %v1593
        %v4569 = vunpack.c.l.b16 %v1594
        %v4570 = vunpack.c.h.b16 %v1594
        %v4571 = vunpack.c.l.b16 %v1595
        %v4572 = vunpack.c.h.b16 %v1595
        %v4573 = vunpack.c.l.b16 %v1596
        %v4574 = vunpack.c.h.b16 %v1596
        %v4575 = vunpack.c.l.b16 %v1597
        %v4576 = vunpack.c.h.b16 %v1597
        %v4577 = vunpack.c.l.b16 %v1598
        %v4578 = vunpack.c.h.b16 %v1598
        %v4579 = vunpack.c.l.b16 %v1599
        %v4580 = vunpack.c.h.b16 %v1599
        %v4581 = vunpack.c.l.b16 %v1600
        %v4582 = vunpack.c.h.b16 %v1600
        %v4583 = vunpack.c.l.b16 %v1601
        %v4584 = vunpack.c.h.b16 %v1601
        %v4585 = vunpack.c.l.b16 %v1602
        %v4586 = vunpack.c.h.b16 %v1602
        %v4587 = vunpack.c.l.b16 %v1603
        %v4588 = vunpack.c.h.b16 %v1603
        %v4589 = vunpack.c.l.b16 %v1604
        %v4590 = vunpack.c.h.b16 %v1604
        %v4591 = vunpack.c.l.b16 %v1605
        %v4592 = vunpack.c.h.b16 %v1605
        %v4593 = vunpack.c.l.b16 %v1606
        %v4594 = vunpack.c.h.b16 %v1606
        %v4595 = vunpack.c.l.b16 %v1607
        %v4596 = vunpack.c.h.b16 %v1607
        %v4597 = vunpack.c.l.b16 %v1608
        %v4598 = vunpack.c.h.b16 %v1608
        %v4599 = vunpack.c.l.b16 %v1609
        %v4600 = vunpack.c.h.b16 %v1609
        %v4601 = vunpack.c.l.b16 %v1610
        %v4602 = vunpack.c.h.b16 %v1610
        %v4603 = vunpack.c.l.b16 %v1611
        %v4604 = vunpack.c.h.b16 %v1611
        %v4605 = vunpack.c.l.b16 %v1612
        %v4606 = vunpack.c.h.b16 %v1612
        %v4607 = vunpack.c.l.b16 %v1613
        %v4608 = vunpack.c.h.b16 %v1613
        %v4609 = vunpack.c.l.b16 %v1614
        %v4610 = vunpack.c.h.b16 %v1614
        %v4611 = vunpack.c.l.b16 %v1615
        %v4612 = vunpack.c.h.b16 %v1615
        %v4613 = vunpack.c.l.b16 %v1616
        %v4614 = vunpack.c.h.b16 %v1616
        %v4615 = vunpack.c.l.b16 %v1617
        %v4616 = vunpack.c.h.b16 %v1617
        %v4617 = vunpack.c.l.b16 %v1618
        %v4618 = vunpack.c.h.b16 %v1618
        %v4619 = vunpack.c.l.b16 %v1619
        %v4620 = vunpack.c.h.b16 %v1619
        %v4621 = vunpack.c.l.b16 %v1620
        %v4622 = vunpack.c.h.b16 %v1620
        %v4623 = vunpack.c.l.b16 %v1621
        %v4624 = vunpack.c.h.b16 %v1621
        %v4625 = vunpack.c.l.b16 %v1622
        %v4626 = vunpack.c.h.b16 %v1622
        %v4627 = vunpack.c.l.b16 %v1623
        %v4628 = vunpack.c.h.b16 %v1623
        %v4629 = vunpack.c.l.b16 %v1624
        %v4630 = vunpack.c.h.b16 %v1624
        %v4631 = vunpack.c.l.b16 %v1625
        %v4632 = vunpack.c.h.b16 %v1625
        %v4633 = vunpack.c.l.b16 %v1626
        %v4634 = vunpack.c.h.b16 %v1626
        %v4635 = vunpack.c.l.b16 %v1627
        %v4636 = vunpack.c.h.b16 %v1627
        %v4637 = vunpack.c.l.b16 %v1628
        %v4638 = vunpack.c.h.b16 %v1628
        %v4639 = vunpack.c.l.b16 %v1629
        %v4640 = vunpack.c.h.b16 %v1629
        %v4641 = vunpack.c.l.b16 %v1630
        %v4642 = vunpack.c.h.b16 %v1630
        %v4643 = vunpack.c.l.b16 %v1631
        %v4644 = vunpack.c.h.b16 %v1631
        %v4645 = vunpack.c.l.b16 %v1632
        %v4646 = vunpack.c.h.b16 %v1632
        %v4647 = vunpack.c.l.b16 %v1633
        %v4648 = vunpack.c.h.b16 %v1633
        %v4649 = vunpack.c.l.b16 %v1634
        %v4650 = vunpack.c.h.b16 %v1634
        %v4651 = vunpack.c.l.b16 %v1635
        %v4652 = vunpack.c.h.b16 %v1635
        %v4653 = vunpack.c.l.b16 %v1636
        %v4654 = vunpack.c.h.b16 %v1636
        %v4655 = vunpack.c.l.b16 %v1637
        %v4656 = vunpack.c.h.b16 %v1637
        %v4657 = vunpack.c.l.b16 %v1638
        %v4658 = vunpack.c.h.b16 %v1638
        %v4659 = vunpack.c.l.b16 %v1639
        %v4660 = vunpack.c.h.b16 %v1639
        %v4661 = vunpack.c.l.b16 %v1640
        %v4662 = vunpack.c.h.b16 %v1640
        %v4663 = vunpack.c.l.b16 %v1641
        %v4664 = vunpack.c.h.b16 %v1641
        %v4665 = vunpack.c.l.b16 %v1642
        %v4666 = vunpack.c.h.b16 %v1642
        %v4667 = vunpack.c.l.b16 %v1643
        %v4668 = vunpack.c.h.b16 %v1643
        %v4669 = vunpack.c.l.b16 %v1644
        %v4670 = vunpack.c.h.b16 %v1644
        %v4671 = vunpack.c.l.b16 %v1645
        %v4672 = vunpack.c.h.b16 %v1645
        %v4673 = vunpack.c.l.b16 %v1646
        %v4674 = vunpack.c.h.b16 %v1646
        %v4675 = vunpack.c.l.b16 %v1647
        %v4676 = vunpack.c.h.b16 %v1647
        %v4677 = vunpack.c.l.b16 %v1648
        %v4678 = vunpack.c.h.b16 %v1648
        %v4679 = vunpack.c.l.b16 %v1649
        %v4680 = vunpack.c.h.b16 %v1649
        %v4681 = vunpack.c.l.b16 %v1650
        %v4682 = vunpack.c.h.b16 %v1650
        %v4683 = vunpack.c.l.b16 %v1651
        %v4684 = vunpack.c.h.b16 %v1651
        %v4685 = vunpack.c.l.b16 %v1652
        %v4686 = vunpack.c.h.b16 %v1652
        %v4687 = vunpack.c.l.b16 %v1653
        %v4688 = vunpack.c.h.b16 %v1653
        %v4689 = vunpack.c.l.b16 %v1654
        %v4690 = vunpack.c.h.b16 %v1654
        %v4691 = vunpack.c.l.b16 %v1655
        %v4692 = vunpack.c.h.b16 %v1655
        %v4693 = vunpack.c.l.b16 %v1656
        %v4694 = vunpack.c.h.b16 %v1656
        %v4695 = vunpack.c.l.b16 %v1657
        %v4696 = vunpack.c.h.b16 %v1657
        %v4697 = vunpack.c.l.b16 %v1658
        %v4698 = vunpack.c.h.b16 %v1658
        %v4699 = vunpack.c.l.b16 %v1659
        %v4700 = vunpack.c.h.b16 %v1659
        %v4701 = vunpack.c.l.b16 %v1660
        %v4702 = vunpack.c.h.b16 %v1660
        %v4703 = vunpack.c.l.b16 %v1661
        %v4704 = vunpack.c.h.b16 %v1661
        %v4705 = vunpack.c.l.b16 %v1662
        %v4706 = vunpack.c.h.b16 %v1662
        %v4707 = vunpack.c.l.b16 %v1663
        %v4708 = vunpack.c.h.b16 %v1663
        %v4709 = vunpack.c.l.b16 %v1664
        %v4710 = vunpack.c.h.b16 %v1664
        %v4711 = vunpack.c.l.b16 %v1665
        %v4712 = vunpack.c.h.b16 %v1665
        %v4713 = vunpack.c.l.b16 %v1666
        %v4714 = vunpack.c.h.b16 %v1666
        %v4715 = vunpack.c.l.b16 %v1667
        %v4716 = vunpack.c.h.b16 %v1667
        %v4717 = vunpack.c.l.b16 %v1668
        %v4718 = vunpack.c.h.b16 %v1668
        %v4719 = vunpack.c.l.b16 %v1669
        %v4720 = vunpack.c.h.b16 %v1669
        %v4721 = vunpack.c.l.b16 %v1670
        %v4722 = vunpack.c.h.b16 %v1670
        %v4723 = vunpack.c.l.b16 %v1671
        %v4724 = vunpack.c.h.b16 %v1671
        %v4725 = vunpack.c.l.b16 %v1672
        %v4726 = vunpack.c.h.b16 %v1672
        %v4727 = vunpack.c.l.b16 %v1673
        %v4728 = vunpack.c.h.b16 %v1673
        %v4729 = vunpack.c.l.b16 %v1674
        %v4730 = vunpack.c.h.b16 %v1674
        %v4731 = vunpack.c.l.b16 %v1675
        %v4732 = vunpack.c.h.b16 %v1675
        %v4733 = vunpack.c.l.b16 %v1676
        %v4734 = vunpack.c.h.b16 %v1676
        %v4735 = vunpack.c.l.b16 %v1677
        %v4736 = vunpack.c.h.b16 %v1677
        %v4737 = vunpack.c.l.b16 %v1678
        %v4738 = vunpack.c.h.b16 %v1678
        %v4739 = vunpack.c.l.b16 %v1679
        %v4740 = vunpack.c.h.b16 %v1679
        %v4741 = vunpack.c.l.b16 %v1680
        %v4742 = vunpack.c.h.b16 %v1680
        %v4743 = vunpack.c.l.b16 %v1681
        %v4744 = vunpack.c.h.b16 %v1681
        %v4745 = vunpack.c.l.b16 %v1682
        %v4746 = vunpack.c.h.b16 %v1682
        %v4747 = vunpack.c.l.b16 %v1683
        %v4748 = vunpack.c.h.b16 %v1683
        %v4749 = vunpack.c.l.b16 %v1684
        %v4750 = vunpack.c.h.b16 %v1684
        %v4751 = vunpack.c.l.b16 %v1685
        %v4752 = vunpack.c.h.b16 %v1685
        %v4753 = vunpack.c.l.b16 %v1686
        %v4754 = vunpack.c.h.b16 %v1686
        %v4755 = vunpack.c.l.b16 %v1687
        %v4756 = vunpack.c.h.b16 %v1687
        %v4757 = vunpack.c.l.b16 %v1688
        %v4758 = vunpack.c.h.b16 %v1688
        %v4759 = vunpack.c.l.b16 %v1689
        %v4760 = vunpack.c.h.b16 %v1689
        %v4761 = vunpack.c.l.b16 %v1690
        %v4762 = vunpack.c.h.b16 %v1690
        %v4763 = vpack.c.b16 %v2719, %v2715
        %v4764 = vpack.c.b16 %v2720, %v2716
        %v4765 = vpack.c.b16 %v2721, %v2717
        %v4766 = vpack.c.b16 %v2722, %v2718
        %v4767 = vpack.c.b16 %v2727, %v2723
        %v4768 = vpack.c.b16 %v2728, %v2724
        %v4769 = vpack.c.b16 %v2729, %v2725
        %v4770 = vpack.c.b16 %v2730, %v2726
        %v4771 = vpack.c.b16 %v2735, %v2731
        %v4772 = vpack.c.b16 %v2736, %v2732
        %v4773 = vpack.c.b16 %v2737, %v2733
        %v4774 = vpack.c.b16 %v2738, %v2734
        %v4775 = vpack.c.b16 %v2743, %v2739
        %v4776 = vpack.c.b16 %v2744, %v2740
        %v4777 = vpack.c.b16 %v2745, %v2741
        %v4778 = vpack.c.b16 %v2746, %v2742
        %v4779 = vpack.c.b16 %v2751, %v2747
        %v4780 = vpack.c.b16 %v2752, %v2748
        %v4781 = vpack.c.b16 %v2753, %v2749
        %v4782 = vpack.c.b16 %v2754, %v2750
        %v4783 = vpack.c.b16 %v2759, %v2755
        %v4784 = vpack.c.b16 %v2760, %v2756
        %v4785 = vpack.c.b16 %v2761, %v2757
        %v4786 = vpack.c.b16 %v2762, %v2758
        %v4787 = vpack.c.b16 %v2767, %v2763
        %v4788 = vpack.c.b16 %v2768, %v2764
        %v4789 = vpack.c.b16 %v2769, %v2765
        %v4790 = vpack.c.b16 %v2770, %v2766
        %v4791 = vpack.c.b16 %v2775, %v2771
        %v4792 = vpack.c.b16 %v2776, %v2772
        %v4793 = vpack.c.b16 %v2777, %v2773
        %v4794 = vpack.c.b16 %v2778, %v2774
        %v4795 = vpack.c.b16 %v2783, %v2779
        %v4796 = vpack.c.b16 %v2784, %v2780
        %v4797 = vpack.c.b16 %v2785, %v2781
        %v4798 = vpack.c.b16 %v2786, %v2782
        %v4799 = vpack.c.b16 %v2791, %v2787
        %v4800 = vpack.c.b16 %v2792, %v2788
        %v4801 = vpack.c.b16 %v2793, %v2789
        %v4802 = vpack.c.b16 %v2794, %v2790
        %v4803 = vpack.c.b16 %v2799, %v2795
        %v4804 = vpack.c.b16 %v2800, %v2796
        %v4805 = vpack.c.b16 %v2801, %v2797
        %v4806 = vpack.c.b16 %v2802, %v2798
        %v4807 = vpack.c.b16 %v2807, %v2803
        %v4808 = vpack.c.b16 %v2808, %v2804
        %v4809 = vpack.c.b16 %v2809, %v2805
        %v4810 = vpack.c.b16 %v2810, %v2806
        %v4811 = vpack.c.b16 %v2815, %v2811
        %v4812 = vpack.c.b16 %v2816, %v2812
        %v4813 = vpack.c.b16 %v2817, %v2813
        %v4814 = vpack.c.b16 %v2818, %v2814
        %v4815 = vpack.c.b16 %v2823, %v2819
        %v4816 = vpack.c.b16 %v2824, %v2820
        %v4817 = vpack.c.b16 %v2825, %v2821
        %v4818 = vpack.c.b16 %v2826, %v2822
        %v4819 = vpack.c.b16 %v2831, %v2827
        %v4820 = vpack.c.b16 %v2832, %v2828
        %v4821 = vpack.c.b16 %v2833, %v2829
        %v4822 = vpack.c.b16 %v2834, %v2830
        %v4823 = vpack.c.b16 %v2839, %v2835
        %v4824 = vpack.c.b16 %v2840, %v2836
        %v4825 = vpack.c.b16 %v2841, %v2837
        %v4826 = vpack.c.b16 %v2842, %v2838
        %v4827 = vpack.c.b16 %v2847, %v2843
        %v4828 = vpack.c.b16 %v2848, %v2844
        %v4829 = vpack.c.b16 %v2849, %v2845
        %v4830 = vpack.c.b16 %v2850, %v2846
        %v4831 = vpack.c.b16 %v2855, %v2851
        %v4832 = vpack.c.b16 %v2856, %v2852
        %v4833 = vpack.c.b16 %v2857, %v2853
        %v4834 = vpack.c.b16 %v2858, %v2854
        %v4835 = vpack.c.b16 %v2863, %v2859
        %v4836 = vpack.c.b16 %v2864, %v2860
        %v4837 = vpack.c.b16 %v2865, %v2861
        %v4838 = vpack.c.b16 %v2866, %v2862
        %v4839 = vpack.c.b16 %v2871, %v2867
        %v4840 = vpack.c.b16 %v2872, %v2868
        %v4841 = vpack.c.b16 %v2873, %v2869
        %v4842 = vpack.c.b16 %v2874, %v2870
        %v4843 = vpack.c.b16 %v2879, %v2875
        %v4844 = vpack.c.b16 %v2880, %v2876
        %v4845 = vpack.c.b16 %v2881, %v2877
        %v4846 = vpack.c.b16 %v2882, %v2878
        %v4847 = vpack.c.b16 %v2887, %v2883
        %v4848 = vpack.c.b16 %v2888, %v2884
        %v4849 = vpack.c.b16 %v2889, %v2885
        %v4850 = vpack.c.b16 %v2890, %v2886
        %v4851 = vpack.c.b16 %v2895, %v2891
        %v4852 = vpack.c.b16 %v2896, %v2892
        %v4853 = vpack.c.b16 %v2897, %v2893
        %v4854 = vpack.c.b16 %v2898, %v2894
        %v4855 = vpack.c.b16 %v2903, %v2899
        %v4856 = vpack.c.b16 %v2904, %v2900
        %v4857 = vpack.c.b16 %v2905, %v2901
        %v4858 = vpack.c.b16 %v2906, %v2902
        %v4859 = vpack.c.b16 %v2911, %v2907
        %v4860 = vpack.c.b16 %v2912, %v2908
        %v4861 = vpack.c.b16 %v2913, %v2909
        %v4862 = vpack.c.b16 %v2914, %v2910
        %v4863 = vpack.c.b16 %v2919, %v2915
        %v4864 = vpack.c.b16 %v2920, %v2916
        %v4865 = vpack.c.b16 %v2921, %v2917
        %v4866 = vpack.c.b16 %v2922, %v2918
        %v4867 = vpack.c.b16 %v2927, %v2923
        %v4868 = vpack.c.b16 %v2928, %v2924
        %v4869 = vpack.c.b16 %v2929, %v2925
        %v4870 = vpack.c.b16 %v2930, %v2926
        %v4871 = vpack.c.b16 %v2935, %v2931
        %v4872 = vpack.c.b16 %v2936, %v2932
        %v4873 = vpack.c.b16 %v2937, %v2933
        %v4874 = vpack.c.b16 %v2938, %v2934
        %v4875 = vpack.c.b16 %v2943, %v2939
        %v4876 = vpack.c.b16 %v2944, %v2940
        %v4877 = vpack.c.b16 %v2945, %v2941
        %v4878 = vpack.c.b16 %v2946, %v2942
        %v4879 = vpack.c.b16 %v2951, %v2947
        %v4880 = vpack.c.b16 %v2952, %v2948
        %v4881 = vpack.c.b16 %v2953, %v2949
        %v4882 = vpack.c.b16 %v2954, %v2950
        %v4883 = vpack.c.b16 %v2959, %v2955
        %v4884 = vpack.c.b16 %v2960, %v2956
        %v4885 = vpack.c.b16 %v2961, %v2957
        %v4886 = vpack.c.b16 %v2962, %v2958
        %v4887 = vpack.c.b16 %v2967, %v2963
        %v4888 = vpack.c.b16 %v2968, %v2964
        %v4889 = vpack.c.b16 %v2969, %v2965
        %v4890 = vpack.c.b16 %v2970, %v2966
        %v4891 = vpack.c.b16 %v2975, %v2971
        %v4892 = vpack.c.b16 %v2976, %v2972
        %v4893 = vpack.c.b16 %v2977, %v2973
        %v4894 = vpack.c.b16 %v2978, %v2974
        %v4895 = vpack.c.b16 %v2983, %v2979
        %v4896 = vpack.c.b16 %v2984, %v2980
        %v4897 = vpack.c.b16 %v2985, %v2981
        %v4898 = vpack.c.b16 %v2986, %v2982
        %v4899 = vpack.c.b16 %v2991, %v2987
        %v4900 = vpack.c.b16 %v2992, %v2988
        %v4901 = vpack.c.b16 %v2993, %v2989
        %v4902 = vpack.c.b16 %v2994, %v2990
        %v4903 = vpack.c.b16 %v2999, %v2995
        %v4904 = vpack.c.b16 %v3000, %v2996
        %v4905 = vpack.c.b16 %v3001, %v2997
        %v4906 = vpack.c.b16 %v3002, %v2998
        %v4907 = vpack.c.b16 %v3007, %v3003
        %v4908 = vpack.c.b16 %v3008, %v3004
        %v4909 = vpack.c.b16 %v3009, %v3005
        %v4910 = vpack.c.b16 %v3010, %v3006
        %v4911 = vpack.c.b16 %v3015, %v3011
        %v4912 = vpack.c.b16 %v3016, %v3012
        %v4913 = vpack.c.b16 %v3017, %v3013
        %v4914 = vpack.c.b16 %v3018, %v3014
        %v4915 = vpack.c.b16 %v3023, %v3019
        %v4916 = vpack.c.b16 %v3024, %v3020
        %v4917 = vpack.c.b16 %v3025, %v3021
        %v4918 = vpack.c.b16 %v3026, %v3022
        %v4919 = vpack.c.b16 %v3031, %v3027
        %v4920 = vpack.c.b16 %v3032, %v3028
        %v4921 = vpack.c.b16 %v3033, %v3029
        %v4922 = vpack.c.b16 %v3034, %v3030
        %v4923 = vpack.c.b16 %v3039, %v3035
        %v4924 = vpack.c.b16 %v3040, %v3036
        %v4925 = vpack.c.b16 %v3041, %v3037
        %v4926 = vpack.c.b16 %v3042, %v3038
        %v4927 = vpack.c.b16 %v3047, %v3043
        %v4928 = vpack.c.b16 %v3048, %v3044
        %v4929 = vpack.c.b16 %v3049, %v3045
        %v4930 = vpack.c.b16 %v3050, %v3046
        %v4931 = vpack.c.b16 %v3055, %v3051
        %v4932 = vpack.c.b16 %v3056, %v3052
        %v4933 = vpack.c.b16 %v3057, %v3053
        %v4934 = vpack.c.b16 %v3058, %v3054
        %v4935 = vpack.c.b16 %v3063, %v3059
        %v4936 = vpack.c.b16 %v3064, %v3060
        %v4937 = vpack.c.b16 %v3065, %v3061
        %v4938 = vpack.c.b16 %v3066, %v3062
        %v4939 = vpack.c.b16 %v3071, %v3067
        %v4940 = vpack.c.b16 %v3072, %v3068
        %v4941 = vpack.c.b16 %v3073, %v3069
        %v4942 = vpack.c.b16 %v3074, %v3070
        %v4943 = vpack.c.b16 %v3079, %v3075
        %v4944 = vpack.c.b16 %v3080, %v3076
        %v4945 = vpack.c.b16 %v3081, %v3077
        %v4946 = vpack.c.b16 %v3082, %v3078
        %v4947 = vpack.c.b16 %v3087, %v3083
        %v4948 = vpack.c.b16 %v3088, %v3084
        %v4949 = vpack.c.b16 %v3089, %v3085
        %v4950 = vpack.c.b16 %v3090, %v3086
        %v4951 = vpack.c.b16 %v3095, %v3091
        %v4952 = vpack.c.b16 %v3096, %v3092
        %v4953 = vpack.c.b16 %v3097, %v3093
        %v4954 = vpack.c.b16 %v3098, %v3094
        %v4955 = vpack.c.b16 %v3103, %v3099
        %v4956 = vpack.c.b16 %v3104, %v3100
        %v4957 = vpack.c.b16 %v3105, %v3101
        %v4958 = vpack.c.b16 %v3106, %v3102
        %v4959 = vpack.c.b16 %v3111, %v3107
        %v4960 = vpack.c.b16 %v3112, %v3108
        %v4961 = vpack.c.b16 %v3113, %v3109
        %v4962 = vpack.c.b16 %v3114, %v3110
        %v4963 = vpack.c.b16 %v3119, %v3115
        %v4964 = vpack.c.b16 %v3120, %v3116
        %v4965 = vpack.c.b16 %v3121, %v3117
        %v4966 = vpack.c.b16 %v3122, %v3118
        %v4967 = vpack.c.b16 %v3127, %v3123
        %v4968 = vpack.c.b16 %v3128, %v3124
        %v4969 = vpack.c.b16 %v3129, %v3125
        %v4970 = vpack.c.b16 %v3130, %v3126
        %v4971 = vpack.c.b16 %v3135, %v3131
        %v4972 = vpack.c.b16 %v3136, %v3132
        %v4973 = vpack.c.b16 %v3137, %v3133
        %v4974 = vpack.c.b16 %v3138, %v3134
        %v4975 = vpack.c.b16 %v3143, %v3139
        %v4976 = vpack.c.b16 %v3144, %v3140
        %v4977 = vpack.c.b16 %v3145, %v3141
        %v4978 = vpack.c.b16 %v3146, %v3142
        %v4979 = vpack.c.b16 %v3151, %v3147
        %v4980 = vpack.c.b16 %v3152, %v3148
        %v4981 = vpack.c.b16 %v3153, %v3149
        %v4982 = vpack.c.b16 %v3154, %v3150
        %v4983 = vpack.c.b16 %v3159, %v3155
        %v4984 = vpack.c.b16 %v3160, %v3156
        %v4985 = vpack.c.b16 %v3161, %v3157
        %v4986 = vpack.c.b16 %v3162, %v3158
        %v4987 = vpack.c.b16 %v3167, %v3163
        %v4988 = vpack.c.b16 %v3168, %v3164
        %v4989 = vpack.c.b16 %v3169, %v3165
        %v4990 = vpack.c.b16 %v3170, %v3166
        %v4991 = vpack.c.b16 %v3175, %v3171
        %v4992 = vpack.c.b16 %v3176, %v3172
        %v4993 = vpack.c.b16 %v3177, %v3173
        %v4994 = vpack.c.b16 %v3178, %v3174
        %v4995 = vpack.c.b16 %v3183, %v3179
        %v4996 = vpack.c.b16 %v3184, %v3180
        %v4997 = vpack.c.b16 %v3185, %v3181
        %v4998 = vpack.c.b16 %v3186, %v3182
        %v4999 = vpack.c.b16 %v3191, %v3187
        %v5000 = vpack.c.b16 %v3192, %v3188
        %v5001 = vpack.c.b16 %v3193, %v3189
        %v5002 = vpack.c.b16 %v3194, %v3190
        %v5003 = vpack.c.b16 %v3199, %v3195
        %v5004 = vpack.c.b16 %v3200, %v3196
        %v5005 = vpack.c.b16 %v3201, %v3197
        %v5006 = vpack.c.b16 %v3202, %v3198
        %v5007 = vpack.c.b16 %v3207, %v3203
        %v5008 = vpack.c.b16 %v3208, %v3204
        %v5009 = vpack.c.b16 %v3209, %v3205
        %v5010 = vpack.c.b16 %v3210, %v3206
        %v5011 = vpack.c.b16 %v3215, %v3211
        %v5012 = vpack.c.b16 %v3216, %v3212
        %v5013 = vpack.c.b16 %v3217, %v3213
        %v5014 = vpack.c.b16 %v3218, %v3214
        %v5015 = vpack.c.b16 %v3223, %v3219
        %v5016 = vpack.c.b16 %v3224, %v3220
        %v5017 = vpack.c.b16 %v3225, %v3221
        %v5018 = vpack.c.b16 %v3226, %v3222
        %v5019 = vpack.c.b16 %v3231, %v3227
        %v5020 = vpack.c.b16 %v3232, %v3228
        %v5021 = vpack.c.b16 %v3233, %v3229
        %v5022 = vpack.c.b16 %v3234, %v3230
        %v5023 = vpack.c.b16 %v3239, %v3235
        %v5024 = vpack.c.b16 %v3240, %v3236
        %v5025 = vpack.c.b16 %v3241, %v3237
        %v5026 = vpack.c.b16 %v3242, %v3238
        %v5027 = vpack.c.b16 %v3247, %v3243
        %v5028 = vpack.c.b16 %v3248, %v3244
        %v5029 = vpack.c.b16 %v3249, %v3245
        %v5030 = vpack.c.b16 %v3250, %v3246
        %v5031 = vpack.c.b16 %v3255, %v3251
        %v5032 = vpack.c.b16 %v3256, %v3252
        %v5033 = vpack.c.b16 %v3257, %v3253
        %v5034 = vpack.c.b16 %v3258, %v3254
        %v5035 = vpack.c.b16 %v3263, %v3259
        %v5036 = vpack.c.b16 %v3264, %v3260
        %v5037 = vpack.c.b16 %v3265, %v3261
        %v5038 = vpack.c.b16 %v3266, %v3262
        %v5039 = vpack.c.b16 %v3271, %v3267
        %v5040 = vpack.c.b16 %v3272, %v3268
        %v5041 = vpack.c.b16 %v3273, %v3269
        %v5042 = vpack.c.b16 %v3274, %v3270
        %v5043 = vpack.c.b16 %v3279, %v3275
        %v5044 = vpack.c.b16 %v3280, %v3276
        %v5045 = vpack.c.b16 %v3281, %v3277
        %v5046 = vpack.c.b16 %v3282, %v3278
        %v5047 = vpack.c.b16 %v3287, %v3283
        %v5048 = vpack.c.b16 %v3288, %v3284
        %v5049 = vpack.c.b16 %v3289, %v3285
        %v5050 = vpack.c.b16 %v3290, %v3286
        %v5051 = vpack.c.b16 %v3295, %v3291
        %v5052 = vpack.c.b16 %v3296, %v3292
        %v5053 = vpack.c.b16 %v3297, %v3293
        %v5054 = vpack.c.b16 %v3298, %v3294
        %v5055 = vpack.c.b16 %v3303, %v3299
        %v5056 = vpack.c.b16 %v3304, %v3300
        %v5057 = vpack.c.b16 %v3305, %v3301
        %v5058 = vpack.c.b16 %v3306, %v3302
        %v5059 = vpack.c.b16 %v3311, %v3307
        %v5060 = vpack.c.b16 %v3312, %v3308
        %v5061 = vpack.c.b16 %v3313, %v3309
        %v5062 = vpack.c.b16 %v3314, %v3310
        %v5063 = vpack.c.b16 %v3319, %v3315
        %v5064 = vpack.c.b16 %v3320, %v3316
        %v5065 = vpack.c.b16 %v3321, %v3317
        %v5066 = vpack.c.b16 %v3322, %v3318
        %v5067 = vpack.c.b16 %v3327, %v3323
        %v5068 = vpack.c.b16 %v3328, %v3324
        %v5069 = vpack.c.b16 %v3329, %v3325
        %v5070 = vpack.c.b16 %v3330, %v3326
        %v5071 = vpack.c.b16 %v3335, %v3331
        %v5072 = vpack.c.b16 %v3336, %v3332
        %v5073 = vpack.c.b16 %v3337, %v3333
        %v5074 = vpack.c.b16 %v3338, %v3334
        %v5075 = vpack.c.b16 %v3343, %v3339
        %v5076 = vpack.c.b16 %v3344, %v3340
        %v5077 = vpack.c.b16 %v3345, %v3341
        %v5078 = vpack.c.b16 %v3346, %v3342
        %v5079 = vpack.c.b16 %v3351, %v3347
        %v5080 = vpack.c.b16 %v3352, %v3348
        %v5081 = vpack.c.b16 %v3353, %v3349
        %v5082 = vpack.c.b16 %v3354, %v3350
        %v5083 = vpack.c.b16 %v3359, %v3355
        %v5084 = vpack.c.b16 %v3360, %v3356
        %v5085 = vpack.c.b16 %v3361, %v3357
        %v5086 = vpack.c.b16 %v3362, %v3358
        %v5087 = vpack.c.b16 %v3367, %v3363
        %v5088 = vpack.c.b16 %v3368, %v3364
        %v5089 = vpack.c.b16 %v3369, %v3365
        %v5090 = vpack.c.b16 %v3370, %v3366
        %v5091 = vpack.c.b16 %v3375, %v3371
        %v5092 = vpack.c.b16 %v3376, %v3372
        %v5093 = vpack.c.b16 %v3377, %v3373
        %v5094 = vpack.c.b16 %v3378, %v3374
        %v5095 = vpack.c.b16 %v3383, %v3379
        %v5096 = vpack.c.b16 %v3384, %v3380
        %v5097 = vpack.c.b16 %v3385, %v3381
        %v5098 = vpack.c.b16 %v3386, %v3382
        %v5099 = vpack.c.b16 %v3391, %v3387
        %v5100 = vpack.c.b16 %v3392, %v3388
        %v5101 = vpack.c.b16 %v3393, %v3389
        %v5102 = vpack.c.b16 %v3394, %v3390
        %v5103 = vpack.c.b16 %v3399, %v3395
        %v5104 = vpack.c.b16 %v3400, %v3396
        %v5105 = vpack.c.b16 %v3401, %v3397
        %v5106 = vpack.c.b16 %v3402, %v3398
        %v5107 = vpack.c.b16 %v3407, %v3403
        %v5108 = vpack.c.b16 %v3408, %v3404
        %v5109 = vpack.c.b16 %v3409, %v3405
        %v5110 = vpack.c.b16 %v3410, %v3406
        %v5111 = vpack.c.b16 %v3415, %v3411
        %v5112 = vpack.c.b16 %v3416, %v3412
        %v5113 = vpack.c.b16 %v3417, %v3413
        %v5114 = vpack.c.b16 %v3418, %v3414
        %v5115 = vpack.c.b16 %v3423, %v3419
        %v5116 = vpack.c.b16 %v3424, %v3420
        %v5117 = vpack.c.b16 %v3425, %v3421
        %v5118 = vpack.c.b16 %v3426, %v3422
        %v5119 = vpack.c.b16 %v3431, %v3427
        %v5120 = vpack.c.b16 %v3432, %v3428
        %v5121 = vpack.c.b16 %v3433, %v3429
        %v5122 = vpack.c.b16 %v3434, %v3430
        %v5123 = vpack.c.b16 %v3439, %v3435
        %v5124 = vpack.c.b16 %v3440, %v3436
        %v5125 = vpack.c.b16 %v3441, %v3437
        %v5126 = vpack.c.b16 %v3442, %v3438
        %v5127 = vpack.c.b16 %v3447, %v3443
        %v5128 = vpack.c.b16 %v3448, %v3444
        %v5129 = vpack.c.b16 %v3449, %v3445
        %v5130 = vpack.c.b16 %v3450, %v3446
        %v5131 = vpack.c.b16 %v3455, %v3451
        %v5132 = vpack.c.b16 %v3456, %v3452
        %v5133 = vpack.c.b16 %v3457, %v3453
        %v5134 = vpack.c.b16 %v3458, %v3454
        %v5135 = vpack.c.b16 %v3463, %v3459
        %v5136 = vpack.c.b16 %v3464, %v3460
        %v5137 = vpack.c.b16 %v3465, %v3461
        %v5138 = vpack.c.b16 %v3466, %v3462
        %v5139 = vpack.c.b16 %v3471, %v3467
        %v5140 = vpack.c.b16 %v3472, %v3468
        %v5141 = vpack.c.b16 %v3473, %v3469
        %v5142 = vpack.c.b16 %v3474, %v3470
        %v5143 = vpack.c.b16 %v3479, %v3475
        %v5144 = vpack.c.b16 %v3480, %v3476
        %v5145 = vpack.c.b16 %v3481, %v3477
        %v5146 = vpack.c.b16 %v3482, %v3478
        %v5147 = vpack.c.b16 %v3487, %v3483
        %v5148 = vpack.c.b16 %v3488, %v3484
        %v5149 = vpack.c.b16 %v3489, %v3485
        %v5150 = vpack.c.b16 %v3490, %v3486
        %v5151 = vpack.c.b16 %v3495, %v3491
        %v5152 = vpack.c.b16 %v3496, %v3492
        %v5153 = vpack.c.b16 %v3497, %v3493
        %v5154 = vpack.c.b16 %v3498, %v3494
        %v5155 = vpack.c.b16 %v3503, %v3499
        %v5156 = vpack.c.b16 %v3504, %v3500
        %v5157 = vpack.c.b16 %v3505, %v3501
        %v5158 = vpack.c.b16 %v3506, %v3502
        %v5159 = vpack.c.b16 %v3511, %v3507
        %v5160 = vpack.c.b16 %v3512, %v3508
        %v5161 = vpack.c.b16 %v3513, %v3509
        %v5162 = vpack.c.b16 %v3514, %v3510
        %v5163 = vpack.c.b16 %v3519, %v3515
        %v5164 = vpack.c.b16 %v3520, %v3516
        %v5165 = vpack.c.b16 %v3521, %v3517
        %v5166 = vpack.c.b16 %v3522, %v3518
        %v5167 = vpack.c.b16 %v3527, %v3523
        %v5168 = vpack.c.b16 %v3528, %v3524
        %v5169 = vpack.c.b16 %v3529, %v3525
        %v5170 = vpack.c.b16 %v3530, %v3526
        %v5171 = vpack.c.b16 %v3535, %v3531
        %v5172 = vpack.c.b16 %v3536, %v3532
        %v5173 = vpack.c.b16 %v3537, %v3533
        %v5174 = vpack.c.b16 %v3538, %v3534
        %v5175 = vpack.c.b16 %v3543, %v3539
        %v5176 = vpack.c.b16 %v3544, %v3540
        %v5177 = vpack.c.b16 %v3545, %v3541
        %v5178 = vpack.c.b16 %v3546, %v3542
        %v5179 = vpack.c.b16 %v3551, %v3547
        %v5180 = vpack.c.b16 %v3552, %v3548
        %v5181 = vpack.c.b16 %v3553, %v3549
        %v5182 = vpack.c.b16 %v3554, %v3550
        %v5183 = vpack.c.b16 %v3559, %v3555
        %v5184 = vpack.c.b16 %v3560, %v3556
        %v5185 = vpack.c.b16 %v3561, %v3557
        %v5186 = vpack.c.b16 %v3562, %v3558
        %v5187 = vpack.c.b16 %v3567, %v3563
        %v5188 = vpack.c.b16 %v3568, %v3564
        %v5189 = vpack.c.b16 %v3569, %v3565
        %v5190 = vpack.c.b16 %v3570, %v3566
        %v5191 = vpack.c.b16 %v3575, %v3571
        %v5192 = vpack.c.b16 %v3576, %v3572
        %v5193 = vpack.c.b16 %v3577, %v3573
        %v5194 = vpack.c.b16 %v3578, %v3574
        %v5195 = vpack.c.b16 %v3583, %v3579
        %v5196 = vpack.c.b16 %v3584, %v3580
        %v5197 = vpack.c.b16 %v3585, %v3581
        %v5198 = vpack.c.b16 %v3586, %v3582
        %v5199 = vpack.c.b16 %v3591, %v3587
        %v5200 = vpack.c.b16 %v3592, %v3588
        %v5201 = vpack.c.b16 %v3593, %v3589
        %v5202 = vpack.c.b16 %v3594, %v3590
        %v5203 = vpack.c.b16 %v3599, %v3595
        %v5204 = vpack.c.b16 %v3600, %v3596
        %v5205 = vpack.c.b16 %v3601, %v3597
        %v5206 = vpack.c.b16 %v3602, %v3598
        %v5207 = vpack.c.b16 %v3607, %v3603
        %v5208 = vpack.c.b16 %v3608, %v3604
        %v5209 = vpack.c.b16 %v3609, %v3605
        %v5210 = vpack.c.b16 %v3610, %v3606
        %v5211 = vpack.c.b16 %v3615, %v3611
        %v5212 = vpack.c.b16 %v3616, %v3612
        %v5213 = vpack.c.b16 %v3617, %v3613
        %v5214 = vpack.c.b16 %v3618, %v3614
        %v5215 = vpack.c.b16 %v3623, %v3619
        %v5216 = vpack.c.b16 %v3624, %v3620
        %v5217 = vpack.c.b16 %v3625, %v3621
        %v5218 = vpack.c.b16 %v3626, %v3622
        %v5219 = vpack.c.b16 %v3631, %v3627
        %v5220 = vpack.c.b16 %v3632, %v3628
        %v5221 = vpack.c.b16 %v3633, %v3629
        %v5222 = vpack.c.b16 %v3634, %v3630
        %v5223 = vpack.c.b16 %v3639, %v3635
        %v5224 = vpack.c.b16 %v3640, %v3636
        %v5225 = vpack.c.b16 %v3641, %v3637
        %v5226 = vpack.c.b16 %v3642, %v3638
        %v5227 = vpack.c.b16 %v3647, %v3643
        %v5228 = vpack.c.b16 %v3648, %v3644
        %v5229 = vpack.c.b16 %v3649, %v3645
        %v5230 = vpack.c.b16 %v3650, %v3646
        %v5231 = vpack.c.b16 %v3655, %v3651
        %v5232 = vpack.c.b16 %v3656, %v3652
        %v5233 = vpack.c.b16 %v3657, %v3653
        %v5234 = vpack.c.b16 %v3658, %v3654
        %v5235 = vpack.c.b16 %v3663, %v3659
        %v5236 = vpack.c.b16 %v3664, %v3660
        %v5237 = vpack.c.b16 %v3665, %v3661
        %v5238 = vpack.c.b16 %v3666, %v3662
        %v5239 = vpack.c.b16 %v3671, %v3667
        %v5240 = vpack.c.b16 %v3672, %v3668
        %v5241 = vpack.c.b16 %v3673, %v3669
        %v5242 = vpack.c.b16 %v3674, %v3670
        %v5243 = vpack.c.b16 %v3679, %v3675
        %v5244 = vpack.c.b16 %v3680, %v3676
        %v5245 = vpack.c.b16 %v3681, %v3677
        %v5246 = vpack.c.b16 %v3682, %v3678
        %v5247 = vpack.c.b16 %v3687, %v3683
        %v5248 = vpack.c.b16 %v3688, %v3684
        %v5249 = vpack.c.b16 %v3689, %v3685
        %v5250 = vpack.c.b16 %v3690, %v3686
        %v5251 = vpack.c.b16 %v3695, %v3691
        %v5252 = vpack.c.b16 %v3696, %v3692
        %v5253 = vpack.c.b16 %v3697, %v3693
        %v5254 = vpack.c.b16 %v3698, %v3694
        %v5255 = vpack.c.b16 %v3703, %v3699
        %v5256 = vpack.c.b16 %v3704, %v3700
        %v5257 = vpack.c.b16 %v3705, %v3701
        %v5258 = vpack.c.b16 %v3706, %v3702
        %v5259 = vpack.c.b16 %v3711, %v3707
        %v5260 = vpack.c.b16 %v3712, %v3708
        %v5261 = vpack.c.b16 %v3713, %v3709
        %v5262 = vpack.c.b16 %v3714, %v3710
        %v5263 = vpack.c.b16 %v3719, %v3715
        %v5264 = vpack.c.b16 %v3720, %v3716
        %v5265 = vpack.c.b16 %v3721, %v3717
        %v5266 = vpack.c.b16 %v3722, %v3718
        %v5267 = vpack.c.b16 %v3727, %v3723
        %v5268 = vpack.c.b16 %v3728, %v3724
        %v5269 = vpack.c.b16 %v3729, %v3725
        %v5270 = vpack.c.b16 %v3730, %v3726
        %v5271 = vpack.c.b16 %v3735, %v3731
        %v5272 = vpack.c.b16 %v3736, %v3732
        %v5273 = vpack.c.b16 %v3737, %v3733
        %v5274 = vpack.c.b16 %v3738, %v3734
        %v5275 = vpack.c.b16 %v3743, %v3739
        %v5276 = vpack.c.b16 %v3744, %v3740
        %v5277 = vpack.c.b16 %v3745, %v3741
        %v5278 = vpack.c.b16 %v3746, %v3742
        %v5279 = vpack.c.b16 %v3751, %v3747
        %v5280 = vpack.c.b16 %v3752, %v3748
        %v5281 = vpack.c.b16 %v3753, %v3749
        %v5282 = vpack.c.b16 %v3754, %v3750
        %v5283 = vpack.c.b16 %v3759, %v3755
        %v5284 = vpack.c.b16 %v3760, %v3756
        %v5285 = vpack.c.b16 %v3761, %v3757
        %v5286 = vpack.c.b16 %v3762, %v3758
        %v5287 = vpack.c.b16 %v3767, %v3763
        %v5288 = vpack.c.b16 %v3768, %v3764
        %v5289 = vpack.c.b16 %v3769, %v3765
        %v5290 = vpack.c.b16 %v3770, %v3766
        %v5291 = vpack.c.b16 %v3775, %v3771
        %v5292 = vpack.c.b16 %v3776, %v3772
        %v5293 = vpack.c.b16 %v3777, %v3773
        %v5294 = vpack.c.b16 %v3778, %v3774
        %v5295 = vpack.c.b16 %v3783, %v3779
        %v5296 = vpack.c.b16 %v3784, %v3780
        %v5297 = vpack.c.b16 %v3785, %v3781
        %v5298 = vpack.c.b16 %v3786, %v3782
        %v5299 = vpack.c.b16 %v3791, %v3787
        %v5300 = vpack.c.b16 %v3792, %v3788
        %v5301 = vpack.c.b16 %v3793, %v3789
        %v5302 = vpack.c.b16 %v3794, %v3790
        %v5303 = vpack.c.b16 %v3799, %v3795
        %v5304 = vpack.c.b16 %v3800, %v3796
        %v5305 = vpack.c.b16 %v3801, %v3797
        %v5306 = vpack.c.b16 %v3802, %v3798
        %v5307 = vpack.c.b16 %v3807, %v3803
        %v5308 = vpack.c.b16 %v3808, %v3804
        %v5309 = vpack.c.b16 %v3809, %v3805
        %v5310 = vpack.c.b16 %v3810, %v3806
        %v5311 = vpack.c.b16 %v3815, %v3811
        %v5312 = vpack.c.b16 %v3816, %v3812
        %v5313 = vpack.c.b16 %v3817, %v3813
        %v5314 = vpack.c.b16 %v3818, %v3814
        %v5315 = vpack.c.b16 %v3823, %v3819
        %v5316 = vpack.c.b16 %v3824, %v3820
        %v5317 = vpack.c.b16 %v3825, %v3821
        %v5318 = vpack.c.b16 %v3826, %v3822
        %v5319 = vpack.c.b16 %v3831, %v3827
        %v5320 = vpack.c.b16 %v3832, %v3828
        %v5321 = vpack.c.b16 %v3833, %v3829
        %v5322 = vpack.c.b16 %v3834, %v3830
        %v5323 = vpack.c.b16 %v3839, %v3835
        %v5324 = vpack.c.b16 %v3840, %v3836
        %v5325 = vpack.c.b16 %v3841, %v3837
        %v5326 = vpack.c.b16 %v3842, %v3838
        %v5327 = vpack.c.b16 %v3847, %v3843
        %v5328 = vpack.c.b16 %v3848, %v3844
        %v5329 = vpack.c.b16 %v3849, %v3845
        %v5330 = vpack.c.b16 %v3850, %v3846
        %v5331 = vpack.c.b16 %v3855, %v3851
        %v5332 = vpack.c.b16 %v3856, %v3852
        %v5333 = vpack.c.b16 %v3857, %v3853
        %v5334 = vpack.c.b16 %v3858, %v3854
        %v5335 = vpack.c.b16 %v3863, %v3859
        %v5336 = vpack.c.b16 %v3864, %v3860
        %v5337 = vpack.c.b16 %v3865, %v3861
        %v5338 = vpack.c.b16 %v3866, %v3862
        %v5339 = vpack.c.b16 %v3871, %v3867
        %v5340 = vpack.c.b16 %v3872, %v3868
        %v5341 = vpack.c.b16 %v3873, %v3869
        %v5342 = vpack.c.b16 %v3874, %v3870
        %v5343 = vpack.c.b16 %v3879, %v3875
        %v5344 = vpack.c.b16 %v3880, %v3876
        %v5345 = vpack.c.b16 %v3881, %v3877
        %v5346 = vpack.c.b16 %v3882, %v3878
        %v5347 = vpack.c.b16 %v3887, %v3883
        %v5348 = vpack.c.b16 %v3888, %v3884
        %v5349 = vpack.c.b16 %v3889, %v3885
        %v5350 = vpack.c.b16 %v3890, %v3886
        %v5351 = vpack.c.b16 %v3895, %v3891
        %v5352 = vpack.c.b16 %v3896, %v3892
        %v5353 = vpack.c.b16 %v3897, %v3893
        %v5354 = vpack.c.b16 %v3898, %v3894
        %v5355 = vpack.c.b16 %v3903, %v3899
        %v5356 = vpack.c.b16 %v3904, %v3900
        %v5357 = vpack.c.b16 %v3905, %v3901
        %v5358 = vpack.c.b16 %v3906, %v3902
        %v5359 = vpack.c.b16 %v3911, %v3907
        %v5360 = vpack.c.b16 %v3912, %v3908
        %v5361 = vpack.c.b16 %v3913, %v3909
        %v5362 = vpack.c.b16 %v3914, %v3910
        %v5363 = vpack.c.b16 %v3919, %v3915
        %v5364 = vpack.c.b16 %v3920, %v3916
        %v5365 = vpack.c.b16 %v3921, %v3917
        %v5366 = vpack.c.b16 %v3922, %v3918
        %v5367 = vpack.c.b16 %v3927, %v3923
        %v5368 = vpack.c.b16 %v3928, %v3924
        %v5369 = vpack.c.b16 %v3929, %v3925
        %v5370 = vpack.c.b16 %v3930, %v3926
        %v5371 = vpack.c.b16 %v3935, %v3931
        %v5372 = vpack.c.b16 %v3936, %v3932
        %v5373 = vpack.c.b16 %v3937, %v3933
        %v5374 = vpack.c.b16 %v3938, %v3934
        %v5375 = vpack.c.b16 %v3943, %v3939
        %v5376 = vpack.c.b16 %v3944, %v3940
        %v5377 = vpack.c.b16 %v3945, %v3941
        %v5378 = vpack.c.b16 %v3946, %v3942
        %v5379 = vpack.c.b16 %v3951, %v3947
        %v5380 = vpack.c.b16 %v3952, %v3948
        %v5381 = vpack.c.b16 %v3953, %v3949
        %v5382 = vpack.c.b16 %v3954, %v3950
        %v5383 = vpack.c.b16 %v3959, %v3955
        %v5384 = vpack.c.b16 %v3960, %v3956
        %v5385 = vpack.c.b16 %v3961, %v3957
        %v5386 = vpack.c.b16 %v3962, %v3958
        %v5387 = vpack.c.b16 %v3967, %v3963
        %v5388 = vpack.c.b16 %v3968, %v3964
        %v5389 = vpack.c.b16 %v3969, %v3965
        %v5390 = vpack.c.b16 %v3970, %v3966
        %v5391 = vpack.c.b16 %v3975, %v3971
        %v5392 = vpack.c.b16 %v3976, %v3972
        %v5393 = vpack.c.b16 %v3977, %v3973
        %v5394 = vpack.c.b16 %v3978, %v3974
        %v5395 = vpack.c.b16 %v3983, %v3979
        %v5396 = vpack.c.b16 %v3984, %v3980
        %v5397 = vpack.c.b16 %v3985, %v3981
        %v5398 = vpack.c.b16 %v3986, %v3982
        %v5399 = vpack.c.b16 %v3991, %v3987
        %v5400 = vpack.c.b16 %v3992, %v3988
        %v5401 = vpack.c.b16 %v3993, %v3989
        %v5402 = vpack.c.b16 %v3994, %v3990
        %v5403 = vpack.c.b16 %v3999, %v3995
        %v5404 = vpack.c.b16 %v4000, %v3996
        %v5405 = vpack.c.b16 %v4001, %v3997
        %v5406 = vpack.c.b16 %v4002, %v3998
        %v5407 = vpack.c.b16 %v4007, %v4003
        %v5408 = vpack.c.b16 %v4008, %v4004
        %v5409 = vpack.c.b16 %v4009, %v4005
        %v5410 = vpack.c.b16 %v4010, %v4006
        %v5411 = vpack.c.b16 %v4015, %v4011
        %v5412 = vpack.c.b16 %v4016, %v4012
        %v5413 = vpack.c.b16 %v4017, %v4013
        %v5414 = vpack.c.b16 %v4018, %v4014
        %v5415 = vpack.c.b16 %v4023, %v4019
        %v5416 = vpack.c.b16 %v4024, %v4020
        %v5417 = vpack.c.b16 %v4025, %v4021
        %v5418 = vpack.c.b16 %v4026, %v4022
        %v5419 = vpack.c.b16 %v4031, %v4027
        %v5420 = vpack.c.b16 %v4032, %v4028
        %v5421 = vpack.c.b16 %v4033, %v4029
        %v5422 = vpack.c.b16 %v4034, %v4030
        %v5423 = vpack.c.b16 %v4039, %v4035
        %v5424 = vpack.c.b16 %v4040, %v4036
        %v5425 = vpack.c.b16 %v4041, %v4037
        %v5426 = vpack.c.b16 %v4042, %v4038
        %v5427 = vpack.c.b16 %v4047, %v4043
        %v5428 = vpack.c.b16 %v4048, %v4044
        %v5429 = vpack.c.b16 %v4049, %v4045
        %v5430 = vpack.c.b16 %v4050, %v4046
        %v5431 = vpack.c.b16 %v4055, %v4051
        %v5432 = vpack.c.b16 %v4056, %v4052
        %v5433 = vpack.c.b16 %v4057, %v4053
        %v5434 = vpack.c.b16 %v4058, %v4054
        %v5435 = vpack.c.b16 %v4063, %v4059
        %v5436 = vpack.c.b16 %v4064, %v4060
        %v5437 = vpack.c.b16 %v4065, %v4061
        %v5438 = vpack.c.b16 %v4066, %v4062
        %v5439 = vpack.c.b16 %v4071, %v4067
        %v5440 = vpack.c.b16 %v4072, %v4068
        %v5441 = vpack.c.b16 %v4073, %v4069
        %v5442 = vpack.c.b16 %v4074, %v4070
        %v5443 = vpack.c.b16 %v4079, %v4075
        %v5444 = vpack.c.b16 %v4080, %v4076
        %v5445 = vpack.c.b16 %v4081, %v4077
        %v5446 = vpack.c.b16 %v4082, %v4078
        %v5447 = vpack.c.b16 %v4087, %v4083
        %v5448 = vpack.c.b16 %v4088, %v4084
        %v5449 = vpack.c.b16 %v4089, %v4085
        %v5450 = vpack.c.b16 %v4090, %v4086
        %v5451 = vpack.c.b16 %v4095, %v4091
        %v5452 = vpack.c.b16 %v4096, %v4092
        %v5453 = vpack.c.b16 %v4097, %v4093
        %v5454 = vpack.c.b16 %v4098, %v4094
        %v5455 = vpack.c.b16 %v4103, %v4099
        %v5456 = vpack.c.b16 %v4104, %v4100
        %v5457 = vpack.c.b16 %v4105, %v4101
        %v5458 = vpack.c.b16 %v4106, %v4102
        %v5459 = vpack.c.b16 %v4111, %v4107
        %v5460 = vpack.c.b16 %v4112, %v4108
        %v5461 = vpack.c.b16 %v4113, %v4109
        %v5462 = vpack.c.b16 %v4114, %v4110
        %v5463 = vpack.c.b16 %v4119, %v4115
        %v5464 = vpack.c.b16 %v4120, %v4116
        %v5465 = vpack.c.b16 %v4121, %v4117
        %v5466 = vpack.c.b16 %v4122, %v4118
        %v5467 = vpack.c.b16 %v4127, %v4123
        %v5468 = vpack.c.b16 %v4128, %v4124
        %v5469 = vpack.c.b16 %v4129, %v4125
        %v5470 = vpack.c.b16 %v4130, %v4126
        %v5471 = vpack.c.b16 %v4135, %v4131
        %v5472 = vpack.c.b16 %v4136, %v4132
        %v5473 = vpack.c.b16 %v4137, %v4133
        %v5474 = vpack.c.b16 %v4138, %v4134
        %v5475 = vpack.c.b16 %v4143, %v4139
        %v5476 = vpack.c.b16 %v4144, %v4140
        %v5477 = vpack.c.b16 %v4145, %v4141
        %v5478 = vpack.c.b16 %v4146, %v4142
        %v5479 = vpack.c.b16 %v4151, %v4147
        %v5480 = vpack.c.b16 %v4152, %v4148
        %v5481 = vpack.c.b16 %v4153, %v4149
        %v5482 = vpack.c.b16 %v4154, %v4150
        %v5483 = vpack.c.b16 %v4159, %v4155
        %v5484 = vpack.c.b16 %v4160, %v4156
        %v5485 = vpack.c.b16 %v4161, %v4157
        %v5486 = vpack.c.b16 %v4162, %v4158
        %v5487 = vpack.c.b16 %v4167, %v4163
        %v5488 = vpack.c.b16 %v4168, %v4164
        %v5489 = vpack.c.b16 %v4169, %v4165
        %v5490 = vpack.c.b16 %v4170, %v4166
        %v5491 = vpack.c.b16 %v4175, %v4171
        %v5492 = vpack.c.b16 %v4176, %v4172
        %v5493 = vpack.c.b16 %v4177, %v4173
        %v5494 = vpack.c.b16 %v4178, %v4174
        %v5495 = vpack.c.b16 %v4183, %v4179
        %v5496 = vpack.c.b16 %v4184, %v4180
        %v5497 = vpack.c.b16 %v4185, %v4181
        %v5498 = vpack.c.b16 %v4186, %v4182
        %v5499 = vpack.c.b16 %v4191, %v4187
        %v5500 = vpack.c.b16 %v4192, %v4188
        %v5501 = vpack.c.b16 %v4193, %v4189
        %v5502 = vpack.c.b16 %v4194, %v4190
        %v5503 = vpack.c.b16 %v4199, %v4195
        %v5504 = vpack.c.b16 %v4200, %v4196
        %v5505 = vpack.c.b16 %v4201, %v4197
        %v5506 = vpack.c.b16 %v4202, %v4198
        %v5507 = vpack.c.b16 %v4207, %v4203
        %v5508 = vpack.c.b16 %v4208, %v4204
        %v5509 = vpack.c.b16 %v4209, %v4205
        %v5510 = vpack.c.b16 %v4210, %v4206
        %v5511 = vpack.c.b16 %v4215, %v4211
        %v5512 = vpack.c.b16 %v4216, %v4212
        %v5513 = vpack.c.b16 %v4217, %v4213
        %v5514 = vpack.c.b16 %v4218, %v4214
        %v5515 = vpack.c.b16 %v4223, %v4219
        %v5516 = vpack.c.b16 %v4224, %v4220
        %v5517 = vpack.c.b16 %v4225, %v4221
        %v5518 = vpack.c.b16 %v4226, %v4222
        %v5519 = vpack.c.b16 %v4231, %v4227
        %v5520 = vpack.c.b16 %v4232, %v4228
        %v5521 = vpack.c.b16 %v4233, %v4229
        %v5522 = vpack.c.b16 %v4234, %v4230
        %v5523 = vpack.c.b16 %v4239, %v4235
        %v5524 = vpack.c.b16 %v4240, %v4236
        %v5525 = vpack.c.b16 %v4241, %v4237
        %v5526 = vpack.c.b16 %v4242, %v4238
        %v5527 = vpack.c.b16 %v4247, %v4243
        %v5528 = vpack.c.b16 %v4248, %v4244
        %v5529 = vpack.c.b16 %v4249, %v4245
        %v5530 = vpack.c.b16 %v4250, %v4246
        %v5531 = vpack.c.b16 %v4255, %v4251
        %v5532 = vpack.c.b16 %v4256, %v4252
        %v5533 = vpack.c.b16 %v4257, %v4253
        %v5534 = vpack.c.b16 %v4258, %v4254
        %v5535 = vpack.c.b16 %v4263, %v4259
        %v5536 = vpack.c.b16 %v4264, %v4260
        %v5537 = vpack.c.b16 %v4265, %v4261
        %v5538 = vpack.c.b16 %v4266, %v4262
        %v5539 = vpack.c.b16 %v4271, %v4267
        %v5540 = vpack.c.b16 %v4272, %v4268
        %v5541 = vpack.c.b16 %v4273, %v4269
        %v5542 = vpack.c.b16 %v4274, %v4270
        %v5543 = vpack.c.b16 %v4279, %v4275
        %v5544 = vpack.c.b16 %v4280, %v4276
        %v5545 = vpack.c.b16 %v4281, %v4277
        %v5546 = vpack.c.b16 %v4282, %v4278
        %v5547 = vpack.c.b16 %v4287, %v4283
        %v5548 = vpack.c.b16 %v4288, %v4284
        %v5549 = vpack.c.b16 %v4289, %v4285
        %v5550 = vpack.c.b16 %v4290, %v4286
        %v5551 = vpack.c.b16 %v4295, %v4291
        %v5552 = vpack.c.b16 %v4296, %v4292
        %v5553 = vpack.c.b16 %v4297, %v4293
        %v5554 = vpack.c.b16 %v4298, %v4294
        %v5555 = vpack.c.b16 %v4303, %v4299
        %v5556 = vpack.c.b16 %v4304, %v4300
        %v5557 = vpack.c.b16 %v4305, %v4301
        %v5558 = vpack.c.b16 %v4306, %v4302
        %v5559 = vpack.c.b16 %v4311, %v4307
        %v5560 = vpack.c.b16 %v4312, %v4308
        %v5561 = vpack.c.b16 %v4313, %v4309
        %v5562 = vpack.c.b16 %v4314, %v4310
        %v5563 = vpack.c.b16 %v4319, %v4315
        %v5564 = vpack.c.b16 %v4320, %v4316
        %v5565 = vpack.c.b16 %v4321, %v4317
        %v5566 = vpack.c.b16 %v4322, %v4318
        %v5567 = vpack.c.b16 %v4327, %v4323
        %v5568 = vpack.c.b16 %v4328, %v4324
        %v5569 = vpack.c.b16 %v4329, %v4325
        %v5570 = vpack.c.b16 %v4330, %v4326
        %v5571 = vpack.c.b16 %v4335, %v4331
        %v5572 = vpack.c.b16 %v4336, %v4332
        %v5573 = vpack.c.b16 %v4337, %v4333
        %v5574 = vpack.c.b16 %v4338, %v4334
        %v5575 = vpack.c.b16 %v4343, %v4339
        %v5576 = vpack.c.b16 %v4344, %v4340
        %v5577 = vpack.c.b16 %v4345, %v4341
        %v5578 = vpack.c.b16 %v4346, %v4342
        %v5579 = vpack.c.b16 %v4351, %v4347
        %v5580 = vpack.c.b16 %v4352, %v4348
        %v5581 = vpack.c.b16 %v4353, %v4349
        %v5582 = vpack.c.b16 %v4354, %v4350
        %v5583 = vpack.c.b16 %v4359, %v4355
        %v5584 = vpack.c.b16 %v4360, %v4356
        %v5585 = vpack.c.b16 %v4361, %v4357
        %v5586 = vpack.c.b16 %v4362, %v4358
        %v5587 = vpack.c.b16 %v4367, %v4363
        %v5588 = vpack.c.b16 %v4368, %v4364
        %v5589 = vpack.c.b16 %v4369, %v4365
        %v5590 = vpack.c.b16 %v4370, %v4366
        %v5591 = vpack.c.b16 %v4375, %v4371
        %v5592 = vpack.c.b16 %v4376, %v4372
        %v5593 = vpack.c.b16 %v4377, %v4373
        %v5594 = vpack.c.b16 %v4378, %v4374
        %v5595 = vpack.c.b16 %v4383, %v4379
        %v5596 = vpack.c.b16 %v4384, %v4380
        %v5597 = vpack.c.b16 %v4385, %v4381
        %v5598 = vpack.c.b16 %v4386, %v4382
        %v5599 = vpack.c.b16 %v4391, %v4387
        %v5600 = vpack.c.b16 %v4392, %v4388
        %v5601 = vpack.c.b16 %v4393, %v4389
        %v5602 = vpack.c.b16 %v4394, %v4390
        %v5603 = vpack.c.b16 %v4399, %v4395
        %v5604 = vpack.c.b16 %v4400, %v4396
        %v5605 = vpack.c.b16 %v4401, %v4397
        %v5606 = vpack.c.b16 %v4402, %v4398
        %v5607 = vpack.c.b16 %v4407, %v4403
        %v5608 = vpack.c.b16 %v4408, %v4404
        %v5609 = vpack.c.b16 %v4409, %v4405
        %v5610 = vpack.c.b16 %v4410, %v4406
        %v5611 = vpack.c.b16 %v4415, %v4411
        %v5612 = vpack.c.b16 %v4416, %v4412
        %v5613 = vpack.c.b16 %v4417, %v4413
        %v5614 = vpack.c.b16 %v4418, %v4414
        %v5615 = vpack.c.b16 %v4423, %v4419
        %v5616 = vpack.c.b16 %v4424, %v4420
        %v5617 = vpack.c.b16 %v4425, %v4421
        %v5618 = vpack.c.b16 %v4426, %v4422
        %v5619 = vpack.c.b16 %v4431, %v4427
        %v5620 = vpack.c.b16 %v4432, %v4428
        %v5621 = vpack.c.b16 %v4433, %v4429
        %v5622 = vpack.c.b16 %v4434, %v4430
        %v5623 = vpack.c.b16 %v4439, %v4435
        %v5624 = vpack.c.b16 %v4440, %v4436
        %v5625 = vpack.c.b16 %v4441, %v4437
        %v5626 = vpack.c.b16 %v4442, %v4438
        %v5627 = vpack.c.b16 %v4447, %v4443
        %v5628 = vpack.c.b16 %v4448, %v4444
        %v5629 = vpack.c.b16 %v4449, %v4445
        %v5630 = vpack.c.b16 %v4450, %v4446
        %v5631 = vpack.c.b16 %v4455, %v4451
        %v5632 = vpack.c.b16 %v4456, %v4452
        %v5633 = vpack.c.b16 %v4457, %v4453
        %v5634 = vpack.c.b16 %v4458, %v4454
        %v5635 = vpack.c.b16 %v4463, %v4459
        %v5636 = vpack.c.b16 %v4464, %v4460
        %v5637 = vpack.c.b16 %v4465, %v4461
        %v5638 = vpack.c.b16 %v4466, %v4462
        %v5639 = vpack.c.b16 %v4471, %v4467
        %v5640 = vpack.c.b16 %v4472, %v4468
        %v5641 = vpack.c.b16 %v4473, %v4469
        %v5642 = vpack.c.b16 %v4474, %v4470
        %v5643 = vpack.c.b16 %v4479, %v4475
        %v5644 = vpack.c.b16 %v4480, %v4476
        %v5645 = vpack.c.b16 %v4481, %v4477
        %v5646 = vpack.c.b16 %v4482, %v4478
        %v5647 = vpack.c.b16 %v4487, %v4483
        %v5648 = vpack.c.b16 %v4488, %v4484
        %v5649 = vpack.c.b16 %v4489, %v4485
        %v5650 = vpack.c.b16 %v4490, %v4486
        %v5651 = vpack.c.b16 %v4495, %v4491
        %v5652 = vpack.c.b16 %v4496, %v4492
        %v5653 = vpack.c.b16 %v4497, %v4493
        %v5654 = vpack.c.b16 %v4498, %v4494
        %v5655 = vpack.c.b16 %v4503, %v4499
        %v5656 = vpack.c.b16 %v4504, %v4500
        %v5657 = vpack.c.b16 %v4505, %v4501
        %v5658 = vpack.c.b16 %v4506, %v4502
        %v5659 = vpack.c.b16 %v4511, %v4507
        %v5660 = vpack.c.b16 %v4512, %v4508
        %v5661 = vpack.c.b16 %v4513, %v4509
        %v5662 = vpack.c.b16 %v4514, %v4510
        %v5663 = vpack.c.b16 %v4519, %v4515
        %v5664 = vpack.c.b16 %v4520, %v4516
        %v5665 = vpack.c.b16 %v4521, %v4517
        %v5666 = vpack.c.b16 %v4522, %v4518
        %v5667 = vpack.c.b16 %v4527, %v4523
        %v5668 = vpack.c.b16 %v4528, %v4524
        %v5669 = vpack.c.b16 %v4529, %v4525
        %v5670 = vpack.c.b16 %v4530, %v4526
        %v5671 = vpack.c.b16 %v4535, %v4531
        %v5672 = vpack.c.b16 %v4536, %v4532
        %v5673 = vpack.c.b16 %v4537, %v4533
        %v5674 = vpack.c.b16 %v4538, %v4534
        %v5675 = vpack.c.b16 %v4543, %v4539
        %v5676 = vpack.c.b16 %v4544, %v4540
        %v5677 = vpack.c.b16 %v4545, %v4541
        %v5678 = vpack.c.b16 %v4546, %v4542
        %v5679 = vpack.c.b16 %v4551, %v4547
        %v5680 = vpack.c.b16 %v4552, %v4548
        %v5681 = vpack.c.b16 %v4553, %v4549
        %v5682 = vpack.c.b16 %v4554, %v4550
        %v5683 = vpack.c.b16 %v4559, %v4555
        %v5684 = vpack.c.b16 %v4560, %v4556
        %v5685 = vpack.c.b16 %v4561, %v4557
        %v5686 = vpack.c.b16 %v4562, %v4558
        %v5687 = vpack.c.b16 %v4567, %v4563
        %v5688 = vpack.c.b16 %v4568, %v4564
        %v5689 = vpack.c.b16 %v4569, %v4565
        %v5690 = vpack.c.b16 %v4570, %v4566
        %v5691 = vpack.c.b16 %v4575, %v4571
        %v5692 = vpack.c.b16 %v4576, %v4572
        %v5693 = vpack.c.b16 %v4577, %v4573
        %v5694 = vpack.c.b16 %v4578, %v4574
        %v5695 = vpack.c.b16 %v4583, %v4579
        %v5696 = vpack.c.b16 %v4584, %v4580
        %v5697 = vpack.c.b16 %v4585, %v4581
        %v5698 = vpack.c.b16 %v4586, %v4582
        %v5699 = vpack.c.b16 %v4591, %v4587
        %v5700 = vpack.c.b16 %v4592, %v4588
        %v5701 = vpack.c.b16 %v4593, %v4589
        %v5702 = vpack.c.b16 %v4594, %v4590
        %v5703 = vpack.c.b16 %v4599, %v4595
        %v5704 = vpack.c.b16 %v4600, %v4596
        %v5705 = vpack.c.b16 %v4601, %v4597
        %v5706 = vpack.c.b16 %v4602, %v4598
        %v5707 = vpack.c.b16 %v4607, %v4603
        %v5708 = vpack.c.b16 %v4608, %v4604
        %v5709 = vpack.c.b16 %v4609, %v4605
        %v5710 = vpack.c.b16 %v4610, %v4606
        %v5711 = vpack.c.b16 %v4615, %v4611
        %v5712 = vpack.c.b16 %v4616, %v4612
        %v5713 = vpack.c.b16 %v4617, %v4613
        %v5714 = vpack.c.b16 %v4618, %v4614
        %v5715 = vpack.c.b16 %v4623, %v4619
        %v5716 = vpack.c.b16 %v4624, %v4620
        %v5717 = vpack.c.b16 %v4625, %v4621
        %v5718 = vpack.c.b16 %v4626, %v4622
        %v5719 = vpack.c.b16 %v4631, %v4627
        %v5720 = vpack.c.b16 %v4632, %v4628
        %v5721 = vpack.c.b16 %v4633, %v4629
        %v5722 = vpack.c.b16 %v4634, %v4630
        %v5723 = vpack.c.b16 %v4639, %v4635
        %v5724 = vpack.c.b16 %v4640, %v4636
        %v5725 = vpack.c.b16 %v4641, %v4637
        %v5726 = vpack.c.b16 %v4642, %v4638
        %v5727 = vpack.c.b16 %v4647, %v4643
        %v5728 = vpack.c.b16 %v4648, %v4644
        %v5729 = vpack.c.b16 %v4649, %v4645
        %v5730 = vpack.c.b16 %v4650, %v4646
        %v5731 = vpack.c.b16 %v4655, %v4651
        %v5732 = vpack.c.b16 %v4656, %v4652
        %v5733 = vpack.c.b16 %v4657, %v4653
        %v5734 = vpack.c.b16 %v4658, %v4654
        %v5735 = vpack.c.b16 %v4663, %v4659
        %v5736 = vpack.c.b16 %v4664, %v4660
        %v5737 = vpack.c.b16 %v4665, %v4661
        %v5738 = vpack.c.b16 %v4666, %v4662
        %v5739 = vpack.c.b16 %v4671, %v4667
        %v5740 = vpack.c.b16 %v4672, %v4668
        %v5741 = vpack.c.b16 %v4673, %v4669
        %v5742 = vpack.c.b16 %v4674, %v4670
        %v5743 = vpack.c.b16 %v4679, %v4675
        %v5744 = vpack.c.b16 %v4680, %v4676
        %v5745 = vpack.c.b16 %v4681, %v4677
        %v5746 = vpack.c.b16 %v4682, %v4678
        %v5747 = vpack.c.b16 %v4687, %v4683
        %v5748 = vpack.c.b16 %v4688, %v4684
        %v5749 = vpack.c.b16 %v4689, %v4685
        %v5750 = vpack.c.b16 %v4690, %v4686
        %v5751 = vpack.c.b16 %v4695, %v4691
        %v5752 = vpack.c.b16 %v4696, %v4692
        %v5753 = vpack.c.b16 %v4697, %v4693
        %v5754 = vpack.c.b16 %v4698, %v4694
        %v5755 = vpack.c.b16 %v4703, %v4699
        %v5756 = vpack.c.b16 %v4704, %v4700
        %v5757 = vpack.c.b16 %v4705, %v4701
        %v5758 = vpack.c.b16 %v4706, %v4702
        %v5759 = vpack.c.b16 %v4711, %v4707
        %v5760 = vpack.c.b16 %v4712, %v4708
        %v5761 = vpack.c.b16 %v4713, %v4709
        %v5762 = vpack.c.b16 %v4714, %v4710
        %v5763 = vpack.c.b16 %v4719, %v4715
        %v5764 = vpack.c.b16 %v4720, %v4716
        %v5765 = vpack.c.b16 %v4721, %v4717
        %v5766 = vpack.c.b16 %v4722, %v4718
        %v5767 = vpack.c.b16 %v4727, %v4723
        %v5768 = vpack.c.b16 %v4728, %v4724
        %v5769 = vpack.c.b16 %v4729, %v4725
        %v5770 = vpack.c.b16 %v4730, %v4726
        %v5771 = vpack.c.b16 %v4735, %v4731
        %v5772 = vpack.c.b16 %v4736, %v4732
        %v5773 = vpack.c.b16 %v4737, %v4733
        %v5774 = vpack.c.b16 %v4738, %v4734
        %v5775 = vpack.c.b16 %v4743, %v4739
        %v5776 = vpack.c.b16 %v4744, %v4740
        %v5777 = vpack.c.b16 %v4745, %v4741
        %v5778 = vpack.c.b16 %v4746, %v4742
        %v5779 = vpack.c.b16 %v4751, %v4747
        %v5780 = vpack.c.b16 %v4752, %v4748
        %v5781 = vpack.c.b16 %v4753, %v4749
        %v5782 = vpack.c.b16 %v4754, %v4750
        %v5783 = vpack.c.b16 %v4759, %v4755
        %v5784 = vpack.c.b16 %v4760, %v4756
        %v5785 = vpack.c.b16 %v4761, %v4757
        %v5786 = vpack.c.b16 %v4762, %v4758
        %6811 = vmatprep.subr.bf16.mxu0 %v4792
        %6812 = vmatpush1.bf16.msra.mxu0 %v4791
        %6813 = vmatprep.subr.bf16.mxu0 %v4788
        %6814 = vmatpush1.bf16.msra.mxu0 %v4787
        %6815 = vmatprep.subr.bf16.mxu0 %v4784
        %6816 = vmatpush1.bf16.msra.mxu0 %v4783
        %6817 = vmatprep.subr.bf16.mxu0 %v4780
        %6818 = vmatpush1.bf16.msra.mxu0 %v4779
        %6819 = vmatprep.subr.bf16.mxu0 %v4776
        %6820 = vmatpush1.bf16.msra.mxu0 %v4775
        %6821 = vmatprep.subr.bf16.mxu0 %v4772
        %6822 = vmatpush1.bf16.msra.mxu0 %v4771
        %6823 = vmatprep.subr.bf16.mxu0 %v4768
        %6824 = vmatpush1.bf16.msra.mxu0 %v4767
        %6825 = vmatprep.subr.bf16.mxu0 %v4764
        %6826 = vmatpush1.bf16.msra.mxu0 %v4763
        %6827 = vmatprep.subr.bf16.mxu0 %v4824
        %6828 = vmatpush2.bf16.msra.mxu0 %v4823
        %6829 = vmatprep.subr.bf16.mxu0 %v4820
        %6830 = vmatpush2.bf16.msra.mxu0 %v4819
        %6831 = vmatprep.subr.bf16.mxu0 %v4816
        %6832 = vmatpush2.bf16.msra.mxu0 %v4815
        %6833 = vmatprep.subr.bf16.mxu0 %v4812
        %6834 = vmatpush2.bf16.msra.mxu0 %v4811
        %6835 = vmatprep.subr.bf16.mxu0 %v4808
        %6836 = vmatpush2.bf16.msra.mxu0 %v4807
        %6837 = vmatprep.subr.bf16.mxu0 %v4804
        %6838 = vmatpush2.bf16.msra.mxu0 %v4803
        %6839 = vmatprep.subr.bf16.mxu0 %v4800
        %6840 = vmatpush2.bf16.msra.mxu0 %v4799
        %6841 = vmatprep.subr.bf16.mxu0 %v4796
        %6842 = vmatpush2.bf16.msra.mxu0 %v4795
        %6843 = vmatprep.mubr.bf16.mxu0 %v636
        %6844 = vmatmul.mubr.bf16.gmra.mxu0 %v635
        %v6845 = vpop.f32.mrf.mxu0
        %v6846 = vadd.f32 0.0, %v6845
        %v6847 = vpop.f32.mrf.mxu0
        %v6848 = vadd.f32 0.0, %v6847
        %v6849 = vpop.f32.mrf.mxu0
        %v6850 = vpop.f32.mrf.mxu0
        %6851 = vdwg.mxu0
        %6852 = vmatprep.subr.bf16.mxu0 %v4856
        %6853 = vmatpush1.bf16.msra.mxu0 %v4855
        %6854 = vmatprep.subr.bf16.mxu0 %v4852
        %6855 = vmatpush1.bf16.msra.mxu0 %v4851
        %6856 = vmatprep.subr.bf16.mxu0 %v4848
        %6857 = vmatpush1.bf16.msra.mxu0 %v4847
        %6858 = vmatprep.subr.bf16.mxu0 %v4844
        %6859 = vmatpush1.bf16.msra.mxu0 %v4843
        %6860 = vmatprep.subr.bf16.mxu0 %v4840
        %6861 = vmatpush1.bf16.msra.mxu0 %v4839
        %6862 = vmatprep.subr.bf16.mxu0 %v4836
        %6863 = vmatpush1.bf16.msra.mxu0 %v4835
        %6864 = vmatprep.subr.bf16.mxu0 %v4832
        %6865 = vmatpush1.bf16.msra.mxu0 %v4831
        %6866 = vmatprep.subr.bf16.mxu0 %v4828
        %6867 = vmatpush1.bf16.msra.mxu0 %v4827
        %6868 = vmatprep.subr.bf16.mxu0 %v4888
        %6869 = vmatpush2.bf16.msra.mxu0 %v4887
        %6870 = vmatprep.subr.bf16.mxu0 %v4884
        %6871 = vmatpush2.bf16.msra.mxu0 %v4883
        %6872 = vmatprep.subr.bf16.mxu0 %v4880
        %6873 = vmatpush2.bf16.msra.mxu0 %v4879
        %6874 = vmatprep.subr.bf16.mxu0 %v4876
        %6875 = vmatpush2.bf16.msra.mxu0 %v4875
        %6876 = vmatprep.subr.bf16.mxu0 %v4872
        %6877 = vmatpush2.bf16.msra.mxu0 %v4871
        %6878 = vmatprep.subr.bf16.mxu0 %v4868
        %6879 = vmatpush2.bf16.msra.mxu0 %v4867
        %6880 = vmatprep.subr.bf16.mxu0 %v4864
        %6881 = vmatpush2.bf16.msra.mxu0 %v4863
        %6882 = vmatprep.subr.bf16.mxu0 %v4860
        %6883 = vmatpush2.bf16.msra.mxu0 %v4859
        %6884 = vmatprep.mubr.bf16.mxu0 %v638
        %6885 = vmatmul.mubr.bf16.gmra.mxu0 %v637
        %v6886 = vpop.f32.mrf.mxu0
        %v6887 = vadd.f32 %v6846, %v6886
        %v6888 = vpop.f32.mrf.mxu0
        %v6889 = vadd.f32 %v6848, %v6888
        %v6890 = vpop.f32.mrf.mxu0
        %v6891 = vpop.f32.mrf.mxu0
        %6892 = vdwg.mxu0
        %6893 = vmatprep.subr.bf16.mxu0 %v4920
        %6894 = vmatpush1.bf16.msra.mxu0 %v4919
        %6895 = vmatprep.subr.bf16.mxu0 %v4916
        %6896 = vmatpush1.bf16.msra.mxu0 %v4915
        %6897 = vmatprep.subr.bf16.mxu0 %v4912
        %6898 = vmatpush1.bf16.msra.mxu0 %v4911
        %6899 = vmatprep.subr.bf16.mxu0 %v4908
        %6900 = vmatpush1.bf16.msra.mxu0 %v4907
        %6901 = vmatprep.subr.bf16.mxu0 %v4904
        %6902 = vmatpush1.bf16.msra.mxu0 %v4903
        %6903 = vmatprep.subr.bf16.mxu0 %v4900
        %6904 = vmatpush1.bf16.msra.mxu0 %v4899
        %6905 = vmatprep.subr.bf16.mxu0 %v4896
        %6906 = vmatpush1.bf16.msra.mxu0 %v4895
        %6907 = vmatprep.subr.bf16.mxu0 %v4892
        %6908 = vmatpush1.bf16.msra.mxu0 %v4891
        %6909 = vmatprep.subr.bf16.mxu0 %v4952
        %6910 = vmatpush2.bf16.msra.mxu0 %v4951
        %6911 = vmatprep.subr.bf16.mxu0 %v4948
        %6912 = vmatpush2.bf16.msra.mxu0 %v4947
        %6913 = vmatprep.subr.bf16.mxu0 %v4944
        %6914 = vmatpush2.bf16.msra.mxu0 %v4943
        %6915 = vmatprep.subr.bf16.mxu0 %v4940
        %6916 = vmatpush2.bf16.msra.mxu0 %v4939
        %6917 = vmatprep.subr.bf16.mxu0 %v4936
        %6918 = vmatpush2.bf16.msra.mxu0 %v4935
        %6919 = vmatprep.subr.bf16.mxu0 %v4932
        %6920 = vmatpush2.bf16.msra.mxu0 %v4931
        %6921 = vmatprep.subr.bf16.mxu0 %v4928
        %6922 = vmatpush2.bf16.msra.mxu0 %v4927
        %6923 = vmatprep.subr.bf16.mxu0 %v4924
        %6924 = vmatpush2.bf16.msra.mxu0 %v4923
        %6925 = vmatprep.mubr.bf16.mxu0 %v640
        %6926 = vmatmul.mubr.bf16.gmra.mxu0 %v639
        %v6927 = vpop.f32.mrf.mxu0
        %v6928 = vadd.f32 %v6887, %v6927
        %v6929 = vpop.f32.mrf.mxu0
        %v6930 = vadd.f32 %v6889, %v6929
        %v6931 = vpop.f32.mrf.mxu0
        %v6932 = vpop.f32.mrf.mxu0
        %6933 = vdwg.mxu0
        %6934 = vmatprep.subr.bf16.mxu0 %v4984
        %6935 = vmatpush1.bf16.msra.mxu0 %v4983
        %6936 = vmatprep.subr.bf16.mxu0 %v4980
        %6937 = vmatpush1.bf16.msra.mxu0 %v4979
        %6938 = vmatprep.subr.bf16.mxu0 %v4976
        %6939 = vmatpush1.bf16.msra.mxu0 %v4975
        %6940 = vmatprep.subr.bf16.mxu0 %v4972
        %6941 = vmatpush1.bf16.msra.mxu0 %v4971
        %6942 = vmatprep.subr.bf16.mxu0 %v4968
        %6943 = vmatpush1.bf16.msra.mxu0 %v4967
        %6944 = vmatprep.subr.bf16.mxu0 %v4964
        %6945 = vmatpush1.bf16.msra.mxu0 %v4963
        %6946 = vmatprep.subr.bf16.mxu0 %v4960
        %6947 = vmatpush1.bf16.msra.mxu0 %v4959
        %6948 = vmatprep.subr.bf16.mxu0 %v4956
        %6949 = vmatpush1.bf16.msra.mxu0 %v4955
        %6950 = vmatprep.subr.bf16.mxu0 %v5016
        %6951 = vmatpush2.bf16.msra.mxu0 %v5015
        %6952 = vmatprep.subr.bf16.mxu0 %v5012
        %6953 = vmatpush2.bf16.msra.mxu0 %v5011
        %6954 = vmatprep.subr.bf16.mxu0 %v5008
        %6955 = vmatpush2.bf16.msra.mxu0 %v5007
        %6956 = vmatprep.subr.bf16.mxu0 %v5004
        %6957 = vmatpush2.bf16.msra.mxu0 %v5003
        %6958 = vmatprep.subr.bf16.mxu0 %v5000
        %6959 = vmatpush2.bf16.msra.mxu0 %v4999
        %6960 = vmatprep.subr.bf16.mxu0 %v4996
        %6961 = vmatpush2.bf16.msra.mxu0 %v4995
        %6962 = vmatprep.subr.bf16.mxu0 %v4992
        %6963 = vmatpush2.bf16.msra.mxu0 %v4991
        %6964 = vmatprep.subr.bf16.mxu0 %v4988
        %6965 = vmatpush2.bf16.msra.mxu0 %v4987
        %6966 = vmatprep.mubr.bf16.mxu0 %v642
        %6967 = vmatmul.mubr.bf16.gmra.mxu0 %v641
        %v6968 = vpop.f32.mrf.mxu0
        %v6969 = vadd.f32 %v6928, %v6968
        %v6970 = vpop.f32.mrf.mxu0
        %v6971 = vadd.f32 %v6930, %v6970
        %v6972 = vpop.f32.mrf.mxu0
        %v6973 = vpop.f32.mrf.mxu0
        %6974 = vdwg.mxu0
        %6975 = vmatprep.subr.bf16.mxu0 %v5048
        %6976 = vmatpush1.bf16.msra.mxu0 %v5047
        %6977 = vmatprep.subr.bf16.mxu0 %v5044
        %6978 = vmatpush1.bf16.msra.mxu0 %v5043
        %6979 = vmatprep.subr.bf16.mxu0 %v5040
        %6980 = vmatpush1.bf16.msra.mxu0 %v5039
        %6981 = vmatprep.subr.bf16.mxu0 %v5036
        %6982 = vmatpush1.bf16.msra.mxu0 %v5035
        %6983 = vmatprep.subr.bf16.mxu0 %v5032
        %6984 = vmatpush1.bf16.msra.mxu0 %v5031
        %6985 = vmatprep.subr.bf16.mxu0 %v5028
        %6986 = vmatpush1.bf16.msra.mxu0 %v5027
        %6987 = vmatprep.subr.bf16.mxu0 %v5024
        %6988 = vmatpush1.bf16.msra.mxu0 %v5023
        %6989 = vmatprep.subr.bf16.mxu0 %v5020
        %6990 = vmatpush1.bf16.msra.mxu0 %v5019
        %6991 = vmatprep.subr.bf16.mxu0 %v5080
        %6992 = vmatpush2.bf16.msra.mxu0 %v5079
        %6993 = vmatprep.subr.bf16.mxu0 %v5076
        %6994 = vmatpush2.bf16.msra.mxu0 %v5075
        %6995 = vmatprep.subr.bf16.mxu0 %v5072
        %6996 = vmatpush2.bf16.msra.mxu0 %v5071
        %6997 = vmatprep.subr.bf16.mxu0 %v5068
        %6998 = vmatpush2.bf16.msra.mxu0 %v5067
        %6999 = vmatprep.subr.bf16.mxu0 %v5064
        %7000 = vmatpush2.bf16.msra.mxu0 %v5063
        %7001 = vmatprep.subr.bf16.mxu0 %v5060
        %7002 = vmatpush2.bf16.msra.mxu0 %v5059
        %7003 = vmatprep.subr.bf16.mxu0 %v5056
        %7004 = vmatpush2.bf16.msra.mxu0 %v5055
        %7005 = vmatprep.subr.bf16.mxu0 %v5052
        %7006 = vmatpush2.bf16.msra.mxu0 %v5051
        %7007 = vmatprep.mubr.bf16.mxu0 %v644
        %7008 = vmatmul.mubr.bf16.gmra.mxu0 %v643
        %v7009 = vpop.f32.mrf.mxu0
        %v7010 = vadd.f32 %v6969, %v7009
        %v7011 = vpop.f32.mrf.mxu0
        %v7012 = vadd.f32 %v6971, %v7011
        %v7013 = vpop.f32.mrf.mxu0
        %v7014 = vpop.f32.mrf.mxu0
        %7015 = vdwg.mxu0
        %7016 = vmatprep.subr.bf16.mxu0 %v5112
        %7017 = vmatpush1.bf16.msra.mxu0 %v5111
        %7018 = vmatprep.subr.bf16.mxu0 %v5108
        %7019 = vmatpush1.bf16.msra.mxu0 %v5107
        %7020 = vmatprep.subr.bf16.mxu0 %v5104
        %7021 = vmatpush1.bf16.msra.mxu0 %v5103
        %7022 = vmatprep.subr.bf16.mxu0 %v5100
        %7023 = vmatpush1.bf16.msra.mxu0 %v5099
        %7024 = vmatprep.subr.bf16.mxu0 %v5096
        %7025 = vmatpush1.bf16.msra.mxu0 %v5095
        %7026 = vmatprep.subr.bf16.mxu0 %v5092
        %7027 = vmatpush1.bf16.msra.mxu0 %v5091
        %7028 = vmatprep.subr.bf16.mxu0 %v5088
        %7029 = vmatpush1.bf16.msra.mxu0 %v5087
        %7030 = vmatprep.subr.bf16.mxu0 %v5084
        %7031 = vmatpush1.bf16.msra.mxu0 %v5083
        %7032 = vmatprep.subr.bf16.mxu0 %v5144
        %7033 = vmatpush2.bf16.msra.mxu0 %v5143
        %7034 = vmatprep.subr.bf16.mxu0 %v5140
        %7035 = vmatpush2.bf16.msra.mxu0 %v5139
        %7036 = vmatprep.subr.bf16.mxu0 %v5136
        %7037 = vmatpush2.bf16.msra.mxu0 %v5135
        %7038 = vmatprep.subr.bf16.mxu0 %v5132
        %7039 = vmatpush2.bf16.msra.mxu0 %v5131
        %7040 = vmatprep.subr.bf16.mxu0 %v5128
        %7041 = vmatpush2.bf16.msra.mxu0 %v5127
        %7042 = vmatprep.subr.bf16.mxu0 %v5124
        %7043 = vmatpush2.bf16.msra.mxu0 %v5123
        %7044 = vmatprep.subr.bf16.mxu0 %v5120
        %7045 = vmatpush2.bf16.msra.mxu0 %v5119
        %7046 = vmatprep.subr.bf16.mxu0 %v5116
        %7047 = vmatpush2.bf16.msra.mxu0 %v5115
        %7048 = vmatprep.mubr.bf16.mxu0 %v646
        %7049 = vmatmul.mubr.bf16.gmra.mxu0 %v645
        %v7050 = vpop.f32.mrf.mxu0
        %v7051 = vadd.f32 %v7010, %v7050
        %v7052 = vpop.f32.mrf.mxu0
        %v7053 = vadd.f32 %v7012, %v7052
        %v7054 = vpop.f32.mrf.mxu0
        %v7055 = vpop.f32.mrf.mxu0
        %7056 = vdwg.mxu0
        %7057 = vmatprep.subr.bf16.mxu0 %v5176
        %7058 = vmatpush1.bf16.msra.mxu0 %v5175
        %7059 = vmatprep.subr.bf16.mxu0 %v5172
        %7060 = vmatpush1.bf16.msra.mxu0 %v5171
        %7061 = vmatprep.subr.bf16.mxu0 %v5168
        %7062 = vmatpush1.bf16.msra.mxu0 %v5167
        %7063 = vmatprep.subr.bf16.mxu0 %v5164
        %7064 = vmatpush1.bf16.msra.mxu0 %v5163
        %7065 = vmatprep.subr.bf16.mxu0 %v5160
        %7066 = vmatpush1.bf16.msra.mxu0 %v5159
        %7067 = vmatprep.subr.bf16.mxu0 %v5156
        %7068 = vmatpush1.bf16.msra.mxu0 %v5155
        %7069 = vmatprep.subr.bf16.mxu0 %v5152
        %7070 = vmatpush1.bf16.msra.mxu0 %v5151
        %7071 = vmatprep.subr.bf16.mxu0 %v5148
        %7072 = vmatpush1.bf16.msra.mxu0 %v5147
        %7073 = vmatprep.subr.bf16.mxu0 %v5208
        %7074 = vmatpush2.bf16.msra.mxu0 %v5207
        %7075 = vmatprep.subr.bf16.mxu0 %v5204
        %7076 = vmatpush2.bf16.msra.mxu0 %v5203
        %7077 = vmatprep.subr.bf16.mxu0 %v5200
        %7078 = vmatpush2.bf16.msra.mxu0 %v5199
        %7079 = vmatprep.subr.bf16.mxu0 %v5196
        %7080 = vmatpush2.bf16.msra.mxu0 %v5195
        %7081 = vmatprep.subr.bf16.mxu0 %v5192
        %7082 = vmatpush2.bf16.msra.mxu0 %v5191
        %7083 = vmatprep.subr.bf16.mxu0 %v5188
        %7084 = vmatpush2.bf16.msra.mxu0 %v5187
        %7085 = vmatprep.subr.bf16.mxu0 %v5184
        %7086 = vmatpush2.bf16.msra.mxu0 %v5183
        %7087 = vmatprep.subr.bf16.mxu0 %v5180
        %7088 = vmatpush2.bf16.msra.mxu0 %v5179
        %7089 = vmatprep.mubr.bf16.mxu0 %v648
        %7090 = vmatmul.mubr.bf16.gmra.mxu0 %v647
        %v7091 = vpop.f32.mrf.mxu0
        %v7092 = vadd.f32 %v7051, %v7091
        %v7093 = vpop.f32.mrf.mxu0
        %v7094 = vadd.f32 %v7053, %v7093
        %v7095 = vpop.f32.mrf.mxu0
        %v7096 = vpop.f32.mrf.mxu0
        %7097 = vdwg.mxu0
        %7098 = vmatprep.subr.bf16.mxu0 %v5240
        %7099 = vmatpush1.bf16.msra.mxu0 %v5239
        %7100 = vmatprep.subr.bf16.mxu0 %v5236
        %7101 = vmatpush1.bf16.msra.mxu0 %v5235
        %7102 = vmatprep.subr.bf16.mxu0 %v5232
        %7103 = vmatpush1.bf16.msra.mxu0 %v5231
        %7104 = vmatprep.subr.bf16.mxu0 %v5228
        %7105 = vmatpush1.bf16.msra.mxu0 %v5227
        %7106 = vmatprep.subr.bf16.mxu0 %v5224
        %7107 = vmatpush1.bf16.msra.mxu0 %v5223
        %7108 = vmatprep.subr.bf16.mxu0 %v5220
        %7109 = vmatpush1.bf16.msra.mxu0 %v5219
        %7110 = vmatprep.subr.bf16.mxu0 %v5216
        %7111 = vmatpush1.bf16.msra.mxu0 %v5215
        %7112 = vmatprep.subr.bf16.mxu0 %v5212
        %7113 = vmatpush1.bf16.msra.mxu0 %v5211
        %7114 = vmatprep.subr.bf16.mxu0 %v5272
        %7115 = vmatpush2.bf16.msra.mxu0 %v5271
        %7116 = vmatprep.subr.bf16.mxu0 %v5268
        %7117 = vmatpush2.bf16.msra.mxu0 %v5267
        %7118 = vmatprep.subr.bf16.mxu0 %v5264
        %7119 = vmatpush2.bf16.msra.mxu0 %v5263
        %7120 = vmatprep.subr.bf16.mxu0 %v5260
        %7121 = vmatpush2.bf16.msra.mxu0 %v5259
        %7122 = vmatprep.subr.bf16.mxu0 %v5256
        %7123 = vmatpush2.bf16.msra.mxu0 %v5255
        %7124 = vmatprep.subr.bf16.mxu0 %v5252
        %7125 = vmatpush2.bf16.msra.mxu0 %v5251
        %7126 = vmatprep.subr.bf16.mxu0 %v5248
        %7127 = vmatpush2.bf16.msra.mxu0 %v5247
        %7128 = vmatprep.subr.bf16.mxu0 %v5244
        %7129 = vmatpush2.bf16.msra.mxu0 %v5243
        %7130 = vmatprep.mubr.bf16.mxu0 %v650
        %7131 = vmatmul.mubr.bf16.gmra.mxu0 %v649
        %v7132 = vpop.f32.mrf.mxu0
        %v7133 = vadd.f32 %v7092, %v7132
        %v7134 = vpop.f32.mrf.mxu0
        %v7135 = vadd.f32 %v7094, %v7134
        %v7136 = vpop.f32.mrf.mxu0
        %v7137 = vpop.f32.mrf.mxu0
        %7138 = vdwg.mxu0
        %7139 = vmatprep.subr.bf16.mxu0 %v5304
        %7140 = vmatpush1.bf16.msra.mxu0 %v5303
        %7141 = vmatprep.subr.bf16.mxu0 %v5300
        %7142 = vmatpush1.bf16.msra.mxu0 %v5299
        %7143 = vmatprep.subr.bf16.mxu0 %v5296
        %7144 = vmatpush1.bf16.msra.mxu0 %v5295
        %7145 = vmatprep.subr.bf16.mxu0 %v5292
        %7146 = vmatpush1.bf16.msra.mxu0 %v5291
        %7147 = vmatprep.subr.bf16.mxu0 %v5288
        %7148 = vmatpush1.bf16.msra.mxu0 %v5287
        %7149 = vmatprep.subr.bf16.mxu0 %v5284
        %7150 = vmatpush1.bf16.msra.mxu0 %v5283
        %7151 = vmatprep.subr.bf16.mxu0 %v5280
        %7152 = vmatpush1.bf16.msra.mxu0 %v5279
        %7153 = vmatprep.subr.bf16.mxu0 %v5276
        %7154 = vmatpush1.bf16.msra.mxu0 %v5275
        %7155 = vmatprep.subr.bf16.mxu0 %v5336
        %7156 = vmatpush2.bf16.msra.mxu0 %v5335
        %7157 = vmatprep.subr.bf16.mxu0 %v5332
        %7158 = vmatpush2.bf16.msra.mxu0 %v5331
        %7159 = vmatprep.subr.bf16.mxu0 %v5328
        %7160 = vmatpush2.bf16.msra.mxu0 %v5327
        %7161 = vmatprep.subr.bf16.mxu0 %v5324
        %7162 = vmatpush2.bf16.msra.mxu0 %v5323
        %7163 = vmatprep.subr.bf16.mxu0 %v5320
        %7164 = vmatpush2.bf16.msra.mxu0 %v5319
        %7165 = vmatprep.subr.bf16.mxu0 %v5316
        %7166 = vmatpush2.bf16.msra.mxu0 %v5315
        %7167 = vmatprep.subr.bf16.mxu0 %v5312
        %7168 = vmatpush2.bf16.msra.mxu0 %v5311
        %7169 = vmatprep.subr.bf16.mxu0 %v5308
        %7170 = vmatpush2.bf16.msra.mxu0 %v5307
        %7171 = vmatprep.mubr.bf16.mxu0 %v652
        %7172 = vmatmul.mubr.bf16.gmra.mxu0 %v651
        %v7173 = vpop.f32.mrf.mxu0
        %v7174 = vadd.f32 %v7133, %v7173
        %v7175 = vpop.f32.mrf.mxu0
        %v7176 = vadd.f32 %v7135, %v7175
        %v7177 = vpop.f32.mrf.mxu0
        %v7178 = vpop.f32.mrf.mxu0
        %7179 = vdwg.mxu0
        %7180 = vmatprep.subr.bf16.mxu0 %v5368
        %7181 = vmatpush1.bf16.msra.mxu0 %v5367
        %7182 = vmatprep.subr.bf16.mxu0 %v5364
        %7183 = vmatpush1.bf16.msra.mxu0 %v5363
        %7184 = vmatprep.subr.bf16.mxu0 %v5360
        %7185 = vmatpush1.bf16.msra.mxu0 %v5359
        %7186 = vmatprep.subr.bf16.mxu0 %v5356
        %7187 = vmatpush1.bf16.msra.mxu0 %v5355
        %7188 = vmatprep.subr.bf16.mxu0 %v5352
        %7189 = vmatpush1.bf16.msra.mxu0 %v5351
        %7190 = vmatprep.subr.bf16.mxu0 %v5348
        %7191 = vmatpush1.bf16.msra.mxu0 %v5347
        %7192 = vmatprep.subr.bf16.mxu0 %v5344
        %7193 = vmatpush1.bf16.msra.mxu0 %v5343
        %7194 = vmatprep.subr.bf16.mxu0 %v5340
        %7195 = vmatpush1.bf16.msra.mxu0 %v5339
        %7196 = vmatprep.subr.bf16.mxu0 %v5400
        %7197 = vmatpush2.bf16.msra.mxu0 %v5399
        %7198 = vmatprep.subr.bf16.mxu0 %v5396
        %7199 = vmatpush2.bf16.msra.mxu0 %v5395
        %7200 = vmatprep.subr.bf16.mxu0 %v5392
        %7201 = vmatpush2.bf16.msra.mxu0 %v5391
        %7202 = vmatprep.subr.bf16.mxu0 %v5388
        %7203 = vmatpush2.bf16.msra.mxu0 %v5387
        %7204 = vmatprep.subr.bf16.mxu0 %v5384
        %7205 = vmatpush2.bf16.msra.mxu0 %v5383
        %7206 = vmatprep.subr.bf16.mxu0 %v5380
        %7207 = vmatpush2.bf16.msra.mxu0 %v5379
        %7208 = vmatprep.subr.bf16.mxu0 %v5376
        %7209 = vmatpush2.bf16.msra.mxu0 %v5375
        %7210 = vmatprep.subr.bf16.mxu0 %v5372
        %7211 = vmatpush2.bf16.msra.mxu0 %v5371
        %7212 = vmatprep.mubr.bf16.mxu0 %v654
        %7213 = vmatmul.mubr.bf16.gmra.mxu0 %v653
        %v7214 = vpop.f32.mrf.mxu0
        %v7215 = vadd.f32 %v7174, %v7214
        %v7216 = vpop.f32.mrf.mxu0
        %v7217 = vadd.f32 %v7176, %v7216
        %v7218 = vpop.f32.mrf.mxu0
        %v7219 = vpop.f32.mrf.mxu0
        %7220 = vdwg.mxu0
        %7221 = vmatprep.subr.bf16.mxu0 %v5432
        %7222 = vmatpush1.bf16.msra.mxu0 %v5431
        %7223 = vmatprep.subr.bf16.mxu0 %v5428
        %7224 = vmatpush1.bf16.msra.mxu0 %v5427
        %7225 = vmatprep.subr.bf16.mxu0 %v5424
        %7226 = vmatpush1.bf16.msra.mxu0 %v5423
        %7227 = vmatprep.subr.bf16.mxu0 %v5420
        %7228 = vmatpush1.bf16.msra.mxu0 %v5419
        %7229 = vmatprep.subr.bf16.mxu0 %v5416
        %7230 = vmatpush1.bf16.msra.mxu0 %v5415
        %7231 = vmatprep.subr.bf16.mxu0 %v5412
        %7232 = vmatpush1.bf16.msra.mxu0 %v5411
        %7233 = vmatprep.subr.bf16.mxu0 %v5408
        %7234 = vmatpush1.bf16.msra.mxu0 %v5407
        %7235 = vmatprep.subr.bf16.mxu0 %v5404
        %7236 = vmatpush1.bf16.msra.mxu0 %v5403
        %7237 = vmatprep.subr.bf16.mxu0 %v5464
        %7238 = vmatpush2.bf16.msra.mxu0 %v5463
        %7239 = vmatprep.subr.bf16.mxu0 %v5460
        %7240 = vmatpush2.bf16.msra.mxu0 %v5459
        %7241 = vmatprep.subr.bf16.mxu0 %v5456
        %7242 = vmatpush2.bf16.msra.mxu0 %v5455
        %7243 = vmatprep.subr.bf16.mxu0 %v5452
        %7244 = vmatpush2.bf16.msra.mxu0 %v5451
        %7245 = vmatprep.subr.bf16.mxu0 %v5448
        %7246 = vmatpush2.bf16.msra.mxu0 %v5447
        %7247 = vmatprep.subr.bf16.mxu0 %v5444
        %7248 = vmatpush2.bf16.msra.mxu0 %v5443
        %7249 = vmatprep.subr.bf16.mxu0 %v5440
        %7250 = vmatpush2.bf16.msra.mxu0 %v5439
        %7251 = vmatprep.subr.bf16.mxu0 %v5436
        %7252 = vmatpush2.bf16.msra.mxu0 %v5435
        %7253 = vmatprep.mubr.bf16.mxu0 %v656
        %7254 = vmatmul.mubr.bf16.gmra.mxu0 %v655
        %v7255 = vpop.f32.mrf.mxu0
        %v7256 = vadd.f32 %v7215, %v7255
        %v7257 = vpop.f32.mrf.mxu0
        %v7258 = vadd.f32 %v7217, %v7257
        %v7259 = vpop.f32.mrf.mxu0
        %v7260 = vpop.f32.mrf.mxu0
        %7261 = vdwg.mxu0
        %7262 = vmatprep.subr.bf16.mxu0 %v5496
        %7263 = vmatpush1.bf16.msra.mxu0 %v5495
        %7264 = vmatprep.subr.bf16.mxu0 %v5492
        %7265 = vmatpush1.bf16.msra.mxu0 %v5491
        %7266 = vmatprep.subr.bf16.mxu0 %v5488
        %7267 = vmatpush1.bf16.msra.mxu0 %v5487
        %7268 = vmatprep.subr.bf16.mxu0 %v5484
        %7269 = vmatpush1.bf16.msra.mxu0 %v5483
        %7270 = vmatprep.subr.bf16.mxu0 %v5480
        %7271 = vmatpush1.bf16.msra.mxu0 %v5479
        %7272 = vmatprep.subr.bf16.mxu0 %v5476
        %7273 = vmatpush1.bf16.msra.mxu0 %v5475
        %7274 = vmatprep.subr.bf16.mxu0 %v5472
        %7275 = vmatpush1.bf16.msra.mxu0 %v5471
        %7276 = vmatprep.subr.bf16.mxu0 %v5468
        %7277 = vmatpush1.bf16.msra.mxu0 %v5467
        %7278 = vmatprep.subr.bf16.mxu0 %v5528
        %7279 = vmatpush2.bf16.msra.mxu0 %v5527
        %7280 = vmatprep.subr.bf16.mxu0 %v5524
        %7281 = vmatpush2.bf16.msra.mxu0 %v5523
        %7282 = vmatprep.subr.bf16.mxu0 %v5520
        %7283 = vmatpush2.bf16.msra.mxu0 %v5519
        %7284 = vmatprep.subr.bf16.mxu0 %v5516
        %7285 = vmatpush2.bf16.msra.mxu0 %v5515
        %7286 = vmatprep.subr.bf16.mxu0 %v5512
        %7287 = vmatpush2.bf16.msra.mxu0 %v5511
        %7288 = vmatprep.subr.bf16.mxu0 %v5508
        %7289 = vmatpush2.bf16.msra.mxu0 %v5507
        %7290 = vmatprep.subr.bf16.mxu0 %v5504
        %7291 = vmatpush2.bf16.msra.mxu0 %v5503
        %7292 = vmatprep.subr.bf16.mxu0 %v5500
        %7293 = vmatpush2.bf16.msra.mxu0 %v5499
        %7294 = vmatprep.mubr.bf16.mxu0 %v658
        %7295 = vmatmul.mubr.bf16.gmra.mxu0 %v657
        %v7296 = vpop.f32.mrf.mxu0
        %v7297 = vadd.f32 %v7256, %v7296
        %v7298 = vpop.f32.mrf.mxu0
        %v7299 = vadd.f32 %v7258, %v7298
        %v7300 = vpop.f32.mrf.mxu0
        %v7301 = vpop.f32.mrf.mxu0
        %7302 = vdwg.mxu0
        %7303 = vmatprep.subr.bf16.mxu0 %v5560
        %7304 = vmatpush1.bf16.msra.mxu0 %v5559
        %7305 = vmatprep.subr.bf16.mxu0 %v5556
        %7306 = vmatpush1.bf16.msra.mxu0 %v5555
        %7307 = vmatprep.subr.bf16.mxu0 %v5552
        %7308 = vmatpush1.bf16.msra.mxu0 %v5551
        %7309 = vmatprep.subr.bf16.mxu0 %v5548
        %7310 = vmatpush1.bf16.msra.mxu0 %v5547
        %7311 = vmatprep.subr.bf16.mxu0 %v5544
        %7312 = vmatpush1.bf16.msra.mxu0 %v5543
        %7313 = vmatprep.subr.bf16.mxu0 %v5540
        %7314 = vmatpush1.bf16.msra.mxu0 %v5539
        %7315 = vmatprep.subr.bf16.mxu0 %v5536
        %7316 = vmatpush1.bf16.msra.mxu0 %v5535
        %7317 = vmatprep.subr.bf16.mxu0 %v5532
        %7318 = vmatpush1.bf16.msra.mxu0 %v5531
        %7319 = vmatprep.subr.bf16.mxu0 %v5592
        %7320 = vmatpush2.bf16.msra.mxu0 %v5591
        %7321 = vmatprep.subr.bf16.mxu0 %v5588
        %7322 = vmatpush2.bf16.msra.mxu0 %v5587
        %7323 = vmatprep.subr.bf16.mxu0 %v5584
        %7324 = vmatpush2.bf16.msra.mxu0 %v5583
        %7325 = vmatprep.subr.bf16.mxu0 %v5580
        %7326 = vmatpush2.bf16.msra.mxu0 %v5579
        %7327 = vmatprep.subr.bf16.mxu0 %v5576
        %7328 = vmatpush2.bf16.msra.mxu0 %v5575
        %7329 = vmatprep.subr.bf16.mxu0 %v5572
        %7330 = vmatpush2.bf16.msra.mxu0 %v5571
        %7331 = vmatprep.subr.bf16.mxu0 %v5568
        %7332 = vmatpush2.bf16.msra.mxu0 %v5567
        %7333 = vmatprep.subr.bf16.mxu0 %v5564
        %7334 = vmatpush2.bf16.msra.mxu0 %v5563
        %7335 = vmatprep.mubr.bf16.mxu0 %v660
        %7336 = vmatmul.mubr.bf16.gmra.mxu0 %v659
        %v7337 = vpop.f32.mrf.mxu0
        %v7338 = vadd.f32 %v7297, %v7337
        %v7339 = vpop.f32.mrf.mxu0
        %v7340 = vadd.f32 %v7299, %v7339
        %v7341 = vpop.f32.mrf.mxu0
        %v7342 = vpop.f32.mrf.mxu0
        %7343 = vdwg.mxu0
        %7344 = vmatprep.subr.bf16.mxu0 %v5624
        %7345 = vmatpush1.bf16.msra.mxu0 %v5623
        %7346 = vmatprep.subr.bf16.mxu0 %v5620
        %7347 = vmatpush1.bf16.msra.mxu0 %v5619
        %7348 = vmatprep.subr.bf16.mxu0 %v5616
        %7349 = vmatpush1.bf16.msra.mxu0 %v5615
        %7350 = vmatprep.subr.bf16.mxu0 %v5612
        %7351 = vmatpush1.bf16.msra.mxu0 %v5611
        %7352 = vmatprep.subr.bf16.mxu0 %v5608
        %7353 = vmatpush1.bf16.msra.mxu0 %v5607
        %7354 = vmatprep.subr.bf16.mxu0 %v5604
        %7355 = vmatpush1.bf16.msra.mxu0 %v5603
        %7356 = vmatprep.subr.bf16.mxu0 %v5600
        %7357 = vmatpush1.bf16.msra.mxu0 %v5599
        %7358 = vmatprep.subr.bf16.mxu0 %v5596
        %7359 = vmatpush1.bf16.msra.mxu0 %v5595
        %7360 = vmatprep.subr.bf16.mxu0 %v5656
        %7361 = vmatpush2.bf16.msra.mxu0 %v5655
        %7362 = vmatprep.subr.bf16.mxu0 %v5652
        %7363 = vmatpush2.bf16.msra.mxu0 %v5651
        %7364 = vmatprep.subr.bf16.mxu0 %v5648
        %7365 = vmatpush2.bf16.msra.mxu0 %v5647
        %7366 = vmatprep.subr.bf16.mxu0 %v5644
        %7367 = vmatpush2.bf16.msra.mxu0 %v5643
        %7368 = vmatprep.subr.bf16.mxu0 %v5640
        %7369 = vmatpush2.bf16.msra.mxu0 %v5639
        %7370 = vmatprep.subr.bf16.mxu0 %v5636
        %7371 = vmatpush2.bf16.msra.mxu0 %v5635
        %7372 = vmatprep.subr.bf16.mxu0 %v5632
        %7373 = vmatpush2.bf16.msra.mxu0 %v5631
        %7374 = vmatprep.subr.bf16.mxu0 %v5628
        %7375 = vmatpush2.bf16.msra.mxu0 %v5627
        %7376 = vmatprep.mubr.bf16.mxu0 %v662
        %7377 = vmatmul.mubr.bf16.gmra.mxu0 %v661
        %v7378 = vpop.f32.mrf.mxu0
        %v7379 = vadd.f32 %v7338, %v7378
        %v7380 = vpop.f32.mrf.mxu0
        %v7381 = vadd.f32 %v7340, %v7380
        %v7382 = vpop.f32.mrf.mxu0
        %v7383 = vpop.f32.mrf.mxu0
        %7384 = vdwg.mxu0
        %7385 = vmatprep.subr.bf16.mxu0 %v5688
        %7386 = vmatpush1.bf16.msra.mxu0 %v5687
        %7387 = vmatprep.subr.bf16.mxu0 %v5684
        %7388 = vmatpush1.bf16.msra.mxu0 %v5683
        %7389 = vmatprep.subr.bf16.mxu0 %v5680
        %7390 = vmatpush1.bf16.msra.mxu0 %v5679
        %7391 = vmatprep.subr.bf16.mxu0 %v5676
        %7392 = vmatpush1.bf16.msra.mxu0 %v5675
        %7393 = vmatprep.subr.bf16.mxu0 %v5672
        %7394 = vmatpush1.bf16.msra.mxu0 %v5671
        %7395 = vmatprep.subr.bf16.mxu0 %v5668
        %7396 = vmatpush1.bf16.msra.mxu0 %v5667
        %7397 = vmatprep.subr.bf16.mxu0 %v5664
        %7398 = vmatpush1.bf16.msra.mxu0 %v5663
        %7399 = vmatprep.subr.bf16.mxu0 %v5660
        %7400 = vmatpush1.bf16.msra.mxu0 %v5659
        %7401 = vmatprep.subr.bf16.mxu0 %v5720
        %7402 = vmatpush2.bf16.msra.mxu0 %v5719
        %7403 = vmatprep.subr.bf16.mxu0 %v5716
        %7404 = vmatpush2.bf16.msra.mxu0 %v5715
        %7405 = vmatprep.subr.bf16.mxu0 %v5712
        %7406 = vmatpush2.bf16.msra.mxu0 %v5711
        %7407 = vmatprep.subr.bf16.mxu0 %v5708
        %7408 = vmatpush2.bf16.msra.mxu0 %v5707
        %7409 = vmatprep.subr.bf16.mxu0 %v5704
        %7410 = vmatpush2.bf16.msra.mxu0 %v5703
        %7411 = vmatprep.subr.bf16.mxu0 %v5700
        %7412 = vmatpush2.bf16.msra.mxu0 %v5699
        %7413 = vmatprep.subr.bf16.mxu0 %v5696
        %7414 = vmatpush2.bf16.msra.mxu0 %v5695
        %7415 = vmatprep.subr.bf16.mxu0 %v5692
        %7416 = vmatpush2.bf16.msra.mxu0 %v5691
        %7417 = vmatprep.mubr.bf16.mxu0 %v664
        %7418 = vmatmul.mubr.bf16.gmra.mxu0 %v663
        %v7419 = vpop.f32.mrf.mxu0
        %v7420 = vadd.f32 %v7379, %v7419
        %v7421 = vpop.f32.mrf.mxu0
        %v7422 = vadd.f32 %v7381, %v7421
        %v7423 = vpop.f32.mrf.mxu0
        %v7424 = vpop.f32.mrf.mxu0
        %7425 = vdwg.mxu0
        %7426 = vmatprep.subr.bf16.mxu0 %v5752
        %7427 = vmatpush1.bf16.msra.mxu0 %v5751
        %7428 = vmatprep.subr.bf16.mxu0 %v5748
        %7429 = vmatpush1.bf16.msra.mxu0 %v5747
        %7430 = vmatprep.subr.bf16.mxu0 %v5744
        %7431 = vmatpush1.bf16.msra.mxu0 %v5743
        %7432 = vmatprep.subr.bf16.mxu0 %v5740
        %7433 = vmatpush1.bf16.msra.mxu0 %v5739
        %7434 = vmatprep.subr.bf16.mxu0 %v5736
        %7435 = vmatpush1.bf16.msra.mxu0 %v5735
        %7436 = vmatprep.subr.bf16.mxu0 %v5732
        %7437 = vmatpush1.bf16.msra.mxu0 %v5731
        %7438 = vmatprep.subr.bf16.mxu0 %v5728
        %7439 = vmatpush1.bf16.msra.mxu0 %v5727
        %7440 = vmatprep.subr.bf16.mxu0 %v5724
        %7441 = vmatpush1.bf16.msra.mxu0 %v5723
        %7442 = vmatprep.subr.bf16.mxu0 %v5784
        %7443 = vmatpush2.bf16.msra.mxu0 %v5783
        %7444 = vmatprep.subr.bf16.mxu0 %v5780
        %7445 = vmatpush2.bf16.msra.mxu0 %v5779
        %7446 = vmatprep.subr.bf16.mxu0 %v5776
        %7447 = vmatpush2.bf16.msra.mxu0 %v5775
        %7448 = vmatprep.subr.bf16.mxu0 %v5772
        %7449 = vmatpush2.bf16.msra.mxu0 %v5771
        %7450 = vmatprep.subr.bf16.mxu0 %v5768
        %7451 = vmatpush2.bf16.msra.mxu0 %v5767
        %7452 = vmatprep.subr.bf16.mxu0 %v5764
        %7453 = vmatpush2.bf16.msra.mxu0 %v5763
        %7454 = vmatprep.subr.bf16.mxu0 %v5760
        %7455 = vmatpush2.bf16.msra.mxu0 %v5759
        %7456 = vmatprep.subr.bf16.mxu0 %v5756
        %7457 = vmatpush2.bf16.msra.mxu0 %v5755
        %7458 = vmatprep.mubr.bf16.mxu0 %v666
        %7459 = vmatmul.mubr.bf16.gmra.mxu0 %v665
        %v7460 = vpop.f32.mrf.mxu0
        %v7461 = vadd.f32 %v7420, %v7460
        %v7462 = vpop.f32.mrf.mxu0
        %v7463 = vadd.f32 %v7422, %v7462
        %v7464 = vpop.f32.mrf.mxu0
        %v7465 = vpop.f32.mrf.mxu0
        %7466 = vdwg.mxu0
        %7467 = vmatprep.subr.bf16.mxu0 %v4794
        %7468 = vmatpush1.bf16.msra.mxu0 %v4793
        %7469 = vmatprep.subr.bf16.mxu0 %v4790
        %7470 = vmatpush1.bf16.msra.mxu0 %v4789
        %7471 = vmatprep.subr.bf16.mxu0 %v4786
        %7472 = vmatpush1.bf16.msra.mxu0 %v4785
        %7473 = vmatprep.subr.bf16.mxu0 %v4782
        %7474 = vmatpush1.bf16.msra.mxu0 %v4781
        %7475 = vmatprep.subr.bf16.mxu0 %v4778
        %7476 = vmatpush1.bf16.msra.mxu0 %v4777
        %7477 = vmatprep.subr.bf16.mxu0 %v4774
        %7478 = vmatpush1.bf16.msra.mxu0 %v4773
        %7479 = vmatprep.subr.bf16.mxu0 %v4770
        %7480 = vmatpush1.bf16.msra.mxu0 %v4769
        %7481 = vmatprep.subr.bf16.mxu0 %v4766
        %7482 = vmatpush1.bf16.msra.mxu0 %v4765
        %7483 = vmatprep.subr.bf16.mxu0 %v4826
        %7484 = vmatpush2.bf16.msra.mxu0 %v4825
        %7485 = vmatprep.subr.bf16.mxu0 %v4822
        %7486 = vmatpush2.bf16.msra.mxu0 %v4821
        %7487 = vmatprep.subr.bf16.mxu0 %v4818
        %7488 = vmatpush2.bf16.msra.mxu0 %v4817
        %7489 = vmatprep.subr.bf16.mxu0 %v4814
        %7490 = vmatpush2.bf16.msra.mxu0 %v4813
        %7491 = vmatprep.subr.bf16.mxu0 %v4810
        %7492 = vmatpush2.bf16.msra.mxu0 %v4809
        %7493 = vmatprep.subr.bf16.mxu0 %v4806
        %7494 = vmatpush2.bf16.msra.mxu0 %v4805
        %7495 = vmatprep.subr.bf16.mxu0 %v4802
        %7496 = vmatpush2.bf16.msra.mxu0 %v4801
        %7497 = vmatprep.subr.bf16.mxu0 %v4798
        %7498 = vmatpush2.bf16.msra.mxu0 %v4797
        %7499 = vmatprep.mubr.bf16.mxu0 %v636
        %7500 = vmatmul.mubr.bf16.gmra.mxu0 %v635
        %v7501 = vpop.f32.mrf.mxu0
        %v7502 = vadd.f32 0.0, %v7501
        %v7503 = vpop.f32.mrf.mxu0
        %v7504 = vadd.f32 0.0, %v7503
        %v7505 = vpop.f32.mrf.mxu0
        %v7506 = vpop.f32.mrf.mxu0
        %7507 = vdwg.mxu0
        %7508 = vmatprep.subr.bf16.mxu0 %v4858
        %7509 = vmatpush1.bf16.msra.mxu0 %v4857
        %7510 = vmatprep.subr.bf16.mxu0 %v4854
        %7511 = vmatpush1.bf16.msra.mxu0 %v4853
        %7512 = vmatprep.subr.bf16.mxu0 %v4850
        %7513 = vmatpush1.bf16.msra.mxu0 %v4849
        %7514 = vmatprep.subr.bf16.mxu0 %v4846
        %7515 = vmatpush1.bf16.msra.mxu0 %v4845
        %7516 = vmatprep.subr.bf16.mxu0 %v4842
        %7517 = vmatpush1.bf16.msra.mxu0 %v4841
        %7518 = vmatprep.subr.bf16.mxu0 %v4838
        %7519 = vmatpush1.bf16.msra.mxu0 %v4837
        %7520 = vmatprep.subr.bf16.mxu0 %v4834
        %7521 = vmatpush1.bf16.msra.mxu0 %v4833
        %7522 = vmatprep.subr.bf16.mxu0 %v4830
        %7523 = vmatpush1.bf16.msra.mxu0 %v4829
        %7524 = vmatprep.subr.bf16.mxu0 %v4890
        %7525 = vmatpush2.bf16.msra.mxu0 %v4889
        %7526 = vmatprep.subr.bf16.mxu0 %v4886
        %7527 = vmatpush2.bf16.msra.mxu0 %v4885
        %7528 = vmatprep.subr.bf16.mxu0 %v4882
        %7529 = vmatpush2.bf16.msra.mxu0 %v4881
        %7530 = vmatprep.subr.bf16.mxu0 %v4878
        %7531 = vmatpush2.bf16.msra.mxu0 %v4877
        %7532 = vmatprep.subr.bf16.mxu0 %v4874
        %7533 = vmatpush2.bf16.msra.mxu0 %v4873
        %7534 = vmatprep.subr.bf16.mxu0 %v4870
        %7535 = vmatpush2.bf16.msra.mxu0 %v4869
        %7536 = vmatprep.subr.bf16.mxu0 %v4866
        %7537 = vmatpush2.bf16.msra.mxu0 %v4865
        %7538 = vmatprep.subr.bf16.mxu0 %v4862
        %7539 = vmatpush2.bf16.msra.mxu0 %v4861
        %7540 = vmatprep.mubr.bf16.mxu0 %v638
        %7541 = vmatmul.mubr.bf16.gmra.mxu0 %v637
        %v7542 = vpop.f32.mrf.mxu0
        %v7543 = vadd.f32 %v7502, %v7542
        %v7544 = vpop.f32.mrf.mxu0
        %v7545 = vadd.f32 %v7504, %v7544
        %v7546 = vpop.f32.mrf.mxu0
        %v7547 = vpop.f32.mrf.mxu0
        %7548 = vdwg.mxu0
        %7549 = vmatprep.subr.bf16.mxu0 %v4922
        %7550 = vmatpush1.bf16.msra.mxu0 %v4921
        %7551 = vmatprep.subr.bf16.mxu0 %v4918
        %7552 = vmatpush1.bf16.msra.mxu0 %v4917
        %7553 = vmatprep.subr.bf16.mxu0 %v4914
        %7554 = vmatpush1.bf16.msra.mxu0 %v4913
        %7555 = vmatprep.subr.bf16.mxu0 %v4910
        %7556 = vmatpush1.bf16.msra.mxu0 %v4909
        %7557 = vmatprep.subr.bf16.mxu0 %v4906
        %7558 = vmatpush1.bf16.msra.mxu0 %v4905
        %7559 = vmatprep.subr.bf16.mxu0 %v4902
        %7560 = vmatpush1.bf16.msra.mxu0 %v4901
        %7561 = vmatprep.subr.bf16.mxu0 %v4898
        %7562 = vmatpush1.bf16.msra.mxu0 %v4897
        %7563 = vmatprep.subr.bf16.mxu0 %v4894
        %7564 = vmatpush1.bf16.msra.mxu0 %v4893
        %7565 = vmatprep.subr.bf16.mxu0 %v4954
        %7566 = vmatpush2.bf16.msra.mxu0 %v4953
        %7567 = vmatprep.subr.bf16.mxu0 %v4950
        %7568 = vmatpush2.bf16.msra.mxu0 %v4949
        %7569 = vmatprep.subr.bf16.mxu0 %v4946
        %7570 = vmatpush2.bf16.msra.mxu0 %v4945
        %7571 = vmatprep.subr.bf16.mxu0 %v4942
        %7572 = vmatpush2.bf16.msra.mxu0 %v4941
        %7573 = vmatprep.subr.bf16.mxu0 %v4938
        %7574 = vmatpush2.bf16.msra.mxu0 %v4937
        %7575 = vmatprep.subr.bf16.mxu0 %v4934
        %7576 = vmatpush2.bf16.msra.mxu0 %v4933
        %7577 = vmatprep.subr.bf16.mxu0 %v4930
        %7578 = vmatpush2.bf16.msra.mxu0 %v4929
        %7579 = vmatprep.subr.bf16.mxu0 %v4926
        %7580 = vmatpush2.bf16.msra.mxu0 %v4925
        %7581 = vmatprep.mubr.bf16.mxu0 %v640
        %7582 = vmatmul.mubr.bf16.gmra.mxu0 %v639
        %v7583 = vpop.f32.mrf.mxu0
        %v7584 = vadd.f32 %v7543, %v7583
        %v7585 = vpop.f32.mrf.mxu0
        %v7586 = vadd.f32 %v7545, %v7585
        %v7587 = vpop.f32.mrf.mxu0
        %v7588 = vpop.f32.mrf.mxu0
        %7589 = vdwg.mxu0
        %7590 = vmatprep.subr.bf16.mxu0 %v4986
        %7591 = vmatpush1.bf16.msra.mxu0 %v4985
        %7592 = vmatprep.subr.bf16.mxu0 %v4982
        %7593 = vmatpush1.bf16.msra.mxu0 %v4981
        %7594 = vmatprep.subr.bf16.mxu0 %v4978
        %7595 = vmatpush1.bf16.msra.mxu0 %v4977
        %7596 = vmatprep.subr.bf16.mxu0 %v4974
        %7597 = vmatpush1.bf16.msra.mxu0 %v4973
        %7598 = vmatprep.subr.bf16.mxu0 %v4970
        %7599 = vmatpush1.bf16.msra.mxu0 %v4969
        %7600 = vmatprep.subr.bf16.mxu0 %v4966
        %7601 = vmatpush1.bf16.msra.mxu0 %v4965
        %7602 = vmatprep.subr.bf16.mxu0 %v4962
        %7603 = vmatpush1.bf16.msra.mxu0 %v4961
        %7604 = vmatprep.subr.bf16.mxu0 %v4958
        %7605 = vmatpush1.bf16.msra.mxu0 %v4957
        %7606 = vmatprep.subr.bf16.mxu0 %v5018
        %7607 = vmatpush2.bf16.msra.mxu0 %v5017
        %7608 = vmatprep.subr.bf16.mxu0 %v5014
        %7609 = vmatpush2.bf16.msra.mxu0 %v5013
        %7610 = vmatprep.subr.bf16.mxu0 %v5010
        %7611 = vmatpush2.bf16.msra.mxu0 %v5009
        %7612 = vmatprep.subr.bf16.mxu0 %v5006
        %7613 = vmatpush2.bf16.msra.mxu0 %v5005
        %7614 = vmatprep.subr.bf16.mxu0 %v5002
        %7615 = vmatpush2.bf16.msra.mxu0 %v5001
        %7616 = vmatprep.subr.bf16.mxu0 %v4998
        %7617 = vmatpush2.bf16.msra.mxu0 %v4997
        %7618 = vmatprep.subr.bf16.mxu0 %v4994
        %7619 = vmatpush2.bf16.msra.mxu0 %v4993
        %7620 = vmatprep.subr.bf16.mxu0 %v4990
        %7621 = vmatpush2.bf16.msra.mxu0 %v4989
        %7622 = vmatprep.mubr.bf16.mxu0 %v642
        %7623 = vmatmul.mubr.bf16.gmra.mxu0 %v641
        %v7624 = vpop.f32.mrf.mxu0
        %v7625 = vadd.f32 %v7584, %v7624
        %v7626 = vpop.f32.mrf.mxu0
        %v7627 = vadd.f32 %v7586, %v7626
        %v7628 = vpop.f32.mrf.mxu0
        %v7629 = vpop.f32.mrf.mxu0
        %7630 = vdwg.mxu0
        %7631 = vmatprep.subr.bf16.mxu0 %v5050
        %7632 = vmatpush1.bf16.msra.mxu0 %v5049
        %7633 = vmatprep.subr.bf16.mxu0 %v5046
        %7634 = vmatpush1.bf16.msra.mxu0 %v5045
        %7635 = vmatprep.subr.bf16.mxu0 %v5042
        %7636 = vmatpush1.bf16.msra.mxu0 %v5041
        %7637 = vmatprep.subr.bf16.mxu0 %v5038
        %7638 = vmatpush1.bf16.msra.mxu0 %v5037
        %7639 = vmatprep.subr.bf16.mxu0 %v5034
        %7640 = vmatpush1.bf16.msra.mxu0 %v5033
        %7641 = vmatprep.subr.bf16.mxu0 %v5030
        %7642 = vmatpush1.bf16.msra.mxu0 %v5029
        %7643 = vmatprep.subr.bf16.mxu0 %v5026
        %7644 = vmatpush1.bf16.msra.mxu0 %v5025
        %7645 = vmatprep.subr.bf16.mxu0 %v5022
        %7646 = vmatpush1.bf16.msra.mxu0 %v5021
        %7647 = vmatprep.subr.bf16.mxu0 %v5082
        %7648 = vmatpush2.bf16.msra.mxu0 %v5081
        %7649 = vmatprep.subr.bf16.mxu0 %v5078
        %7650 = vmatpush2.bf16.msra.mxu0 %v5077
        %7651 = vmatprep.subr.bf16.mxu0 %v5074
        %7652 = vmatpush2.bf16.msra.mxu0 %v5073
        %7653 = vmatprep.subr.bf16.mxu0 %v5070
        %7654 = vmatpush2.bf16.msra.mxu0 %v5069
        %7655 = vmatprep.subr.bf16.mxu0 %v5066
        %7656 = vmatpush2.bf16.msra.mxu0 %v5065
        %7657 = vmatprep.subr.bf16.mxu0 %v5062
        %7658 = vmatpush2.bf16.msra.mxu0 %v5061
        %7659 = vmatprep.subr.bf16.mxu0 %v5058
        %7660 = vmatpush2.bf16.msra.mxu0 %v5057
        %7661 = vmatprep.subr.bf16.mxu0 %v5054
        %7662 = vmatpush2.bf16.msra.mxu0 %v5053
        %7663 = vmatprep.mubr.bf16.mxu0 %v644
        %7664 = vmatmul.mubr.bf16.gmra.mxu0 %v643
        %v7665 = vpop.f32.mrf.mxu0
        %v7666 = vadd.f32 %v7625, %v7665
        %v7667 = vpop.f32.mrf.mxu0
        %v7668 = vadd.f32 %v7627, %v7667
        %v7669 = vpop.f32.mrf.mxu0
        %v7670 = vpop.f32.mrf.mxu0
        %7671 = vdwg.mxu0
        %7672 = vmatprep.subr.bf16.mxu0 %v5114
        %7673 = vmatpush1.bf16.msra.mxu0 %v5113
        %7674 = vmatprep.subr.bf16.mxu0 %v5110
        %7675 = vmatpush1.bf16.msra.mxu0 %v5109
        %7676 = vmatprep.subr.bf16.mxu0 %v5106
        %7677 = vmatpush1.bf16.msra.mxu0 %v5105
        %7678 = vmatprep.subr.bf16.mxu0 %v5102
        %7679 = vmatpush1.bf16.msra.mxu0 %v5101
        %7680 = vmatprep.subr.bf16.mxu0 %v5098
        %7681 = vmatpush1.bf16.msra.mxu0 %v5097
        %7682 = vmatprep.subr.bf16.mxu0 %v5094
        %7683 = vmatpush1.bf16.msra.mxu0 %v5093
        %7684 = vmatprep.subr.bf16.mxu0 %v5090
        %7685 = vmatpush1.bf16.msra.mxu0 %v5089
        %7686 = vmatprep.subr.bf16.mxu0 %v5086
        %7687 = vmatpush1.bf16.msra.mxu0 %v5085
        %7688 = vmatprep.subr.bf16.mxu0 %v5146
        %7689 = vmatpush2.bf16.msra.mxu0 %v5145
        %7690 = vmatprep.subr.bf16.mxu0 %v5142
        %7691 = vmatpush2.bf16.msra.mxu0 %v5141
        %7692 = vmatprep.subr.bf16.mxu0 %v5138
        %7693 = vmatpush2.bf16.msra.mxu0 %v5137
        %7694 = vmatprep.subr.bf16.mxu0 %v5134
        %7695 = vmatpush2.bf16.msra.mxu0 %v5133
        %7696 = vmatprep.subr.bf16.mxu0 %v5130
        %7697 = vmatpush2.bf16.msra.mxu0 %v5129
        %7698 = vmatprep.subr.bf16.mxu0 %v5126
        %7699 = vmatpush2.bf16.msra.mxu0 %v5125
        %7700 = vmatprep.subr.bf16.mxu0 %v5122
        %7701 = vmatpush2.bf16.msra.mxu0 %v5121
        %7702 = vmatprep.subr.bf16.mxu0 %v5118
        %7703 = vmatpush2.bf16.msra.mxu0 %v5117
        %7704 = vmatprep.mubr.bf16.mxu0 %v646
        %7705 = vmatmul.mubr.bf16.gmra.mxu0 %v645
        %v7706 = vpop.f32.mrf.mxu0
        %v7707 = vadd.f32 %v7666, %v7706
        %v7708 = vpop.f32.mrf.mxu0
        %v7709 = vadd.f32 %v7668, %v7708
        %v7710 = vpop.f32.mrf.mxu0
        %v7711 = vpop.f32.mrf.mxu0
        %7712 = vdwg.mxu0
        %7713 = vmatprep.subr.bf16.mxu0 %v5178
        %7714 = vmatpush1.bf16.msra.mxu0 %v5177
        %7715 = vmatprep.subr.bf16.mxu0 %v5174
        %7716 = vmatpush1.bf16.msra.mxu0 %v5173
        %7717 = vmatprep.subr.bf16.mxu0 %v5170
        %7718 = vmatpush1.bf16.msra.mxu0 %v5169
        %7719 = vmatprep.subr.bf16.mxu0 %v5166
        %7720 = vmatpush1.bf16.msra.mxu0 %v5165
        %7721 = vmatprep.subr.bf16.mxu0 %v5162
        %7722 = vmatpush1.bf16.msra.mxu0 %v5161
        %7723 = vmatprep.subr.bf16.mxu0 %v5158
        %7724 = vmatpush1.bf16.msra.mxu0 %v5157
        %7725 = vmatprep.subr.bf16.mxu0 %v5154
        %7726 = vmatpush1.bf16.msra.mxu0 %v5153
        %7727 = vmatprep.subr.bf16.mxu0 %v5150
        %7728 = vmatpush1.bf16.msra.mxu0 %v5149
        %7729 = vmatprep.subr.bf16.mxu0 %v5210
        %7730 = vmatpush2.bf16.msra.mxu0 %v5209
        %7731 = vmatprep.subr.bf16.mxu0 %v5206
        %7732 = vmatpush2.bf16.msra.mxu0 %v5205
        %7733 = vmatprep.subr.bf16.mxu0 %v5202
        %7734 = vmatpush2.bf16.msra.mxu0 %v5201
        %7735 = vmatprep.subr.bf16.mxu0 %v5198
        %7736 = vmatpush2.bf16.msra.mxu0 %v5197
        %7737 = vmatprep.subr.bf16.mxu0 %v5194
        %7738 = vmatpush2.bf16.msra.mxu0 %v5193
        %7739 = vmatprep.subr.bf16.mxu0 %v5190
        %7740 = vmatpush2.bf16.msra.mxu0 %v5189
        %7741 = vmatprep.subr.bf16.mxu0 %v5186
        %7742 = vmatpush2.bf16.msra.mxu0 %v5185
        %7743 = vmatprep.subr.bf16.mxu0 %v5182
        %7744 = vmatpush2.bf16.msra.mxu0 %v5181
        %7745 = vmatprep.mubr.bf16.mxu0 %v648
        %7746 = vmatmul.mubr.bf16.gmra.mxu0 %v647
        %v7747 = vpop.f32.mrf.mxu0
        %v7748 = vadd.f32 %v7707, %v7747
        %v7749 = vpop.f32.mrf.mxu0
        %v7750 = vadd.f32 %v7709, %v7749
        %v7751 = vpop.f32.mrf.mxu0
        %v7752 = vpop.f32.mrf.mxu0
        %7753 = vdwg.mxu0
        %7754 = vmatprep.subr.bf16.mxu0 %v5242
        %7755 = vmatpush1.bf16.msra.mxu0 %v5241
        %7756 = vmatprep.subr.bf16.mxu0 %v5238
        %7757 = vmatpush1.bf16.msra.mxu0 %v5237
        %7758 = vmatprep.subr.bf16.mxu0 %v5234
        %7759 = vmatpush1.bf16.msra.mxu0 %v5233
        %7760 = vmatprep.subr.bf16.mxu0 %v5230
        %7761 = vmatpush1.bf16.msra.mxu0 %v5229
        %7762 = vmatprep.subr.bf16.mxu0 %v5226
        %7763 = vmatpush1.bf16.msra.mxu0 %v5225
        %7764 = vmatprep.subr.bf16.mxu0 %v5222
        %7765 = vmatpush1.bf16.msra.mxu0 %v5221
        %7766 = vmatprep.subr.bf16.mxu0 %v5218
        %7767 = vmatpush1.bf16.msra.mxu0 %v5217
        %7768 = vmatprep.subr.bf16.mxu0 %v5214
        %7769 = vmatpush1.bf16.msra.mxu0 %v5213
        %7770 = vmatprep.subr.bf16.mxu0 %v5274
        %7771 = vmatpush2.bf16.msra.mxu0 %v5273
        %7772 = vmatprep.subr.bf16.mxu0 %v5270
        %7773 = vmatpush2.bf16.msra.mxu0 %v5269
        %7774 = vmatprep.subr.bf16.mxu0 %v5266
        %7775 = vmatpush2.bf16.msra.mxu0 %v5265
        %7776 = vmatprep.subr.bf16.mxu0 %v5262
        %7777 = vmatpush2.bf16.msra.mxu0 %v5261
        %7778 = vmatprep.subr.bf16.mxu0 %v5258
        %7779 = vmatpush2.bf16.msra.mxu0 %v5257
        %7780 = vmatprep.subr.bf16.mxu0 %v5254
        %7781 = vmatpush2.bf16.msra.mxu0 %v5253
        %7782 = vmatprep.subr.bf16.mxu0 %v5250
        %7783 = vmatpush2.bf16.msra.mxu0 %v5249
        %7784 = vmatprep.subr.bf16.mxu0 %v5246
        %7785 = vmatpush2.bf16.msra.mxu0 %v5245
        %7786 = vmatprep.mubr.bf16.mxu0 %v650
        %7787 = vmatmul.mubr.bf16.gmra.mxu0 %v649
        %v7788 = vpop.f32.mrf.mxu0
        %v7789 = vadd.f32 %v7748, %v7788
        %v7790 = vpop.f32.mrf.mxu0
        %v7791 = vadd.f32 %v7750, %v7790
        %v7792 = vpop.f32.mrf.mxu0
        %v7793 = vpop.f32.mrf.mxu0
        %7794 = vdwg.mxu0
        %7795 = vmatprep.subr.bf16.mxu0 %v5306
        %7796 = vmatpush1.bf16.msra.mxu0 %v5305
        %7797 = vmatprep.subr.bf16.mxu0 %v5302
        %7798 = vmatpush1.bf16.msra.mxu0 %v5301
        %7799 = vmatprep.subr.bf16.mxu0 %v5298
        %7800 = vmatpush1.bf16.msra.mxu0 %v5297
        %7801 = vmatprep.subr.bf16.mxu0 %v5294
        %7802 = vmatpush1.bf16.msra.mxu0 %v5293
        %7803 = vmatprep.subr.bf16.mxu0 %v5290
        %7804 = vmatpush1.bf16.msra.mxu0 %v5289
        %7805 = vmatprep.subr.bf16.mxu0 %v5286
        %7806 = vmatpush1.bf16.msra.mxu0 %v5285
        %7807 = vmatprep.subr.bf16.mxu0 %v5282
        %7808 = vmatpush1.bf16.msra.mxu0 %v5281
        %7809 = vmatprep.subr.bf16.mxu0 %v5278
        %7810 = vmatpush1.bf16.msra.mxu0 %v5277
        %7811 = vmatprep.subr.bf16.mxu0 %v5338
        %7812 = vmatpush2.bf16.msra.mxu0 %v5337
        %7813 = vmatprep.subr.bf16.mxu0 %v5334
        %7814 = vmatpush2.bf16.msra.mxu0 %v5333
        %7815 = vmatprep.subr.bf16.mxu0 %v5330
        %7816 = vmatpush2.bf16.msra.mxu0 %v5329
        %7817 = vmatprep.subr.bf16.mxu0 %v5326
        %7818 = vmatpush2.bf16.msra.mxu0 %v5325
        %7819 = vmatprep.subr.bf16.mxu0 %v5322
        %7820 = vmatpush2.bf16.msra.mxu0 %v5321
        %7821 = vmatprep.subr.bf16.mxu0 %v5318
        %7822 = vmatpush2.bf16.msra.mxu0 %v5317
        %7823 = vmatprep.subr.bf16.mxu0 %v5314
        %7824 = vmatpush2.bf16.msra.mxu0 %v5313
        %7825 = vmatprep.subr.bf16.mxu0 %v5310
        %7826 = vmatpush2.bf16.msra.mxu0 %v5309
        %7827 = vmatprep.mubr.bf16.mxu0 %v652
        %7828 = vmatmul.mubr.bf16.gmra.mxu0 %v651
        %v7829 = vpop.f32.mrf.mxu0
        %v7830 = vadd.f32 %v7789, %v7829
        %v7831 = vpop.f32.mrf.mxu0
        %v7832 = vadd.f32 %v7791, %v7831
        %v7833 = vpop.f32.mrf.mxu0
        %v7834 = vpop.f32.mrf.mxu0
        %7835 = vdwg.mxu0
        %7836 = vmatprep.subr.bf16.mxu0 %v5370
        %7837 = vmatpush1.bf16.msra.mxu0 %v5369
        %7838 = vmatprep.subr.bf16.mxu0 %v5366
        %7839 = vmatpush1.bf16.msra.mxu0 %v5365
        %7840 = vmatprep.subr.bf16.mxu0 %v5362
        %7841 = vmatpush1.bf16.msra.mxu0 %v5361
        %7842 = vmatprep.subr.bf16.mxu0 %v5358
        %7843 = vmatpush1.bf16.msra.mxu0 %v5357
        %7844 = vmatprep.subr.bf16.mxu0 %v5354
        %7845 = vmatpush1.bf16.msra.mxu0 %v5353
        %7846 = vmatprep.subr.bf16.mxu0 %v5350
        %7847 = vmatpush1.bf16.msra.mxu0 %v5349
        %7848 = vmatprep.subr.bf16.mxu0 %v5346
        %7849 = vmatpush1.bf16.msra.mxu0 %v5345
        %7850 = vmatprep.subr.bf16.mxu0 %v5342
        %7851 = vmatpush1.bf16.msra.mxu0 %v5341
        %7852 = vmatprep.subr.bf16.mxu0 %v5402
        %7853 = vmatpush2.bf16.msra.mxu0 %v5401
        %7854 = vmatprep.subr.bf16.mxu0 %v5398
        %7855 = vmatpush2.bf16.msra.mxu0 %v5397
        %7856 = vmatprep.subr.bf16.mxu0 %v5394
        %7857 = vmatpush2.bf16.msra.mxu0 %v5393
        %7858 = vmatprep.subr.bf16.mxu0 %v5390
        %7859 = vmatpush2.bf16.msra.mxu0 %v5389
        %7860 = vmatprep.subr.bf16.mxu0 %v5386
        %7861 = vmatpush2.bf16.msra.mxu0 %v5385
        %7862 = vmatprep.subr.bf16.mxu0 %v5382
        %7863 = vmatpush2.bf16.msra.mxu0 %v5381
        %7864 = vmatprep.subr.bf16.mxu0 %v5378
        %7865 = vmatpush2.bf16.msra.mxu0 %v5377
        %7866 = vmatprep.subr.bf16.mxu0 %v5374
        %7867 = vmatpush2.bf16.msra.mxu0 %v5373
        %7868 = vmatprep.mubr.bf16.mxu0 %v654
        %7869 = vmatmul.mubr.bf16.gmra.mxu0 %v653
        %v7870 = vpop.f32.mrf.mxu0
        %v7871 = vadd.f32 %v7830, %v7870
        %v7872 = vpop.f32.mrf.mxu0
        %v7873 = vadd.f32 %v7832, %v7872
        %v7874 = vpop.f32.mrf.mxu0
        %v7875 = vpop.f32.mrf.mxu0
        %7876 = vdwg.mxu0
        %7877 = vmatprep.subr.bf16.mxu0 %v5434
        %7878 = vmatpush1.bf16.msra.mxu0 %v5433
        %7879 = vmatprep.subr.bf16.mxu0 %v5430
        %7880 = vmatpush1.bf16.msra.mxu0 %v5429
        %7881 = vmatprep.subr.bf16.mxu0 %v5426
        %7882 = vmatpush1.bf16.msra.mxu0 %v5425
        %7883 = vmatprep.subr.bf16.mxu0 %v5422
        %7884 = vmatpush1.bf16.msra.mxu0 %v5421
        %7885 = vmatprep.subr.bf16.mxu0 %v5418
        %7886 = vmatpush1.bf16.msra.mxu0 %v5417
        %7887 = vmatprep.subr.bf16.mxu0 %v5414
        %7888 = vmatpush1.bf16.msra.mxu0 %v5413
        %7889 = vmatprep.subr.bf16.mxu0 %v5410
        %7890 = vmatpush1.bf16.msra.mxu0 %v5409
        %7891 = vmatprep.subr.bf16.mxu0 %v5406
        %7892 = vmatpush1.bf16.msra.mxu0 %v5405
        %7893 = vmatprep.subr.bf16.mxu0 %v5466
        %7894 = vmatpush2.bf16.msra.mxu0 %v5465
        %7895 = vmatprep.subr.bf16.mxu0 %v5462
        %7896 = vmatpush2.bf16.msra.mxu0 %v5461
        %7897 = vmatprep.subr.bf16.mxu0 %v5458
        %7898 = vmatpush2.bf16.msra.mxu0 %v5457
        %7899 = vmatprep.subr.bf16.mxu0 %v5454
        %7900 = vmatpush2.bf16.msra.mxu0 %v5453
        %7901 = vmatprep.subr.bf16.mxu0 %v5450
        %7902 = vmatpush2.bf16.msra.mxu0 %v5449
        %7903 = vmatprep.subr.bf16.mxu0 %v5446
        %7904 = vmatpush2.bf16.msra.mxu0 %v5445
        %7905 = vmatprep.subr.bf16.mxu0 %v5442
        %7906 = vmatpush2.bf16.msra.mxu0 %v5441
        %7907 = vmatprep.subr.bf16.mxu0 %v5438
        %7908 = vmatpush2.bf16.msra.mxu0 %v5437
        %7909 = vmatprep.mubr.bf16.mxu0 %v656
        %7910 = vmatmul.mubr.bf16.gmra.mxu0 %v655
        %v7911 = vpop.f32.mrf.mxu0
        %v7912 = vadd.f32 %v7871, %v7911
        %v7913 = vpop.f32.mrf.mxu0
        %v7914 = vadd.f32 %v7873, %v7913
        %v7915 = vpop.f32.mrf.mxu0
        %v7916 = vpop.f32.mrf.mxu0
        %7917 = vdwg.mxu0
        %7918 = vmatprep.subr.bf16.mxu0 %v5498
        %7919 = vmatpush1.bf16.msra.mxu0 %v5497
        %7920 = vmatprep.subr.bf16.mxu0 %v5494
        %7921 = vmatpush1.bf16.msra.mxu0 %v5493
        %7922 = vmatprep.subr.bf16.mxu0 %v5490
        %7923 = vmatpush1.bf16.msra.mxu0 %v5489
        %7924 = vmatprep.subr.bf16.mxu0 %v5486
        %7925 = vmatpush1.bf16.msra.mxu0 %v5485
        %7926 = vmatprep.subr.bf16.mxu0 %v5482
        %7927 = vmatpush1.bf16.msra.mxu0 %v5481
        %7928 = vmatprep.subr.bf16.mxu0 %v5478
        %7929 = vmatpush1.bf16.msra.mxu0 %v5477
        %7930 = vmatprep.subr.bf16.mxu0 %v5474
        %7931 = vmatpush1.bf16.msra.mxu0 %v5473
        %7932 = vmatprep.subr.bf16.mxu0 %v5470
        %7933 = vmatpush1.bf16.msra.mxu0 %v5469
        %7934 = vmatprep.subr.bf16.mxu0 %v5530
        %7935 = vmatpush2.bf16.msra.mxu0 %v5529
        %7936 = vmatprep.subr.bf16.mxu0 %v5526
        %7937 = vmatpush2.bf16.msra.mxu0 %v5525
        %7938 = vmatprep.subr.bf16.mxu0 %v5522
        %7939 = vmatpush2.bf16.msra.mxu0 %v5521
        %7940 = vmatprep.subr.bf16.mxu0 %v5518
        %7941 = vmatpush2.bf16.msra.mxu0 %v5517
        %7942 = vmatprep.subr.bf16.mxu0 %v5514
        %7943 = vmatpush2.bf16.msra.mxu0 %v5513
        %7944 = vmatprep.subr.bf16.mxu0 %v5510
        %7945 = vmatpush2.bf16.msra.mxu0 %v5509
        %7946 = vmatprep.subr.bf16.mxu0 %v5506
        %7947 = vmatpush2.bf16.msra.mxu0 %v5505
        %7948 = vmatprep.subr.bf16.mxu0 %v5502
        %7949 = vmatpush2.bf16.msra.mxu0 %v5501
        %7950 = vmatprep.mubr.bf16.mxu0 %v658
        %7951 = vmatmul.mubr.bf16.gmra.mxu0 %v657
        %v7952 = vpop.f32.mrf.mxu0
        %v7953 = vadd.f32 %v7912, %v7952
        %v7954 = vpop.f32.mrf.mxu0
        %v7955 = vadd.f32 %v7914, %v7954
        %v7956 = vpop.f32.mrf.mxu0
        %v7957 = vpop.f32.mrf.mxu0
        %7958 = vdwg.mxu0
        %7959 = vmatprep.subr.bf16.mxu0 %v5562
        %7960 = vmatpush1.bf16.msra.mxu0 %v5561
        %7961 = vmatprep.subr.bf16.mxu0 %v5558
        %7962 = vmatpush1.bf16.msra.mxu0 %v5557
        %7963 = vmatprep.subr.bf16.mxu0 %v5554
        %7964 = vmatpush1.bf16.msra.mxu0 %v5553
        %7965 = vmatprep.subr.bf16.mxu0 %v5550
        %7966 = vmatpush1.bf16.msra.mxu0 %v5549
        %7967 = vmatprep.subr.bf16.mxu0 %v5546
        %7968 = vmatpush1.bf16.msra.mxu0 %v5545
        %7969 = vmatprep.subr.bf16.mxu0 %v5542
        %7970 = vmatpush1.bf16.msra.mxu0 %v5541
        %7971 = vmatprep.subr.bf16.mxu0 %v5538
        %7972 = vmatpush1.bf16.msra.mxu0 %v5537
        %7973 = vmatprep.subr.bf16.mxu0 %v5534
        %7974 = vmatpush1.bf16.msra.mxu0 %v5533
        %7975 = vmatprep.subr.bf16.mxu0 %v5594
        %7976 = vmatpush2.bf16.msra.mxu0 %v5593
        %7977 = vmatprep.subr.bf16.mxu0 %v5590
        %7978 = vmatpush2.bf16.msra.mxu0 %v5589
        %7979 = vmatprep.subr.bf16.mxu0 %v5586
        %7980 = vmatpush2.bf16.msra.mxu0 %v5585
        %7981 = vmatprep.subr.bf16.mxu0 %v5582
        %7982 = vmatpush2.bf16.msra.mxu0 %v5581
        %7983 = vmatprep.subr.bf16.mxu0 %v5578
        %7984 = vmatpush2.bf16.msra.mxu0 %v5577
        %7985 = vmatprep.subr.bf16.mxu0 %v5574
        %7986 = vmatpush2.bf16.msra.mxu0 %v5573
        %7987 = vmatprep.subr.bf16.mxu0 %v5570
        %7988 = vmatpush2.bf16.msra.mxu0 %v5569
        %7989 = vmatprep.subr.bf16.mxu0 %v5566
        %7990 = vmatpush2.bf16.msra.mxu0 %v5565
        %7991 = vmatprep.mubr.bf16.mxu0 %v660
        %7992 = vmatmul.mubr.bf16.gmra.mxu0 %v659
        %v7993 = vpop.f32.mrf.mxu0
        %v7994 = vadd.f32 %v7953, %v7993
        %v7995 = vpop.f32.mrf.mxu0
        %v7996 = vadd.f32 %v7955, %v7995
        %v7997 = vpop.f32.mrf.mxu0
        %v7998 = vpop.f32.mrf.mxu0
        %7999 = vdwg.mxu0
        %8000 = vmatprep.subr.bf16.mxu0 %v5626
        %8001 = vmatpush1.bf16.msra.mxu0 %v5625
        %8002 = vmatprep.subr.bf16.mxu0 %v5622
        %8003 = vmatpush1.bf16.msra.mxu0 %v5621
        %8004 = vmatprep.subr.bf16.mxu0 %v5618
        %8005 = vmatpush1.bf16.msra.mxu0 %v5617
        %8006 = vmatprep.subr.bf16.mxu0 %v5614
        %8007 = vmatpush1.bf16.msra.mxu0 %v5613
        %8008 = vmatprep.subr.bf16.mxu0 %v5610
        %8009 = vmatpush1.bf16.msra.mxu0 %v5609
        %8010 = vmatprep.subr.bf16.mxu0 %v5606
        %8011 = vmatpush1.bf16.msra.mxu0 %v5605
        %8012 = vmatprep.subr.bf16.mxu0 %v5602
        %8013 = vmatpush1.bf16.msra.mxu0 %v5601
        %8014 = vmatprep.subr.bf16.mxu0 %v5598
        %8015 = vmatpush1.bf16.msra.mxu0 %v5597
        %8016 = vmatprep.subr.bf16.mxu0 %v5658
        %8017 = vmatpush2.bf16.msra.mxu0 %v5657
        %8018 = vmatprep.subr.bf16.mxu0 %v5654
        %8019 = vmatpush2.bf16.msra.mxu0 %v5653
        %8020 = vmatprep.subr.bf16.mxu0 %v5650
        %8021 = vmatpush2.bf16.msra.mxu0 %v5649
        %8022 = vmatprep.subr.bf16.mxu0 %v5646
        %8023 = vmatpush2.bf16.msra.mxu0 %v5645
        %8024 = vmatprep.subr.bf16.mxu0 %v5642
        %8025 = vmatpush2.bf16.msra.mxu0 %v5641
        %8026 = vmatprep.subr.bf16.mxu0 %v5638
        %8027 = vmatpush2.bf16.msra.mxu0 %v5637
        %8028 = vmatprep.subr.bf16.mxu0 %v5634
        %8029 = vmatpush2.bf16.msra.mxu0 %v5633
        %8030 = vmatprep.subr.bf16.mxu0 %v5630
        %8031 = vmatpush2.bf16.msra.mxu0 %v5629
        %8032 = vmatprep.mubr.bf16.mxu0 %v662
        %8033 = vmatmul.mubr.bf16.gmra.mxu0 %v661
        %v8034 = vpop.f32.mrf.mxu0
        %v8035 = vadd.f32 %v7994, %v8034
        %v8036 = vpop.f32.mrf.mxu0
        %v8037 = vadd.f32 %v7996, %v8036
        %v8038 = vpop.f32.mrf.mxu0
        %v8039 = vpop.f32.mrf.mxu0
        %8040 = vdwg.mxu0
        %8041 = vmatprep.subr.bf16.mxu0 %v5690
        %8042 = vmatpush1.bf16.msra.mxu0 %v5689
        %8043 = vmatprep.subr.bf16.mxu0 %v5686
        %8044 = vmatpush1.bf16.msra.mxu0 %v5685
        %8045 = vmatprep.subr.bf16.mxu0 %v5682
        %8046 = vmatpush1.bf16.msra.mxu0 %v5681
        %8047 = vmatprep.subr.bf16.mxu0 %v5678
        %8048 = vmatpush1.bf16.msra.mxu0 %v5677
        %8049 = vmatprep.subr.bf16.mxu0 %v5674
        %8050 = vmatpush1.bf16.msra.mxu0 %v5673
        %8051 = vmatprep.subr.bf16.mxu0 %v5670
        %8052 = vmatpush1.bf16.msra.mxu0 %v5669
        %8053 = vmatprep.subr.bf16.mxu0 %v5666
        %8054 = vmatpush1.bf16.msra.mxu0 %v5665
        %8055 = vmatprep.subr.bf16.mxu0 %v5662
        %8056 = vmatpush1.bf16.msra.mxu0 %v5661
        %8057 = vmatprep.subr.bf16.mxu0 %v5722
        %8058 = vmatpush2.bf16.msra.mxu0 %v5721
        %8059 = vmatprep.subr.bf16.mxu0 %v5718
        %8060 = vmatpush2.bf16.msra.mxu0 %v5717
        %8061 = vmatprep.subr.bf16.mxu0 %v5714
        %8062 = vmatpush2.bf16.msra.mxu0 %v5713
        %8063 = vmatprep.subr.bf16.mxu0 %v5710
        %8064 = vmatpush2.bf16.msra.mxu0 %v5709
        %8065 = vmatprep.subr.bf16.mxu0 %v5706
        %8066 = vmatpush2.bf16.msra.mxu0 %v5705
        %8067 = vmatprep.subr.bf16.mxu0 %v5702
        %8068 = vmatpush2.bf16.msra.mxu0 %v5701
        %8069 = vmatprep.subr.bf16.mxu0 %v5698
        %8070 = vmatpush2.bf16.msra.mxu0 %v5697
        %8071 = vmatprep.subr.bf16.mxu0 %v5694
        %8072 = vmatpush2.bf16.msra.mxu0 %v5693
        %8073 = vmatprep.mubr.bf16.mxu0 %v664
        %8074 = vmatmul.mubr.bf16.gmra.mxu0 %v663
        %v8075 = vpop.f32.mrf.mxu0
        %v8076 = vadd.f32 %v8035, %v8075
        %v8077 = vpop.f32.mrf.mxu0
        %v8078 = vadd.f32 %v8037, %v8077
        %v8079 = vpop.f32.mrf.mxu0
        %v8080 = vpop.f32.mrf.mxu0
        %8081 = vdwg.mxu0
        %8082 = vmatprep.subr.bf16.mxu0 %v5754
        %8083 = vmatpush1.bf16.msra.mxu0 %v5753
        %8084 = vmatprep.subr.bf16.mxu0 %v5750
        %8085 = vmatpush1.bf16.msra.mxu0 %v5749
        %8086 = vmatprep.subr.bf16.mxu0 %v5746
        %8087 = vmatpush1.bf16.msra.mxu0 %v5745
        %8088 = vmatprep.subr.bf16.mxu0 %v5742
        %8089 = vmatpush1.bf16.msra.mxu0 %v5741
        %8090 = vmatprep.subr.bf16.mxu0 %v5738
        %8091 = vmatpush1.bf16.msra.mxu0 %v5737
        %8092 = vmatprep.subr.bf16.mxu0 %v5734
        %8093 = vmatpush1.bf16.msra.mxu0 %v5733
        %8094 = vmatprep.subr.bf16.mxu0 %v5730
        %8095 = vmatpush1.bf16.msra.mxu0 %v5729
        %8096 = vmatprep.subr.bf16.mxu0 %v5726
        %8097 = vmatpush1.bf16.msra.mxu0 %v5725
        %8098 = vmatprep.subr.bf16.mxu0 %v5786
        %8099 = vmatpush2.bf16.msra.mxu0 %v5785
        %8100 = vmatprep.subr.bf16.mxu0 %v5782
        %8101 = vmatpush2.bf16.msra.mxu0 %v5781
        %8102 = vmatprep.subr.bf16.mxu0 %v5778
        %8103 = vmatpush2.bf16.msra.mxu0 %v5777
        %8104 = vmatprep.subr.bf16.mxu0 %v5774
        %8105 = vmatpush2.bf16.msra.mxu0 %v5773
        %8106 = vmatprep.subr.bf16.mxu0 %v5770
        %8107 = vmatpush2.bf16.msra.mxu0 %v5769
        %8108 = vmatprep.subr.bf16.mxu0 %v5766
        %8109 = vmatpush2.bf16.msra.mxu0 %v5765
        %8110 = vmatprep.subr.bf16.mxu0 %v5762
        %8111 = vmatpush2.bf16.msra.mxu0 %v5761
        %8112 = vmatprep.subr.bf16.mxu0 %v5758
        %8113 = vmatpush2.bf16.msra.mxu0 %v5757
        %8114 = vmatprep.mubr.bf16.mxu0 %v666
        %8115 = vmatmul.mubr.bf16.gmra.mxu0 %v665
        %v8116 = vpop.f32.mrf.mxu0
        %v8117 = vadd.f32 %v8076, %v8116
        %v8118 = vpop.f32.mrf.mxu0
        %v8119 = vadd.f32 %v8078, %v8118
        %v8120 = vpop.f32.mrf.mxu0
        %v8121 = vpop.f32.mrf.mxu0
        %8122 = vdwg.mxu0
        %v8123 = vadd.f32 %v599, %v7461
        %v8124 = vadd.f32 %v600, %v7463
        %v8125 = vadd.f32 %v601, %v8117
        %v8126 = vadd.f32 %v602, %v8119
        %8127 = vst [vmem:[#allocation2] sm:$0xff] %v8123
        %8128 = vst [vmem:[#allocation2 + $0x8] sm:$0xff] %v8124
        %8129 = vst [vmem:[#allocation2 + $0x10] sm:$0xff] %v8125
        %8130 = vst [vmem:[#allocation2 + $0x18] sm:$0xff] %v8126
        %p8131 = scmp.eq.s32.totalorder %s28, 2
        // Predicated region
        $region85: #{discriminator_forward.1} parent=55 // pred_check
          %p8132 = pneg %p8131
        $region86: #{discriminator_forward.1} parent=55 // pred_check_branch
          %8134 = sbr.rel (%p8132) target = $region88
        $region87: #{discriminator_forward.1} parent=55 // pred_region
          %v8135 = vld [vmem:[#allocation2] sm:$0xff]
          %v8136 = vld [vmem:[#allocation2 + $0x8] sm:$0xff]
          %v8137 = vld [vmem:[#allocation2 + $0x10] sm:$0xff]
          %v8138 = vld [vmem:[#allocation2 + $0x18] sm:$0xff]
          %vm8139 = vcmp.ge.f32.partialorder %v8135, 0.0
          %vm8140 = vcmp.ge.f32.partialorder %v8136, 0.0
          %vm8141 = vcmp.ge.f32.partialorder %v8137, 0.0
          %vm8142 = vcmp.ge.f32.partialorder %v8138, 0.0
          %v8143 = vmul.f32 %v8135, 0.2
          %v8144 = vmul.f32 %v8136, 0.2
          %v8145 = vmul.f32 %v8137, 0.2
          %v8146 = vmul.f32 %v8138, 0.2
          %v8147 = vsel %vm8139, %v8135, %v8143
          %v8148 = vsel %vm8140, %v8136, %v8144
          %v8149 = vsel %vm8141, %v8137, %v8145
          %v8150 = vsel %vm8142, %v8138, %v8146
          %v8151 = vpack.c.bf16 %v8147, %v8147
          %v8152 = vpack.c.bf16 %v8148, %v8148
          %v8153 = vpack.c.bf16 %v8149, %v8149
          %v8154 = vpack.c.bf16 %v8150, %v8150
          %v8155 = vld [vmem:[#allocation9] sm:$0xff]
          %v8156 = vld [vmem:[#allocation9 + $0x8] sm:$0xff]
          %v8157 = vld [vmem:[#allocation9 + $0x10] sm:$0xff]
          %v8158 = vld [vmem:[#allocation9 + $0x18] sm:$0xff]
          %v8159 = vld [vmem:[#allocation9 + $0x20] sm:$0xff]
          %v8160 = vld [vmem:[#allocation9 + $0x28] sm:$0xff]
          %v8161 = vld [vmem:[#allocation9 + $0x30] sm:$0xff]
          %v8162 = vld [vmem:[#allocation9 + $0x38] sm:$0xff]
          %v8163 = vld [vmem:[#allocation9 + $0x40] sm:$0xff]
          %v8164 = vld [vmem:[#allocation9 + $0x48] sm:$0xff]
          %v8165 = vld [vmem:[#allocation9 + $0x50] sm:$0xff]
          %v8166 = vld [vmem:[#allocation9 + $0x58] sm:$0xff]
          %v8167 = vld [vmem:[#allocation9 + $0x60] sm:$0xff]
          %v8168 = vld [vmem:[#allocation9 + $0x68] sm:$0xff]
          %v8169 = vld [vmem:[#allocation9 + $0x70] sm:$0xff]
          %v8170 = vld [vmem:[#allocation9 + $0x78] sm:$0xff]
          %v8171 = vld [vmem:[#allocation9 + $0x80] sm:$0xff]
          %v8172 = vld [vmem:[#allocation9 + $0x88] sm:$0xff]
          %v8173 = vld [vmem:[#allocation9 + $0x90] sm:$0xff]
          %v8174 = vld [vmem:[#allocation9 + $0x98] sm:$0xff]
          %v8175 = vld [vmem:[#allocation9 + $0xa0] sm:$0xff]
          %v8176 = vld [vmem:[#allocation9 + $0xa8] sm:$0xff]
          %v8177 = vld [vmem:[#allocation9 + $0xb0] sm:$0xff]
          %v8178 = vld [vmem:[#allocation9 + $0xb8] sm:$0xff]
          %v8179 = vld [vmem:[#allocation9 + $0xc0] sm:$0xff]
          %v8180 = vld [vmem:[#allocation9 + $0xc8] sm:$0xff]
          %v8181 = vld [vmem:[#allocation9 + $0xd0] sm:$0xff]
          %v8182 = vld [vmem:[#allocation9 + $0xd8] sm:$0xff]
          %v8183 = vld [vmem:[#allocation9 + $0xe0] sm:$0xff]
          %v8184 = vld [vmem:[#allocation9 + $0xe8] sm:$0xff]
          %v8185 = vld [vmem:[#allocation9 + $0xf0] sm:$0xff]
          %v8186 = vld [vmem:[#allocation9 + $0xf8] sm:$0xff]
          %v8187 = vld [vmem:[#allocation9 + $0x100] sm:$0xff]
          %v8188 = vld [vmem:[#allocation9 + $0x108] sm:$0xff]
          %v8189 = vld [vmem:[#allocation9 + $0x110] sm:$0xff]
          %v8190 = vld [vmem:[#allocation9 + $0x118] sm:$0xff]
          %v8191 = vld [vmem:[#allocation9 + $0x120] sm:$0xff]
          %v8192 = vld [vmem:[#allocation9 + $0x128] sm:$0xff]
          %v8193 = vld [vmem:[#allocation9 + $0x130] sm:$0xff]
          %v8194 = vld [vmem:[#allocation9 + $0x138] sm:$0xff]
          %v8195 = vld [vmem:[#allocation9 + $0x140] sm:$0xff]
          %v8196 = vld [vmem:[#allocation9 + $0x148] sm:$0xff]
          %v8197 = vld [vmem:[#allocation9 + $0x150] sm:$0xff]
          %v8198 = vld [vmem:[#allocation9 + $0x158] sm:$0xff]
          %v8199 = vld [vmem:[#allocation9 + $0x160] sm:$0xff]
          %v8200 = vld [vmem:[#allocation9 + $0x168] sm:$0xff]
          %v8201 = vld [vmem:[#allocation9 + $0x170] sm:$0xff]
          %v8202 = vld [vmem:[#allocation9 + $0x178] sm:$0xff]
          %v8203 = vld [vmem:[#allocation9 + $0x180] sm:$0xff]
          %v8204 = vld [vmem:[#allocation9 + $0x188] sm:$0xff]
          %v8205 = vld [vmem:[#allocation9 + $0x190] sm:$0xff]
          %v8206 = vld [vmem:[#allocation9 + $0x198] sm:$0xff]
          %v8207 = vld [vmem:[#allocation9 + $0x1a0] sm:$0xff]
          %v8208 = vld [vmem:[#allocation9 + $0x1a8] sm:$0xff]
          %v8209 = vld [vmem:[#allocation9 + $0x1b0] sm:$0xff]
          %v8210 = vld [vmem:[#allocation9 + $0x1b8] sm:$0xff]
          %v8211 = vld [vmem:[#allocation9 + $0x1c0] sm:$0xff]
          %v8212 = vld [vmem:[#allocation9 + $0x1c8] sm:$0xff]
          %v8213 = vld [vmem:[#allocation9 + $0x1d0] sm:$0xff]
          %v8214 = vld [vmem:[#allocation9 + $0x1d8] sm:$0xff]
          %v8215 = vld [vmem:[#allocation9 + $0x1e0] sm:$0xff]
          %v8216 = vld [vmem:[#allocation9 + $0x1e8] sm:$0xff]
          %v8217 = vld [vmem:[#allocation9 + $0x1f0] sm:$0xff]
          %v8218 = vld [vmem:[#allocation9 + $0x1f8] sm:$0xff]
          %v8219 = vld [vmem:[#allocation11] sm:$0x3]
          %v8221 = vlaneseq
          %v8222 = vshrl.u32 %v8221, 7
          %v8223 = vsub.s32 0, %v8222
          %v8224 = vrot.slane %v8219, %v8223
          %v8225 = vlaneseq
          %v8226 = vshrl.u32 %v8225, 7
          %v8227 = vsub.s32 1, %v8226
          %v8228 = vrot.slane %v8219, %v8227
          %v8295 = vunpack.c.l.b16 %v8155
          %v8296 = vunpack.c.h.b16 %v8155
          %v8297 = vunpack.c.l.b16 %v8156
          %v8298 = vunpack.c.h.b16 %v8156
          %v8299 = vunpack.c.l.b16 %v8157
          %v8300 = vunpack.c.h.b16 %v8157
          %v8301 = vunpack.c.l.b16 %v8158
          %v8302 = vunpack.c.h.b16 %v8158
          %v8303 = vunpack.c.l.b16 %v8159
          %v8304 = vunpack.c.h.b16 %v8159
          %v8305 = vunpack.c.l.b16 %v8160
          %v8306 = vunpack.c.h.b16 %v8160
          %v8307 = vunpack.c.l.b16 %v8161
          %v8308 = vunpack.c.h.b16 %v8161
          %v8309 = vunpack.c.l.b16 %v8162
          %v8310 = vunpack.c.h.b16 %v8162
          %v8311 = vunpack.c.l.b16 %v8163
          %v8312 = vunpack.c.h.b16 %v8163
          %v8313 = vunpack.c.l.b16 %v8164
          %v8314 = vunpack.c.h.b16 %v8164
          %v8315 = vunpack.c.l.b16 %v8165
          %v8316 = vunpack.c.h.b16 %v8165
          %v8317 = vunpack.c.l.b16 %v8166
          %v8318 = vunpack.c.h.b16 %v8166
          %v8319 = vunpack.c.l.b16 %v8167
          %v8320 = vunpack.c.h.b16 %v8167
          %v8321 = vunpack.c.l.b16 %v8168
          %v8322 = vunpack.c.h.b16 %v8168
          %v8323 = vunpack.c.l.b16 %v8169
          %v8324 = vunpack.c.h.b16 %v8169
          %v8325 = vunpack.c.l.b16 %v8170
          %v8326 = vunpack.c.h.b16 %v8170
          %v8327 = vunpack.c.l.b16 %v8171
          %v8328 = vunpack.c.h.b16 %v8171
          %v8329 = vunpack.c.l.b16 %v8172
          %v8330 = vunpack.c.h.b16 %v8172
          %v8331 = vunpack.c.l.b16 %v8173
          %v8332 = vunpack.c.h.b16 %v8173
          %v8333 = vunpack.c.l.b16 %v8174
          %v8334 = vunpack.c.h.b16 %v8174
          %v8335 = vunpack.c.l.b16 %v8175
          %v8336 = vunpack.c.h.b16 %v8175
          %v8337 = vunpack.c.l.b16 %v8176
          %v8338 = vunpack.c.h.b16 %v8176
          %v8339 = vunpack.c.l.b16 %v8177
          %v8340 = vunpack.c.h.b16 %v8177
          %v8341 = vunpack.c.l.b16 %v8178
          %v8342 = vunpack.c.h.b16 %v8178
          %v8343 = vunpack.c.l.b16 %v8179
          %v8344 = vunpack.c.h.b16 %v8179
          %v8345 = vunpack.c.l.b16 %v8180
          %v8346 = vunpack.c.h.b16 %v8180
          %v8347 = vunpack.c.l.b16 %v8181
          %v8348 = vunpack.c.h.b16 %v8181
          %v8349 = vunpack.c.l.b16 %v8182
          %v8350 = vunpack.c.h.b16 %v8182
          %v8351 = vunpack.c.l.b16 %v8183
          %v8352 = vunpack.c.h.b16 %v8183
          %v8353 = vunpack.c.l.b16 %v8184
          %v8354 = vunpack.c.h.b16 %v8184
          %v8355 = vunpack.c.l.b16 %v8185
          %v8356 = vunpack.c.h.b16 %v8185
          %v8357 = vunpack.c.l.b16 %v8186
          %v8358 = vunpack.c.h.b16 %v8186
          %v8359 = vunpack.c.l.b16 %v8187
          %v8360 = vunpack.c.h.b16 %v8187
          %v8361 = vunpack.c.l.b16 %v8188
          %v8362 = vunpack.c.h.b16 %v8188
          %v8363 = vunpack.c.l.b16 %v8189
          %v8364 = vunpack.c.h.b16 %v8189
          %v8365 = vunpack.c.l.b16 %v8190
          %v8366 = vunpack.c.h.b16 %v8190
          %v8367 = vunpack.c.l.b16 %v8191
          %v8368 = vunpack.c.h.b16 %v8191
          %v8369 = vunpack.c.l.b16 %v8192
          %v8370 = vunpack.c.h.b16 %v8192
          %v8371 = vunpack.c.l.b16 %v8193
          %v8372 = vunpack.c.h.b16 %v8193
          %v8373 = vunpack.c.l.b16 %v8194
          %v8374 = vunpack.c.h.b16 %v8194
          %v8375 = vunpack.c.l.b16 %v8195
          %v8376 = vunpack.c.h.b16 %v8195
          %v8377 = vunpack.c.l.b16 %v8196
          %v8378 = vunpack.c.h.b16 %v8196
          %v8379 = vunpack.c.l.b16 %v8197
          %v8380 = vunpack.c.h.b16 %v8197
          %v8381 = vunpack.c.l.b16 %v8198
          %v8382 = vunpack.c.h.b16 %v8198
          %v8383 = vunpack.c.l.b16 %v8199
          %v8384 = vunpack.c.h.b16 %v8199
          %v8385 = vunpack.c.l.b16 %v8200
          %v8386 = vunpack.c.h.b16 %v8200
          %v8387 = vunpack.c.l.b16 %v8201
          %v8388 = vunpack.c.h.b16 %v8201
          %v8389 = vunpack.c.l.b16 %v8202
          %v8390 = vunpack.c.h.b16 %v8202
          %v8391 = vunpack.c.l.b16 %v8203
          %v8392 = vunpack.c.h.b16 %v8203
          %v8393 = vunpack.c.l.b16 %v8204
          %v8394 = vunpack.c.h.b16 %v8204
          %v8395 = vunpack.c.l.b16 %v8205
          %v8396 = vunpack.c.h.b16 %v8205
          %v8397 = vunpack.c.l.b16 %v8206
          %v8398 = vunpack.c.h.b16 %v8206
          %v8399 = vunpack.c.l.b16 %v8207
          %v8400 = vunpack.c.h.b16 %v8207
          %v8401 = vunpack.c.l.b16 %v8208
          %v8402 = vunpack.c.h.b16 %v8208
          %v8403 = vunpack.c.l.b16 %v8209
          %v8404 = vunpack.c.h.b16 %v8209
          %v8405 = vunpack.c.l.b16 %v8210
          %v8406 = vunpack.c.h.b16 %v8210
          %v8407 = vunpack.c.l.b16 %v8211
          %v8408 = vunpack.c.h.b16 %v8211
          %v8409 = vunpack.c.l.b16 %v8212
          %v8410 = vunpack.c.h.b16 %v8212
          %v8411 = vunpack.c.l.b16 %v8213
          %v8412 = vunpack.c.h.b16 %v8213
          %v8413 = vunpack.c.l.b16 %v8214
          %v8414 = vunpack.c.h.b16 %v8214
          %v8415 = vunpack.c.l.b16 %v8215
          %v8416 = vunpack.c.h.b16 %v8215
          %v8417 = vunpack.c.l.b16 %v8216
          %v8418 = vunpack.c.h.b16 %v8216
          %v8419 = vunpack.c.l.b16 %v8217
          %v8420 = vunpack.c.h.b16 %v8217
          %v8421 = vunpack.c.l.b16 %v8218
          %v8422 = vunpack.c.h.b16 %v8218
          %v8423 = vpack.c.b16 %v8297, %v8295
          %v8424 = vpack.c.b16 %v8298, %v8296
          %v8425 = vpack.c.b16 %v8301, %v8299
          %v8426 = vpack.c.b16 %v8302, %v8300
          %v8427 = vpack.c.b16 %v8305, %v8303
          %v8428 = vpack.c.b16 %v8306, %v8304
          %v8429 = vpack.c.b16 %v8309, %v8307
          %v8430 = vpack.c.b16 %v8310, %v8308
          %v8431 = vpack.c.b16 %v8313, %v8311
          %v8432 = vpack.c.b16 %v8314, %v8312
          %v8433 = vpack.c.b16 %v8317, %v8315
          %v8434 = vpack.c.b16 %v8318, %v8316
          %v8435 = vpack.c.b16 %v8321, %v8319
          %v8436 = vpack.c.b16 %v8322, %v8320
          %v8437 = vpack.c.b16 %v8325, %v8323
          %v8438 = vpack.c.b16 %v8326, %v8324
          %v8439 = vpack.c.b16 %v8329, %v8327
          %v8440 = vpack.c.b16 %v8330, %v8328
          %v8441 = vpack.c.b16 %v8333, %v8331
          %v8442 = vpack.c.b16 %v8334, %v8332
          %v8443 = vpack.c.b16 %v8337, %v8335
          %v8444 = vpack.c.b16 %v8338, %v8336
          %v8445 = vpack.c.b16 %v8341, %v8339
          %v8446 = vpack.c.b16 %v8342, %v8340
          %v8447 = vpack.c.b16 %v8345, %v8343
          %v8448 = vpack.c.b16 %v8346, %v8344
          %v8449 = vpack.c.b16 %v8349, %v8347
          %v8450 = vpack.c.b16 %v8350, %v8348
          %v8451 = vpack.c.b16 %v8353, %v8351
          %v8452 = vpack.c.b16 %v8354, %v8352
          %v8453 = vpack.c.b16 %v8357, %v8355
          %v8454 = vpack.c.b16 %v8358, %v8356
          %v8455 = vpack.c.b16 %v8361, %v8359
          %v8456 = vpack.c.b16 %v8362, %v8360
          %v8457 = vpack.c.b16 %v8365, %v8363
          %v8458 = vpack.c.b16 %v8366, %v8364
          %v8459 = vpack.c.b16 %v8369, %v8367
          %v8460 = vpack.c.b16 %v8370, %v8368
          %v8461 = vpack.c.b16 %v8373, %v8371
          %v8462 = vpack.c.b16 %v8374, %v8372
          %v8463 = vpack.c.b16 %v8377, %v8375
          %v8464 = vpack.c.b16 %v8378, %v8376
          %v8465 = vpack.c.b16 %v8381, %v8379
          %v8466 = vpack.c.b16 %v8382, %v8380
          %v8467 = vpack.c.b16 %v8385, %v8383
          %v8468 = vpack.c.b16 %v8386, %v8384
          %v8469 = vpack.c.b16 %v8389, %v8387
          %v8470 = vpack.c.b16 %v8390, %v8388
          %v8471 = vpack.c.b16 %v8393, %v8391
          %v8472 = vpack.c.b16 %v8394, %v8392
          %v8473 = vpack.c.b16 %v8397, %v8395
          %v8474 = vpack.c.b16 %v8398, %v8396
          %v8475 = vpack.c.b16 %v8401, %v8399
          %v8476 = vpack.c.b16 %v8402, %v8400
          %v8477 = vpack.c.b16 %v8405, %v8403
          %v8478 = vpack.c.b16 %v8406, %v8404
          %v8479 = vpack.c.b16 %v8409, %v8407
          %v8480 = vpack.c.b16 %v8410, %v8408
          %v8481 = vpack.c.b16 %v8413, %v8411
          %v8482 = vpack.c.b16 %v8414, %v8412
          %v8483 = vpack.c.b16 %v8417, %v8415
          %v8484 = vpack.c.b16 %v8418, %v8416
          %v8485 = vpack.c.b16 %v8421, %v8419
          %v8486 = vpack.c.b16 %v8422, %v8420
          %8551 = vmatprep.subr.bf16.mxu0 %v8438
          %8552 = vmatpush1.bf16.msra.mxu0 %v8437
          %8553 = vmatprep.subr.bf16.mxu0 %v8436
          %8554 = vmatpush1.bf16.msra.mxu0 %v8435
          %8555 = vmatprep.subr.bf16.mxu0 %v8434
          %8556 = vmatpush1.bf16.msra.mxu0 %v8433
          %8557 = vmatprep.subr.bf16.mxu0 %v8432
          %8558 = vmatpush1.bf16.msra.mxu0 %v8431
          %8559 = vmatprep.subr.bf16.mxu0 %v8430
          %8560 = vmatpush1.bf16.msra.mxu0 %v8429
          %8561 = vmatprep.subr.bf16.mxu0 %v8428
          %8562 = vmatpush1.bf16.msra.mxu0 %v8427
          %8563 = vmatprep.subr.bf16.mxu0 %v8426
          %8564 = vmatpush1.bf16.msra.mxu0 %v8425
          %8565 = vmatprep.subr.bf16.mxu0 %v8424
          %8566 = vmatpush1.bf16.msra.mxu0 %v8423
          %8567 = vmatprep.subr.bf16.mxu0 %v8454
          %8568 = vmatpush2.bf16.msra.mxu0 %v8453
          %8569 = vmatprep.subr.bf16.mxu0 %v8452
          %8570 = vmatpush2.bf16.msra.mxu0 %v8451
          %8571 = vmatprep.subr.bf16.mxu0 %v8450
          %8572 = vmatpush2.bf16.msra.mxu0 %v8449
          %8573 = vmatprep.subr.bf16.mxu0 %v8448
          %8574 = vmatpush2.bf16.msra.mxu0 %v8447
          %8575 = vmatprep.subr.bf16.mxu0 %v8446
          %8576 = vmatpush2.bf16.msra.mxu0 %v8445
          %8577 = vmatprep.subr.bf16.mxu0 %v8444
          %8578 = vmatpush2.bf16.msra.mxu0 %v8443
          %8579 = vmatprep.subr.bf16.mxu0 %v8442
          %8580 = vmatpush2.bf16.msra.mxu0 %v8441
          %8581 = vmatprep.subr.bf16.mxu0 %v8440
          %8582 = vmatpush2.bf16.msra.mxu0 %v8439
          %8583 = vmatprep.mubr.bf16.mxu0 %v8152
          %8584 = vmatmul.mubr.bf16.gmra.mxu0 %v8151
          %v8585 = vpop.f32.mrf.mxu0
          %v8586 = vadd.f32 %v8224, %v8585
          %v8587 = vpop.f32.mrf.mxu0
          %v8588 = vadd.f32 %v8228, %v8587
          %v8589 = vpop.f32.mrf.mxu0
          %v8590 = vpop.f32.mrf.mxu0
          %8591 = vdwg.mxu0
          %8592 = vmatprep.subr.bf16.mxu0 %v8470
          %8593 = vmatpush1.bf16.msra.mxu0 %v8469
          %8594 = vmatprep.subr.bf16.mxu0 %v8468
          %8595 = vmatpush1.bf16.msra.mxu0 %v8467
          %8596 = vmatprep.subr.bf16.mxu0 %v8466
          %8597 = vmatpush1.bf16.msra.mxu0 %v8465
          %8598 = vmatprep.subr.bf16.mxu0 %v8464
          %8599 = vmatpush1.bf16.msra.mxu0 %v8463
          %8600 = vmatprep.subr.bf16.mxu0 %v8462
          %8601 = vmatpush1.bf16.msra.mxu0 %v8461
          %8602 = vmatprep.subr.bf16.mxu0 %v8460
          %8603 = vmatpush1.bf16.msra.mxu0 %v8459
          %8604 = vmatprep.subr.bf16.mxu0 %v8458
          %8605 = vmatpush1.bf16.msra.mxu0 %v8457
          %8606 = vmatprep.subr.bf16.mxu0 %v8456
          %8607 = vmatpush1.bf16.msra.mxu0 %v8455
          %8608 = vmatprep.subr.bf16.mxu0 %v8486
          %8609 = vmatpush2.bf16.msra.mxu0 %v8485
          %8610 = vmatprep.subr.bf16.mxu0 %v8484
          %8611 = vmatpush2.bf16.msra.mxu0 %v8483
          %8612 = vmatprep.subr.bf16.mxu0 %v8482
          %8613 = vmatpush2.bf16.msra.mxu0 %v8481
          %8614 = vmatprep.subr.bf16.mxu0 %v8480
          %8615 = vmatpush2.bf16.msra.mxu0 %v8479
          %8616 = vmatprep.subr.bf16.mxu0 %v8478
          %8617 = vmatpush2.bf16.msra.mxu0 %v8477
          %8618 = vmatprep.subr.bf16.mxu0 %v8476
          %8619 = vmatpush2.bf16.msra.mxu0 %v8475
          %8620 = vmatprep.subr.bf16.mxu0 %v8474
          %8621 = vmatpush2.bf16.msra.mxu0 %v8473
          %8622 = vmatprep.subr.bf16.mxu0 %v8472
          %8623 = vmatpush2.bf16.msra.mxu0 %v8471
          %8624 = vmatprep.mubr.bf16.mxu0 %v8154
          %8625 = vmatmul.mubr.bf16.gmra.mxu0 %v8153
          %v8626 = vpop.f32.mrf.mxu0
          %v8627 = vadd.f32 %v8586, %v8626
          %v8628 = vpop.f32.mrf.mxu0
          %v8629 = vadd.f32 %v8588, %v8628
          %v8630 = vpop.f32.mrf.mxu0
          %v8631 = vpop.f32.mrf.mxu0
          %8632 = vdwg.mxu0
          %vm8633 = vcmp.ge.f32.partialorder %v8627, 0.0
          %vm8634 = vcmp.ge.f32.partialorder %v8629, 0.0
          %v8635 = vmul.f32 %v8627, 0.2
          %v8636 = vmul.f32 %v8629, 0.2
          %v8637 = vsel %vm8633, %v8627, %v8635
          %v8638 = vsel %vm8634, %v8629, %v8636
          %v8639 = vld [vmem:[#allocation12] sm:$0x3]
          %v8641 = vlaneseq
          %v8642 = vshrl.u32 %v8641, 7
          %v8643 = vsub.s32 0, %v8642
          %v8644 = vrot.slane %v8639, %v8643
          %v8645 = vlaneseq
          %v8646 = vshrl.u32 %v8645, 7
          %v8647 = vsub.s32 1, %v8646
          %v8648 = vrot.slane %v8639, %v8647
          %v8651 = vmul.f32 %v8637, %v8644
          %v8652 = vmul.f32 %v8638, %v8648
          %v8653 = vadd.f32 %v8651, %v8652
          %8654 = vadd.xlane.f32.xlu0 %v8653
          %v8655 = vpop.xlane.xlu0 %8654
          %v8656 = vld [vmem:[#allocation3] sm:$0x1]
          %v8658 = vlaneseq
          %v8659 = vshrl.u32 %v8658, 7
          %v8660 = vsub.s32 0, %v8659
          %v8661 = vrot.slane %v8656, %v8660
          %v8663 = vadd.f32 %v8655, %v8661
          %v8664 = vxor.u32 %v8663, 2147483648
          %v8665 = vmul.f32 %v8664, 1.442695
          %v8666 = vpow.pop %v8665
          %v8667 = vadd.f32 %v8666, 1.0
          %v8668 = vrcp.pop %v8667
          %v8669 = vmul.f32 1.0, %v8668
          %vm8670 = vcmask 7168
          %8671 = vst.msk [vmem:[%s9] sm:$0xff] %vm8670, %v8669
        $region88: #{discriminator_forward.1} parent=55 // pred_fallthru
          _
        // Predicated region
        $region89: #{discriminator_forward.1} parent=55 // pred_check
          %p8672 = pneg %p240
        $region90: #{discriminator_forward.1} parent=55 // pred_check_branch
          %8674 = sbr.rel (%p8672) target = $region92
        $region91: #{discriminator_forward.1} parent=55 // pred_region
          _
        $region92: #{discriminator_forward.1} parent=55 // pred_fallthru
          _
        // Predicated region
        $region93: #{discriminator_forward.1} parent=55 // pred_check
          %p8675 = pneg %p240
        $region94: #{discriminator_forward.1} parent=55 // pred_check_branch
          %8677 = sbr.rel (%p8675) target = $region96
        $region95: #{discriminator_forward.1} parent=55 // pred_region
          _
        $region96: #{discriminator_forward.1} parent=55 // pred_fallthru
          _
      $region56: #{discriminator_forward.1} parent=5 // pred_fallthru
        _
      %p8678 = scmp.le.s32.totalorder 2, %s23
      // Predicated region
      $region97: #{discriminator_forward.1} parent=5 // pred_check
        %p8679 = pneg %p8678
      $region98: #{discriminator_forward.1} parent=5 // pred_check_branch
        %8681 = sbr.rel (%p8679) target = $region100
      $region99: #{discriminator_forward.1} parent=5 // pred_region
        %s8682 = ssub.s32 %s23, 2
      $region100: #{discriminator_forward.1} parent=5 // pred_fallthru
        _
    $region6: #{discriminator_forward.1} parent=1 // loop_footer
      %s27 = sadd.s32 1, %s23
    $region7: #{discriminator_forward.1} parent=1 // loop_footer_branch
      %22 = sbr.rel target = $region3
    $region8: #{discriminator_forward.1} parent=1 // loop_exit
      _
    %8683 = vsyncpa [#allocation5], 1
    %s8684 = scalar_lea.sflag [#allocation5], 1
    %8685 = vsyncpa %s8684, 1
    %8686 = vsyncpa [#allocation7], 1
    %8687 = vsyncpa [#allocation10], 1
    %8688 = vsyncpa [#allocation13], 1

</llo_original>
